<compile_context>
chip_gen: v7x
topology: tpu7x:2x2x1
jax: 0.10.0
libtpu: 0.0.40
codegen_flags: <defaults>
</compile_context>

<pallas_src>
import functools

import jax
import jax.numpy as jnp
from jax.experimental import pallas as pl
from jax.experimental.pallas import tpu as pltpu

_DILATIONS = (2, 3, 4, 5)
_K1 = 25          # conv1 kernel size (stride 2, no padding)
_POOL = 4         # MaxPool1d / AdaptiveAvgPool1d factor


# ----------------------------------------------------------------------------
# Fused forward kernel: one grid step == one batch element
# ----------------------------------------------------------------------------
def _fused_forward_kernel(
    Lp, pad,
    # inputs
    patches_ref,                                   # (1, 4*Lp, 25)
    c1w_ref, c1b_ref, c1s_ref, c1t_ref,            # (25,16), (1,16)*3
    m1w_ref, m1b_ref, m1s_ref, m1t_ref,            # (4,48,32), (1,128)*3
    se1w1_ref, se1b1_ref, se1w2_ref, se1b2_ref,    # (128,64),(1,64),(64,128),(1,128)
    m2w_ref, m2b_ref, m2s_ref, m2t_ref,            # (4,384,64), (1,256)*3
    se2w1_ref, se2b1_ref, se2w2_ref, se2b2_ref,    # (256,128),(1,128),(128,256),(1,256)
    fc1w_ref, fc1b_ref, fc2w_ref, fc2b_ref, fc3w_ref, fc3b_ref,
    # output
    out_ref,                                       # (1, 1, out_dim)
    # scratch
    xpad1_ref, cat1_ref, xpad2_ref, cat2_ref,
):
    f32 = jnp.float32

    # ---- conv1 (k=25, stride=2) + ReLU + folded BN for all 4*Lp positions at once ----
    y = jnp.dot(patches_ref[0], c1w_ref[...], preferred_element_type=f32)
    y = jnp.maximum(y + c1b_ref[...], 0.0) * c1s_ref[...] + c1t_ref[...]   # (4*Lp, 16)

    # ---- MaxPool1d(4, 4): phase-major layout -> max of 4 contiguous row blocks ----
    pooled = jnp.maximum(jnp.maximum(y[0:Lp], y[Lp:2 * Lp]),
                         jnp.maximum(y[2 * Lp:3 * Lp], y[3 * Lp:4 * Lp]))  # (Lp, 16)

    def dilated_module(x, xpad_ref, cat_ref, w_ref, b_ref, s_ref, t_ref):
        # x: (Lp, cin).  4 dilated-conv branches written into one lane-dense
        # concat scratch (Lp, 4*cout), then shared bias + ReLU + folded-BN epilogue.
        cin = x.shape[1]
        cout = w_ref.shape[2]
        xpad_ref[...] = jnp.zeros(xpad_ref.shape, f32)       # zero padding rows
        xpad_ref[pad:pad + Lp, :] = x
        for di, d in enumerate(_DILATIONS):
            wd = w_ref[di]                                   # (3*cin, cout)
            acc = jnp.zeros((Lp, cout), f32)
            for k in range(3):                               # taps at offsets -d, 0, +d
                off = pad + (k - 1) * d
                acc = acc + jnp.dot(xpad_ref[off:off + Lp, :],
                                    wd[k * cin:(k + 1) * cin, :],
                                    preferred_element_type=f32)
            cat_ref[:, di * cout:(di + 1) * cout] = acc
        conv = cat_ref[...]                                  # (Lp, 4*cout), lane-dense
        return jnp.maximum(conv + b_ref[...], 0.0) * s_ref[...] + t_ref[...]

    def se_block(x, w1_ref, b1_ref, w2_ref, b2_ref):
        m = jnp.mean(x, axis=0, keepdims=True)               # (1, C)
        h = jnp.maximum(
            jnp.dot(m, w1_ref[...], preferred_element_type=f32) + b1_ref[...], 0.0)
        e = jax.nn.sigmoid(
            jnp.dot(h, w2_ref[...], preferred_element_type=f32) + b2_ref[...])
        return x * e

    f1 = dilated_module(pooled, xpad1_ref, cat1_ref, m1w_ref, m1b_ref, m1s_ref, m1t_ref)
    f1 = se_block(f1, se1w1_ref, se1b1_ref, se1w2_ref, se1b2_ref)
    f2 = dilated_module(f1, xpad2_ref, cat2_ref, m2w_ref, m2b_ref, m2s_ref, m2t_ref)
    f2 = se_block(f2, se2w1_ref, se2b1_ref, se2w2_ref, se2b2_ref)

    # ---- AdaptiveAvgPool1d(4) fused with fc1.  fc1's weight is pre-permuted so its
    #      input index is (pool_pos * C + channel); no in-kernel transpose needed. ----
    q = Lp // _POOL
    C2 = f2.shape[1]
    h1 = fc1b_ref[...]                                       # (1, 512)
    for tt in range(_POOL):
        ap_t = jnp.mean(f2[tt * q:(tt + 1) * q, :], axis=0, keepdims=True)  # (1, C2)
        h1 = h1 + jnp.dot(ap_t, fc1w_ref[tt * C2:(tt + 1) * C2, :],
                          preferred_element_type=f32)
    h1 = jnp.maximum(h1, 0.0)

    # ---- fc2 + ReLU, fc3 (Dropout = identity in eval mode) ----
    h2 = jnp.maximum(
        jnp.dot(h1, fc2w_ref[...], preferred_element_type=f32) + fc2b_ref[...], 0.0)
    out = jnp.dot(h2, fc3w_ref[...], preferred_element_type=f32) + fc3b_ref[...]
    out_ref[0] = out


def _const_spec(shape):
    n = len(shape)
    return pl.BlockSpec(tuple(shape), lambda *_: (0,) * n)


# ----------------------------------------------------------------------------
# Forward wrapper (glue: im2col gather, weight packing, one pallas_call)
# ----------------------------------------------------------------------------
def multi_scale_cnn_forward(params, x_ncw):
    """x_ncw: (B, 1, L) -- PyTorch NCW input layout."""
    B, _, L = x_ncw.shape
    Lout1 = (L - _K1) // 2 + 1            # conv1 output length
    Lp = Lout1 // _POOL                   # length after MaxPool1d(4, 4)
    # TODO(synk): only the evenly-divisible AdaptiveAvgPool1d case is handled.
    assert Lp >= _POOL and Lp % _POOL == 0, Lp

    # im2col for conv1, phase-major within each batch element: row (p*Lp + g) holds
    # the window of conv output position l = 4*g + p, so MaxPool1d(4,4) becomes an
    # elementwise max of 4 contiguous row blocks inside the kernel.
    l_idx = 4 * jnp.arange(Lp)[None, :] + jnp.arange(_POOL)[:, None]       # (4, Lp)
    idx = 2 * l_idx[:, :, None] + jnp.arange(_K1)[None, None, :]           # (4, Lp, 25)
    patches = x_ncw[:, 0, :][:, idx].reshape(B, _POOL * Lp, _K1)

    # Pack the 4 dilation branches of each module: stacked (taps*cin, cout) weights,
    # plus bias / folded-BN vectors concatenated to the lane-dense 128/256 width.
    row = lambda v: v.reshape(1, -1)
    cat = lambda fmt: row(jnp.concatenate([params[fmt.format(d)] for d in _DILATIONS]))
    m1w = jnp.stack([params[f"m1_{d}_w"].reshape(3 * 16, 32) for d in _DILATIONS])
    m2w = jnp.stack([params[f"m2_{d}_w"].reshape(3 * 128, 64) for d in _DILATIONS])

    # fc1 weight rows are in PyTorch flatten order (channel*4 + pool_pos); permute to
    # the kernel's (pool_pos*256 + channel) order.
    C2 = 256
    out_dim = params["fc3_w"].shape[1]
    fc1w = params["fc1_w"].reshape(C2, _POOL, -1).transpose(1, 0, 2).reshape(_POOL * C2, -1)

    args = (
        patches,
        params["conv1_w"], row(params["conv1_b"]), row(params["bn1_scale"]), row(params["bn1_shift"]),
        m1w, cat("m1_{}_b"), cat("m1_{}_scale"), cat("m1_{}_shift"),
        params["se1_w1"], row(params["se1_b1"]), params["se1_w2"], row(params["se1_b2"]),
        m2w, cat("m2_{}_b"), cat("m2_{}_scale"), cat("m2_{}_shift"),
        params["se2_w1"], row(params["se2_b1"]), params["se2_w2"], row(params["se2_b2"]),
        fc1w, row(params["fc1_b"]), params["fc2_w"], row(params["fc2_b"]),
        params["fc3_w"], row(params["fc3_b"]),
    )

    pad = max(_DILATIONS)
    kern = functools.partial(_fused_forward_kernel, Lp, pad)
    in_specs = ([pl.BlockSpec((1, _POOL * Lp, _K1), lambda b: (b, 0, 0))]
                + [_const_spec(a.shape) for a in args[1:]])

    out = pl.pallas_call(
        kern,
        out_shape=jax.ShapeDtypeStruct((B, 1, out_dim), jnp.float32),
        grid=(B,),
        in_specs=in_specs,
        out_specs=pl.BlockSpec((1, 1, out_dim), lambda b: (b, 0, 0)),
        scratch_shapes=[
            pltpu.VMEM((Lp + 2 * pad, 16), jnp.float32),    # padded module-1 input
            pltpu.VMEM((Lp, 128), jnp.float32),             # module-1 branch concat
            pltpu.VMEM((Lp + 2 * pad, 128), jnp.float32),   # padded module-2 input
            pltpu.VMEM((Lp, 256), jnp.float32),             # module-2 branch concat
        ],
        compiler_params=pltpu.CompilerParams(
            dimension_semantics=("parallel",),              # v7x: one TC per batch elem
            vmem_limit_bytes=32 * 1024 * 1024,
        ),
    )(*args)
    return out[:, 0, :]


# ----------------------------------------------------------------------------
# Deterministic parameter init (eval-mode BN folded into scale/shift)
# ----------------------------------------------------------------------------
def _bn_affine(key, c):
    k1, k2, k3, k4 = jax.random.split(key, 4)
    gamma = 1.0 + 0.1 * jax.random.normal(k1, (c,), jnp.float32)
    beta = 0.1 * jax.random.normal(k2, (c,), jnp.float32)
    mean = 0.1 * jax.random.normal(k3, (c,), jnp.float32)
    var = jnp.abs(jax.random.normal(k4, (c,), jnp.float32)) + 1.0
    scale = gamma / jnp.sqrt(var + 1e-5)
    shift = beta - mean * scale
    return scale, shift


def init_params(key, output_dim):
    keys = iter(jax.random.split(key, 64))

    def nrm(shape, scale=0.1):
        return scale * jax.random.normal(next(keys), shape, jnp.float32)

    p = {}
    # conv1: Conv1d(1, 16, k=25, stride=2) stored as (k*Cin, Cout) for im2col matmul
    p["conv1_w"] = nrm((_K1, 16))
    p["conv1_b"] = nrm((16,))
    p["bn1_scale"], p["bn1_shift"] = _bn_affine(next(keys), 16)
    for d in _DILATIONS:
        p[f"m1_{d}_w"] = nrm((3, 16, 32))       # (k, Cin, Cout)
        p[f"m1_{d}_b"] = nrm((32,))
        p[f"m1_{d}_scale"], p[f"m1_{d}_shift"] = _bn_affine(next(keys), 32)
        p[f"m2_{d}_w"] = nrm((3, 128, 64))
        p[f"m2_{d}_b"] = nrm((64,))
        p[f"m2_{d}_scale"], p[f"m2_{d}_shift"] = _bn_affine(next(keys), 64)
    p["se1_w1"] = nrm((128, 64)); p["se1_b1"] = nrm((64,))
    p["se1_w2"] = nrm((64, 128)); p["se1_b2"] = nrm((128,))
    p["se2_w1"] = nrm((256, 128)); p["se2_b1"] = nrm((128,))
    p["se2_w2"] = nrm((128, 256)); p["se2_b2"] = nrm((256,))
    p["fc1_w"] = nrm((1024, 512)); p["fc1_b"] = nrm((512,))
    p["fc2_w"] = nrm((512, 512)); p["fc2_b"] = nrm((512,))
    p["fc3_w"] = nrm((512, output_dim)); p["fc3_b"] = nrm((output_dim,))
    return p


# ----------------------------------------------------------------------------
# Pure-JAX reference (mirrors Multi_scale_CNN.forward, eval mode) for validation
# ----------------------------------------------------------------------------
def _reference_forward(params, x_ncw):
    hi = jax.lax.Precision.HIGHEST
    B, _, L = x_ncw.shape
    sig = x_ncw[:, 0, :]
    Lout1 = (L - _K1) // 2 + 1
    idx = 2 * jnp.arange(Lout1)[:, None] + jnp.arange(_K1)[None, :]
    patches = sig[:, idx]                                               # (B, Lout1, 25)
    y = jnp.einsum("blk,kc->blc", patches, params["conv1_w"], precision=hi)
    y = jnp.maximum(y + params["conv1_b"], 0.0) * params["bn1_scale"] + params["bn1_shift"]
    Lp = Lout1 // _POOL
    pool1 = y[:, :Lp * _POOL, :].reshape(B, Lp, _POOL, -1).max(axis=2)  # (B, Lp, 16)

    def dconv(x, w, b, s, t, d):
        xp = jnp.pad(x, ((0, 0), (d, d), (0, 0)))
        acc = sum(jnp.einsum("blc,cf->blf", xp[:, k * d:k * d + Lp, :], w[k], precision=hi)
                  for k in range(3))
        return jnp.maximum(acc + b, 0.0) * s + t

    def se(x, w1, b1, w2, b2):
        m = x.mean(axis=1)
        h = jnp.maximum(jnp.dot(m, w1, precision=hi) + b1, 0.0)
        e = jax.nn.sigmoid(jnp.dot(h, w2, precision=hi) + b2)
        return x * e[:, None, :]

    f1 = jnp.concatenate(
        [dconv(pool1, params[f"m1_{d}_w"], params[f"m1_{d}_b"],
               params[f"m1_{d}_scale"], params[f"m1_{d}_shift"], d) for d in _DILATIONS], -1)
    f1 = se(f1, params["se1_w1"], params["se1_b1"], params["se1_w2"], params["se1_b2"])
    f2 = jnp.concatenate(
        [dconv(f1, params[f"m2_{d}_w"], params[f"m2_{d}_b"],
               params[f"m2_{d}_scale"], params[f"m2_{d}_shift"], d) for d in _DILATIONS], -1)
    f2 = se(f2, params["se2_w1"], params["se2_b1"], params["se2_w2"], params["se2_b2"])

    ap = f2.reshape(B, _POOL, Lp // _POOL, -1).mean(axis=2)             # (B, 4, 256)
    flat = jnp.transpose(ap, (0, 2, 1)).reshape(B, -1)                  # PyTorch order c*4+t
    h = jnp.maximum(jnp.dot(flat, params["fc1_w"], precision=hi) + params["fc1_b"], 0.0)
    h = jnp.maximum(jnp.dot(h, params["fc2_w"], precision=hi) + params["fc2_b"], 0.0)
    return jnp.dot(h, params["fc3_w"], precision=hi) + params["fc3_b"]


if __name__ == "__main__":
    OUTPUT_DIM = 10
    x = jax.random.normal(jax.random.PRNGKey(0), (2, 1, 153), jnp.float32)  # (B, 1, L)
    params = init_params(jax.random.PRNGKey(42), OUTPUT_DIM)

    fwd = jax.jit(multi_scale_cnn_forward)
    out = jax.block_until_ready(fwd(params, x))

    assert out.shape == (2, OUTPUT_DIM), out.shape
    assert bool(jnp.all(jnp.isfinite(out)))

    ref = _reference_forward(params, x)
    assert bool(jnp.allclose(out, ref, rtol=1e-2, atol=1e-2)), \
        float(jnp.max(jnp.abs(out - ref)))
    print("KERNEL_OK")
</pallas_src>

<mosaic_0001>
module attributes {stable_mosaic.version = 11 : i64} {
  func.func @_fused_forward_kernel(%arg0: i32, %arg1: memref<1x64x25xf32, #tpu.memory_space<vmem>>, %arg2: memref<25x16xf32, #tpu.memory_space<vmem>>, %arg3: memref<1x16xf32, #tpu.memory_space<vmem>>, %arg4: memref<1x16xf32, #tpu.memory_space<vmem>>, %arg5: memref<1x16xf32, #tpu.memory_space<vmem>>, %arg6: memref<4x48x32xf32, #tpu.memory_space<vmem>>, %arg7: memref<1x128xf32, #tpu.memory_space<vmem>>, %arg8: memref<1x128xf32, #tpu.memory_space<vmem>>, %arg9: memref<1x128xf32, #tpu.memory_space<vmem>>, %arg10: memref<128x64xf32, #tpu.memory_space<vmem>>, %arg11: memref<1x64xf32, #tpu.memory_space<vmem>>, %arg12: memref<64x128xf32, #tpu.memory_space<vmem>>, %arg13: memref<1x128xf32, #tpu.memory_space<vmem>>, %arg14: memref<4x384x64xf32, #tpu.memory_space<vmem>>, %arg15: memref<1x256xf32, #tpu.memory_space<vmem>>, %arg16: memref<1x256xf32, #tpu.memory_space<vmem>>, %arg17: memref<1x256xf32, #tpu.memory_space<vmem>>, %arg18: memref<256x128xf32, #tpu.memory_space<vmem>>, %arg19: memref<1x128xf32, #tpu.memory_space<vmem>>, %arg20: memref<128x256xf32, #tpu.memory_space<vmem>>, %arg21: memref<1x256xf32, #tpu.memory_space<vmem>>, %arg22: memref<1024x512xf32, #tpu.memory_space<vmem>>, %arg23: memref<1x512xf32, #tpu.memory_space<vmem>>, %arg24: memref<512x512xf32, #tpu.memory_space<vmem>>, %arg25: memref<1x512xf32, #tpu.memory_space<vmem>>, %arg26: memref<512x10xf32, #tpu.memory_space<vmem>>, %arg27: memref<1x10xf32, #tpu.memory_space<vmem>>, %arg28: memref<1x1x10xf32, #tpu.memory_space<vmem>>, %arg29: memref<26x16xf32, #tpu.memory_space<vmem>>, %arg30: memref<16x128xf32, #tpu.memory_space<vmem>>, %arg31: memref<26x128xf32, #tpu.memory_space<vmem>>, %arg32: memref<16x256xf32, #tpu.memory_space<vmem>>) attributes {dimension_semantics = [#tpu.dimension_semantics<parallel>], iteration_bounds = array<i64: 2>, scalar_prefetch = 0 : i64, scratch_operands = 4 : i64, tpu.core_type = #tpu.core_type<tc>, window_params = [{transform_indices = @transform_0, window_bounds = array<i64: 1, 64, 25>}, {pipeline_mode = #tpu.pipeline_mode<synchronous>, transform_indices = @transform_1, window_bounds = array<i64: 25, 16>}, {pipeline_mode = #tpu.pipeline_mode<synchronous>, transform_indices = @transform_2, window_bounds = array<i64: 1, 16>}, {pipeline_mode = #tpu.pipeline_mode<synchronous>, transform_indices = @transform_3, window_bounds = array<i64: 1, 16>}, {pipeline_mode = #tpu.pipeline_mode<synchronous>, transform_indices = @transform_4, window_bounds = array<i64: 1, 16>}, {pipeline_mode = #tpu.pipeline_mode<synchronous>, transform_indices = @transform_5, window_bounds = array<i64: 4, 48, 32>}, {pipeline_mode = #tpu.pipeline_mode<synchronous>, transform_indices = @transform_6, window_bounds = array<i64: 1, 128>}, {pipeline_mode = #tpu.pipeline_mode<synchronous>, transform_indices = @transform_7, window_bounds = array<i64: 1, 128>}, {pipeline_mode = #tpu.pipeline_mode<synchronous>, transform_indices = @transform_8, window_bounds = array<i64: 1, 128>}, {pipeline_mode = #tpu.pipeline_mode<synchronous>, transform_indices = @transform_9, window_bounds = array<i64: 128, 64>}, {pipeline_mode = #tpu.pipeline_mode<synchronous>, transform_indices = @transform_10, window_bounds = array<i64: 1, 64>}, {pipeline_mode = #tpu.pipeline_mode<synchronous>, transform_indices = @transform_11, window_bounds = array<i64: 64, 128>}, {pipeline_mode = #tpu.pipeline_mode<synchronous>, transform_indices = @transform_12, window_bounds = array<i64: 1, 128>}, {pipeline_mode = #tpu.pipeline_mode<synchronous>, transform_indices = @transform_13, window_bounds = array<i64: 4, 384, 64>}, {pipeline_mode = #tpu.pipeline_mode<synchronous>, transform_indices = @transform_14, window_bounds = array<i64: 1, 256>}, {pipeline_mode = #tpu.pipeline_mode<synchronous>, transform_indices = @transform_15, window_bounds = array<i64: 1, 256>}, {pipeline_mode = #tpu.pipeline_mode<synchronous>, transform_indices = @transform_16, window_bounds = array<i64: 1, 256>}, {pipeline_mode = #tpu.pipeline_mode<synchronous>, transform_indices = @transform_17, window_bounds = array<i64: 256, 128>}, {pipeline_mode = #tpu.pipeline_mode<synchronous>, transform_indices = @transform_18, window_bounds = array<i64: 1, 128>}, {pipeline_mode = #tpu.pipeline_mode<synchronous>, transform_indices = @transform_19, window_bounds = array<i64: 128, 256>}, {pipeline_mode = #tpu.pipeline_mode<synchronous>, transform_indices = @transform_20, window_bounds = array<i64: 1, 256>}, {pipeline_mode = #tpu.pipeline_mode<synchronous>, transform_indices = @transform_21, window_bounds = array<i64: 1024, 512>}, {pipeline_mode = #tpu.pipeline_mode<synchronous>, transform_indices = @transform_22, window_bounds = array<i64: 1, 512>}, {pipeline_mode = #tpu.pipeline_mode<synchronous>, transform_indices = @transform_23, window_bounds = array<i64: 512, 512>}, {pipeline_mode = #tpu.pipeline_mode<synchronous>, transform_indices = @transform_24, window_bounds = array<i64: 1, 512>}, {pipeline_mode = #tpu.pipeline_mode<synchronous>, transform_indices = @transform_25, window_bounds = array<i64: 512, 10>}, {pipeline_mode = #tpu.pipeline_mode<synchronous>, transform_indices = @transform_26, window_bounds = array<i64: 1, 10>}, {transform_indices = @transform_27, window_bounds = array<i64: 1, 1, 10>}]} {
    %c0 = arith.constant 0 : index
    %c0_0 = arith.constant 0 : index
    %c0_1 = arith.constant 0 : index
    %0 = vector.load %arg1[%c0, %c0_0, %c0_1] : memref<1x64x25xf32, #tpu.memory_space<vmem>>, vector<1x64x25xf32>
    %1 = vector.shape_cast %0 : vector<1x64x25xf32> to vector<64x25xf32>
    %c0_2 = arith.constant 0 : index
    %c0_3 = arith.constant 0 : index
    %2 = vector.load %arg2[%c0_2, %c0_3] : memref<25x16xf32, #tpu.memory_space<vmem>>, vector<25x16xf32>
    %cst = arith.constant dense<0.000000e+00> : vector<64x16xf32>
    %3 = tpu.matmul %1, %2, %cst {dimension_numbers = #tpu.dot_dimension_numbers<[1], [0], [0], [1], [0, 0, 1, 1], [], []>} : vector<64x25xf32>, vector<25x16xf32>, vector<64x16xf32> -> vector<64x16xf32>
    %c0_4 = arith.constant 0 : index
    %c0_5 = arith.constant 0 : index
    %4 = vector.load %arg3[%c0_4, %c0_5] : memref<1x16xf32, #tpu.memory_space<vmem>>, vector<1x16xf32>
    %5 = vector.broadcast %4 : vector<1x16xf32> to vector<64x16xf32>
    %6 = arith.addf %3, %5 : vector<64x16xf32>
    %cst_6 = arith.constant 0.000000e+00 : f32
    %7 = vector.broadcast %cst_6 : f32 to vector<64x16xf32>
    %8 = arith.maximumf %6, %7 : vector<64x16xf32>
    %c0_7 = arith.constant 0 : index
    %c0_8 = arith.constant 0 : index
    %9 = vector.load %arg4[%c0_7, %c0_8] : memref<1x16xf32, #tpu.memory_space<vmem>>, vector<1x16xf32>
    %10 = vector.broadcast %9 : vector<1x16xf32> to vector<64x16xf32>
    %11 = arith.mulf %8, %10 : vector<64x16xf32>
    %c0_9 = arith.constant 0 : index
    %c0_10 = arith.constant 0 : index
    %12 = vector.load %arg5[%c0_9, %c0_10] : memref<1x16xf32, #tpu.memory_space<vmem>>, vector<1x16xf32>
    %13 = vector.broadcast %12 : vector<1x16xf32> to vector<64x16xf32>
    %14 = arith.addf %11, %13 : vector<64x16xf32>
    %15 = vector.extract_strided_slice %14 {offsets = [0, 0], sizes = [16, 16], strides = [1, 1]} : vector<64x16xf32> to vector<16x16xf32>
    %16 = vector.extract_strided_slice %14 {offsets = [16, 0], sizes = [16, 16], strides = [1, 1]} : vector<64x16xf32> to vector<16x16xf32>
    %17 = arith.maximumf %15, %16 : vector<16x16xf32>
    %18 = vector.extract_strided_slice %14 {offsets = [32, 0], sizes = [16, 16], strides = [1, 1]} : vector<64x16xf32> to vector<16x16xf32>
    %19 = vector.extract_strided_slice %14 {offsets = [48, 0], sizes = [16, 16], strides = [1, 1]} : vector<64x16xf32> to vector<16x16xf32>
    %20 = arith.maximumf %18, %19 : vector<16x16xf32>
    %21 = arith.maximumf %17, %20 : vector<16x16xf32>
    %cst_11 = arith.constant 0.000000e+00 : f32
    %22 = vector.broadcast %cst_11 : f32 to vector<26x16xf32>
    %c0_12 = arith.constant 0 : index
    %c0_13 = arith.constant 0 : index
    %23 = vector.load %arg29[%c0_12, %c0_13] : memref<26x16xf32, #tpu.memory_space<vmem>>, vector<26x16xf32>
    tpu.vector_store %arg29[%c0_12, %c0_13], %22 {strides = array<i32>} : memref<26x16xf32, #tpu.memory_space<vmem>>, vector<26x16xf32>,
    %c5 = arith.constant 5 : index
    %c0_14 = arith.constant 0 : index
    %24 = vector.load %arg29[%c5, %c0_14] : memref<26x16xf32, #tpu.memory_space<vmem>>, vector<16x16xf32>
    tpu.vector_store %arg29[%c5, %c0_14], %21 {strides = array<i32>} : memref<26x16xf32, #tpu.memory_space<vmem>>, vector<16x16xf32>,
    %c0_15 = arith.constant 0 : index
    %c0_16 = arith.constant 0 : index
    %c0_17 = arith.constant 0 : index
    %25 = vector.load %arg6[%c0_15, %c0_16, %c0_17] : memref<4x48x32xf32, #tpu.memory_space<vmem>>, vector<1x48x32xf32>
    %26 = vector.shape_cast %25 : vector<1x48x32xf32> to vector<48x32xf32>
    %cst_18 = arith.constant 0.000000e+00 : f32
    %27 = vector.broadcast %cst_18 : f32 to vector<16x32xf32>
    %c3 = arith.constant 3 : index
    %c0_19 = arith.constant 0 : index
    %28 = vector.load %arg29[%c3, %c0_19] : memref<26x16xf32, #tpu.memory_space<vmem>>, vector<16x16xf32>
    %29 = vector.extract_strided_slice %26 {offsets = [0, 0], sizes = [16, 32], strides = [1, 1]} : vector<48x32xf32> to vector<16x32xf32>
    %cst_20 = arith.constant dense<0.000000e+00> : vector<16x32xf32>
    %30 = tpu.matmul %28, %29, %cst_20 {dimension_numbers = #tpu.dot_dimension_numbers<[1], [0], [0], [1], [0, 0, 1, 1], [], []>} : vector<16x16xf32>, vector<16x32xf32>, vector<16x32xf32> -> vector<16x32xf32>
    %31 = arith.addf %27, %30 : vector<16x32xf32>
    %c5_21 = arith.constant 5 : index
    %c0_22 = arith.constant 0 : index
    %32 = vector.load %arg29[%c5_21, %c0_22] : memref<26x16xf32, #tpu.memory_space<vmem>>, vector<16x16xf32>
    %33 = vector.extract_strided_slice %26 {offsets = [16, 0], sizes = [16, 32], strides = [1, 1]} : vector<48x32xf32> to vector<16x32xf32>
    %cst_23 = arith.constant dense<0.000000e+00> : vector<16x32xf32>
    %34 = tpu.matmul %32, %33, %cst_23 {dimension_numbers = #tpu.dot_dimension_numbers<[1], [0], [0], [1], [0, 0, 1, 1], [], []>} : vector<16x16xf32>, vector<16x32xf32>, vector<16x32xf32> -> vector<16x32xf32>
    %35 = arith.addf %31, %34 : vector<16x32xf32>
    %c7 = arith.constant 7 : index
    %c0_24 = arith.constant 0 : index
    %36 = vector.load %arg29[%c7, %c0_24] : memref<26x16xf32, #tpu.memory_space<vmem>>, vector<16x16xf32>
    %37 = vector.extract_strided_slice %26 {offsets = [32, 0], sizes = [16, 32], strides = [1, 1]} : vector<48x32xf32> to vector<16x32xf32>
    %cst_25 = arith.constant dense<0.000000e+00> : vector<16x32xf32>
    %38 = tpu.matmul %36, %37, %cst_25 {dimension_numbers = #tpu.dot_dimension_numbers<[1], [0], [0], [1], [0, 0, 1, 1], [], []>} : vector<16x16xf32>, vector<16x32xf32>, vector<16x32xf32> -> vector<16x32xf32>
    %39 = arith.addf %35, %38 : vector<16x32xf32>
    %c0_26 = arith.constant 0 : index
    %c0_27 = arith.constant 0 : index
    %40 = vector.load %arg30[%c0_26, %c0_27] : memref<16x128xf32, #tpu.memory_space<vmem>>, vector<16x32xf32>
    tpu.vector_store %arg30[%c0_26, %c0_27], %39 {strides = array<i32>} : memref<16x128xf32, #tpu.memory_space<vmem>>, vector<16x32xf32>,
    %c1 = arith.constant 1 : index
    %c0_28 = arith.constant 0 : index
    %c0_29 = arith.constant 0 : index
    %41 = vector.load %arg6[%c1, %c0_28, %c0_29] : memref<4x48x32xf32, #tpu.memory_space<vmem>>, vector<1x48x32xf32>
    %42 = vector.shape_cast %41 : vector<1x48x32xf32> to vector<48x32xf32>
    %cst_30 = arith.constant 0.000000e+00 : f32
    %43 = vector.broadcast %cst_30 : f32 to vector<16x32xf32>
    %c2 = arith.constant 2 : index
    %c0_31 = arith.constant 0 : index
    %44 = vector.load %arg29[%c2, %c0_31] : memref<26x16xf32, #tpu.memory_space<vmem>>, vector<16x16xf32>
    %45 = vector.extract_strided_slice %42 {offsets = [0, 0], sizes = [16, 32], strides = [1, 1]} : vector<48x32xf32> to vector<16x32xf32>
    %cst_32 = arith.constant dense<0.000000e+00> : vector<16x32xf32>
    %46 = tpu.matmul %44, %45, %cst_32 {dimension_numbers = #tpu.dot_dimension_numbers<[1], [0], [0], [1], [0, 0, 1, 1], [], []>} : vector<16x16xf32>, vector<16x32xf32>, vector<16x32xf32> -> vector<16x32xf32>
    %47 = arith.addf %43, %46 : vector<16x32xf32>
    %c5_33 = arith.constant 5 : index
    %c0_34 = arith.constant 0 : index
    %48 = vector.load %arg29[%c5_33, %c0_34] : memref<26x16xf32, #tpu.memory_space<vmem>>, vector<16x16xf32>
    %49 = vector.extract_strided_slice %42 {offsets = [16, 0], sizes = [16, 32], strides = [1, 1]} : vector<48x32xf32> to vector<16x32xf32>
    %cst_35 = arith.constant dense<0.000000e+00> : vector<16x32xf32>
    %50 = tpu.matmul %48, %49, %cst_35 {dimension_numbers = #tpu.dot_dimension_numbers<[1], [0], [0], [1], [0, 0, 1, 1], [], []>} : vector<16x16xf32>, vector<16x32xf32>, vector<16x32xf32> -> vector<16x32xf32>
    %51 = arith.addf %47, %50 : vector<16x32xf32>
    %c8 = arith.constant 8 : index
    %c0_36 = arith.constant 0 : index
    %52 = vector.load %arg29[%c8, %c0_36] : memref<26x16xf32, #tpu.memory_space<vmem>>, vector<16x16xf32>
    %53 = vector.extract_strided_slice %42 {offsets = [32, 0], sizes = [16, 32], strides = [1, 1]} : vector<48x32xf32> to vector<16x32xf32>
    %cst_37 = arith.constant dense<0.000000e+00> : vector<16x32xf32>
    %54 = tpu.matmul %52, %53, %cst_37 {dimension_numbers = #tpu.dot_dimension_numbers<[1], [0], [0], [1], [0, 0, 1, 1], [], []>} : vector<16x16xf32>, vector<16x32xf32>, vector<16x32xf32> -> vector<16x32xf32>
    %55 = arith.addf %51, %54 : vector<16x32xf32>
    %c0_38 = arith.constant 0 : index
    %c32 = arith.constant 32 : index
    %56 = vector.load %arg30[%c0_38, %c32] : memref<16x128xf32, #tpu.memory_space<vmem>>, vector<16x32xf32>
    tpu.vector_store %arg30[%c0_38, %c32], %55 {strides = array<i32>} : memref<16x128xf32, #tpu.memory_space<vmem>>, vector<16x32xf32>,
    %c2_39 = arith.constant 2 : index
    %c0_40 = arith.constant 0 : index
    %c0_41 = arith.constant 0 : index
    %57 = vector.load %arg6[%c2_39, %c0_40, %c0_41] : memref<4x48x32xf32, #tpu.memory_space<vmem>>, vector<1x48x32xf32>
    %58 = vector.shape_cast %57 : vector<1x48x32xf32> to vector<48x32xf32>
    %cst_42 = arith.constant 0.000000e+00 : f32
    %59 = vector.broadcast %cst_42 : f32 to vector<16x32xf32>
    %c1_43 = arith.constant 1 : index
    %c0_44 = arith.constant 0 : index
    %60 = vector.load %arg29[%c1_43, %c0_44] : memref<26x16xf32, #tpu.memory_space<vmem>>, vector<16x16xf32>
    %61 = vector.extract_strided_slice %58 {offsets = [0, 0], sizes = [16, 32], strides = [1, 1]} : vector<48x32xf32> to vector<16x32xf32>
    %cst_45 = arith.constant dense<0.000000e+00> : vector<16x32xf32>
    %62 = tpu.matmul %60, %61, %cst_45 {dimension_numbers = #tpu.dot_dimension_numbers<[1], [0], [0], [1], [0, 0, 1, 1], [], []>} : vector<16x16xf32>, vector<16x32xf32>, vector<16x32xf32> -> vector<16x32xf32>
    %63 = arith.addf %59, %62 : vector<16x32xf32>
    %c5_46 = arith.constant 5 : index
    %c0_47 = arith.constant 0 : index
    %64 = vector.load %arg29[%c5_46, %c0_47] : memref<26x16xf32, #tpu.memory_space<vmem>>, vector<16x16xf32>
    %65 = vector.extract_strided_slice %58 {offsets = [16, 0], sizes = [16, 32], strides = [1, 1]} : vector<48x32xf32> to vector<16x32xf32>
    %cst_48 = arith.constant dense<0.000000e+00> : vector<16x32xf32>
    %66 = tpu.matmul %64, %65, %cst_48 {dimension_numbers = #tpu.dot_dimension_numbers<[1], [0], [0], [1], [0, 0, 1, 1], [], []>} : vector<16x16xf32>, vector<16x32xf32>, vector<16x32xf32> -> vector<16x32xf32>
    %67 = arith.addf %63, %66 : vector<16x32xf32>
    %c9 = arith.constant 9 : index
    %c0_49 = arith.constant 0 : index
    %68 = vector.load %arg29[%c9, %c0_49] : memref<26x16xf32, #tpu.memory_space<vmem>>, vector<16x16xf32>
    %69 = vector.extract_strided_slice %58 {offsets = [32, 0], sizes = [16, 32], strides = [1, 1]} : vector<48x32xf32> to vector<16x32xf32>
    %cst_50 = arith.constant dense<0.000000e+00> : vector<16x32xf32>
    %70 = tpu.matmul %68, %69, %cst_50 {dimension_numbers = #tpu.dot_dimension_numbers<[1], [0], [0], [1], [0, 0, 1, 1], [], []>} : vector<16x16xf32>, vector<16x32xf32>, vector<16x32xf32> -> vector<16x32xf32>
    %71 = arith.addf %67, %70 : vector<16x32xf32>
    %c0_51 = arith.constant 0 : index
    %c64 = arith.constant 64 : index
    %72 = vector.load %arg30[%c0_51, %c64] : memref<16x128xf32, #tpu.memory_space<vmem>>, vector<16x32xf32>
    tpu.vector_store %arg30[%c0_51, %c64], %71 {strides = array<i32>} : memref<16x128xf32, #tpu.memory_space<vmem>>, vector<16x32xf32>,
    %c3_52 = arith.constant 3 : index
    %c0_53 = arith.constant 0 : index
    %c0_54 = arith.constant 0 : index
    %73 = vector.load %arg6[%c3_52, %c0_53, %c0_54] : memref<4x48x32xf32, #tpu.memory_space<vmem>>, vector<1x48x32xf32>
    %74 = vector.shape_cast %73 : vector<1x48x32xf32> to vector<48x32xf32>
    %cst_55 = arith.constant 0.000000e+00 : f32
    %75 = vector.broadcast %cst_55 : f32 to vector<16x32xf32>
    %c0_56 = arith.constant 0 : index
    %c0_57 = arith.constant 0 : index
    %76 = vector.load %arg29[%c0_56, %c0_57] : memref<26x16xf32, #tpu.memory_space<vmem>>, vector<16x16xf32>
    %77 = vector.extract_strided_slice %74 {offsets = [0, 0], sizes = [16, 32], strides = [1, 1]} : vector<48x32xf32> to vector<16x32xf32>
    %cst_58 = arith.constant dense<0.000000e+00> : vector<16x32xf32>
    %78 = tpu.matmul %76, %77, %cst_58 {dimension_numbers = #tpu.dot_dimension_numbers<[1], [0], [0], [1], [0, 0, 1, 1], [], []>} : vector<16x16xf32>, vector<16x32xf32>, vector<16x32xf32> -> vector<16x32xf32>
    %79 = arith.addf %75, %78 : vector<16x32xf32>
    %c5_59 = arith.constant 5 : index
    %c0_60 = arith.constant 0 : index
    %80 = vector.load %arg29[%c5_59, %c0_60] : memref<26x16xf32, #tpu.memory_space<vmem>>, vector<16x16xf32>
    %81 = vector.extract_strided_slice %74 {offsets = [16, 0], sizes = [16, 32], strides = [1, 1]} : vector<48x32xf32> to vector<16x32xf32>
    %cst_61 = arith.constant dense<0.000000e+00> : vector<16x32xf32>
    %82 = tpu.matmul %80, %81, %cst_61 {dimension_numbers = #tpu.dot_dimension_numbers<[1], [0], [0], [1], [0, 0, 1, 1], [], []>} : vector<16x16xf32>, vector<16x32xf32>, vector<16x32xf32> -> vector<16x32xf32>
    %83 = arith.addf %79, %82 : vector<16x32xf32>
    %c10 = arith.constant 10 : index
    %c0_62 = arith.constant 0 : index
    %84 = vector.load %arg29[%c10, %c0_62] : memref<26x16xf32, #tpu.memory_space<vmem>>, vector<16x16xf32>
    %85 = vector.extract_strided_slice %74 {offsets = [32, 0], sizes = [16, 32], strides = [1, 1]} : vector<48x32xf32> to vector<16x32xf32>
    %cst_63 = arith.constant dense<0.000000e+00> : vector<16x32xf32>
    %86 = tpu.matmul %84, %85, %cst_63 {dimension_numbers = #tpu.dot_dimension_numbers<[1], [0], [0], [1], [0, 0, 1, 1], [], []>} : vector<16x16xf32>, vector<16x32xf32>, vector<16x32xf32> -> vector<16x32xf32>
    %87 = arith.addf %83, %86 : vector<16x32xf32>
    %c0_64 = arith.constant 0 : index
    %c96 = arith.constant 96 : index
    %88 = vector.load %arg30[%c0_64, %c96] : memref<16x128xf32, #tpu.memory_space<vmem>>, vector<16x32xf32>
    tpu.vector_store %arg30[%c0_64, %c96], %87 {strides = array<i32>} : memref<16x128xf32, #tpu.memory_space<vmem>>, vector<16x32xf32>,
    %c0_65 = arith.constant 0 : index
    %c0_66 = arith.constant 0 : index
    %89 = vector.load %arg30[%c0_65, %c0_66] : memref<16x128xf32, #tpu.memory_space<vmem>>, vector<16x128xf32>
    %c0_67 = arith.constant 0 : index
    %c0_68 = arith.constant 0 : index
    %90 = vector.load %arg7[%c0_67, %c0_68] : memref<1x128xf32, #tpu.memory_space<vmem>>, vector<1x128xf32>
    %91 = vector.broadcast %90 : vector<1x128xf32> to vector<16x128xf32>
    %92 = arith.addf %89, %91 : vector<16x128xf32>
    %cst_69 = arith.constant 0.000000e+00 : f32
    %93 = vector.broadcast %cst_69 : f32 to vector<16x128xf32>
    %94 = arith.maximumf %92, %93 : vector<16x128xf32>
    %c0_70 = arith.constant 0 : index
    %c0_71 = arith.constant 0 : index
    %95 = vector.load %arg8[%c0_70, %c0_71] : memref<1x128xf32, #tpu.memory_space<vmem>>, vector<1x128xf32>
    %96 = vector.broadcast %95 : vector<1x128xf32> to vector<16x128xf32>
    %97 = arith.mulf %94, %96 : vector<16x128xf32>
    %c0_72 = arith.constant 0 : index
    %c0_73 = arith.constant 0 : index
    %98 = vector.load %arg9[%c0_72, %c0_73] : memref<1x128xf32, #tpu.memory_space<vmem>>, vector<1x128xf32>
    %99 = vector.broadcast %98 : vector<1x128xf32> to vector<16x128xf32>
    %100 = arith.addf %97, %99 : vector<16x128xf32>
    %cst_74 = arith.constant dense<0.000000e+00> : vector<128xf32>
    %101 = vector.multi_reduction <add>, %100, %cst_74 [0] : vector<16x128xf32> to vector<128xf32>
    %102 = vector.shape_cast %101 : vector<128xf32> to vector<1x128xf32>
    %cst_75 = arith.constant 1.600000e+01 : f32
    %103 = vector.broadcast %cst_75 : f32 to vector<1x128xf32>
    %104 = arith.divf %102, %103 : vector<1x128xf32>
    %c0_76 = arith.constant 0 : index
    %c0_77 = arith.constant 0 : index
    %105 = vector.load %arg10[%c0_76, %c0_77] : memref<128x64xf32, #tpu.memory_space<vmem>>, vector<128x64xf32>
    %cst_78 = arith.constant dense<0.000000e+00> : vector<1x64xf32>
    %106 = tpu.matmul %104, %105, %cst_78 {dimension_numbers = #tpu.dot_dimension_numbers<[1], [0], [0], [1], [0, 0, 1, 1], [], []>} : vector<1x128xf32>, vector<128x64xf32>, vector<1x64xf32> -> vector<1x64xf32>
    %c0_79 = arith.constant 0 : index
    %c0_80 = arith.constant 0 : index
    %107 = vector.load %arg11[%c0_79, %c0_80] : memref<1x64xf32, #tpu.memory_space<vmem>>, vector<1x64xf32>
    %108 = arith.addf %106, %107 : vector<1x64xf32>
    %cst_81 = arith.constant 0.000000e+00 : f32
    %109 = vector.broadcast %cst_81 : f32 to vector<1x64xf32>
    %110 = arith.maximumf %108, %109 : vector<1x64xf32>
    %c0_82 = arith.constant 0 : index
    %c0_83 = arith.constant 0 : index
    %111 = vector.load %arg12[%c0_82, %c0_83] : memref<64x128xf32, #tpu.memory_space<vmem>>, vector<64x128xf32>
    %cst_84 = arith.constant dense<0.000000e+00> : vector<1x128xf32>
    %112 = tpu.matmul %110, %111, %cst_84 {dimension_numbers = #tpu.dot_dimension_numbers<[1], [0], [0], [1], [0, 0, 1, 1], [], []>} : vector<1x64xf32>, vector<64x128xf32>, vector<1x128xf32> -> vector<1x128xf32>
    %c0_85 = arith.constant 0 : index
    %c0_86 = arith.constant 0 : index
    %113 = vector.load %arg13[%c0_85, %c0_86] : memref<1x128xf32, #tpu.memory_space<vmem>>, vector<1x128xf32>
    %114 = arith.addf %112, %113 : vector<1x128xf32>
    %115 = arith.negf %114 : vector<1x128xf32>
    %116 = math.exp %115 : vector<1x128xf32>
    %cst_87 = arith.constant 1.000000e+00 : f32
    %117 = vector.broadcast %cst_87 : f32 to vector<1x128xf32>
    %118 = arith.addf %117, %116 : vector<1x128xf32>
    %119 = arith.divf %117, %118 : vector<1x128xf32>
    %120 = vector.broadcast %119 : vector<1x128xf32> to vector<16x128xf32>
    %121 = arith.mulf %100, %120 : vector<16x128xf32>
    %cst_88 = arith.constant 0.000000e+00 : f32
    %122 = vector.broadcast %cst_88 : f32 to vector<26x128xf32>
    %c0_89 = arith.constant 0 : index
    %c0_90 = arith.constant 0 : index
    %123 = vector.load %arg31[%c0_89, %c0_90] : memref<26x128xf32, #tpu.memory_space<vmem>>, vector<26x128xf32>
    tpu.vector_store %arg31[%c0_89, %c0_90], %122 {strides = array<i32>} : memref<26x128xf32, #tpu.memory_space<vmem>>, vector<26x128xf32>,
    %c5_91 = arith.constant 5 : index
    %c0_92 = arith.constant 0 : index
    %124 = vector.load %arg31[%c5_91, %c0_92] : memref<26x128xf32, #tpu.memory_space<vmem>>, vector<16x128xf32>
    tpu.vector_store %arg31[%c5_91, %c0_92], %121 {strides = array<i32>} : memref<26x128xf32, #tpu.memory_space<vmem>>, vector<16x128xf32>,
    %c0_93 = arith.constant 0 : index
    %c0_94 = arith.constant 0 : index
    %c0_95 = arith.constant 0 : index
    %125 = vector.load %arg14[%c0_93, %c0_94, %c0_95] : memref<4x384x64xf32, #tpu.memory_space<vmem>>, vector<1x384x64xf32>
    %126 = vector.shape_cast %125 : vector<1x384x64xf32> to vector<384x64xf32>
    %cst_96 = arith.constant 0.000000e+00 : f32
    %127 = vector.broadcast %cst_96 : f32 to vector<16x64xf32>
    %c3_97 = arith.constant 3 : index
    %c0_98 = arith.constant 0 : index
    %128 = vector.load %arg31[%c3_97, %c0_98] : memref<26x128xf32, #tpu.memory_space<vmem>>, vector<16x128xf32>
    %129 = vector.extract_strided_slice %126 {offsets = [0, 0], sizes = [128, 64], strides = [1, 1]} : vector<384x64xf32> to vector<128x64xf32>
    %cst_99 = arith.constant dense<0.000000e+00> : vector<16x64xf32>
    %130 = tpu.matmul %128, %129, %cst_99 {dimension_numbers = #tpu.dot_dimension_numbers<[1], [0], [0], [1], [0, 0, 1, 1], [], []>} : vector<16x128xf32>, vector<128x64xf32>, vector<16x64xf32> -> vector<16x64xf32>
    %131 = arith.addf %127, %130 : vector<16x64xf32>
    %c5_100 = arith.constant 5 : index
    %c0_101 = arith.constant 0 : index
    %132 = vector.load %arg31[%c5_100, %c0_101] : memref<26x128xf32, #tpu.memory_space<vmem>>, vector<16x128xf32>
    %133 = vector.extract_strided_slice %126 {offsets = [128, 0], sizes = [128, 64], strides = [1, 1]} : vector<384x64xf32> to vector<128x64xf32>
    %cst_102 = arith.constant dense<0.000000e+00> : vector<16x64xf32>
    %134 = tpu.matmul %132, %133, %cst_102 {dimension_numbers = #tpu.dot_dimension_numbers<[1], [0], [0], [1], [0, 0, 1, 1], [], []>} : vector<16x128xf32>, vector<128x64xf32>, vector<16x64xf32> -> vector<16x64xf32>
    %135 = arith.addf %131, %134 : vector<16x64xf32>
    %c7_103 = arith.constant 7 : index
    %c0_104 = arith.constant 0 : index
    %136 = vector.load %arg31[%c7_103, %c0_104] : memref<26x128xf32, #tpu.memory_space<vmem>>, vector<16x128xf32>
    %137 = vector.extract_strided_slice %126 {offsets = [256, 0], sizes = [128, 64], strides = [1, 1]} : vector<384x64xf32> to vector<128x64xf32>
    %cst_105 = arith.constant dense<0.000000e+00> : vector<16x64xf32>
    %138 = tpu.matmul %136, %137, %cst_105 {dimension_numbers = #tpu.dot_dimension_numbers<[1], [0], [0], [1], [0, 0, 1, 1], [], []>} : vector<16x128xf32>, vector<128x64xf32>, vector<16x64xf32> -> vector<16x64xf32>
    %139 = arith.addf %135, %138 : vector<16x64xf32>
    %c0_106 = arith.constant 0 : index
    %c0_107 = arith.constant 0 : index
    %140 = vector.load %arg32[%c0_106, %c0_107] : memref<16x256xf32, #tpu.memory_space<vmem>>, vector<16x64xf32>
    tpu.vector_store %arg32[%c0_106, %c0_107], %139 {strides = array<i32>} : memref<16x256xf32, #tpu.memory_space<vmem>>, vector<16x64xf32>,
    %c1_108 = arith.constant 1 : index
    %c0_109 = arith.constant 0 : index
    %c0_110 = arith.constant 0 : index
    %141 = vector.load %arg14[%c1_108, %c0_109, %c0_110] : memref<4x384x64xf32, #tpu.memory_space<vmem>>, vector<1x384x64xf32>
    %142 = vector.shape_cast %141 : vector<1x384x64xf32> to vector<384x64xf32>
    %cst_111 = arith.constant 0.000000e+00 : f32
    %143 = vector.broadcast %cst_111 : f32 to vector<16x64xf32>
    %c2_112 = arith.constant 2 : index
    %c0_113 = arith.constant 0 : index
    %144 = vector.load %arg31[%c2_112, %c0_113] : memref<26x128xf32, #tpu.memory_space<vmem>>, vector<16x128xf32>
    %145 = vector.extract_strided_slice %142 {offsets = [0, 0], sizes = [128, 64], strides = [1, 1]} : vector<384x64xf32> to vector<128x64xf32>
    %cst_114 = arith.constant dense<0.000000e+00> : vector<16x64xf32>
    %146 = tpu.matmul %144, %145, %cst_114 {dimension_numbers = #tpu.dot_dimension_numbers<[1], [0], [0], [1], [0, 0, 1, 1], [], []>} : vector<16x128xf32>, vector<128x64xf32>, vector<16x64xf32> -> vector<16x64xf32>
    %147 = arith.addf %143, %146 : vector<16x64xf32>
    %c5_115 = arith.constant 5 : index
    %c0_116 = arith.constant 0 : index
    %148 = vector.load %arg31[%c5_115, %c0_116] : memref<26x128xf32, #tpu.memory_space<vmem>>, vector<16x128xf32>
    %149 = vector.extract_strided_slice %142 {offsets = [128, 0], sizes = [128, 64], strides = [1, 1]} : vector<384x64xf32> to vector<128x64xf32>
    %cst_117 = arith.constant dense<0.000000e+00> : vector<16x64xf32>
    %150 = tpu.matmul %148, %149, %cst_117 {dimension_numbers = #tpu.dot_dimension_numbers<[1], [0], [0], [1], [0, 0, 1, 1], [], []>} : vector<16x128xf32>, vector<128x64xf32>, vector<16x64xf32> -> vector<16x64xf32>
    %151 = arith.addf %147, %150 : vector<16x64xf32>
    %c8_118 = arith.constant 8 : index
    %c0_119 = arith.constant 0 : index
    %152 = vector.load %arg31[%c8_118, %c0_119] : memref<26x128xf32, #tpu.memory_space<vmem>>, vector<16x128xf32>
    %153 = vector.extract_strided_slice %142 {offsets = [256, 0], sizes = [128, 64], strides = [1, 1]} : vector<384x64xf32> to vector<128x64xf32>
    %cst_120 = arith.constant dense<0.000000e+00> : vector<16x64xf32>
    %154 = tpu.matmul %152, %153, %cst_120 {dimension_numbers = #tpu.dot_dimension_numbers<[1], [0], [0], [1], [0, 0, 1, 1], [], []>} : vector<16x128xf32>, vector<128x64xf32>, vector<16x64xf32> -> vector<16x64xf32>
    %155 = arith.addf %151, %154 : vector<16x64xf32>
    %c0_121 = arith.constant 0 : index
    %c64_122 = arith.constant 64 : index
    %156 = vector.load %arg32[%c0_121, %c64_122] : memref<16x256xf32, #tpu.memory_space<vmem>>, vector<16x64xf32>
    tpu.vector_store %arg32[%c0_121, %c64_122], %155 {strides = array<i32>} : memref<16x256xf32, #tpu.memory_space<vmem>>, vector<16x64xf32>,
    %c2_123 = arith.constant 2 : index
    %c0_124 = arith.constant 0 : index
    %c0_125 = arith.constant 0 : index
    %157 = vector.load %arg14[%c2_123, %c0_124, %c0_125] : memref<4x384x64xf32, #tpu.memory_space<vmem>>, vector<1x384x64xf32>
    %158 = vector.shape_cast %157 : vector<1x384x64xf32> to vector<384x64xf32>
    %cst_126 = arith.constant 0.000000e+00 : f32
    %159 = vector.broadcast %cst_126 : f32 to vector<16x64xf32>
    %c1_127 = arith.constant 1 : index
    %c0_128 = arith.constant 0 : index
    %160 = vector.load %arg31[%c1_127, %c0_128] : memref<26x128xf32, #tpu.memory_space<vmem>>, vector<16x128xf32>
    %161 = vector.extract_strided_slice %158 {offsets = [0, 0], sizes = [128, 64], strides = [1, 1]} : vector<384x64xf32> to vector<128x64xf32>
    %cst_129 = arith.constant dense<0.000000e+00> : vector<16x64xf32>
    %162 = tpu.matmul %160, %161, %cst_129 {dimension_numbers = #tpu.dot_dimension_numbers<[1], [0], [0], [1], [0, 0, 1, 1], [], []>} : vector<16x128xf32>, vector<128x64xf32>, vector<16x64xf32> -> vector<16x64xf32>
    %163 = arith.addf %159, %162 : vector<16x64xf32>
    %c5_130 = arith.constant 5 : index
    %c0_131 = arith.constant 0 : index
    %164 = vector.load %arg31[%c5_130, %c0_131] : memref<26x128xf32, #tpu.memory_space<vmem>>, vector<16x128xf32>
    %165 = vector.extract_strided_slice %158 {offsets = [128, 0], sizes = [128, 64], strides = [1, 1]} : vector<384x64xf32> to vector<128x64xf32>
    %cst_132 = arith.constant dense<0.000000e+00> : vector<16x64xf32>
    %166 = tpu.matmul %164, %165, %cst_132 {dimension_numbers = #tpu.dot_dimension_numbers<[1], [0], [0], [1], [0, 0, 1, 1], [], []>} : vector<16x128xf32>, vector<128x64xf32>, vector<16x64xf32> -> vector<16x64xf32>
    %167 = arith.addf %163, %166 : vector<16x64xf32>
    %c9_133 = arith.constant 9 : index
    %c0_134 = arith.constant 0 : index
    %168 = vector.load %arg31[%c9_133, %c0_134] : memref<26x128xf32, #tpu.memory_space<vmem>>, vector<16x128xf32>
    %169 = vector.extract_strided_slice %158 {offsets = [256, 0], sizes = [128, 64], strides = [1, 1]} : vector<384x64xf32> to vector<128x64xf32>
    %cst_135 = arith.constant dense<0.000000e+00> : vector<16x64xf32>
    %170 = tpu.matmul %168, %169, %cst_135 {dimension_numbers = #tpu.dot_dimension_numbers<[1], [0], [0], [1], [0, 0, 1, 1], [], []>} : vector<16x128xf32>, vector<128x64xf32>, vector<16x64xf32> -> vector<16x64xf32>
    %171 = arith.addf %167, %170 : vector<16x64xf32>
    %c0_136 = arith.constant 0 : index
    %c128 = arith.constant 128 : index
    %172 = vector.load %arg32[%c0_136, %c128] : memref<16x256xf32, #tpu.memory_space<vmem>>, vector<16x64xf32>
    tpu.vector_store %arg32[%c0_136, %c128], %171 {strides = array<i32>} : memref<16x256xf32, #tpu.memory_space<vmem>>, vector<16x64xf32>,
    %c3_137 = arith.constant 3 : index
    %c0_138 = arith.constant 0 : index
    %c0_139 = arith.constant 0 : index
    %173 = vector.load %arg14[%c3_137, %c0_138, %c0_139] : memref<4x384x64xf32, #tpu.memory_space<vmem>>, vector<1x384x64xf32>
    %174 = vector.shape_cast %173 : vector<1x384x64xf32> to vector<384x64xf32>
    %cst_140 = arith.constant 0.000000e+00 : f32
    %175 = vector.broadcast %cst_140 : f32 to vector<16x64xf32>
    %c0_141 = arith.constant 0 : index
    %c0_142 = arith.constant 0 : index
    %176 = vector.load %arg31[%c0_141, %c0_142] : memref<26x128xf32, #tpu.memory_space<vmem>>, vector<16x128xf32>
    %177 = vector.extract_strided_slice %174 {offsets = [0, 0], sizes = [128, 64], strides = [1, 1]} : vector<384x64xf32> to vector<128x64xf32>
    %cst_143 = arith.constant dense<0.000000e+00> : vector<16x64xf32>
    %178 = tpu.matmul %176, %177, %cst_143 {dimension_numbers = #tpu.dot_dimension_numbers<[1], [0], [0], [1], [0, 0, 1, 1], [], []>} : vector<16x128xf32>, vector<128x64xf32>, vector<16x64xf32> -> vector<16x64xf32>
    %179 = arith.addf %175, %178 : vector<16x64xf32>
    %c5_144 = arith.constant 5 : index
    %c0_145 = arith.constant 0 : index
    %180 = vector.load %arg31[%c5_144, %c0_145] : memref<26x128xf32, #tpu.memory_space<vmem>>, vector<16x128xf32>
    %181 = vector.extract_strided_slice %174 {offsets = [128, 0], sizes = [128, 64], strides = [1, 1]} : vector<384x64xf32> to vector<128x64xf32>
    %cst_146 = arith.constant dense<0.000000e+00> : vector<16x64xf32>
    %182 = tpu.matmul %180, %181, %cst_146 {dimension_numbers = #tpu.dot_dimension_numbers<[1], [0], [0], [1], [0, 0, 1, 1], [], []>} : vector<16x128xf32>, vector<128x64xf32>, vector<16x64xf32> -> vector<16x64xf32>
    %183 = arith.addf %179, %182 : vector<16x64xf32>
    %c10_147 = arith.constant 10 : index
    %c0_148 = arith.constant 0 : index
    %184 = vector.load %arg31[%c10_147, %c0_148] : memref<26x128xf32, #tpu.memory_space<vmem>>, vector<16x128xf32>
    %185 = vector.extract_strided_slice %174 {offsets = [256, 0], sizes = [128, 64], strides = [1, 1]} : vector<384x64xf32> to vector<128x64xf32>
    %cst_149 = arith.constant dense<0.000000e+00> : vector<16x64xf32>
    %186 = tpu.matmul %184, %185, %cst_149 {dimension_numbers = #tpu.dot_dimension_numbers<[1], [0], [0], [1], [0, 0, 1, 1], [], []>} : vector<16x128xf32>, vector<128x64xf32>, vector<16x64xf32> -> vector<16x64xf32>
    %187 = arith.addf %183, %186 : vector<16x64xf32>
    %c0_150 = arith.constant 0 : index
    %c192 = arith.constant 192 : index
    %188 = vector.load %arg32[%c0_150, %c192] : memref<16x256xf32, #tpu.memory_space<vmem>>, vector<16x64xf32>
    tpu.vector_store %arg32[%c0_150, %c192], %187 {strides = array<i32>} : memref<16x256xf32, #tpu.memory_space<vmem>>, vector<16x64xf32>,
    %c0_151 = arith.constant 0 : index
    %c0_152 = arith.constant 0 : index
    %189 = vector.load %arg32[%c0_151, %c0_152] : memref<16x256xf32, #tpu.memory_space<vmem>>, vector<16x256xf32>
    %c0_153 = arith.constant 0 : index
    %c0_154 = arith.constant 0 : index
    %190 = vector.load %arg15[%c0_153, %c0_154] : memref<1x256xf32, #tpu.memory_space<vmem>>, vector<1x256xf32>
    %191 = vector.broadcast %190 : vector<1x256xf32> to vector<16x256xf32>
    %192 = arith.addf %189, %191 : vector<16x256xf32>
    %cst_155 = arith.constant 0.000000e+00 : f32
    %193 = vector.broadcast %cst_155 : f32 to vector<16x256xf32>
    %194 = arith.maximumf %192, %193 : vector<16x256xf32>
    %c0_156 = arith.constant 0 : index
    %c0_157 = arith.constant 0 : index
    %195 = vector.load %arg16[%c0_156, %c0_157] : memref<1x256xf32, #tpu.memory_space<vmem>>, vector<1x256xf32>
    %196 = vector.broadcast %195 : vector<1x256xf32> to vector<16x256xf32>
    %197 = arith.mulf %194, %196 : vector<16x256xf32>
    %c0_158 = arith.constant 0 : index
    %c0_159 = arith.constant 0 : index
    %198 = vector.load %arg17[%c0_158, %c0_159] : memref<1x256xf32, #tpu.memory_space<vmem>>, vector<1x256xf32>
    %199 = vector.broadcast %198 : vector<1x256xf32> to vector<16x256xf32>
    %200 = arith.addf %197, %199 : vector<16x256xf32>
    %cst_160 = arith.constant dense<0.000000e+00> : vector<256xf32>
    %201 = vector.multi_reduction <add>, %200, %cst_160 [0] : vector<16x256xf32> to vector<256xf32>
    %202 = vector.shape_cast %201 : vector<256xf32> to vector<1x256xf32>
    %cst_161 = arith.constant 1.600000e+01 : f32
    %203 = vector.broadcast %cst_161 : f32 to vector<1x256xf32>
    %204 = arith.divf %202, %203 : vector<1x256xf32>
    %c0_162 = arith.constant 0 : index
    %c0_163 = arith.constant 0 : index
    %205 = vector.load %arg18[%c0_162, %c0_163] : memref<256x128xf32, #tpu.memory_space<vmem>>, vector<256x128xf32>
    %cst_164 = arith.constant dense<0.000000e+00> : vector<1x128xf32>
    %206 = tpu.matmul %204, %205, %cst_164 {dimension_numbers = #tpu.dot_dimension_numbers<[1], [0], [0], [1], [0, 0, 1, 1], [], []>} : vector<1x256xf32>, vector<256x128xf32>, vector<1x128xf32> -> vector<1x128xf32>
    %c0_165 = arith.constant 0 : index
    %c0_166 = arith.constant 0 : index
    %207 = vector.load %arg19[%c0_165, %c0_166] : memref<1x128xf32, #tpu.memory_space<vmem>>, vector<1x128xf32>
    %208 = arith.addf %206, %207 : vector<1x128xf32>
    %cst_167 = arith.constant 0.000000e+00 : f32
    %209 = vector.broadcast %cst_167 : f32 to vector<1x128xf32>
    %210 = arith.maximumf %208, %209 : vector<1x128xf32>
    %c0_168 = arith.constant 0 : index
    %c0_169 = arith.constant 0 : index
    %211 = vector.load %arg20[%c0_168, %c0_169] : memref<128x256xf32, #tpu.memory_space<vmem>>, vector<128x256xf32>
    %cst_170 = arith.constant dense<0.000000e+00> : vector<1x256xf32>
    %212 = tpu.matmul %210, %211, %cst_170 {dimension_numbers = #tpu.dot_dimension_numbers<[1], [0], [0], [1], [0, 0, 1, 1], [], []>} : vector<1x128xf32>, vector<128x256xf32>, vector<1x256xf32> -> vector<1x256xf32>
    %c0_171 = arith.constant 0 : index
    %c0_172 = arith.constant 0 : index
    %213 = vector.load %arg21[%c0_171, %c0_172] : memref<1x256xf32, #tpu.memory_space<vmem>>, vector<1x256xf32>
    %214 = arith.addf %212, %213 : vector<1x256xf32>
    %215 = arith.negf %214 : vector<1x256xf32>
    %216 = math.exp %215 : vector<1x256xf32>
    %cst_173 = arith.constant 1.000000e+00 : f32
    %217 = vector.broadcast %cst_173 : f32 to vector<1x256xf32>
    %218 = arith.addf %217, %216 : vector<1x256xf32>
    %219 = arith.divf %217, %218 : vector<1x256xf32>
    %220 = vector.broadcast %219 : vector<1x256xf32> to vector<16x256xf32>
    %221 = arith.mulf %200, %220 : vector<16x256xf32>
    %c0_174 = arith.constant 0 : index
    %c0_175 = arith.constant 0 : index
    %222 = vector.load %arg23[%c0_174, %c0_175] : memref<1x512xf32, #tpu.memory_space<vmem>>, vector<1x512xf32>
    %223 = vector.extract_strided_slice %221 {offsets = [0, 0], sizes = [4, 256], strides = [1, 1]} : vector<16x256xf32> to vector<4x256xf32>
    %cst_176 = arith.constant dense<0.000000e+00> : vector<256xf32>
    %224 = vector.multi_reduction <add>, %223, %cst_176 [0] : vector<4x256xf32> to vector<256xf32>
    %225 = vector.shape_cast %224 : vector<256xf32> to vector<1x256xf32>
    %cst_177 = arith.constant 4.000000e+00 : f32
    %226 = vector.broadcast %cst_177 : f32 to vector<1x256xf32>
    %227 = arith.divf %225, %226 : vector<1x256xf32>
    %c0_178 = arith.constant 0 : index
    %c0_179 = arith.constant 0 : index
    %228 = vector.load %arg22[%c0_178, %c0_179] : memref<1024x512xf32, #tpu.memory_space<vmem>>, vector<256x512xf32>
    %cst_180 = arith.constant dense<0.000000e+00> : vector<1x512xf32>
    %229 = tpu.matmul %227, %228, %cst_180 {dimension_numbers = #tpu.dot_dimension_numbers<[1], [0], [0], [1], [0, 0, 1, 1], [], []>} : vector<1x256xf32>, vector<256x512xf32>, vector<1x512xf32> -> vector<1x512xf32>
    %230 = arith.addf %222, %229 : vector<1x512xf32>
    %231 = vector.extract_strided_slice %221 {offsets = [4, 0], sizes = [4, 256], strides = [1, 1]} : vector<16x256xf32> to vector<4x256xf32>
    %cst_181 = arith.constant dense<0.000000e+00> : vector<256xf32>
    %232 = vector.multi_reduction <add>, %231, %cst_181 [0] : vector<4x256xf32> to vector<256xf32>
    %233 = vector.shape_cast %232 : vector<256xf32> to vector<1x256xf32>
    %cst_182 = arith.constant 4.000000e+00 : f32
    %234 = vector.broadcast %cst_182 : f32 to vector<1x256xf32>
    %235 = arith.divf %233, %234 : vector<1x256xf32>
    %c256 = arith.constant 256 : index
    %c0_183 = arith.constant 0 : index
    %236 = vector.load %arg22[%c256, %c0_183] : memref<1024x512xf32, #tpu.memory_space<vmem>>, vector<256x512xf32>
    %cst_184 = arith.constant dense<0.000000e+00> : vector<1x512xf32>
    %237 = tpu.matmul %235, %236, %cst_184 {dimension_numbers = #tpu.dot_dimension_numbers<[1], [0], [0], [1], [0, 0, 1, 1], [], []>} : vector<1x256xf32>, vector<256x512xf32>, vector<1x512xf32> -> vector<1x512xf32>
    %238 = arith.addf %230, %237 : vector<1x512xf32>
    %239 = vector.extract_strided_slice %221 {offsets = [8, 0], sizes = [4, 256], strides = [1, 1]} : vector<16x256xf32> to vector<4x256xf32>
    %cst_185 = arith.constant dense<0.000000e+00> : vector<256xf32>
    %240 = vector.multi_reduction <add>, %239, %cst_185 [0] : vector<4x256xf32> to vector<256xf32>
    %241 = vector.shape_cast %240 : vector<256xf32> to vector<1x256xf32>
    %cst_186 = arith.constant 4.000000e+00 : f32
    %242 = vector.broadcast %cst_186 : f32 to vector<1x256xf32>
    %243 = arith.divf %241, %242 : vector<1x256xf32>
    %c512 = arith.constant 512 : index
    %c0_187 = arith.constant 0 : index
    %244 = vector.load %arg22[%c512, %c0_187] : memref<1024x512xf32, #tpu.memory_space<vmem>>, vector<256x512xf32>
    %cst_188 = arith.constant dense<0.000000e+00> : vector<1x512xf32>
    %245 = tpu.matmul %243, %244, %cst_188 {dimension_numbers = #tpu.dot_dimension_numbers<[1], [0], [0], [1], [0, 0, 1, 1], [], []>} : vector<1x256xf32>, vector<256x512xf32>, vector<1x512xf32> -> vector<1x512xf32>
    %246 = arith.addf %238, %245 : vector<1x512xf32>
    %247 = vector.extract_strided_slice %221 {offsets = [12, 0], sizes = [4, 256], strides = [1, 1]} : vector<16x256xf32> to vector<4x256xf32>
    %cst_189 = arith.constant dense<0.000000e+00> : vector<256xf32>
    %248 = vector.multi_reduction <add>, %247, %cst_189 [0] : vector<4x256xf32> to vector<256xf32>
    %249 = vector.shape_cast %248 : vector<256xf32> to vector<1x256xf32>
    %cst_190 = arith.constant 4.000000e+00 : f32
    %250 = vector.broadcast %cst_190 : f32 to vector<1x256xf32>
    %251 = arith.divf %249, %250 : vector<1x256xf32>
    %c768 = arith.constant 768 : index
    %c0_191 = arith.constant 0 : index
    %252 = vector.load %arg22[%c768, %c0_191] : memref<1024x512xf32, #tpu.memory_space<vmem>>, vector<256x512xf32>
    %cst_192 = arith.constant dense<0.000000e+00> : vector<1x512xf32>
    %253 = tpu.matmul %251, %252, %cst_192 {dimension_numbers = #tpu.dot_dimension_numbers<[1], [0], [0], [1], [0, 0, 1, 1], [], []>} : vector<1x256xf32>, vector<256x512xf32>, vector<1x512xf32> -> vector<1x512xf32>
    %254 = arith.addf %246, %253 : vector<1x512xf32>
    %cst_193 = arith.constant 0.000000e+00 : f32
    %255 = vector.broadcast %cst_193 : f32 to vector<1x512xf32>
    %256 = arith.maximumf %254, %255 : vector<1x512xf32>
    %c0_194 = arith.constant 0 : index
    %c0_195 = arith.constant 0 : index
    %257 = vector.load %arg24[%c0_194, %c0_195] : memref<512x512xf32, #tpu.memory_space<vmem>>, vector<512x512xf32>
    %cst_196 = arith.constant dense<0.000000e+00> : vector<1x512xf32>
    %258 = tpu.matmul %256, %257, %cst_196 {dimension_numbers = #tpu.dot_dimension_numbers<[1], [0], [0], [1], [0, 0, 1, 1], [], []>} : vector<1x512xf32>, vector<512x512xf32>, vector<1x512xf32> -> vector<1x512xf32>
    %c0_197 = arith.constant 0 : index
    %c0_198 = arith.constant 0 : index
    %259 = vector.load %arg25[%c0_197, %c0_198] : memref<1x512xf32, #tpu.memory_space<vmem>>, vector<1x512xf32>
    %260 = arith.addf %258, %259 : vector<1x512xf32>
    %cst_199 = arith.constant 0.000000e+00 : f32
    %261 = vector.broadcast %cst_199 : f32 to vector<1x512xf32>
    %262 = arith.maximumf %260, %261 : vector<1x512xf32>
    %c0_200 = arith.constant 0 : index
    %c0_201 = arith.constant 0 : index
    %263 = vector.load %arg26[%c0_200, %c0_201] : memref<512x10xf32, #tpu.memory_space<vmem>>, vector<512x10xf32>
    %cst_202 = arith.constant dense<0.000000e+00> : vector<1x10xf32>
    %264 = tpu.matmul %262, %263, %cst_202 {dimension_numbers = #tpu.dot_dimension_numbers<[1], [0], [0], [1], [0, 0, 1, 1], [], []>} : vector<1x512xf32>, vector<512x10xf32>, vector<1x10xf32> -> vector<1x10xf32>
    %c0_203 = arith.constant 0 : index
    %c0_204 = arith.constant 0 : index
    %265 = vector.load %arg27[%c0_203, %c0_204] : memref<1x10xf32, #tpu.memory_space<vmem>>, vector<1x10xf32>
    %266 = arith.addf %264, %265 : vector<1x10xf32>
    %c0_205 = arith.constant 0 : index
    %c0_206 = arith.constant 0 : index
    %c0_207 = arith.constant 0 : index
    %267 = vector.load %arg28[%c0_205, %c0_206, %c0_207] : memref<1x1x10xf32, #tpu.memory_space<vmem>>, vector<1x1x10xf32>
    %268 = vector.shape_cast %267 : vector<1x1x10xf32> to vector<1x10xf32>
    %269 = vector.shape_cast %266 : vector<1x10xf32> to vector<1x1x10xf32>
    tpu.vector_store %arg28[%c0_205, %c0_206, %c0_207], %269 {strides = array<i32>} : memref<1x1x10xf32, #tpu.memory_space<vmem>>, vector<1x1x10xf32>,
    return
  }
  func.func @transform_0(%arg0: i32) -> (i32, i32, i32) {
    %c0_i32 = arith.constant 0 : i32
    %c0_i32_0 = arith.constant 0 : i32
    %c0_i32_1 = arith.constant 0 : i32
    return %arg0, %c0_i32, %c0_i32_0 : i32, i32, i32
  }
  func.func @transform_1(%arg0: i32) -> (i32, i32) {
    %c0_i32 = arith.constant 0 : i32
    %c0_i32_0 = arith.constant 0 : i32
    %c0_i32_1 = arith.constant 0 : i32
    return %c0_i32, %c0_i32_0 : i32, i32
  }
  func.func @transform_2(%arg0: i32) -> (i32, i32) {
    %c0_i32 = arith.constant 0 : i32
    %c0_i32_0 = arith.constant 0 : i32
    %c0_i32_1 = arith.constant 0 : i32
    return %c0_i32, %c0_i32_0 : i32, i32
  }
  func.func @transform_3(%arg0: i32) -> (i32, i32) {
    %c0_i32 = arith.constant 0 : i32
    %c0_i32_0 = arith.constant 0 : i32
    %c0_i32_1 = arith.constant 0 : i32
    return %c0_i32, %c0_i32_0 : i32, i32
  }
  func.func @transform_4(%arg0: i32) -> (i32, i32) {
    %c0_i32 = arith.constant 0 : i32
    %c0_i32_0 = arith.constant 0 : i32
    %c0_i32_1 = arith.constant 0 : i32
    return %c0_i32, %c0_i32_0 : i32, i32
  }
  func.func @transform_5(%arg0: i32) -> (i32, i32, i32) {
    %c0_i32 = arith.constant 0 : i32
    %c0_i32_0 = arith.constant 0 : i32
    %c0_i32_1 = arith.constant 0 : i32
    %c0_i32_2 = arith.constant 0 : i32
    return %c0_i32, %c0_i32_0, %c0_i32_1 : i32, i32, i32
  }
  func.func @transform_6(%arg0: i32) -> (i32, i32) {
    %c0_i32 = arith.constant 0 : i32
    %c0_i32_0 = arith.constant 0 : i32
    %c0_i32_1 = arith.constant 0 : i32
    return %c0_i32, %c0_i32_0 : i32, i32
  }
  func.func @transform_7(%arg0: i32) -> (i32, i32) {
    %c0_i32 = arith.constant 0 : i32
    %c0_i32_0 = arith.constant 0 : i32
    %c0_i32_1 = arith.constant 0 : i32
    return %c0_i32, %c0_i32_0 : i32, i32
  }
  func.func @transform_8(%arg0: i32) -> (i32, i32) {
    %c0_i32 = arith.constant 0 : i32
    %c0_i32_0 = arith.constant 0 : i32
    %c0_i32_1 = arith.constant 0 : i32
    return %c0_i32, %c0_i32_0 : i32, i32
  }
  func.func @transform_9(%arg0: i32) -> (i32, i32) {
    %c0_i32 = arith.constant 0 : i32
    %c0_i32_0 = arith.constant 0 : i32
    %c0_i32_1 = arith.constant 0 : i32
    return %c0_i32, %c0_i32_0 : i32, i32
  }
  func.func @transform_10(%arg0: i32) -> (i32, i32) {
    %c0_i32 = arith.constant 0 : i32
    %c0_i32_0 = arith.constant 0 : i32
    %c0_i32_1 = arith.constant 0 : i32
    return %c0_i32, %c0_i32_0 : i32, i32
  }
  func.func @transform_11(%arg0: i32) -> (i32, i32) {
    %c0_i32 = arith.constant 0 : i32
    %c0_i32_0 = arith.constant 0 : i32
    %c0_i32_1 = arith.constant 0 : i32
    return %c0_i32, %c0_i32_0 : i32, i32
  }
  func.func @transform_12(%arg0: i32) -> (i32, i32) {
    %c0_i32 = arith.constant 0 : i32
    %c0_i32_0 = arith.constant 0 : i32
    %c0_i32_1 = arith.constant 0 : i32
    return %c0_i32, %c0_i32_0 : i32, i32
  }
  func.func @transform_13(%arg0: i32) -> (i32, i32, i32) {
    %c0_i32 = arith.constant 0 : i32
    %c0_i32_0 = arith.constant 0 : i32
    %c0_i32_1 = arith.constant 0 : i32
    %c0_i32_2 = arith.constant 0 : i32
    return %c0_i32, %c0_i32_0, %c0_i32_1 : i32, i32, i32
  }
  func.func @transform_14(%arg0: i32) -> (i32, i32) {
    %c0_i32 = arith.constant 0 : i32
    %c0_i32_0 = arith.constant 0 : i32
    %c0_i32_1 = arith.constant 0 : i32
    return %c0_i32, %c0_i32_0 : i32, i32
  }
  func.func @transform_15(%arg0: i32) -> (i32, i32) {
    %c0_i32 = arith.constant 0 : i32
    %c0_i32_0 = arith.constant 0 : i32
    %c0_i32_1 = arith.constant 0 : i32
    return %c0_i32, %c0_i32_0 : i32, i32
  }
  func.func @transform_16(%arg0: i32) -> (i32, i32) {
    %c0_i32 = arith.constant 0 : i32
    %c0_i32_0 = arith.constant 0 : i32
    %c0_i32_1 = arith.constant 0 : i32
    return %c0_i32, %c0_i32_0 : i32, i32
  }
  func.func @transform_17(%arg0: i32) -> (i32, i32) {
    %c0_i32 = arith.constant 0 : i32
    %c0_i32_0 = arith.constant 0 : i32
    %c0_i32_1 = arith.constant 0 : i32
    return %c0_i32, %c0_i32_0 : i32, i32
  }
  func.func @transform_18(%arg0: i32) -> (i32, i32) {
    %c0_i32 = arith.constant 0 : i32
    %c0_i32_0 = arith.constant 0 : i32
    %c0_i32_1 = arith.constant 0 : i32
    return %c0_i32, %c0_i32_0 : i32, i32
  }
  func.func @transform_19(%arg0: i32) -> (i32, i32) {
    %c0_i32 = arith.constant 0 : i32
    %c0_i32_0 = arith.constant 0 : i32
    %c0_i32_1 = arith.constant 0 : i32
    return %c0_i32, %c0_i32_0 : i32, i32
  }
  func.func @transform_20(%arg0: i32) -> (i32, i32) {
    %c0_i32 = arith.constant 0 : i32
    %c0_i32_0 = arith.constant 0 : i32
    %c0_i32_1 = arith.constant 0 : i32
    return %c0_i32, %c0_i32_0 : i32, i32
  }
  func.func @transform_21(%arg0: i32) -> (i32, i32) {
    %c0_i32 = arith.constant 0 : i32
    %c0_i32_0 = arith.constant 0 : i32
    %c0_i32_1 = arith.constant 0 : i32
    return %c0_i32, %c0_i32_0 : i32, i32
  }
  func.func @transform_22(%arg0: i32) -> (i32, i32) {
    %c0_i32 = arith.constant 0 : i32
    %c0_i32_0 = arith.constant 0 : i32
    %c0_i32_1 = arith.constant 0 : i32
    return %c0_i32, %c0_i32_0 : i32, i32
  }
  func.func @transform_23(%arg0: i32) -> (i32, i32) {
    %c0_i32 = arith.constant 0 : i32
    %c0_i32_0 = arith.constant 0 : i32
    %c0_i32_1 = arith.constant 0 : i32
    return %c0_i32, %c0_i32_0 : i32, i32
  }
  func.func @transform_24(%arg0: i32) -> (i32, i32) {
    %c0_i32 = arith.constant 0 : i32
    %c0_i32_0 = arith.constant 0 : i32
    %c0_i32_1 = arith.constant 0 : i32
    return %c0_i32, %c0_i32_0 : i32, i32
  }
  func.func @transform_25(%arg0: i32) -> (i32, i32) {
    %c0_i32 = arith.constant 0 : i32
    %c0_i32_0 = arith.constant 0 : i32
    %c0_i32_1 = arith.constant 0 : i32
    return %c0_i32, %c0_i32_0 : i32, i32
  }
  func.func @transform_26(%arg0: i32) -> (i32, i32) {
    %c0_i32 = arith.constant 0 : i32
    %c0_i32_0 = arith.constant 0 : i32
    %c0_i32_1 = arith.constant 0 : i32
    return %c0_i32, %c0_i32_0 : i32, i32
  }
  func.func @transform_27(%arg0: i32) -> (i32, i32, i32) {
    %c0_i32 = arith.constant 0 : i32
    %c0_i32_0 = arith.constant 0 : i32
    %c0_i32_1 = arith.constant 0 : i32
    return %arg0, %c0_i32, %c0_i32_0 : i32, i32, i32
  }
}

</mosaic_0001>

<llo_original>
// kernel: multi_scale_cnn_forward.1
$region0: #{multi_scale_cnn_forward.1}
  #allocation0 [shape = 'u32[]', space=smem, size = 0x4, offset = 0x4, fixed_abs, tag = 'smem constant byte address 0x4 - core index']
  #allocation1 [shape = 'u32[144,128]{1,0:T(1,128)}', space=vmem, size = 0x12000, scoped, tag = 'internal scratch']
  #allocation2 [shape = 'f32[26,16]{1,0:T(8,128)}', space=vmem, size = 0x4000, scoped, tag = 'scratch operand']
  #allocation3 [shape = 'f32[16,128]{1,0:T(8,128)}', space=vmem, size = 0x2000, scoped, tag = 'scratch operand']
  #allocation4 [shape = 'f32[26,128]{1,0:T(8,128)}', space=vmem, size = 0x4000, scoped, tag = 'scratch operand']
  #allocation5 [shape = 'f32[16,256]{1,0:T(8,128)}', space=vmem, size = 0x4000, scoped, tag = 'scratch operand']
  %s0 = inlined_call_operand.vmem [shape: f32[2,64,25], index: 0, kind: input, shape index: {}]
  %s1 = inlined_call_operand.vmem [shape: f32[25,16], index: 1, kind: input, shape index: {}]
  %s2 = inlined_call_operand.vmem [shape: f32[1,16], index: 2, kind: input, shape index: {}]
  %s3 = inlined_call_operand.vmem [shape: f32[1,16], index: 3, kind: input, shape index: {}]
  %s4 = inlined_call_operand.vmem [shape: f32[1,16], index: 4, kind: input, shape index: {}]
  %s5 = inlined_call_operand.vmem [shape: f32[4,48,32], index: 5, kind: input, shape index: {}]
  %s6 = inlined_call_operand.vmem [shape: f32[1,128], index: 6, kind: input, shape index: {}]
  %s7 = inlined_call_operand.vmem [shape: f32[1,128], index: 7, kind: input, shape index: {}]
  %s8 = inlined_call_operand.vmem [shape: f32[1,128], index: 8, kind: input, shape index: {}]
  %s9 = inlined_call_operand.vmem [shape: f32[128,64], index: 9, kind: input, shape index: {}]
  %s10 = inlined_call_operand.vmem [shape: f32[1,64], index: 10, kind: input, shape index: {}]
  %s11 = inlined_call_operand.vmem [shape: f32[64,128], index: 11, kind: input, shape index: {}]
  %s12 = inlined_call_operand.vmem [shape: f32[1,128], index: 12, kind: input, shape index: {}]
  %s13 = inlined_call_operand.vmem [shape: f32[4,384,64], index: 13, kind: input, shape index: {}]
  %s14 = inlined_call_operand.vmem [shape: f32[1,256], index: 14, kind: input, shape index: {}]
  %s15 = inlined_call_operand.vmem [shape: f32[1,256], index: 15, kind: input, shape index: {}]
  %s16 = inlined_call_operand.vmem [shape: f32[1,256], index: 16, kind: input, shape index: {}]
  %s17 = inlined_call_operand.vmem [shape: f32[256,128], index: 17, kind: input, shape index: {}]
  %s18 = inlined_call_operand.vmem [shape: f32[1,128], index: 18, kind: input, shape index: {}]
  %s19 = inlined_call_operand.vmem [shape: f32[128,256], index: 19, kind: input, shape index: {}]
  %s20 = inlined_call_operand.vmem [shape: f32[1,256], index: 20, kind: input, shape index: {}]
  %s21 = inlined_call_operand.vmem [shape: f32[1024,512], index: 21, kind: input, shape index: {}]
  %s22 = inlined_call_operand.vmem [shape: f32[1,512], index: 22, kind: input, shape index: {}]
  %s23 = inlined_call_operand.vmem [shape: f32[512,512], index: 23, kind: input, shape index: {}]
  %s24 = inlined_call_operand.vmem [shape: f32[1,512], index: 24, kind: input, shape index: {}]
  %s25 = inlined_call_operand.vmem [shape: f32[512,10], index: 25, kind: input, shape index: {}]
  %s26 = inlined_call_operand.vmem [shape: f32[1,10], index: 26, kind: input, shape index: {}]
  %s27 = inlined_call_operand.hbm [shape: f32[2,1,10], index: 27, kind: output, shape index: {}]
  %s28 = sld [smem:[#allocation0]]
  $region141: #{multi_scale_cnn_forward.1} parent=0
    _
  %s30 = ssub.s32 1, %s28
  %s31 = scalar_select 0, %s30, %s28
  $region1: #{multi_scale_cnn_forward.1} parent=0
    #allocation6 [shape = 'u8[1024]{0}', space=vmem, size = 0x400, scoped, tag = 'output window, operand 0']
    #allocation7 [shape = 's32[2]{0}', space=sflag, size = 0x8, scoped, tag = 'scoped memory for multi_scale_cnn_forward.1']
    %32 = vsyncpa [#allocation7], 0
    %s33 = scalar_lea.sflag [#allocation7], 1
    %34 = vsyncpa %s33, 0
    loop: start=0, step=1, limit=4
    $region2: #{multi_scale_cnn_forward.1} parent=1 // loop_pre_header
      _
    $region3: #{multi_scale_cnn_forward.1} parent=1 // loop_header
      %s36 = sphi 0, %s40
      %p37 = scmp.ge.s32.totalorder %s36, 4
      %s46 = sphi 0, %s48
      %s49 = sphi 0, %s46
      %s50 = sphi 0, %s49
      %s66 = sphi 0, %s50
      %s70 = sphi 0, %s70
      %s72 = sphi 0, %s70
      %s73 = sphi 0, %s72
      %s87 = sphi 0, %s73
      %s91 = sphi 0, %s91
      %s93 = sphi 0, %s91
      %s94 = sphi 0, %s93
      %s108 = sphi 0, %s94
      %s112 = sphi 0, %s112
      %s114 = sphi 0, %s112
      %s115 = sphi 0, %s114
      %s129 = sphi 0, %s115
      %s133 = sphi 0, %s133
      %s135 = sphi 0, %s133
      %s136 = sphi 0, %s135
      %s150 = sphi 0, %s136
      %s154 = sphi 0, %s154
      %s156 = sphi 0, %s154
      %s157 = sphi 0, %s156
      %s171 = sphi 0, %s157
      %s175 = sphi 0, %s175
      %s177 = sphi 0, %s175
      %s178 = sphi 0, %s177
      %s192 = sphi 0, %s178
      %s196 = sphi 0, %s196
      %s198 = sphi 0, %s196
      %s199 = sphi 0, %s198
      %s213 = sphi 0, %s199
      %s217 = sphi 0, %s217
      %s219 = sphi 0, %s217
      %s220 = sphi 0, %s219
      %s234 = sphi 0, %s220
      %s238 = sphi 0, %s238
      %s240 = sphi 0, %s238
      %s241 = sphi 0, %s240
      %s255 = sphi 0, %s241
      %s259 = sphi 0, %s259
      %s261 = sphi 0, %s259
      %s262 = sphi 0, %s261
      %s276 = sphi 0, %s262
      %s280 = sphi 0, %s280
      %s282 = sphi 0, %s280
      %s283 = sphi 0, %s282
      %s297 = sphi 0, %s283
      %s301 = sphi 0, %s301
      %s303 = sphi 0, %s301
      %s304 = sphi 0, %s303
      %s318 = sphi 0, %s304
      %s322 = sphi 0, %s322
      %s324 = sphi 0, %s322
      %s325 = sphi 0, %s324
      %s339 = sphi 0, %s325
      %s343 = sphi 0, %s343
      %s345 = sphi 0, %s343
      %s346 = sphi 0, %s345
      %s360 = sphi 0, %s346
      %s364 = sphi 0, %s364
      %s366 = sphi 0, %s364
      %s367 = sphi 0, %s366
      %s381 = sphi 0, %s367
      %s385 = sphi 0, %s385
      %s387 = sphi 0, %s385
      %s388 = sphi 0, %s387
      %s402 = sphi 0, %s388
      %s406 = sphi 0, %s406
      %s408 = sphi 0, %s406
      %s409 = sphi 0, %s408
      %s423 = sphi 0, %s409
      %s427 = sphi 0, %s427
      %s429 = sphi 0, %s427
      %s430 = sphi 0, %s429
      %s444 = sphi 0, %s430
      %s448 = sphi 0, %s448
      %s450 = sphi 0, %s448
      %s451 = sphi 0, %s450
      %s465 = sphi 0, %s451
      %s469 = sphi 0, %s469
      %s471 = sphi 0, %s469
      %s472 = sphi 0, %s471
      %s486 = sphi 0, %s472
      %s490 = sphi 0, %s490
      %s492 = sphi 0, %s490
      %s493 = sphi 0, %s492
      %s507 = sphi 0, %s493
      %s511 = sphi 0, %s511
      %s513 = sphi 0, %s511
      %s514 = sphi 0, %s513
      %s528 = sphi 0, %s514
      %s532 = sphi 0, %s532
      %s534 = sphi 0, %s532
      %s535 = sphi 0, %s534
      %s549 = sphi 0, %s535
      %s553 = sphi 0, %s553
      %s555 = sphi 0, %s553
      %s556 = sphi 0, %s555
      %s570 = sphi 0, %s556
      %s574 = sphi 0, %s574
      %s576 = sphi 0, %s574
      %s577 = sphi 0, %s576
      %s591 = sphi 0, %s577
      %s595 = sphi 0, %s595
      %s597 = sphi 0, %s595
      %s598 = sphi 0, %s597
      %s612 = sphi 0, %s598
      %s618 = sphi 0, %s620
      %s621 = sphi 0, %s618
      %s622 = sphi 0, %s621
      %s638 = sphi 0, %s622
    $region4: #{multi_scale_cnn_forward.1} parent=1 // loop_header_branch
      %39 = sbr.rel (%p37) target = $region8
    $region5: #{multi_scale_cnn_forward.1} parent=1 // loop_body
      %s41 = ssub.s32 %s36, 1
      %s42 = ssub.s32 %s36, 2
      %s43 = sadd.s32 %s36, 1
      %s44 = ssub.s32 %s36, %s43
      %p45 = scmp.eq.s32.totalorder %s44, 0
      %s47 = sadd.s32 %s46, 1
      %s48 = scalar_select %p45, %s46, %s47
      %p51 = pneg %p45
      %p52 = scmp.eq.s32.totalorder %s36, 1
      %p53 = por %p51, %p52
      %p54 = scmp.ne.s32.totalorder %s46, %s49
      %p55 = scmp.eq.s32.totalorder %s36, 0
      %p56 = por %p54, %p55
      %p57 = scmp.ne.s32.totalorder %s46, %s49
      %p58 = scmp.eq.s32.totalorder %s41, 1
      %p59 = por %p57, %p58
      %p60 = scmp.ne.s32.totalorder %s49, %s50
      %p61 = scmp.eq.s32.totalorder %s41, 0
      %p62 = por %p60, %p61
      %p63 = scmp.ne.s32.totalorder %s49, %s50
      %p64 = scmp.eq.s32.totalorder %s42, 1
      %p65 = por %p63, %p64
      %p67 = scmp.ne.s32.totalorder %s50, %s66
      %p68 = scmp.eq.s32.totalorder %s42, 0
      %p69 = por %p67, %p68
      %s71 = sadd.s32 %s70, 1
      %p74 = scmp.eq.s32.totalorder %s36, 1
      %p75 = scmp.ne.s32.totalorder %s70, %s72
      %p76 = scmp.eq.s32.totalorder %s36, 0
      %p77 = por %p75, %p76
      %p78 = scmp.ne.s32.totalorder %s70, %s72
      %p79 = scmp.eq.s32.totalorder %s41, 1
      %p80 = por %p78, %p79
      %p81 = scmp.ne.s32.totalorder %s72, %s73
      %p82 = scmp.eq.s32.totalorder %s41, 0
      %p83 = por %p81, %p82
      %p84 = scmp.ne.s32.totalorder %s72, %s73
      %p85 = scmp.eq.s32.totalorder %s42, 1
      %p86 = por %p84, %p85
      %p88 = scmp.ne.s32.totalorder %s73, %s87
      %p89 = scmp.eq.s32.totalorder %s42, 0
      %p90 = por %p88, %p89
      %s92 = sadd.s32 %s91, 1
      %p95 = scmp.eq.s32.totalorder %s36, 1
      %p96 = scmp.ne.s32.totalorder %s91, %s93
      %p97 = scmp.eq.s32.totalorder %s36, 0
      %p98 = por %p96, %p97
      %p99 = scmp.ne.s32.totalorder %s91, %s93
      %p100 = scmp.eq.s32.totalorder %s41, 1
      %p101 = por %p99, %p100
      %p102 = scmp.ne.s32.totalorder %s93, %s94
      %p103 = scmp.eq.s32.totalorder %s41, 0
      %p104 = por %p102, %p103
      %p105 = scmp.ne.s32.totalorder %s93, %s94
      %p106 = scmp.eq.s32.totalorder %s42, 1
      %p107 = por %p105, %p106
      %p109 = scmp.ne.s32.totalorder %s94, %s108
      %p110 = scmp.eq.s32.totalorder %s42, 0
      %p111 = por %p109, %p110
      %s113 = sadd.s32 %s112, 1
      %p116 = scmp.eq.s32.totalorder %s36, 1
      %p117 = scmp.ne.s32.totalorder %s112, %s114
      %p118 = scmp.eq.s32.totalorder %s36, 0
      %p119 = por %p117, %p118
      %p120 = scmp.ne.s32.totalorder %s112, %s114
      %p121 = scmp.eq.s32.totalorder %s41, 1
      %p122 = por %p120, %p121
      %p123 = scmp.ne.s32.totalorder %s114, %s115
      %p124 = scmp.eq.s32.totalorder %s41, 0
      %p125 = por %p123, %p124
      %p126 = scmp.ne.s32.totalorder %s114, %s115
      %p127 = scmp.eq.s32.totalorder %s42, 1
      %p128 = por %p126, %p127
      %p130 = scmp.ne.s32.totalorder %s115, %s129
      %p131 = scmp.eq.s32.totalorder %s42, 0
      %p132 = por %p130, %p131
      %s134 = sadd.s32 %s133, 1
      %p137 = scmp.eq.s32.totalorder %s36, 1
      %p138 = scmp.ne.s32.totalorder %s133, %s135
      %p139 = scmp.eq.s32.totalorder %s36, 0
      %p140 = por %p138, %p139
      %p141 = scmp.ne.s32.totalorder %s133, %s135
      %p142 = scmp.eq.s32.totalorder %s41, 1
      %p143 = por %p141, %p142
      %p144 = scmp.ne.s32.totalorder %s135, %s136
      %p145 = scmp.eq.s32.totalorder %s41, 0
      %p146 = por %p144, %p145
      %p147 = scmp.ne.s32.totalorder %s135, %s136
      %p148 = scmp.eq.s32.totalorder %s42, 1
      %p149 = por %p147, %p148
      %p151 = scmp.ne.s32.totalorder %s136, %s150
      %p152 = scmp.eq.s32.totalorder %s42, 0
      %p153 = por %p151, %p152
      %s155 = sadd.s32 %s154, 1
      %p158 = scmp.eq.s32.totalorder %s36, 1
      %p159 = scmp.ne.s32.totalorder %s154, %s156
      %p160 = scmp.eq.s32.totalorder %s36, 0
      %p161 = por %p159, %p160
      %p162 = scmp.ne.s32.totalorder %s154, %s156
      %p163 = scmp.eq.s32.totalorder %s41, 1
      %p164 = por %p162, %p163
      %p165 = scmp.ne.s32.totalorder %s156, %s157
      %p166 = scmp.eq.s32.totalorder %s41, 0
      %p167 = por %p165, %p166
      %p168 = scmp.ne.s32.totalorder %s156, %s157
      %p169 = scmp.eq.s32.totalorder %s42, 1
      %p170 = por %p168, %p169
      %p172 = scmp.ne.s32.totalorder %s157, %s171
      %p173 = scmp.eq.s32.totalorder %s42, 0
      %p174 = por %p172, %p173
      %s176 = sadd.s32 %s175, 1
      %p179 = scmp.eq.s32.totalorder %s36, 1
      %p180 = scmp.ne.s32.totalorder %s175, %s177
      %p181 = scmp.eq.s32.totalorder %s36, 0
      %p182 = por %p180, %p181
      %p183 = scmp.ne.s32.totalorder %s175, %s177
      %p184 = scmp.eq.s32.totalorder %s41, 1
      %p185 = por %p183, %p184
      %p186 = scmp.ne.s32.totalorder %s177, %s178
      %p187 = scmp.eq.s32.totalorder %s41, 0
      %p188 = por %p186, %p187
      %p189 = scmp.ne.s32.totalorder %s177, %s178
      %p190 = scmp.eq.s32.totalorder %s42, 1
      %p191 = por %p189, %p190
      %p193 = scmp.ne.s32.totalorder %s178, %s192
      %p194 = scmp.eq.s32.totalorder %s42, 0
      %p195 = por %p193, %p194
      %s197 = sadd.s32 %s196, 1
      %p200 = scmp.eq.s32.totalorder %s36, 1
      %p201 = scmp.ne.s32.totalorder %s196, %s198
      %p202 = scmp.eq.s32.totalorder %s36, 0
      %p203 = por %p201, %p202
      %p204 = scmp.ne.s32.totalorder %s196, %s198
      %p205 = scmp.eq.s32.totalorder %s41, 1
      %p206 = por %p204, %p205
      %p207 = scmp.ne.s32.totalorder %s198, %s199
      %p208 = scmp.eq.s32.totalorder %s41, 0
      %p209 = por %p207, %p208
      %p210 = scmp.ne.s32.totalorder %s198, %s199
      %p211 = scmp.eq.s32.totalorder %s42, 1
      %p212 = por %p210, %p211
      %p214 = scmp.ne.s32.totalorder %s199, %s213
      %p215 = scmp.eq.s32.totalorder %s42, 0
      %p216 = por %p214, %p215
      %s218 = sadd.s32 %s217, 1
      %p221 = scmp.eq.s32.totalorder %s36, 1
      %p222 = scmp.ne.s32.totalorder %s217, %s219
      %p223 = scmp.eq.s32.totalorder %s36, 0
      %p224 = por %p222, %p223
      %p225 = scmp.ne.s32.totalorder %s217, %s219
      %p226 = scmp.eq.s32.totalorder %s41, 1
      %p227 = por %p225, %p226
      %p228 = scmp.ne.s32.totalorder %s219, %s220
      %p229 = scmp.eq.s32.totalorder %s41, 0
      %p230 = por %p228, %p229
      %p231 = scmp.ne.s32.totalorder %s219, %s220
      %p232 = scmp.eq.s32.totalorder %s42, 1
      %p233 = por %p231, %p232
      %p235 = scmp.ne.s32.totalorder %s220, %s234
      %p236 = scmp.eq.s32.totalorder %s42, 0
      %p237 = por %p235, %p236
      %s239 = sadd.s32 %s238, 1
      %p242 = scmp.eq.s32.totalorder %s36, 1
      %p243 = scmp.ne.s32.totalorder %s238, %s240
      %p244 = scmp.eq.s32.totalorder %s36, 0
      %p245 = por %p243, %p244
      %p246 = scmp.ne.s32.totalorder %s238, %s240
      %p247 = scmp.eq.s32.totalorder %s41, 1
      %p248 = por %p246, %p247
      %p249 = scmp.ne.s32.totalorder %s240, %s241
      %p250 = scmp.eq.s32.totalorder %s41, 0
      %p251 = por %p249, %p250
      %p252 = scmp.ne.s32.totalorder %s240, %s241
      %p253 = scmp.eq.s32.totalorder %s42, 1
      %p254 = por %p252, %p253
      %p256 = scmp.ne.s32.totalorder %s241, %s255
      %p257 = scmp.eq.s32.totalorder %s42, 0
      %p258 = por %p256, %p257
      %s260 = sadd.s32 %s259, 1
      %p263 = scmp.eq.s32.totalorder %s36, 1
      %p264 = scmp.ne.s32.totalorder %s259, %s261
      %p265 = scmp.eq.s32.totalorder %s36, 0
      %p266 = por %p264, %p265
      %p267 = scmp.ne.s32.totalorder %s259, %s261
      %p268 = scmp.eq.s32.totalorder %s41, 1
      %p269 = por %p267, %p268
      %p270 = scmp.ne.s32.totalorder %s261, %s262
      %p271 = scmp.eq.s32.totalorder %s41, 0
      %p272 = por %p270, %p271
      %p273 = scmp.ne.s32.totalorder %s261, %s262
      %p274 = scmp.eq.s32.totalorder %s42, 1
      %p275 = por %p273, %p274
      %p277 = scmp.ne.s32.totalorder %s262, %s276
      %p278 = scmp.eq.s32.totalorder %s42, 0
      %p279 = por %p277, %p278
      %s281 = sadd.s32 %s280, 1
      %p284 = scmp.eq.s32.totalorder %s36, 1
      %p285 = scmp.ne.s32.totalorder %s280, %s282
      %p286 = scmp.eq.s32.totalorder %s36, 0
      %p287 = por %p285, %p286
      %p288 = scmp.ne.s32.totalorder %s280, %s282
      %p289 = scmp.eq.s32.totalorder %s41, 1
      %p290 = por %p288, %p289
      %p291 = scmp.ne.s32.totalorder %s282, %s283
      %p292 = scmp.eq.s32.totalorder %s41, 0
      %p293 = por %p291, %p292
      %p294 = scmp.ne.s32.totalorder %s282, %s283
      %p295 = scmp.eq.s32.totalorder %s42, 1
      %p296 = por %p294, %p295
      %p298 = scmp.ne.s32.totalorder %s283, %s297
      %p299 = scmp.eq.s32.totalorder %s42, 0
      %p300 = por %p298, %p299
      %s302 = sadd.s32 %s301, 1
      %p305 = scmp.eq.s32.totalorder %s36, 1
      %p306 = scmp.ne.s32.totalorder %s301, %s303
      %p307 = scmp.eq.s32.totalorder %s36, 0
      %p308 = por %p306, %p307
      %p309 = scmp.ne.s32.totalorder %s301, %s303
      %p310 = scmp.eq.s32.totalorder %s41, 1
      %p311 = por %p309, %p310
      %p312 = scmp.ne.s32.totalorder %s303, %s304
      %p313 = scmp.eq.s32.totalorder %s41, 0
      %p314 = por %p312, %p313
      %p315 = scmp.ne.s32.totalorder %s303, %s304
      %p316 = scmp.eq.s32.totalorder %s42, 1
      %p317 = por %p315, %p316
      %p319 = scmp.ne.s32.totalorder %s304, %s318
      %p320 = scmp.eq.s32.totalorder %s42, 0
      %p321 = por %p319, %p320
      %s323 = sadd.s32 %s322, 1
      %p326 = scmp.eq.s32.totalorder %s36, 1
      %p327 = scmp.ne.s32.totalorder %s322, %s324
      %p328 = scmp.eq.s32.totalorder %s36, 0
      %p329 = por %p327, %p328
      %p330 = scmp.ne.s32.totalorder %s322, %s324
      %p331 = scmp.eq.s32.totalorder %s41, 1
      %p332 = por %p330, %p331
      %p333 = scmp.ne.s32.totalorder %s324, %s325
      %p334 = scmp.eq.s32.totalorder %s41, 0
      %p335 = por %p333, %p334
      %p336 = scmp.ne.s32.totalorder %s324, %s325
      %p337 = scmp.eq.s32.totalorder %s42, 1
      %p338 = por %p336, %p337
      %p340 = scmp.ne.s32.totalorder %s325, %s339
      %p341 = scmp.eq.s32.totalorder %s42, 0
      %p342 = por %p340, %p341
      %s344 = sadd.s32 %s343, 1
      %p347 = scmp.eq.s32.totalorder %s36, 1
      %p348 = scmp.ne.s32.totalorder %s343, %s345
      %p349 = scmp.eq.s32.totalorder %s36, 0
      %p350 = por %p348, %p349
      %p351 = scmp.ne.s32.totalorder %s343, %s345
      %p352 = scmp.eq.s32.totalorder %s41, 1
      %p353 = por %p351, %p352
      %p354 = scmp.ne.s32.totalorder %s345, %s346
      %p355 = scmp.eq.s32.totalorder %s41, 0
      %p356 = por %p354, %p355
      %p357 = scmp.ne.s32.totalorder %s345, %s346
      %p358 = scmp.eq.s32.totalorder %s42, 1
      %p359 = por %p357, %p358
      %p361 = scmp.ne.s32.totalorder %s346, %s360
      %p362 = scmp.eq.s32.totalorder %s42, 0
      %p363 = por %p361, %p362
      %s365 = sadd.s32 %s364, 1
      %p368 = scmp.eq.s32.totalorder %s36, 1
      %p369 = scmp.ne.s32.totalorder %s364, %s366
      %p370 = scmp.eq.s32.totalorder %s36, 0
      %p371 = por %p369, %p370
      %p372 = scmp.ne.s32.totalorder %s364, %s366
      %p373 = scmp.eq.s32.totalorder %s41, 1
      %p374 = por %p372, %p373
      %p375 = scmp.ne.s32.totalorder %s366, %s367
      %p376 = scmp.eq.s32.totalorder %s41, 0
      %p377 = por %p375, %p376
      %p378 = scmp.ne.s32.totalorder %s366, %s367
      %p379 = scmp.eq.s32.totalorder %s42, 1
      %p380 = por %p378, %p379
      %p382 = scmp.ne.s32.totalorder %s367, %s381
      %p383 = scmp.eq.s32.totalorder %s42, 0
      %p384 = por %p382, %p383
      %s386 = sadd.s32 %s385, 1
      %p389 = scmp.eq.s32.totalorder %s36, 1
      %p390 = scmp.ne.s32.totalorder %s385, %s387
      %p391 = scmp.eq.s32.totalorder %s36, 0
      %p392 = por %p390, %p391
      %p393 = scmp.ne.s32.totalorder %s385, %s387
      %p394 = scmp.eq.s32.totalorder %s41, 1
      %p395 = por %p393, %p394
      %p396 = scmp.ne.s32.totalorder %s387, %s388
      %p397 = scmp.eq.s32.totalorder %s41, 0
      %p398 = por %p396, %p397
      %p399 = scmp.ne.s32.totalorder %s387, %s388
      %p400 = scmp.eq.s32.totalorder %s42, 1
      %p401 = por %p399, %p400
      %p403 = scmp.ne.s32.totalorder %s388, %s402
      %p404 = scmp.eq.s32.totalorder %s42, 0
      %p405 = por %p403, %p404
      %s407 = sadd.s32 %s406, 1
      %p410 = scmp.eq.s32.totalorder %s36, 1
      %p411 = scmp.ne.s32.totalorder %s406, %s408
      %p412 = scmp.eq.s32.totalorder %s36, 0
      %p413 = por %p411, %p412
      %p414 = scmp.ne.s32.totalorder %s406, %s408
      %p415 = scmp.eq.s32.totalorder %s41, 1
      %p416 = por %p414, %p415
      %p417 = scmp.ne.s32.totalorder %s408, %s409
      %p418 = scmp.eq.s32.totalorder %s41, 0
      %p419 = por %p417, %p418
      %p420 = scmp.ne.s32.totalorder %s408, %s409
      %p421 = scmp.eq.s32.totalorder %s42, 1
      %p422 = por %p420, %p421
      %p424 = scmp.ne.s32.totalorder %s409, %s423
      %p425 = scmp.eq.s32.totalorder %s42, 0
      %p426 = por %p424, %p425
      %s428 = sadd.s32 %s427, 1
      %p431 = scmp.eq.s32.totalorder %s36, 1
      %p432 = scmp.ne.s32.totalorder %s427, %s429
      %p433 = scmp.eq.s32.totalorder %s36, 0
      %p434 = por %p432, %p433
      %p435 = scmp.ne.s32.totalorder %s427, %s429
      %p436 = scmp.eq.s32.totalorder %s41, 1
      %p437 = por %p435, %p436
      %p438 = scmp.ne.s32.totalorder %s429, %s430
      %p439 = scmp.eq.s32.totalorder %s41, 0
      %p440 = por %p438, %p439
      %p441 = scmp.ne.s32.totalorder %s429, %s430
      %p442 = scmp.eq.s32.totalorder %s42, 1
      %p443 = por %p441, %p442
      %p445 = scmp.ne.s32.totalorder %s430, %s444
      %p446 = scmp.eq.s32.totalorder %s42, 0
      %p447 = por %p445, %p446
      %s449 = sadd.s32 %s448, 1
      %p452 = scmp.eq.s32.totalorder %s36, 1
      %p453 = scmp.ne.s32.totalorder %s448, %s450
      %p454 = scmp.eq.s32.totalorder %s36, 0
      %p455 = por %p453, %p454
      %p456 = scmp.ne.s32.totalorder %s448, %s450
      %p457 = scmp.eq.s32.totalorder %s41, 1
      %p458 = por %p456, %p457
      %p459 = scmp.ne.s32.totalorder %s450, %s451
      %p460 = scmp.eq.s32.totalorder %s41, 0
      %p461 = por %p459, %p460
      %p462 = scmp.ne.s32.totalorder %s450, %s451
      %p463 = scmp.eq.s32.totalorder %s42, 1
      %p464 = por %p462, %p463
      %p466 = scmp.ne.s32.totalorder %s451, %s465
      %p467 = scmp.eq.s32.totalorder %s42, 0
      %p468 = por %p466, %p467
      %s470 = sadd.s32 %s469, 1
      %p473 = scmp.eq.s32.totalorder %s36, 1
      %p474 = scmp.ne.s32.totalorder %s469, %s471
      %p475 = scmp.eq.s32.totalorder %s36, 0
      %p476 = por %p474, %p475
      %p477 = scmp.ne.s32.totalorder %s469, %s471
      %p478 = scmp.eq.s32.totalorder %s41, 1
      %p479 = por %p477, %p478
      %p480 = scmp.ne.s32.totalorder %s471, %s472
      %p481 = scmp.eq.s32.totalorder %s41, 0
      %p482 = por %p480, %p481
      %p483 = scmp.ne.s32.totalorder %s471, %s472
      %p484 = scmp.eq.s32.totalorder %s42, 1
      %p485 = por %p483, %p484
      %p487 = scmp.ne.s32.totalorder %s472, %s486
      %p488 = scmp.eq.s32.totalorder %s42, 0
      %p489 = por %p487, %p488
      %s491 = sadd.s32 %s490, 1
      %p494 = scmp.eq.s32.totalorder %s36, 1
      %p495 = scmp.ne.s32.totalorder %s490, %s492
      %p496 = scmp.eq.s32.totalorder %s36, 0
      %p497 = por %p495, %p496
      %p498 = scmp.ne.s32.totalorder %s490, %s492
      %p499 = scmp.eq.s32.totalorder %s41, 1
      %p500 = por %p498, %p499
      %p501 = scmp.ne.s32.totalorder %s492, %s493
      %p502 = scmp.eq.s32.totalorder %s41, 0
      %p503 = por %p501, %p502
      %p504 = scmp.ne.s32.totalorder %s492, %s493
      %p505 = scmp.eq.s32.totalorder %s42, 1
      %p506 = por %p504, %p505
      %p508 = scmp.ne.s32.totalorder %s493, %s507
      %p509 = scmp.eq.s32.totalorder %s42, 0
      %p510 = por %p508, %p509
      %s512 = sadd.s32 %s511, 1
      %p515 = scmp.eq.s32.totalorder %s36, 1
      %p516 = scmp.ne.s32.totalorder %s511, %s513
      %p517 = scmp.eq.s32.totalorder %s36, 0
      %p518 = por %p516, %p517
      %p519 = scmp.ne.s32.totalorder %s511, %s513
      %p520 = scmp.eq.s32.totalorder %s41, 1
      %p521 = por %p519, %p520
      %p522 = scmp.ne.s32.totalorder %s513, %s514
      %p523 = scmp.eq.s32.totalorder %s41, 0
      %p524 = por %p522, %p523
      %p525 = scmp.ne.s32.totalorder %s513, %s514
      %p526 = scmp.eq.s32.totalorder %s42, 1
      %p527 = por %p525, %p526
      %p529 = scmp.ne.s32.totalorder %s514, %s528
      %p530 = scmp.eq.s32.totalorder %s42, 0
      %p531 = por %p529, %p530
      %s533 = sadd.s32 %s532, 1
      %p536 = scmp.eq.s32.totalorder %s36, 1
      %p537 = scmp.ne.s32.totalorder %s532, %s534
      %p538 = scmp.eq.s32.totalorder %s36, 0
      %p539 = por %p537, %p538
      %p540 = scmp.ne.s32.totalorder %s532, %s534
      %p541 = scmp.eq.s32.totalorder %s41, 1
      %p542 = por %p540, %p541
      %p543 = scmp.ne.s32.totalorder %s534, %s535
      %p544 = scmp.eq.s32.totalorder %s41, 0
      %p545 = por %p543, %p544
      %p546 = scmp.ne.s32.totalorder %s534, %s535
      %p547 = scmp.eq.s32.totalorder %s42, 1
      %p548 = por %p546, %p547
      %p550 = scmp.ne.s32.totalorder %s535, %s549
      %p551 = scmp.eq.s32.totalorder %s42, 0
      %p552 = por %p550, %p551
      %s554 = sadd.s32 %s553, 1
      %p557 = scmp.eq.s32.totalorder %s36, 1
      %p558 = scmp.ne.s32.totalorder %s553, %s555
      %p559 = scmp.eq.s32.totalorder %s36, 0
      %p560 = por %p558, %p559
      %p561 = scmp.ne.s32.totalorder %s553, %s555
      %p562 = scmp.eq.s32.totalorder %s41, 1
      %p563 = por %p561, %p562
      %p564 = scmp.ne.s32.totalorder %s555, %s556
      %p565 = scmp.eq.s32.totalorder %s41, 0
      %p566 = por %p564, %p565
      %p567 = scmp.ne.s32.totalorder %s555, %s556
      %p568 = scmp.eq.s32.totalorder %s42, 1
      %p569 = por %p567, %p568
      %p571 = scmp.ne.s32.totalorder %s556, %s570
      %p572 = scmp.eq.s32.totalorder %s42, 0
      %p573 = por %p571, %p572
      %s575 = sadd.s32 %s574, 1
      %p578 = scmp.eq.s32.totalorder %s36, 1
      %p579 = scmp.ne.s32.totalorder %s574, %s576
      %p580 = scmp.eq.s32.totalorder %s36, 0
      %p581 = por %p579, %p580
      %p582 = scmp.ne.s32.totalorder %s574, %s576
      %p583 = scmp.eq.s32.totalorder %s41, 1
      %p584 = por %p582, %p583
      %p585 = scmp.ne.s32.totalorder %s576, %s577
      %p586 = scmp.eq.s32.totalorder %s41, 0
      %p587 = por %p585, %p586
      %p588 = scmp.ne.s32.totalorder %s576, %s577
      %p589 = scmp.eq.s32.totalorder %s42, 1
      %p590 = por %p588, %p589
      %p592 = scmp.ne.s32.totalorder %s577, %s591
      %p593 = scmp.eq.s32.totalorder %s42, 0
      %p594 = por %p592, %p593
      %s596 = sadd.s32 %s595, 1
      %p599 = scmp.eq.s32.totalorder %s36, 1
      %p600 = scmp.ne.s32.totalorder %s595, %s597
      %p601 = scmp.eq.s32.totalorder %s36, 0
      %p602 = por %p600, %p601
      %p603 = scmp.ne.s32.totalorder %s595, %s597
      %p604 = scmp.eq.s32.totalorder %s41, 1
      %p605 = por %p603, %p604
      %p606 = scmp.ne.s32.totalorder %s597, %s598
      %p607 = scmp.eq.s32.totalorder %s41, 0
      %p608 = por %p606, %p607
      %p609 = scmp.ne.s32.totalorder %s597, %s598
      %p610 = scmp.eq.s32.totalorder %s42, 1
      %p611 = por %p609, %p610
      %p613 = scmp.ne.s32.totalorder %s598, %s612
      %p614 = scmp.eq.s32.totalorder %s42, 0
      %p615 = por %p613, %p614
      %s616 = ssub.s32 %s36, %s43
      %p617 = scmp.eq.s32.totalorder %s616, 0
      %s619 = sadd.s32 %s618, 1
      %s620 = scalar_select %p617, %s618, %s619
      %p623 = pneg %p617
      %p624 = scmp.eq.s32.totalorder %s36, 1
      %p625 = por %p623, %p624
      %p626 = scmp.ne.s32.totalorder %s618, %s621
      %p627 = scmp.eq.s32.totalorder %s36, 0
      %p628 = por %p626, %p627
      %p629 = scmp.ne.s32.totalorder %s618, %s621
      %p630 = scmp.eq.s32.totalorder %s41, 1
      %p631 = por %p629, %p630
      %p632 = scmp.ne.s32.totalorder %s621, %s622
      %p633 = scmp.eq.s32.totalorder %s41, 0
      %p634 = por %p632, %p633
      %p635 = scmp.ne.s32.totalorder %s621, %s622
      %p636 = scmp.eq.s32.totalorder %s42, 1
      %p637 = por %p635, %p636
      %p639 = scmp.ne.s32.totalorder %s622, %s638
      %p640 = scmp.eq.s32.totalorder %s42, 0
      %p641 = por %p639, %p640
      %p642 = scmp.le.s32.totalorder 1, %s36
      %p643 = scmp.lt.s32.totalorder %s36, 3
      %p644 = pnand %p642, %p643
      %p645 = pneg %p644
      // Predicated region
      $region9: #{multi_scale_cnn_forward.1} parent=5 // pred_check
        _
      $region10: #{multi_scale_cnn_forward.1} parent=5 // pred_check_branch
        %647 = sbr.rel (%p644) target = $region12
      $region11: #{multi_scale_cnn_forward.1} parent=5 // pred_region
        %s648 = ssub.s32 %s36, 1
        // Predicated region
        $region13: #{multi_scale_cnn_forward.1} parent=11 // pred_check
          %p649 = pneg %p83
        $region14: #{multi_scale_cnn_forward.1} parent=11 // pred_check_branch
          %651 = sbr.rel (%p649) target = $region16
        $region15: #{multi_scale_cnn_forward.1} parent=11 // pred_region
          _
        $region16: #{multi_scale_cnn_forward.1} parent=11 // pred_fallthru
          _
        // Predicated region
        $region17: #{multi_scale_cnn_forward.1} parent=11 // pred_check
          %p652 = pneg %p104
        $region18: #{multi_scale_cnn_forward.1} parent=11 // pred_check_branch
          %654 = sbr.rel (%p652) target = $region20
        $region19: #{multi_scale_cnn_forward.1} parent=11 // pred_region
          _
        $region20: #{multi_scale_cnn_forward.1} parent=11 // pred_fallthru
          _
        // Predicated region
        $region21: #{multi_scale_cnn_forward.1} parent=11 // pred_check
          %p655 = pneg %p125
        $region22: #{multi_scale_cnn_forward.1} parent=11 // pred_check_branch
          %657 = sbr.rel (%p655) target = $region24
        $region23: #{multi_scale_cnn_forward.1} parent=11 // pred_region
          _
        $region24: #{multi_scale_cnn_forward.1} parent=11 // pred_fallthru
          _
        // Predicated region
        $region25: #{multi_scale_cnn_forward.1} parent=11 // pred_check
          %p658 = pneg %p146
        $region26: #{multi_scale_cnn_forward.1} parent=11 // pred_check_branch
          %660 = sbr.rel (%p658) target = $region28
        $region27: #{multi_scale_cnn_forward.1} parent=11 // pred_region
          _
        $region28: #{multi_scale_cnn_forward.1} parent=11 // pred_fallthru
          _
        // Predicated region
        $region29: #{multi_scale_cnn_forward.1} parent=11 // pred_check
          %p661 = pneg %p167
        $region30: #{multi_scale_cnn_forward.1} parent=11 // pred_check_branch
          %663 = sbr.rel (%p661) target = $region32
        $region31: #{multi_scale_cnn_forward.1} parent=11 // pred_region
          _
        $region32: #{multi_scale_cnn_forward.1} parent=11 // pred_fallthru
          _
        // Predicated region
        $region33: #{multi_scale_cnn_forward.1} parent=11 // pred_check
          %p664 = pneg %p188
        $region34: #{multi_scale_cnn_forward.1} parent=11 // pred_check_branch
          %666 = sbr.rel (%p664) target = $region36
        $region35: #{multi_scale_cnn_forward.1} parent=11 // pred_region
          _
        $region36: #{multi_scale_cnn_forward.1} parent=11 // pred_fallthru
          _
        // Predicated region
        $region37: #{multi_scale_cnn_forward.1} parent=11 // pred_check
          %p667 = pneg %p209
        $region38: #{multi_scale_cnn_forward.1} parent=11 // pred_check_branch
          %669 = sbr.rel (%p667) target = $region40
        $region39: #{multi_scale_cnn_forward.1} parent=11 // pred_region
          _
        $region40: #{multi_scale_cnn_forward.1} parent=11 // pred_fallthru
          _
        // Predicated region
        $region41: #{multi_scale_cnn_forward.1} parent=11 // pred_check
          %p670 = pneg %p230
        $region42: #{multi_scale_cnn_forward.1} parent=11 // pred_check_branch
          %672 = sbr.rel (%p670) target = $region44
        $region43: #{multi_scale_cnn_forward.1} parent=11 // pred_region
          _
        $region44: #{multi_scale_cnn_forward.1} parent=11 // pred_fallthru
          _
        // Predicated region
        $region45: #{multi_scale_cnn_forward.1} parent=11 // pred_check
          %p673 = pneg %p251
        $region46: #{multi_scale_cnn_forward.1} parent=11 // pred_check_branch
          %675 = sbr.rel (%p673) target = $region48
        $region47: #{multi_scale_cnn_forward.1} parent=11 // pred_region
          _
        $region48: #{multi_scale_cnn_forward.1} parent=11 // pred_fallthru
          _
        // Predicated region
        $region49: #{multi_scale_cnn_forward.1} parent=11 // pred_check
          %p676 = pneg %p272
        $region50: #{multi_scale_cnn_forward.1} parent=11 // pred_check_branch
          %678 = sbr.rel (%p676) target = $region52
        $region51: #{multi_scale_cnn_forward.1} parent=11 // pred_region
          _
        $region52: #{multi_scale_cnn_forward.1} parent=11 // pred_fallthru
          _
        // Predicated region
        $region53: #{multi_scale_cnn_forward.1} parent=11 // pred_check
          %p679 = pneg %p293
        $region54: #{multi_scale_cnn_forward.1} parent=11 // pred_check_branch
          %681 = sbr.rel (%p679) target = $region56
        $region55: #{multi_scale_cnn_forward.1} parent=11 // pred_region
          _
        $region56: #{multi_scale_cnn_forward.1} parent=11 // pred_fallthru
          _
        // Predicated region
        $region57: #{multi_scale_cnn_forward.1} parent=11 // pred_check
          %p682 = pneg %p314
        $region58: #{multi_scale_cnn_forward.1} parent=11 // pred_check_branch
          %684 = sbr.rel (%p682) target = $region60
        $region59: #{multi_scale_cnn_forward.1} parent=11 // pred_region
          _
        $region60: #{multi_scale_cnn_forward.1} parent=11 // pred_fallthru
          _
        // Predicated region
        $region61: #{multi_scale_cnn_forward.1} parent=11 // pred_check
          %p685 = pneg %p335
        $region62: #{multi_scale_cnn_forward.1} parent=11 // pred_check_branch
          %687 = sbr.rel (%p685) target = $region64
        $region63: #{multi_scale_cnn_forward.1} parent=11 // pred_region
          _
        $region64: #{multi_scale_cnn_forward.1} parent=11 // pred_fallthru
          _
        // Predicated region
        $region65: #{multi_scale_cnn_forward.1} parent=11 // pred_check
          %p688 = pneg %p356
        $region66: #{multi_scale_cnn_forward.1} parent=11 // pred_check_branch
          %690 = sbr.rel (%p688) target = $region68
        $region67: #{multi_scale_cnn_forward.1} parent=11 // pred_region
          _
        $region68: #{multi_scale_cnn_forward.1} parent=11 // pred_fallthru
          _
        // Predicated region
        $region69: #{multi_scale_cnn_forward.1} parent=11 // pred_check
          %p691 = pneg %p377
        $region70: #{multi_scale_cnn_forward.1} parent=11 // pred_check_branch
          %693 = sbr.rel (%p691) target = $region72
        $region71: #{multi_scale_cnn_forward.1} parent=11 // pred_region
          _
        $region72: #{multi_scale_cnn_forward.1} parent=11 // pred_fallthru
          _
        // Predicated region
        $region73: #{multi_scale_cnn_forward.1} parent=11 // pred_check
          %p694 = pneg %p398
        $region74: #{multi_scale_cnn_forward.1} parent=11 // pred_check_branch
          %696 = sbr.rel (%p694) target = $region76
        $region75: #{multi_scale_cnn_forward.1} parent=11 // pred_region
          _
        $region76: #{multi_scale_cnn_forward.1} parent=11 // pred_fallthru
          _
        // Predicated region
        $region77: #{multi_scale_cnn_forward.1} parent=11 // pred_check
          %p697 = pneg %p419
        $region78: #{multi_scale_cnn_forward.1} parent=11 // pred_check_branch
          %699 = sbr.rel (%p697) target = $region80
        $region79: #{multi_scale_cnn_forward.1} parent=11 // pred_region
          _
        $region80: #{multi_scale_cnn_forward.1} parent=11 // pred_fallthru
          _
        // Predicated region
        $region81: #{multi_scale_cnn_forward.1} parent=11 // pred_check
          %p700 = pneg %p440
        $region82: #{multi_scale_cnn_forward.1} parent=11 // pred_check_branch
          %702 = sbr.rel (%p700) target = $region84
        $region83: #{multi_scale_cnn_forward.1} parent=11 // pred_region
          _
        $region84: #{multi_scale_cnn_forward.1} parent=11 // pred_fallthru
          _
        // Predicated region
        $region85: #{multi_scale_cnn_forward.1} parent=11 // pred_check
          %p703 = pneg %p461
        $region86: #{multi_scale_cnn_forward.1} parent=11 // pred_check_branch
          %705 = sbr.rel (%p703) target = $region88
        $region87: #{multi_scale_cnn_forward.1} parent=11 // pred_region
          _
        $region88: #{multi_scale_cnn_forward.1} parent=11 // pred_fallthru
          _
        // Predicated region
        $region89: #{multi_scale_cnn_forward.1} parent=11 // pred_check
          %p706 = pneg %p482
        $region90: #{multi_scale_cnn_forward.1} parent=11 // pred_check_branch
          %708 = sbr.rel (%p706) target = $region92
        $region91: #{multi_scale_cnn_forward.1} parent=11 // pred_region
          _
        $region92: #{multi_scale_cnn_forward.1} parent=11 // pred_fallthru
          _
        // Predicated region
        $region93: #{multi_scale_cnn_forward.1} parent=11 // pred_check
          %p709 = pneg %p503
        $region94: #{multi_scale_cnn_forward.1} parent=11 // pred_check_branch
          %711 = sbr.rel (%p709) target = $region96
        $region95: #{multi_scale_cnn_forward.1} parent=11 // pred_region
          _
        $region96: #{multi_scale_cnn_forward.1} parent=11 // pred_fallthru
          _
        // Predicated region
        $region97: #{multi_scale_cnn_forward.1} parent=11 // pred_check
          %p712 = pneg %p524
        $region98: #{multi_scale_cnn_forward.1} parent=11 // pred_check_branch
          %714 = sbr.rel (%p712) target = $region100
        $region99: #{multi_scale_cnn_forward.1} parent=11 // pred_region
          _
        $region100: #{multi_scale_cnn_forward.1} parent=11 // pred_fallthru
          _
        // Predicated region
        $region101: #{multi_scale_cnn_forward.1} parent=11 // pred_check
          %p715 = pneg %p545
        $region102: #{multi_scale_cnn_forward.1} parent=11 // pred_check_branch
          %717 = sbr.rel (%p715) target = $region104
        $region103: #{multi_scale_cnn_forward.1} parent=11 // pred_region
          _
        $region104: #{multi_scale_cnn_forward.1} parent=11 // pred_fallthru
          _
        // Predicated region
        $region105: #{multi_scale_cnn_forward.1} parent=11 // pred_check
          %p718 = pneg %p566
        $region106: #{multi_scale_cnn_forward.1} parent=11 // pred_check_branch
          %720 = sbr.rel (%p718) target = $region108
        $region107: #{multi_scale_cnn_forward.1} parent=11 // pred_region
          _
        $region108: #{multi_scale_cnn_forward.1} parent=11 // pred_fallthru
          _
        // Predicated region
        $region109: #{multi_scale_cnn_forward.1} parent=11 // pred_check
          %p721 = pneg %p587
        $region110: #{multi_scale_cnn_forward.1} parent=11 // pred_check_branch
          %723 = sbr.rel (%p721) target = $region112
        $region111: #{multi_scale_cnn_forward.1} parent=11 // pred_region
          _
        $region112: #{multi_scale_cnn_forward.1} parent=11 // pred_fallthru
          _
        // Predicated region
        $region113: #{multi_scale_cnn_forward.1} parent=11 // pred_check
          %p724 = pneg %p608
        $region114: #{multi_scale_cnn_forward.1} parent=11 // pred_check_branch
          %726 = sbr.rel (%p724) target = $region116
        $region115: #{multi_scale_cnn_forward.1} parent=11 // pred_region
          _
        $region116: #{multi_scale_cnn_forward.1} parent=11 // pred_fallthru
          _
      $region12: #{multi_scale_cnn_forward.1} parent=5 // pred_fallthru
        _
      %p727 = scmp.lt.s32.totalorder %s36, 2
      // Predicated region
      $region117: #{multi_scale_cnn_forward.1} parent=5 // pred_check
        %p728 = pneg %p727
      $region118: #{multi_scale_cnn_forward.1} parent=5 // pred_check_branch
        %730 = sbr.rel (%p728) target = $region120
      $region119: #{multi_scale_cnn_forward.1} parent=5 // pred_region
        // Predicated region
        $region121: #{multi_scale_cnn_forward.1} parent=119 // pred_check
          %p731 = pneg %p56
        $region122: #{multi_scale_cnn_forward.1} parent=119 // pred_check_branch
          %733 = sbr.rel (%p731) target = $region124
        $region123: #{multi_scale_cnn_forward.1} parent=119 // pred_region
          %p734 = scmp.lt.s32.totalorder %s36, 1
          %s735 = scalar_select %p734, %s36, 1
          %s736 = smul.addr %s735, 8
          %s737 = smul.addr %s736, 8
          %s738 = scalar_lea.vmem %s0, %s737
        $region124: #{multi_scale_cnn_forward.1} parent=119 // pred_fallthru
          _
      $region120: #{multi_scale_cnn_forward.1} parent=5 // pred_fallthru
        _
      %p739 = scmp.le.s32.totalorder 1, %s36
      %p740 = scmp.lt.s32.totalorder %s36, 3
      %p741 = pnand %p739, %p740
      %p742 = pneg %p741
      // Predicated region
      $region125: #{multi_scale_cnn_forward.1} parent=5 // pred_check
        _
      $region126: #{multi_scale_cnn_forward.1} parent=5 // pred_check_branch
        %744 = sbr.rel (%p741) target = $region128
      $region127: #{multi_scale_cnn_forward.1} parent=5 // pred_region
        %s745 = ssub.s32 %s36, 1
        %p746 = scmp.lt.s32.totalorder %s41, 1
        %s747 = scalar_select %p746, %s41, 1
        %s748 = smul.addr %s747, 8
        %s749 = smul.addr %s748, 8
        %s750 = scalar_lea.vmem %s0, %s749
        %p751 = pneg %p62
        %p752 = pneg %p59
        %p753 = pneg %p83
        %p754 = pneg %p80
        %p755 = pneg %p104
        %p756 = pneg %p101
        %p757 = pneg %p125
        %p758 = pneg %p122
        %p759 = pneg %p146
        %p760 = pneg %p143
        %p761 = pneg %p167
        %p762 = pneg %p164
        %p763 = pneg %p188
        %p764 = pneg %p185
        %p765 = pneg %p209
        %p766 = pneg %p206
        %p767 = pneg %p230
        %p768 = pneg %p227
        %p769 = pneg %p251
        %p770 = pneg %p248
        %p771 = pneg %p272
        %p772 = pneg %p269
        %p773 = pneg %p293
        %p774 = pneg %p290
        %p775 = pneg %p314
        %p776 = pneg %p311
        %p777 = pneg %p335
        %p778 = pneg %p332
        %p779 = pneg %p356
        %p780 = pneg %p353
        %p781 = pneg %p377
        %p782 = pneg %p374
        %p783 = pneg %p398
        %p784 = pneg %p395
        %p785 = pneg %p419
        %p786 = pneg %p416
        %p787 = pneg %p440
        %p788 = pneg %p437
        %p789 = pneg %p461
        %p790 = pneg %p458
        %p791 = pneg %p482
        %p792 = pneg %p479
        %p793 = pneg %p503
        %p794 = pneg %p500
        %p795 = pneg %p524
        %p796 = pneg %p521
        %p797 = pneg %p545
        %p798 = pneg %p542
        %p799 = pneg %p566
        %p800 = pneg %p563
        %p801 = pneg %p587
        %p802 = pneg %p584
        %p803 = pneg %p608
        %p804 = pneg %p605
        %p805 = pneg %p634
        %p806 = pneg %p631
        %s807 = sand.u32 %s621, 1
        %s808 = scalar_lea.sflag [#allocation7], %s807
        %s809 = sand.u32 %s621, 1
        %s810 = scalar_lea.vmem [#allocation6], %s809
        %p811 = scmp.lt.s32.totalorder %s41, 1
        %s812 = scalar_select %p811, %s41, 1
        %s813 = smul.addr %s812, 8
        %s814 = smul.addr %s813, 8
        %s815 = scalar_lea.vmem %s0, %s814
        %v816 = vld [vmem:[%s815] sm:$0xff]
        %v817 = vld [vmem:[%s815 + $0x8] sm:$0xff]
        %v818 = vld [vmem:[%s815 + $0x10] sm:$0xff]
        %v819 = vld [vmem:[%s815 + $0x18] sm:$0xff]
        %v820 = vld [vmem:[%s815 + $0x20] sm:$0xff]
        %v821 = vld [vmem:[%s815 + $0x28] sm:$0xff]
        %v822 = vld [vmem:[%s815 + $0x30] sm:$0xff]
        %v823 = vld [vmem:[%s815 + $0x38] sm:$0xff]
        %v824 = vld [vmem:[%s1] sm:$0xff]
        %v825 = vld [vmem:[%s1 + $0x8] sm:$0xff]
        %v826 = vld [vmem:[%s1 + $0x10] sm:$0xff]
        %v827 = vld [vmem:[%s1 + $0x18] sm:$0x1]
        %v828 = vld [vmem:[%s2] sm:$0x1]
        %v830 = vlaneseq
        %v831 = vshrl.u32 %v830, 7
        %v832 = vsub.s32 0, %v831
        %v833 = vrot.slane %v828, %v832
        %vm835 = vcmask 203776
        %v837 = vsel %vm835, %v816, 0
        %v840 = vsel %vm835, %v817, 0
        %v843 = vsel %vm835, %v818, 0
        %v846 = vsel %vm835, %v819, 0
        %v849 = vsel %vm835, %v820, 0
        %v852 = vsel %vm835, %v821, 0
        %v855 = vsel %vm835, %v822, 0
        %v858 = vsel %vm835, %v823, 0
        %vm860 = vcmask 1040384
        %v862 = vsel %vm860, %v827, 0
        %864 = vmatprep.subr.mxu0 0.0
        %865 = vmatpush1.msra.mxu0 %v824
        %866 = vmatprep.subr.mxu0 0.0
        %867 = vmatpush1.msra.mxu0 %v825
        %868 = vmatprep.subr.mxu0 0.0
        %869 = vmatpush1.msra.mxu0 %v826
        %870 = vmatprep.subr.mxu0 0.0
        %871 = vmatpush1.msra.mxu0 %v862
        %872 = vmatprep.subr.mxu0 0.0
        %873 = vmatpush1.msra.mxu0 0.0
        %874 = vmatprep.subr.mxu0 0.0
        %875 = vmatpush1.msra.mxu0 0.0
        %876 = vmatprep.subr.mxu0 0.0
        %877 = vmatpush1.msra.mxu0 0.0
        %878 = vmatprep.subr.mxu0 0.0
        %879 = vmatpush1.msra.mxu0 0.0
        %880 = vmatprep.subr.mxu0 0.0
        %881 = vmatpush1.msra.mxu0 0.0
        %882 = vmatprep.subr.mxu0 0.0
        %883 = vmatpush1.msra.mxu0 0.0
        %884 = vmatprep.subr.mxu0 0.0
        %885 = vmatpush1.msra.mxu0 0.0
        %886 = vmatprep.subr.mxu0 0.0
        %887 = vmatpush1.msra.mxu0 0.0
        %888 = vmatprep.subr.mxu0 0.0
        %889 = vmatpush1.msra.mxu0 0.0
        %890 = vmatprep.subr.mxu0 0.0
        %891 = vmatpush1.msra.mxu0 0.0
        %892 = vmatprep.subr.mxu0 0.0
        %893 = vmatpush1.msra.mxu0 0.0
        %894 = vmatprep.subr.mxu0 0.0
        %895 = vmatpush1.msra.mxu0 0.0
        %896 = vmatprep.subr.mxu0 0.0
        %897 = vmatpush1.msra.mxu0 0.0
        %898 = vmatprep.subr.mxu0 0.0
        %899 = vmatpush1.msra.mxu0 0.0
        %900 = vmatprep.subr.mxu0 0.0
        %901 = vmatpush1.msra.mxu0 0.0
        %902 = vmatprep.subr.mxu0 0.0
        %903 = vmatpush1.msra.mxu0 0.0
        %904 = vmatprep.subr.mxu0 0.0
        %905 = vmatpush1.msra.mxu0 0.0
        %906 = vmatprep.subr.mxu0 0.0
        %907 = vmatpush1.msra.mxu0 0.0
        %908 = vmatprep.subr.mxu0 0.0
        %909 = vmatpush1.msra.mxu0 0.0
        %910 = vmatprep.subr.mxu0 0.0
        %911 = vmatpush1.msra.mxu0 0.0
        %912 = vmatprep.subr.mxu0 0.0
        %913 = vmatpush1.msra.mxu0 0.0
        %914 = vmatprep.subr.mxu0 0.0
        %915 = vmatpush1.msra.mxu0 0.0
        %916 = vmatprep.subr.mxu0 0.0
        %917 = vmatpush1.msra.mxu0 0.0
        %918 = vmatprep.subr.mxu0 0.0
        %919 = vmatpush1.msra.mxu0 0.0
        %920 = vmatprep.subr.mxu0 0.0
        %921 = vmatpush1.msra.mxu0 0.0
        %922 = vmatprep.subr.mxu0 0.0
        %923 = vmatpush1.msra.mxu0 0.0
        %924 = vmatprep.subr.mxu0 0.0
        %925 = vmatpush1.msra.mxu0 0.0
        %926 = vmatprep.subr.mxu0 0.0
        %927 = vmatpush1.msra.mxu0 0.0
        %928 = vmatprep.mubr.f32.mxu0 0.0
        %929 = vmatmul.mubr.f32.gmra.mrb[0].mxu0 %v837
        %v930 = vpop.f32.mrb[0].mxu0
        %v931 = vadd.f32 %v833, %v930
        %v932 = vpop.f32.mrb[0].mxu0
        %933 = vmatprep.mubr.f32.mxu0 0.0
        %934 = vmatmul.mubr.f32.gmra.mrb[0].mxu0 %v840
        %v935 = vpop.f32.mrb[0].mxu0
        %v936 = vadd.f32 %v833, %v935
        %v937 = vpop.f32.mrb[0].mxu0
        %938 = vmatprep.mubr.f32.mxu0 0.0
        %939 = vmatmul.mubr.f32.gmra.mrb[0].mxu0 %v843
        %v940 = vpop.f32.mrb[0].mxu0
        %v941 = vadd.f32 %v833, %v940
        %v942 = vpop.f32.mrb[0].mxu0
        %943 = vmatprep.mubr.f32.mxu0 0.0
        %944 = vmatmul.mubr.f32.gmra.mrb[0].mxu0 %v846
        %v945 = vpop.f32.mrb[0].mxu0
        %v946 = vadd.f32 %v833, %v945
        %v947 = vpop.f32.mrb[0].mxu0
        %948 = vmatprep.mubr.f32.mxu0 0.0
        %949 = vmatmul.mubr.f32.gmra.mrb[0].mxu0 %v849
        %v950 = vpop.f32.mrb[0].mxu0
        %v951 = vadd.f32 %v833, %v950
        %v952 = vpop.f32.mrb[0].mxu0
        %953 = vmatprep.mubr.f32.mxu0 0.0
        %954 = vmatmul.mubr.f32.gmra.mrb[0].mxu0 %v852
        %v955 = vpop.f32.mrb[0].mxu0
        %v956 = vadd.f32 %v833, %v955
        %v957 = vpop.f32.mrb[0].mxu0
        %958 = vmatprep.mubr.f32.mxu0 0.0
        %959 = vmatmul.mubr.f32.gmra.mrb[0].mxu0 %v855
        %v960 = vpop.f32.mrb[0].mxu0
        %v961 = vadd.f32 %v833, %v960
        %v962 = vpop.f32.mrb[0].mxu0
        %963 = vmatprep.mubr.f32.mxu0 0.0
        %964 = vmatmul.mubr.f32.gmra.mrb[0].mxu0 %v858
        %v965 = vpop.f32.mrb[0].mxu0
        %v966 = vadd.f32 %v833, %v965
        %v967 = vpop.f32.mrb[0].mxu0
        %968 = vdwg.mxu0
        %v969 = vmax.f32 %v931, 0.0
        %v970 = vmax.f32 %v936, 0.0
        %v971 = vmax.f32 %v941, 0.0
        %v972 = vmax.f32 %v946, 0.0
        %v973 = vmax.f32 %v951, 0.0
        %v974 = vmax.f32 %v956, 0.0
        %v975 = vmax.f32 %v961, 0.0
        %v976 = vmax.f32 %v966, 0.0
        %v977 = vld [vmem:[%s3] sm:$0x1]
        %v979 = vlaneseq
        %v980 = vshrl.u32 %v979, 7
        %v981 = vsub.s32 0, %v980
        %v982 = vrot.slane %v977, %v981
        %v984 = vmul.f32 %v969, %v982
        %v985 = vmul.f32 %v970, %v982
        %v986 = vmul.f32 %v971, %v982
        %v987 = vmul.f32 %v972, %v982
        %v988 = vmul.f32 %v973, %v982
        %v989 = vmul.f32 %v974, %v982
        %v990 = vmul.f32 %v975, %v982
        %v991 = vmul.f32 %v976, %v982
        %v992 = vld [vmem:[%s4] sm:$0x1]
        %v994 = vlaneseq
        %v995 = vshrl.u32 %v994, 7
        %v996 = vsub.s32 0, %v995
        %v997 = vrot.slane %v992, %v996
        %v999 = vadd.f32 %v984, %v997
        %v1000 = vadd.f32 %v985, %v997
        %v1001 = vadd.f32 %v986, %v997
        %v1002 = vadd.f32 %v987, %v997
        %v1003 = vadd.f32 %v988, %v997
        %v1004 = vadd.f32 %v989, %v997
        %v1005 = vadd.f32 %v990, %v997
        %v1006 = vadd.f32 %v991, %v997
        %v1007 = vmax.f32 %v999, %v1001
        %v1008 = vmax.f32 %v1000, %v1002
        %v1009 = vmax.f32 %v1003, %v1005
        %v1010 = vmax.f32 %v1004, %v1006
        %v1011 = vmax.f32 %v1007, %v1009
        %v1012 = vmax.f32 %v1008, %v1010
        %vm1013 = vcmask 130048
        %1014 = vst.msk [vmem:[#allocation2] sm:$0xff] %vm1013, 0.0
        %1015 = vst.msk [vmem:[#allocation2 + $0x8] sm:$0xff] %vm1013, 0.0
        %1016 = vst.msk [vmem:[#allocation2 + $0x10] sm:$0xff] %vm1013, 0.0
        %vm1017 = vcmask 123904
        %1018 = vst.msk [vmem:[#allocation2 + $0x18] sm:$0x3] %vm1017, 0.0
        %1019 = vst.msk [vmem:[#allocation2 + $0x5] sm:$0xff] %vm1013, %v1011
        %1020 = vst.msk [vmem:[#allocation2 + $0xd] sm:$0xff] %vm1013, %v1012
        %v1021 = vld [vmem:[%s5] sm:$0xff]
        %v1022 = vld [vmem:[%s5 + $0x8] sm:$0xff]
        %v1023 = vld [vmem:[%s5 + $0x10] sm:$0xff]
        %v1024 = vld [vmem:[%s5 + $0x18] sm:$0xff]
        %v1025 = vld [vmem:[%s5 + $0x20] sm:$0xff]
        %v1026 = vld [vmem:[%s5 + $0x28] sm:$0xff]
        %v1027 = vld [vmem:[#allocation2 + $0x3] sm:$0xff]
        %v1028 = vld [vmem:[#allocation2 + $0xb] sm:$0xff]
        %v1029 = vld [vmem:[#allocation2 + $0x5] sm:$0xff]
        %v1030 = vld [vmem:[#allocation2 + $0xd] sm:$0xff]
        %v1032 = vsel %vm1013, %v1029, 0
        %v1035 = vsel %vm1013, %v1030, 0
        %1037 = vmatprep.subr.mxu0 0.0
        %1038 = vmatpush1.msra.mxu0 %v1023
        %1039 = vmatprep.subr.mxu0 0.0
        %1040 = vmatpush1.msra.mxu0 %v1024
        %1041 = vmatprep.subr.mxu0 0.0
        %1042 = vmatpush1.msra.mxu0 0.0
        %1043 = vmatprep.subr.mxu0 0.0
        %1044 = vmatpush1.msra.mxu0 0.0
        %1045 = vmatprep.subr.mxu0 0.0
        %1046 = vmatpush1.msra.mxu0 0.0
        %1047 = vmatprep.subr.mxu0 0.0
        %1048 = vmatpush1.msra.mxu0 0.0
        %1049 = vmatprep.subr.mxu0 0.0
        %1050 = vmatpush1.msra.mxu0 0.0
        %1051 = vmatprep.subr.mxu0 0.0
        %1052 = vmatpush1.msra.mxu0 0.0
        %1053 = vmatprep.subr.mxu0 0.0
        %1054 = vmatpush1.msra.mxu0 0.0
        %1055 = vmatprep.subr.mxu0 0.0
        %1056 = vmatpush1.msra.mxu0 0.0
        %1057 = vmatprep.subr.mxu0 0.0
        %1058 = vmatpush1.msra.mxu0 0.0
        %1059 = vmatprep.subr.mxu0 0.0
        %1060 = vmatpush1.msra.mxu0 0.0
        %1061 = vmatprep.subr.mxu0 0.0
        %1062 = vmatpush1.msra.mxu0 0.0
        %1063 = vmatprep.subr.mxu0 0.0
        %1064 = vmatpush1.msra.mxu0 0.0
        %1065 = vmatprep.subr.mxu0 0.0
        %1066 = vmatpush1.msra.mxu0 0.0
        %1067 = vmatprep.subr.mxu0 0.0
        %1068 = vmatpush1.msra.mxu0 0.0
        %1069 = vmatprep.subr.mxu0 0.0
        %1070 = vmatpush1.msra.mxu0 0.0
        %1071 = vmatprep.subr.mxu0 0.0
        %1072 = vmatpush1.msra.mxu0 0.0
        %1073 = vmatprep.subr.mxu0 0.0
        %1074 = vmatpush1.msra.mxu0 0.0
        %1075 = vmatprep.subr.mxu0 0.0
        %1076 = vmatpush1.msra.mxu0 0.0
        %1077 = vmatprep.subr.mxu0 0.0
        %1078 = vmatpush1.msra.mxu0 0.0
        %1079 = vmatprep.subr.mxu0 0.0
        %1080 = vmatpush1.msra.mxu0 0.0
        %1081 = vmatprep.subr.mxu0 0.0
        %1082 = vmatpush1.msra.mxu0 0.0
        %1083 = vmatprep.subr.mxu0 0.0
        %1084 = vmatpush1.msra.mxu0 0.0
        %1085 = vmatprep.subr.mxu0 0.0
        %1086 = vmatpush1.msra.mxu0 0.0
        %1087 = vmatprep.subr.mxu0 0.0
        %1088 = vmatpush1.msra.mxu0 0.0
        %1089 = vmatprep.subr.mxu0 0.0
        %1090 = vmatpush1.msra.mxu0 0.0
        %1091 = vmatprep.subr.mxu0 0.0
        %1092 = vmatpush1.msra.mxu0 0.0
        %1093 = vmatprep.subr.mxu0 0.0
        %1094 = vmatpush1.msra.mxu0 0.0
        %1095 = vmatprep.subr.mxu0 0.0
        %1096 = vmatpush1.msra.mxu0 0.0
        %1097 = vmatprep.subr.mxu0 0.0
        %1098 = vmatpush1.msra.mxu0 0.0
        %1099 = vmatprep.subr.mxu0 0.0
        %1100 = vmatpush1.msra.mxu0 0.0
        %1101 = vmatprep.mubr.f32.mxu0 0.0
        %1102 = vmatmul.mubr.f32.gmra.mrb[0].mxu0 %v1032
        %v1103 = vpop.f32.mrb[0].mxu0
        %v1104 = vadd.f32 0.0, %v1103
        %v1105 = vpop.f32.mrb[0].mxu0
        %1106 = vmatprep.mubr.f32.mxu0 0.0
        %1107 = vmatmul.mubr.f32.gmra.mrb[0].mxu0 %v1035
        %v1108 = vpop.f32.mrb[0].mxu0
        %v1109 = vadd.f32 0.0, %v1108
        %v1110 = vpop.f32.mrb[0].mxu0
        %1111 = vdwg.mxu0
        %v1113 = vsel %vm1013, %v1027, 0
        %v1116 = vsel %vm1013, %v1028, 0
        %1118 = vmatprep.subr.mxu0 0.0
        %1119 = vmatpush1.msra.mxu0 %v1021
        %1120 = vmatprep.subr.mxu0 0.0
        %1121 = vmatpush1.msra.mxu0 %v1022
        %1122 = vmatprep.subr.mxu0 0.0
        %1123 = vmatpush1.msra.mxu0 0.0
        %1124 = vmatprep.subr.mxu0 0.0
        %1125 = vmatpush1.msra.mxu0 0.0
        %1126 = vmatprep.subr.mxu0 0.0
        %1127 = vmatpush1.msra.mxu0 0.0
        %1128 = vmatprep.subr.mxu0 0.0
        %1129 = vmatpush1.msra.mxu0 0.0
        %1130 = vmatprep.subr.mxu0 0.0
        %1131 = vmatpush1.msra.mxu0 0.0
        %1132 = vmatprep.subr.mxu0 0.0
        %1133 = vmatpush1.msra.mxu0 0.0
        %1134 = vmatprep.subr.mxu0 0.0
        %1135 = vmatpush1.msra.mxu0 0.0
        %1136 = vmatprep.subr.mxu0 0.0
        %1137 = vmatpush1.msra.mxu0 0.0
        %1138 = vmatprep.subr.mxu0 0.0
        %1139 = vmatpush1.msra.mxu0 0.0
        %1140 = vmatprep.subr.mxu0 0.0
        %1141 = vmatpush1.msra.mxu0 0.0
        %1142 = vmatprep.subr.mxu0 0.0
        %1143 = vmatpush1.msra.mxu0 0.0
        %1144 = vmatprep.subr.mxu0 0.0
        %1145 = vmatpush1.msra.mxu0 0.0
        %1146 = vmatprep.subr.mxu0 0.0
        %1147 = vmatpush1.msra.mxu0 0.0
        %1148 = vmatprep.subr.mxu0 0.0
        %1149 = vmatpush1.msra.mxu0 0.0
        %1150 = vmatprep.subr.mxu0 0.0
        %1151 = vmatpush1.msra.mxu0 0.0
        %1152 = vmatprep.subr.mxu0 0.0
        %1153 = vmatpush1.msra.mxu0 0.0
        %1154 = vmatprep.subr.mxu0 0.0
        %1155 = vmatpush1.msra.mxu0 0.0
        %1156 = vmatprep.subr.mxu0 0.0
        %1157 = vmatpush1.msra.mxu0 0.0
        %1158 = vmatprep.subr.mxu0 0.0
        %1159 = vmatpush1.msra.mxu0 0.0
        %1160 = vmatprep.subr.mxu0 0.0
        %1161 = vmatpush1.msra.mxu0 0.0
        %1162 = vmatprep.subr.mxu0 0.0
        %1163 = vmatpush1.msra.mxu0 0.0
        %1164 = vmatprep.subr.mxu0 0.0
        %1165 = vmatpush1.msra.mxu0 0.0
        %1166 = vmatprep.subr.mxu0 0.0
        %1167 = vmatpush1.msra.mxu0 0.0
        %1168 = vmatprep.subr.mxu0 0.0
        %1169 = vmatpush1.msra.mxu0 0.0
        %1170 = vmatprep.subr.mxu0 0.0
        %1171 = vmatpush1.msra.mxu0 0.0
        %1172 = vmatprep.subr.mxu0 0.0
        %1173 = vmatpush1.msra.mxu0 0.0
        %1174 = vmatprep.subr.mxu0 0.0
        %1175 = vmatpush1.msra.mxu0 0.0
        %1176 = vmatprep.subr.mxu0 0.0
        %1177 = vmatpush1.msra.mxu0 0.0
        %1178 = vmatprep.subr.mxu0 0.0
        %1179 = vmatpush1.msra.mxu0 0.0
        %1180 = vmatprep.subr.mxu0 0.0
        %1181 = vmatpush1.msra.mxu0 0.0
        %1182 = vmatprep.mubr.f32.mxu0 0.0
        %1183 = vmatmul.mubr.f32.gmra.mrb[0].mxu0 %v1113
        %v1184 = vpop.f32.mrb[0].mxu0
        %v1185 = vadd.f32 %v1104, %v1184
        %v1186 = vpop.f32.mrb[0].mxu0
        %1187 = vmatprep.mubr.f32.mxu0 0.0
        %1188 = vmatmul.mubr.f32.gmra.mrb[0].mxu0 %v1116
        %v1189 = vpop.f32.mrb[0].mxu0
        %v1190 = vadd.f32 %v1109, %v1189
        %v1191 = vpop.f32.mrb[0].mxu0
        %1192 = vdwg.mxu0
        %v1193 = vld [vmem:[#allocation2 + $0x7] sm:$0xff]
        %v1194 = vld [vmem:[#allocation2 + $0xf] sm:$0xff]
        %v1196 = vsel %vm1013, %v1193, 0
        %v1199 = vsel %vm1013, %v1194, 0
        %1201 = vmatprep.subr.mxu0 0.0
        %1202 = vmatpush1.msra.mxu0 %v1025
        %1203 = vmatprep.subr.mxu0 0.0
        %1204 = vmatpush1.msra.mxu0 %v1026
        %1205 = vmatprep.subr.mxu0 0.0
        %1206 = vmatpush1.msra.mxu0 0.0
        %1207 = vmatprep.subr.mxu0 0.0
        %1208 = vmatpush1.msra.mxu0 0.0
        %1209 = vmatprep.subr.mxu0 0.0
        %1210 = vmatpush1.msra.mxu0 0.0
        %1211 = vmatprep.subr.mxu0 0.0
        %1212 = vmatpush1.msra.mxu0 0.0
        %1213 = vmatprep.subr.mxu0 0.0
        %1214 = vmatpush1.msra.mxu0 0.0
        %1215 = vmatprep.subr.mxu0 0.0
        %1216 = vmatpush1.msra.mxu0 0.0
        %1217 = vmatprep.subr.mxu0 0.0
        %1218 = vmatpush1.msra.mxu0 0.0
        %1219 = vmatprep.subr.mxu0 0.0
        %1220 = vmatpush1.msra.mxu0 0.0
        %1221 = vmatprep.subr.mxu0 0.0
        %1222 = vmatpush1.msra.mxu0 0.0
        %1223 = vmatprep.subr.mxu0 0.0
        %1224 = vmatpush1.msra.mxu0 0.0
        %1225 = vmatprep.subr.mxu0 0.0
        %1226 = vmatpush1.msra.mxu0 0.0
        %1227 = vmatprep.subr.mxu0 0.0
        %1228 = vmatpush1.msra.mxu0 0.0
        %1229 = vmatprep.subr.mxu0 0.0
        %1230 = vmatpush1.msra.mxu0 0.0
        %1231 = vmatprep.subr.mxu0 0.0
        %1232 = vmatpush1.msra.mxu0 0.0
        %1233 = vmatprep.subr.mxu0 0.0
        %1234 = vmatpush1.msra.mxu0 0.0
        %1235 = vmatprep.subr.mxu0 0.0
        %1236 = vmatpush1.msra.mxu0 0.0
        %1237 = vmatprep.subr.mxu0 0.0
        %1238 = vmatpush1.msra.mxu0 0.0
        %1239 = vmatprep.subr.mxu0 0.0
        %1240 = vmatpush1.msra.mxu0 0.0
        %1241 = vmatprep.subr.mxu0 0.0
        %1242 = vmatpush1.msra.mxu0 0.0
        %1243 = vmatprep.subr.mxu0 0.0
        %1244 = vmatpush1.msra.mxu0 0.0
        %1245 = vmatprep.subr.mxu0 0.0
        %1246 = vmatpush1.msra.mxu0 0.0
        %1247 = vmatprep.subr.mxu0 0.0
        %1248 = vmatpush1.msra.mxu0 0.0
        %1249 = vmatprep.subr.mxu0 0.0
        %1250 = vmatpush1.msra.mxu0 0.0
        %1251 = vmatprep.subr.mxu0 0.0
        %1252 = vmatpush1.msra.mxu0 0.0
        %1253 = vmatprep.subr.mxu0 0.0
        %1254 = vmatpush1.msra.mxu0 0.0
        %1255 = vmatprep.subr.mxu0 0.0
        %1256 = vmatpush1.msra.mxu0 0.0
        %1257 = vmatprep.subr.mxu0 0.0
        %1258 = vmatpush1.msra.mxu0 0.0
        %1259 = vmatprep.subr.mxu0 0.0
        %1260 = vmatpush1.msra.mxu0 0.0
        %1261 = vmatprep.subr.mxu0 0.0
        %1262 = vmatpush1.msra.mxu0 0.0
        %1263 = vmatprep.subr.mxu0 0.0
        %1264 = vmatpush1.msra.mxu0 0.0
        %1265 = vmatprep.mubr.f32.mxu0 0.0
        %1266 = vmatmul.mubr.f32.gmra.mrb[0].mxu0 %v1196
        %v1267 = vpop.f32.mrb[0].mxu0
        %v1268 = vadd.f32 0.0, %v1267
        %v1269 = vpop.f32.mrb[0].mxu0
        %1270 = vmatprep.mubr.f32.mxu0 0.0
        %1271 = vmatmul.mubr.f32.gmra.mrb[0].mxu0 %v1199
        %v1272 = vpop.f32.mrb[0].mxu0
        %v1273 = vadd.f32 0.0, %v1272
        %v1274 = vpop.f32.mrb[0].mxu0
        %1275 = vdwg.mxu0
        %v1276 = vadd.f32 %v1185, %v1268
        %v1277 = vadd.f32 %v1190, %v1273
        %vm1278 = vcmask 261120
        %1279 = vst.msk [vmem:[#allocation3] sm:$0xff] %vm1278, %v1276
        %1280 = vst.msk [vmem:[#allocation3 + $0x8] sm:$0xff] %vm1278, %v1277
        %s1281 = scalar_lea.vmem %s5, 48
        %v1282 = vld [vmem:[%s1281] sm:$0xff]
        %v1283 = vld [vmem:[%s1281 + $0x8] sm:$0xff]
        %v1284 = vld [vmem:[%s1281 + $0x10] sm:$0xff]
        %v1285 = vld [vmem:[%s1281 + $0x18] sm:$0xff]
        %v1286 = vld [vmem:[%s1281 + $0x20] sm:$0xff]
        %v1287 = vld [vmem:[%s1281 + $0x28] sm:$0xff]
        %v1288 = vld [vmem:[#allocation2 + $0x2] sm:$0xff]
        %v1289 = vld [vmem:[#allocation2 + $0xa] sm:$0xff]
        %v1290 = vld [vmem:[#allocation2 + $0x5] sm:$0xff]
        %v1291 = vld [vmem:[#allocation2 + $0xd] sm:$0xff]
        %v1293 = vsel %vm1013, %v1290, 0
        %v1296 = vsel %vm1013, %v1291, 0
        %1298 = vmatprep.subr.mxu0 0.0
        %1299 = vmatpush1.msra.mxu0 %v1284
        %1300 = vmatprep.subr.mxu0 0.0
        %1301 = vmatpush1.msra.mxu0 %v1285
        %1302 = vmatprep.subr.mxu0 0.0
        %1303 = vmatpush1.msra.mxu0 0.0
        %1304 = vmatprep.subr.mxu0 0.0
        %1305 = vmatpush1.msra.mxu0 0.0
        %1306 = vmatprep.subr.mxu0 0.0
        %1307 = vmatpush1.msra.mxu0 0.0
        %1308 = vmatprep.subr.mxu0 0.0
        %1309 = vmatpush1.msra.mxu0 0.0
        %1310 = vmatprep.subr.mxu0 0.0
        %1311 = vmatpush1.msra.mxu0 0.0
        %1312 = vmatprep.subr.mxu0 0.0
        %1313 = vmatpush1.msra.mxu0 0.0
        %1314 = vmatprep.subr.mxu0 0.0
        %1315 = vmatpush1.msra.mxu0 0.0
        %1316 = vmatprep.subr.mxu0 0.0
        %1317 = vmatpush1.msra.mxu0 0.0
        %1318 = vmatprep.subr.mxu0 0.0
        %1319 = vmatpush1.msra.mxu0 0.0
        %1320 = vmatprep.subr.mxu0 0.0
        %1321 = vmatpush1.msra.mxu0 0.0
        %1322 = vmatprep.subr.mxu0 0.0
        %1323 = vmatpush1.msra.mxu0 0.0
        %1324 = vmatprep.subr.mxu0 0.0
        %1325 = vmatpush1.msra.mxu0 0.0
        %1326 = vmatprep.subr.mxu0 0.0
        %1327 = vmatpush1.msra.mxu0 0.0
        %1328 = vmatprep.subr.mxu0 0.0
        %1329 = vmatpush1.msra.mxu0 0.0
        %1330 = vmatprep.subr.mxu0 0.0
        %1331 = vmatpush1.msra.mxu0 0.0
        %1332 = vmatprep.subr.mxu0 0.0
        %1333 = vmatpush1.msra.mxu0 0.0
        %1334 = vmatprep.subr.mxu0 0.0
        %1335 = vmatpush1.msra.mxu0 0.0
        %1336 = vmatprep.subr.mxu0 0.0
        %1337 = vmatpush1.msra.mxu0 0.0
        %1338 = vmatprep.subr.mxu0 0.0
        %1339 = vmatpush1.msra.mxu0 0.0
        %1340 = vmatprep.subr.mxu0 0.0
        %1341 = vmatpush1.msra.mxu0 0.0
        %1342 = vmatprep.subr.mxu0 0.0
        %1343 = vmatpush1.msra.mxu0 0.0
        %1344 = vmatprep.subr.mxu0 0.0
        %1345 = vmatpush1.msra.mxu0 0.0
        %1346 = vmatprep.subr.mxu0 0.0
        %1347 = vmatpush1.msra.mxu0 0.0
        %1348 = vmatprep.subr.mxu0 0.0
        %1349 = vmatpush1.msra.mxu0 0.0
        %1350 = vmatprep.subr.mxu0 0.0
        %1351 = vmatpush1.msra.mxu0 0.0
        %1352 = vmatprep.subr.mxu0 0.0
        %1353 = vmatpush1.msra.mxu0 0.0
        %1354 = vmatprep.subr.mxu0 0.0
        %1355 = vmatpush1.msra.mxu0 0.0
        %1356 = vmatprep.subr.mxu0 0.0
        %1357 = vmatpush1.msra.mxu0 0.0
        %1358 = vmatprep.subr.mxu0 0.0
        %1359 = vmatpush1.msra.mxu0 0.0
        %1360 = vmatprep.subr.mxu0 0.0
        %1361 = vmatpush1.msra.mxu0 0.0
        %1362 = vmatprep.mubr.f32.mxu0 0.0
        %1363 = vmatmul.mubr.f32.gmra.mrb[0].mxu0 %v1293
        %v1364 = vpop.f32.mrb[0].mxu0
        %v1365 = vadd.f32 0.0, %v1364
        %v1366 = vpop.f32.mrb[0].mxu0
        %1367 = vmatprep.mubr.f32.mxu0 0.0
        %1368 = vmatmul.mubr.f32.gmra.mrb[0].mxu0 %v1296
        %v1369 = vpop.f32.mrb[0].mxu0
        %v1370 = vadd.f32 0.0, %v1369
        %v1371 = vpop.f32.mrb[0].mxu0
        %1372 = vdwg.mxu0
        %v1374 = vsel %vm1013, %v1288, 0
        %v1377 = vsel %vm1013, %v1289, 0
        %1379 = vmatprep.subr.mxu0 0.0
        %1380 = vmatpush1.msra.mxu0 %v1282
        %1381 = vmatprep.subr.mxu0 0.0
        %1382 = vmatpush1.msra.mxu0 %v1283
        %1383 = vmatprep.subr.mxu0 0.0
        %1384 = vmatpush1.msra.mxu0 0.0
        %1385 = vmatprep.subr.mxu0 0.0
        %1386 = vmatpush1.msra.mxu0 0.0
        %1387 = vmatprep.subr.mxu0 0.0
        %1388 = vmatpush1.msra.mxu0 0.0
        %1389 = vmatprep.subr.mxu0 0.0
        %1390 = vmatpush1.msra.mxu0 0.0
        %1391 = vmatprep.subr.mxu0 0.0
        %1392 = vmatpush1.msra.mxu0 0.0
        %1393 = vmatprep.subr.mxu0 0.0
        %1394 = vmatpush1.msra.mxu0 0.0
        %1395 = vmatprep.subr.mxu0 0.0
        %1396 = vmatpush1.msra.mxu0 0.0
        %1397 = vmatprep.subr.mxu0 0.0
        %1398 = vmatpush1.msra.mxu0 0.0
        %1399 = vmatprep.subr.mxu0 0.0
        %1400 = vmatpush1.msra.mxu0 0.0
        %1401 = vmatprep.subr.mxu0 0.0
        %1402 = vmatpush1.msra.mxu0 0.0
        %1403 = vmatprep.subr.mxu0 0.0
        %1404 = vmatpush1.msra.mxu0 0.0
        %1405 = vmatprep.subr.mxu0 0.0
        %1406 = vmatpush1.msra.mxu0 0.0
        %1407 = vmatprep.subr.mxu0 0.0
        %1408 = vmatpush1.msra.mxu0 0.0
        %1409 = vmatprep.subr.mxu0 0.0
        %1410 = vmatpush1.msra.mxu0 0.0
        %1411 = vmatprep.subr.mxu0 0.0
        %1412 = vmatpush1.msra.mxu0 0.0
        %1413 = vmatprep.subr.mxu0 0.0
        %1414 = vmatpush1.msra.mxu0 0.0
        %1415 = vmatprep.subr.mxu0 0.0
        %1416 = vmatpush1.msra.mxu0 0.0
        %1417 = vmatprep.subr.mxu0 0.0
        %1418 = vmatpush1.msra.mxu0 0.0
        %1419 = vmatprep.subr.mxu0 0.0
        %1420 = vmatpush1.msra.mxu0 0.0
        %1421 = vmatprep.subr.mxu0 0.0
        %1422 = vmatpush1.msra.mxu0 0.0
        %1423 = vmatprep.subr.mxu0 0.0
        %1424 = vmatpush1.msra.mxu0 0.0
        %1425 = vmatprep.subr.mxu0 0.0
        %1426 = vmatpush1.msra.mxu0 0.0
        %1427 = vmatprep.subr.mxu0 0.0
        %1428 = vmatpush1.msra.mxu0 0.0
        %1429 = vmatprep.subr.mxu0 0.0
        %1430 = vmatpush1.msra.mxu0 0.0
        %1431 = vmatprep.subr.mxu0 0.0
        %1432 = vmatpush1.msra.mxu0 0.0
        %1433 = vmatprep.subr.mxu0 0.0
        %1434 = vmatpush1.msra.mxu0 0.0
        %1435 = vmatprep.subr.mxu0 0.0
        %1436 = vmatpush1.msra.mxu0 0.0
        %1437 = vmatprep.subr.mxu0 0.0
        %1438 = vmatpush1.msra.mxu0 0.0
        %1439 = vmatprep.subr.mxu0 0.0
        %1440 = vmatpush1.msra.mxu0 0.0
        %1441 = vmatprep.subr.mxu0 0.0
        %1442 = vmatpush1.msra.mxu0 0.0
        %1443 = vmatprep.mubr.f32.mxu0 0.0
        %1444 = vmatmul.mubr.f32.gmra.mrb[0].mxu0 %v1374
        %v1445 = vpop.f32.mrb[0].mxu0
        %v1446 = vadd.f32 %v1365, %v1445
        %v1447 = vpop.f32.mrb[0].mxu0
        %1448 = vmatprep.mubr.f32.mxu0 0.0
        %1449 = vmatmul.mubr.f32.gmra.mrb[0].mxu0 %v1377
        %v1450 = vpop.f32.mrb[0].mxu0
        %v1451 = vadd.f32 %v1370, %v1450
        %v1452 = vpop.f32.mrb[0].mxu0
        %1453 = vdwg.mxu0
        %v1454 = vld [vmem:[#allocation2 + $0x8] sm:$0xff]
        %v1455 = vld [vmem:[#allocation2 + $0x10] sm:$0xff]
        %v1457 = vsel %vm1013, %v1454, 0
        %v1460 = vsel %vm1013, %v1455, 0
        %1462 = vmatprep.subr.mxu0 0.0
        %1463 = vmatpush1.msra.mxu0 %v1286
        %1464 = vmatprep.subr.mxu0 0.0
        %1465 = vmatpush1.msra.mxu0 %v1287
        %1466 = vmatprep.subr.mxu0 0.0
        %1467 = vmatpush1.msra.mxu0 0.0
        %1468 = vmatprep.subr.mxu0 0.0
        %1469 = vmatpush1.msra.mxu0 0.0
        %1470 = vmatprep.subr.mxu0 0.0
        %1471 = vmatpush1.msra.mxu0 0.0
        %1472 = vmatprep.subr.mxu0 0.0
        %1473 = vmatpush1.msra.mxu0 0.0
        %1474 = vmatprep.subr.mxu0 0.0
        %1475 = vmatpush1.msra.mxu0 0.0
        %1476 = vmatprep.subr.mxu0 0.0
        %1477 = vmatpush1.msra.mxu0 0.0
        %1478 = vmatprep.subr.mxu0 0.0
        %1479 = vmatpush1.msra.mxu0 0.0
        %1480 = vmatprep.subr.mxu0 0.0
        %1481 = vmatpush1.msra.mxu0 0.0
        %1482 = vmatprep.subr.mxu0 0.0
        %1483 = vmatpush1.msra.mxu0 0.0
        %1484 = vmatprep.subr.mxu0 0.0
        %1485 = vmatpush1.msra.mxu0 0.0
        %1486 = vmatprep.subr.mxu0 0.0
        %1487 = vmatpush1.msra.mxu0 0.0
        %1488 = vmatprep.subr.mxu0 0.0
        %1489 = vmatpush1.msra.mxu0 0.0
        %1490 = vmatprep.subr.mxu0 0.0
        %1491 = vmatpush1.msra.mxu0 0.0
        %1492 = vmatprep.subr.mxu0 0.0
        %1493 = vmatpush1.msra.mxu0 0.0
        %1494 = vmatprep.subr.mxu0 0.0
        %1495 = vmatpush1.msra.mxu0 0.0
        %1496 = vmatprep.subr.mxu0 0.0
        %1497 = vmatpush1.msra.mxu0 0.0
        %1498 = vmatprep.subr.mxu0 0.0
        %1499 = vmatpush1.msra.mxu0 0.0
        %1500 = vmatprep.subr.mxu0 0.0
        %1501 = vmatpush1.msra.mxu0 0.0
        %1502 = vmatprep.subr.mxu0 0.0
        %1503 = vmatpush1.msra.mxu0 0.0
        %1504 = vmatprep.subr.mxu0 0.0
        %1505 = vmatpush1.msra.mxu0 0.0
        %1506 = vmatprep.subr.mxu0 0.0
        %1507 = vmatpush1.msra.mxu0 0.0
        %1508 = vmatprep.subr.mxu0 0.0
        %1509 = vmatpush1.msra.mxu0 0.0
        %1510 = vmatprep.subr.mxu0 0.0
        %1511 = vmatpush1.msra.mxu0 0.0
        %1512 = vmatprep.subr.mxu0 0.0
        %1513 = vmatpush1.msra.mxu0 0.0
        %1514 = vmatprep.subr.mxu0 0.0
        %1515 = vmatpush1.msra.mxu0 0.0
        %1516 = vmatprep.subr.mxu0 0.0
        %1517 = vmatpush1.msra.mxu0 0.0
        %1518 = vmatprep.subr.mxu0 0.0
        %1519 = vmatpush1.msra.mxu0 0.0
        %1520 = vmatprep.subr.mxu0 0.0
        %1521 = vmatpush1.msra.mxu0 0.0
        %1522 = vmatprep.subr.mxu0 0.0
        %1523 = vmatpush1.msra.mxu0 0.0
        %1524 = vmatprep.subr.mxu0 0.0
        %1525 = vmatpush1.msra.mxu0 0.0
        %1526 = vmatprep.mubr.f32.mxu0 0.0
        %1527 = vmatmul.mubr.f32.gmra.mrb[0].mxu0 %v1457
        %v1528 = vpop.f32.mrb[0].mxu0
        %v1529 = vadd.f32 0.0, %v1528
        %v1530 = vpop.f32.mrb[0].mxu0
        %1531 = vmatprep.mubr.f32.mxu0 0.0
        %1532 = vmatmul.mubr.f32.gmra.mrb[0].mxu0 %v1460
        %v1533 = vpop.f32.mrb[0].mxu0
        %v1534 = vadd.f32 0.0, %v1533
        %v1535 = vpop.f32.mrb[0].mxu0
        %1536 = vdwg.mxu0
        %v1537 = vadd.f32 %v1446, %v1529
        %v1538 = vadd.f32 %v1451, %v1534
        %1541 = vrot.lane.b32.xlu0 %v1537, 32
        %v1542 = vpop.permute.xlu0 %1541
        %1543 = vrot.lane.b32.xlu0 %v1538, 32
        %v1544 = vpop.permute.xlu0 %1543
        %vm1547 = vcmask 523520
        %1548 = vst.msk [vmem:[#allocation3] sm:$0xff] %vm1547, %v1542
        %1549 = vst.msk [vmem:[#allocation3 + $0x8] sm:$0xff] %vm1547, %v1544
        %s1550 = scalar_lea.vmem %s5, 96
        %v1551 = vld [vmem:[%s1550] sm:$0xff]
        %v1552 = vld [vmem:[%s1550 + $0x8] sm:$0xff]
        %v1553 = vld [vmem:[%s1550 + $0x10] sm:$0xff]
        %v1554 = vld [vmem:[%s1550 + $0x18] sm:$0xff]
        %v1555 = vld [vmem:[%s1550 + $0x20] sm:$0xff]
        %v1556 = vld [vmem:[%s1550 + $0x28] sm:$0xff]
        %v1557 = vld [vmem:[#allocation2 + $0x1] sm:$0xff]
        %v1558 = vld [vmem:[#allocation2 + $0x9] sm:$0xff]
        %v1559 = vld [vmem:[#allocation2 + $0x5] sm:$0xff]
        %v1560 = vld [vmem:[#allocation2 + $0xd] sm:$0xff]
        %v1562 = vsel %vm1013, %v1559, 0
        %v1565 = vsel %vm1013, %v1560, 0
        %1567 = vmatprep.subr.mxu0 0.0
        %1568 = vmatpush1.msra.mxu0 %v1553
        %1569 = vmatprep.subr.mxu0 0.0
        %1570 = vmatpush1.msra.mxu0 %v1554
        %1571 = vmatprep.subr.mxu0 0.0
        %1572 = vmatpush1.msra.mxu0 0.0
        %1573 = vmatprep.subr.mxu0 0.0
        %1574 = vmatpush1.msra.mxu0 0.0
        %1575 = vmatprep.subr.mxu0 0.0
        %1576 = vmatpush1.msra.mxu0 0.0
        %1577 = vmatprep.subr.mxu0 0.0
        %1578 = vmatpush1.msra.mxu0 0.0
        %1579 = vmatprep.subr.mxu0 0.0
        %1580 = vmatpush1.msra.mxu0 0.0
        %1581 = vmatprep.subr.mxu0 0.0
        %1582 = vmatpush1.msra.mxu0 0.0
        %1583 = vmatprep.subr.mxu0 0.0
        %1584 = vmatpush1.msra.mxu0 0.0
        %1585 = vmatprep.subr.mxu0 0.0
        %1586 = vmatpush1.msra.mxu0 0.0
        %1587 = vmatprep.subr.mxu0 0.0
        %1588 = vmatpush1.msra.mxu0 0.0
        %1589 = vmatprep.subr.mxu0 0.0
        %1590 = vmatpush1.msra.mxu0 0.0
        %1591 = vmatprep.subr.mxu0 0.0
        %1592 = vmatpush1.msra.mxu0 0.0
        %1593 = vmatprep.subr.mxu0 0.0
        %1594 = vmatpush1.msra.mxu0 0.0
        %1595 = vmatprep.subr.mxu0 0.0
        %1596 = vmatpush1.msra.mxu0 0.0
        %1597 = vmatprep.subr.mxu0 0.0
        %1598 = vmatpush1.msra.mxu0 0.0
        %1599 = vmatprep.subr.mxu0 0.0
        %1600 = vmatpush1.msra.mxu0 0.0
        %1601 = vmatprep.subr.mxu0 0.0
        %1602 = vmatpush1.msra.mxu0 0.0
        %1603 = vmatprep.subr.mxu0 0.0
        %1604 = vmatpush1.msra.mxu0 0.0
        %1605 = vmatprep.subr.mxu0 0.0
        %1606 = vmatpush1.msra.mxu0 0.0
        %1607 = vmatprep.subr.mxu0 0.0
        %1608 = vmatpush1.msra.mxu0 0.0
        %1609 = vmatprep.subr.mxu0 0.0
        %1610 = vmatpush1.msra.mxu0 0.0
        %1611 = vmatprep.subr.mxu0 0.0
        %1612 = vmatpush1.msra.mxu0 0.0
        %1613 = vmatprep.subr.mxu0 0.0
        %1614 = vmatpush1.msra.mxu0 0.0
        %1615 = vmatprep.subr.mxu0 0.0
        %1616 = vmatpush1.msra.mxu0 0.0
        %1617 = vmatprep.subr.mxu0 0.0
        %1618 = vmatpush1.msra.mxu0 0.0
        %1619 = vmatprep.subr.mxu0 0.0
        %1620 = vmatpush1.msra.mxu0 0.0
        %1621 = vmatprep.subr.mxu0 0.0
        %1622 = vmatpush1.msra.mxu0 0.0
        %1623 = vmatprep.subr.mxu0 0.0
        %1624 = vmatpush1.msra.mxu0 0.0
        %1625 = vmatprep.subr.mxu0 0.0
        %1626 = vmatpush1.msra.mxu0 0.0
        %1627 = vmatprep.subr.mxu0 0.0
        %1628 = vmatpush1.msra.mxu0 0.0
        %1629 = vmatprep.subr.mxu0 0.0
        %1630 = vmatpush1.msra.mxu0 0.0
        %1631 = vmatprep.mubr.f32.mxu0 0.0
        %1632 = vmatmul.mubr.f32.gmra.mrb[0].mxu0 %v1562
        %v1633 = vpop.f32.mrb[0].mxu0
        %v1634 = vadd.f32 0.0, %v1633
        %v1635 = vpop.f32.mrb[0].mxu0
        %1636 = vmatprep.mubr.f32.mxu0 0.0
        %1637 = vmatmul.mubr.f32.gmra.mrb[0].mxu0 %v1565
        %v1638 = vpop.f32.mrb[0].mxu0
        %v1639 = vadd.f32 0.0, %v1638
        %v1640 = vpop.f32.mrb[0].mxu0
        %1641 = vdwg.mxu0
        %v1643 = vsel %vm1013, %v1557, 0
        %v1646 = vsel %vm1013, %v1558, 0
        %1648 = vmatprep.subr.mxu0 0.0
        %1649 = vmatpush1.msra.mxu0 %v1551
        %1650 = vmatprep.subr.mxu0 0.0
        %1651 = vmatpush1.msra.mxu0 %v1552
        %1652 = vmatprep.subr.mxu0 0.0
        %1653 = vmatpush1.msra.mxu0 0.0
        %1654 = vmatprep.subr.mxu0 0.0
        %1655 = vmatpush1.msra.mxu0 0.0
        %1656 = vmatprep.subr.mxu0 0.0
        %1657 = vmatpush1.msra.mxu0 0.0
        %1658 = vmatprep.subr.mxu0 0.0
        %1659 = vmatpush1.msra.mxu0 0.0
        %1660 = vmatprep.subr.mxu0 0.0
        %1661 = vmatpush1.msra.mxu0 0.0
        %1662 = vmatprep.subr.mxu0 0.0
        %1663 = vmatpush1.msra.mxu0 0.0
        %1664 = vmatprep.subr.mxu0 0.0
        %1665 = vmatpush1.msra.mxu0 0.0
        %1666 = vmatprep.subr.mxu0 0.0
        %1667 = vmatpush1.msra.mxu0 0.0
        %1668 = vmatprep.subr.mxu0 0.0
        %1669 = vmatpush1.msra.mxu0 0.0
        %1670 = vmatprep.subr.mxu0 0.0
        %1671 = vmatpush1.msra.mxu0 0.0
        %1672 = vmatprep.subr.mxu0 0.0
        %1673 = vmatpush1.msra.mxu0 0.0
        %1674 = vmatprep.subr.mxu0 0.0
        %1675 = vmatpush1.msra.mxu0 0.0
        %1676 = vmatprep.subr.mxu0 0.0
        %1677 = vmatpush1.msra.mxu0 0.0
        %1678 = vmatprep.subr.mxu0 0.0
        %1679 = vmatpush1.msra.mxu0 0.0
        %1680 = vmatprep.subr.mxu0 0.0
        %1681 = vmatpush1.msra.mxu0 0.0
        %1682 = vmatprep.subr.mxu0 0.0
        %1683 = vmatpush1.msra.mxu0 0.0
        %1684 = vmatprep.subr.mxu0 0.0
        %1685 = vmatpush1.msra.mxu0 0.0
        %1686 = vmatprep.subr.mxu0 0.0
        %1687 = vmatpush1.msra.mxu0 0.0
        %1688 = vmatprep.subr.mxu0 0.0
        %1689 = vmatpush1.msra.mxu0 0.0
        %1690 = vmatprep.subr.mxu0 0.0
        %1691 = vmatpush1.msra.mxu0 0.0
        %1692 = vmatprep.subr.mxu0 0.0
        %1693 = vmatpush1.msra.mxu0 0.0
        %1694 = vmatprep.subr.mxu0 0.0
        %1695 = vmatpush1.msra.mxu0 0.0
        %1696 = vmatprep.subr.mxu0 0.0
        %1697 = vmatpush1.msra.mxu0 0.0
        %1698 = vmatprep.subr.mxu0 0.0
        %1699 = vmatpush1.msra.mxu0 0.0
        %1700 = vmatprep.subr.mxu0 0.0
        %1701 = vmatpush1.msra.mxu0 0.0
        %1702 = vmatprep.subr.mxu0 0.0
        %1703 = vmatpush1.msra.mxu0 0.0
        %1704 = vmatprep.subr.mxu0 0.0
        %1705 = vmatpush1.msra.mxu0 0.0
        %1706 = vmatprep.subr.mxu0 0.0
        %1707 = vmatpush1.msra.mxu0 0.0
        %1708 = vmatprep.subr.mxu0 0.0
        %1709 = vmatpush1.msra.mxu0 0.0
        %1710 = vmatprep.subr.mxu0 0.0
        %1711 = vmatpush1.msra.mxu0 0.0
        %1712 = vmatprep.mubr.f32.mxu0 0.0
        %1713 = vmatmul.mubr.f32.gmra.mrb[0].mxu0 %v1643
        %v1714 = vpop.f32.mrb[0].mxu0
        %v1715 = vadd.f32 %v1634, %v1714
        %v1716 = vpop.f32.mrb[0].mxu0
        %1717 = vmatprep.mubr.f32.mxu0 0.0
        %1718 = vmatmul.mubr.f32.gmra.mrb[0].mxu0 %v1646
        %v1719 = vpop.f32.mrb[0].mxu0
        %v1720 = vadd.f32 %v1639, %v1719
        %v1721 = vpop.f32.mrb[0].mxu0
        %1722 = vdwg.mxu0
        %v1723 = vld [vmem:[#allocation2 + $0x9] sm:$0xff]
        %v1724 = vld [vmem:[#allocation2 + $0x11] sm:$0xff]
        %v1726 = vsel %vm1013, %v1723, 0
        %v1729 = vsel %vm1013, %v1724, 0
        %1731 = vmatprep.subr.mxu0 0.0
        %1732 = vmatpush1.msra.mxu0 %v1555
        %1733 = vmatprep.subr.mxu0 0.0
        %1734 = vmatpush1.msra.mxu0 %v1556
        %1735 = vmatprep.subr.mxu0 0.0
        %1736 = vmatpush1.msra.mxu0 0.0
        %1737 = vmatprep.subr.mxu0 0.0
        %1738 = vmatpush1.msra.mxu0 0.0
        %1739 = vmatprep.subr.mxu0 0.0
        %1740 = vmatpush1.msra.mxu0 0.0
        %1741 = vmatprep.subr.mxu0 0.0
        %1742 = vmatpush1.msra.mxu0 0.0
        %1743 = vmatprep.subr.mxu0 0.0
        %1744 = vmatpush1.msra.mxu0 0.0
        %1745 = vmatprep.subr.mxu0 0.0
        %1746 = vmatpush1.msra.mxu0 0.0
        %1747 = vmatprep.subr.mxu0 0.0
        %1748 = vmatpush1.msra.mxu0 0.0
        %1749 = vmatprep.subr.mxu0 0.0
        %1750 = vmatpush1.msra.mxu0 0.0
        %1751 = vmatprep.subr.mxu0 0.0
        %1752 = vmatpush1.msra.mxu0 0.0
        %1753 = vmatprep.subr.mxu0 0.0
        %1754 = vmatpush1.msra.mxu0 0.0
        %1755 = vmatprep.subr.mxu0 0.0
        %1756 = vmatpush1.msra.mxu0 0.0
        %1757 = vmatprep.subr.mxu0 0.0
        %1758 = vmatpush1.msra.mxu0 0.0
        %1759 = vmatprep.subr.mxu0 0.0
        %1760 = vmatpush1.msra.mxu0 0.0
        %1761 = vmatprep.subr.mxu0 0.0
        %1762 = vmatpush1.msra.mxu0 0.0
        %1763 = vmatprep.subr.mxu0 0.0
        %1764 = vmatpush1.msra.mxu0 0.0
        %1765 = vmatprep.subr.mxu0 0.0
        %1766 = vmatpush1.msra.mxu0 0.0
        %1767 = vmatprep.subr.mxu0 0.0
        %1768 = vmatpush1.msra.mxu0 0.0
        %1769 = vmatprep.subr.mxu0 0.0
        %1770 = vmatpush1.msra.mxu0 0.0
        %1771 = vmatprep.subr.mxu0 0.0
        %1772 = vmatpush1.msra.mxu0 0.0
        %1773 = vmatprep.subr.mxu0 0.0
        %1774 = vmatpush1.msra.mxu0 0.0
        %1775 = vmatprep.subr.mxu0 0.0
        %1776 = vmatpush1.msra.mxu0 0.0
        %1777 = vmatprep.subr.mxu0 0.0
        %1778 = vmatpush1.msra.mxu0 0.0
        %1779 = vmatprep.subr.mxu0 0.0
        %1780 = vmatpush1.msra.mxu0 0.0
        %1781 = vmatprep.subr.mxu0 0.0
        %1782 = vmatpush1.msra.mxu0 0.0
        %1783 = vmatprep.subr.mxu0 0.0
        %1784 = vmatpush1.msra.mxu0 0.0
        %1785 = vmatprep.subr.mxu0 0.0
        %1786 = vmatpush1.msra.mxu0 0.0
        %1787 = vmatprep.subr.mxu0 0.0
        %1788 = vmatpush1.msra.mxu0 0.0
        %1789 = vmatprep.subr.mxu0 0.0
        %1790 = vmatpush1.msra.mxu0 0.0
        %1791 = vmatprep.subr.mxu0 0.0
        %1792 = vmatpush1.msra.mxu0 0.0
        %1793 = vmatprep.subr.mxu0 0.0
        %1794 = vmatpush1.msra.mxu0 0.0
        %1795 = vmatprep.mubr.f32.mxu0 0.0
        %1796 = vmatmul.mubr.f32.gmra.mrb[0].mxu0 %v1726
        %v1797 = vpop.f32.mrb[0].mxu0
        %v1798 = vadd.f32 0.0, %v1797
        %v1799 = vpop.f32.mrb[0].mxu0
        %1800 = vmatprep.mubr.f32.mxu0 0.0
        %1801 = vmatmul.mubr.f32.gmra.mrb[0].mxu0 %v1729
        %v1802 = vpop.f32.mrb[0].mxu0
        %v1803 = vadd.f32 0.0, %v1802
        %v1804 = vpop.f32.mrb[0].mxu0
        %1805 = vdwg.mxu0
        %v1806 = vadd.f32 %v1715, %v1798
        %v1807 = vadd.f32 %v1720, %v1803
        %1810 = vrot.lane.b32.xlu0 %v1806, 64
        %v1811 = vpop.permute.xlu0 %1810
        %1812 = vrot.lane.b32.xlu0 %v1807, 64
        %v1813 = vpop.permute.xlu0 %1812
        %vm1816 = vcmask 785920
        %1817 = vst.msk [vmem:[#allocation3] sm:$0xff] %vm1816, %v1811
        %1818 = vst.msk [vmem:[#allocation3 + $0x8] sm:$0xff] %vm1816, %v1813
        %s1819 = scalar_lea.vmem %s5, 144
        %v1820 = vld [vmem:[%s1819] sm:$0xff]
        %v1821 = vld [vmem:[%s1819 + $0x8] sm:$0xff]
        %v1822 = vld [vmem:[%s1819 + $0x10] sm:$0xff]
        %v1823 = vld [vmem:[%s1819 + $0x18] sm:$0xff]
        %v1824 = vld [vmem:[%s1819 + $0x20] sm:$0xff]
        %v1825 = vld [vmem:[%s1819 + $0x28] sm:$0xff]
        %v1826 = vld [vmem:[#allocation2] sm:$0xff]
        %v1827 = vld [vmem:[#allocation2 + $0x8] sm:$0xff]
        %v1828 = vld [vmem:[#allocation2 + $0x5] sm:$0xff]
        %v1829 = vld [vmem:[#allocation2 + $0xd] sm:$0xff]
        %v1831 = vsel %vm1013, %v1828, 0
        %v1834 = vsel %vm1013, %v1829, 0
        %1836 = vmatprep.subr.mxu0 0.0
        %1837 = vmatpush1.msra.mxu0 %v1822
        %1838 = vmatprep.subr.mxu0 0.0
        %1839 = vmatpush1.msra.mxu0 %v1823
        %1840 = vmatprep.subr.mxu0 0.0
        %1841 = vmatpush1.msra.mxu0 0.0
        %1842 = vmatprep.subr.mxu0 0.0
        %1843 = vmatpush1.msra.mxu0 0.0
        %1844 = vmatprep.subr.mxu0 0.0
        %1845 = vmatpush1.msra.mxu0 0.0
        %1846 = vmatprep.subr.mxu0 0.0
        %1847 = vmatpush1.msra.mxu0 0.0
        %1848 = vmatprep.subr.mxu0 0.0
        %1849 = vmatpush1.msra.mxu0 0.0
        %1850 = vmatprep.subr.mxu0 0.0
        %1851 = vmatpush1.msra.mxu0 0.0
        %1852 = vmatprep.subr.mxu0 0.0
        %1853 = vmatpush1.msra.mxu0 0.0
        %1854 = vmatprep.subr.mxu0 0.0
        %1855 = vmatpush1.msra.mxu0 0.0
        %1856 = vmatprep.subr.mxu0 0.0
        %1857 = vmatpush1.msra.mxu0 0.0
        %1858 = vmatprep.subr.mxu0 0.0
        %1859 = vmatpush1.msra.mxu0 0.0
        %1860 = vmatprep.subr.mxu0 0.0
        %1861 = vmatpush1.msra.mxu0 0.0
        %1862 = vmatprep.subr.mxu0 0.0
        %1863 = vmatpush1.msra.mxu0 0.0
        %1864 = vmatprep.subr.mxu0 0.0
        %1865 = vmatpush1.msra.mxu0 0.0
        %1866 = vmatprep.subr.mxu0 0.0
        %1867 = vmatpush1.msra.mxu0 0.0
        %1868 = vmatprep.subr.mxu0 0.0
        %1869 = vmatpush1.msra.mxu0 0.0
        %1870 = vmatprep.subr.mxu0 0.0
        %1871 = vmatpush1.msra.mxu0 0.0
        %1872 = vmatprep.subr.mxu0 0.0
        %1873 = vmatpush1.msra.mxu0 0.0
        %1874 = vmatprep.subr.mxu0 0.0
        %1875 = vmatpush1.msra.mxu0 0.0
        %1876 = vmatprep.subr.mxu0 0.0
        %1877 = vmatpush1.msra.mxu0 0.0
        %1878 = vmatprep.subr.mxu0 0.0
        %1879 = vmatpush1.msra.mxu0 0.0
        %1880 = vmatprep.subr.mxu0 0.0
        %1881 = vmatpush1.msra.mxu0 0.0
        %1882 = vmatprep.subr.mxu0 0.0
        %1883 = vmatpush1.msra.mxu0 0.0
        %1884 = vmatprep.subr.mxu0 0.0
        %1885 = vmatpush1.msra.mxu0 0.0
        %1886 = vmatprep.subr.mxu0 0.0
        %1887 = vmatpush1.msra.mxu0 0.0
        %1888 = vmatprep.subr.mxu0 0.0
        %1889 = vmatpush1.msra.mxu0 0.0
        %1890 = vmatprep.subr.mxu0 0.0
        %1891 = vmatpush1.msra.mxu0 0.0
        %1892 = vmatprep.subr.mxu0 0.0
        %1893 = vmatpush1.msra.mxu0 0.0
        %1894 = vmatprep.subr.mxu0 0.0
        %1895 = vmatpush1.msra.mxu0 0.0
        %1896 = vmatprep.subr.mxu0 0.0
        %1897 = vmatpush1.msra.mxu0 0.0
        %1898 = vmatprep.subr.mxu0 0.0
        %1899 = vmatpush1.msra.mxu0 0.0
        %1900 = vmatprep.mubr.f32.mxu0 0.0
        %1901 = vmatmul.mubr.f32.gmra.mrb[0].mxu0 %v1831
        %v1902 = vpop.f32.mrb[0].mxu0
        %v1903 = vadd.f32 0.0, %v1902
        %v1904 = vpop.f32.mrb[0].mxu0
        %1905 = vmatprep.mubr.f32.mxu0 0.0
        %1906 = vmatmul.mubr.f32.gmra.mrb[0].mxu0 %v1834
        %v1907 = vpop.f32.mrb[0].mxu0
        %v1908 = vadd.f32 0.0, %v1907
        %v1909 = vpop.f32.mrb[0].mxu0
        %1910 = vdwg.mxu0
        %v1912 = vsel %vm1013, %v1826, 0
        %v1915 = vsel %vm1013, %v1827, 0
        %1917 = vmatprep.subr.mxu0 0.0
        %1918 = vmatpush1.msra.mxu0 %v1820
        %1919 = vmatprep.subr.mxu0 0.0
        %1920 = vmatpush1.msra.mxu0 %v1821
        %1921 = vmatprep.subr.mxu0 0.0
        %1922 = vmatpush1.msra.mxu0 0.0
        %1923 = vmatprep.subr.mxu0 0.0
        %1924 = vmatpush1.msra.mxu0 0.0
        %1925 = vmatprep.subr.mxu0 0.0
        %1926 = vmatpush1.msra.mxu0 0.0
        %1927 = vmatprep.subr.mxu0 0.0
        %1928 = vmatpush1.msra.mxu0 0.0
        %1929 = vmatprep.subr.mxu0 0.0
        %1930 = vmatpush1.msra.mxu0 0.0
        %1931 = vmatprep.subr.mxu0 0.0
        %1932 = vmatpush1.msra.mxu0 0.0
        %1933 = vmatprep.subr.mxu0 0.0
        %1934 = vmatpush1.msra.mxu0 0.0
        %1935 = vmatprep.subr.mxu0 0.0
        %1936 = vmatpush1.msra.mxu0 0.0
        %1937 = vmatprep.subr.mxu0 0.0
        %1938 = vmatpush1.msra.mxu0 0.0
        %1939 = vmatprep.subr.mxu0 0.0
        %1940 = vmatpush1.msra.mxu0 0.0
        %1941 = vmatprep.subr.mxu0 0.0
        %1942 = vmatpush1.msra.mxu0 0.0
        %1943 = vmatprep.subr.mxu0 0.0
        %1944 = vmatpush1.msra.mxu0 0.0
        %1945 = vmatprep.subr.mxu0 0.0
        %1946 = vmatpush1.msra.mxu0 0.0
        %1947 = vmatprep.subr.mxu0 0.0
        %1948 = vmatpush1.msra.mxu0 0.0
        %1949 = vmatprep.subr.mxu0 0.0
        %1950 = vmatpush1.msra.mxu0 0.0
        %1951 = vmatprep.subr.mxu0 0.0
        %1952 = vmatpush1.msra.mxu0 0.0
        %1953 = vmatprep.subr.mxu0 0.0
        %1954 = vmatpush1.msra.mxu0 0.0
        %1955 = vmatprep.subr.mxu0 0.0
        %1956 = vmatpush1.msra.mxu0 0.0
        %1957 = vmatprep.subr.mxu0 0.0
        %1958 = vmatpush1.msra.mxu0 0.0
        %1959 = vmatprep.subr.mxu0 0.0
        %1960 = vmatpush1.msra.mxu0 0.0
        %1961 = vmatprep.subr.mxu0 0.0
        %1962 = vmatpush1.msra.mxu0 0.0
        %1963 = vmatprep.subr.mxu0 0.0
        %1964 = vmatpush1.msra.mxu0 0.0
        %1965 = vmatprep.subr.mxu0 0.0
        %1966 = vmatpush1.msra.mxu0 0.0
        %1967 = vmatprep.subr.mxu0 0.0
        %1968 = vmatpush1.msra.mxu0 0.0
        %1969 = vmatprep.subr.mxu0 0.0
        %1970 = vmatpush1.msra.mxu0 0.0
        %1971 = vmatprep.subr.mxu0 0.0
        %1972 = vmatpush1.msra.mxu0 0.0
        %1973 = vmatprep.subr.mxu0 0.0
        %1974 = vmatpush1.msra.mxu0 0.0
        %1975 = vmatprep.subr.mxu0 0.0
        %1976 = vmatpush1.msra.mxu0 0.0
        %1977 = vmatprep.subr.mxu0 0.0
        %1978 = vmatpush1.msra.mxu0 0.0
        %1979 = vmatprep.subr.mxu0 0.0
        %1980 = vmatpush1.msra.mxu0 0.0
        %1981 = vmatprep.mubr.f32.mxu0 0.0
        %1982 = vmatmul.mubr.f32.gmra.mrb[0].mxu0 %v1912
        %v1983 = vpop.f32.mrb[0].mxu0
        %v1984 = vadd.f32 %v1903, %v1983
        %v1985 = vpop.f32.mrb[0].mxu0
        %1986 = vmatprep.mubr.f32.mxu0 0.0
        %1987 = vmatmul.mubr.f32.gmra.mrb[0].mxu0 %v1915
        %v1988 = vpop.f32.mrb[0].mxu0
        %v1989 = vadd.f32 %v1908, %v1988
        %v1990 = vpop.f32.mrb[0].mxu0
        %1991 = vdwg.mxu0
        %v1992 = vld [vmem:[#allocation2 + $0xa] sm:$0xff]
        %v1993 = vld [vmem:[#allocation2 + $0x12] sm:$0xff]
        %v1995 = vsel %vm1013, %v1992, 0
        %v1998 = vsel %vm1013, %v1993, 0
        %2000 = vmatprep.subr.mxu0 0.0
        %2001 = vmatpush1.msra.mxu0 %v1824
        %2002 = vmatprep.subr.mxu0 0.0
        %2003 = vmatpush1.msra.mxu0 %v1825
        %2004 = vmatprep.subr.mxu0 0.0
        %2005 = vmatpush1.msra.mxu0 0.0
        %2006 = vmatprep.subr.mxu0 0.0
        %2007 = vmatpush1.msra.mxu0 0.0
        %2008 = vmatprep.subr.mxu0 0.0
        %2009 = vmatpush1.msra.mxu0 0.0
        %2010 = vmatprep.subr.mxu0 0.0
        %2011 = vmatpush1.msra.mxu0 0.0
        %2012 = vmatprep.subr.mxu0 0.0
        %2013 = vmatpush1.msra.mxu0 0.0
        %2014 = vmatprep.subr.mxu0 0.0
        %2015 = vmatpush1.msra.mxu0 0.0
        %2016 = vmatprep.subr.mxu0 0.0
        %2017 = vmatpush1.msra.mxu0 0.0
        %2018 = vmatprep.subr.mxu0 0.0
        %2019 = vmatpush1.msra.mxu0 0.0
        %2020 = vmatprep.subr.mxu0 0.0
        %2021 = vmatpush1.msra.mxu0 0.0
        %2022 = vmatprep.subr.mxu0 0.0
        %2023 = vmatpush1.msra.mxu0 0.0
        %2024 = vmatprep.subr.mxu0 0.0
        %2025 = vmatpush1.msra.mxu0 0.0
        %2026 = vmatprep.subr.mxu0 0.0
        %2027 = vmatpush1.msra.mxu0 0.0
        %2028 = vmatprep.subr.mxu0 0.0
        %2029 = vmatpush1.msra.mxu0 0.0
        %2030 = vmatprep.subr.mxu0 0.0
        %2031 = vmatpush1.msra.mxu0 0.0
        %2032 = vmatprep.subr.mxu0 0.0
        %2033 = vmatpush1.msra.mxu0 0.0
        %2034 = vmatprep.subr.mxu0 0.0
        %2035 = vmatpush1.msra.mxu0 0.0
        %2036 = vmatprep.subr.mxu0 0.0
        %2037 = vmatpush1.msra.mxu0 0.0
        %2038 = vmatprep.subr.mxu0 0.0
        %2039 = vmatpush1.msra.mxu0 0.0
        %2040 = vmatprep.subr.mxu0 0.0
        %2041 = vmatpush1.msra.mxu0 0.0
        %2042 = vmatprep.subr.mxu0 0.0
        %2043 = vmatpush1.msra.mxu0 0.0
        %2044 = vmatprep.subr.mxu0 0.0
        %2045 = vmatpush1.msra.mxu0 0.0
        %2046 = vmatprep.subr.mxu0 0.0
        %2047 = vmatpush1.msra.mxu0 0.0
        %2048 = vmatprep.subr.mxu0 0.0
        %2049 = vmatpush1.msra.mxu0 0.0
        %2050 = vmatprep.subr.mxu0 0.0
        %2051 = vmatpush1.msra.mxu0 0.0
        %2052 = vmatprep.subr.mxu0 0.0
        %2053 = vmatpush1.msra.mxu0 0.0
        %2054 = vmatprep.subr.mxu0 0.0
        %2055 = vmatpush1.msra.mxu0 0.0
        %2056 = vmatprep.subr.mxu0 0.0
        %2057 = vmatpush1.msra.mxu0 0.0
        %2058 = vmatprep.subr.mxu0 0.0
        %2059 = vmatpush1.msra.mxu0 0.0
        %2060 = vmatprep.subr.mxu0 0.0
        %2061 = vmatpush1.msra.mxu0 0.0
        %2062 = vmatprep.subr.mxu0 0.0
        %2063 = vmatpush1.msra.mxu0 0.0
        %2064 = vmatprep.mubr.f32.mxu0 0.0
        %2065 = vmatmul.mubr.f32.gmra.mrb[0].mxu0 %v1995
        %v2066 = vpop.f32.mrb[0].mxu0
        %v2067 = vadd.f32 0.0, %v2066
        %v2068 = vpop.f32.mrb[0].mxu0
        %2069 = vmatprep.mubr.f32.mxu0 0.0
        %2070 = vmatmul.mubr.f32.gmra.mrb[0].mxu0 %v1998
        %v2071 = vpop.f32.mrb[0].mxu0
        %v2072 = vadd.f32 0.0, %v2071
        %v2073 = vpop.f32.mrb[0].mxu0
        %2074 = vdwg.mxu0
        %v2075 = vadd.f32 %v1984, %v2067
        %v2076 = vadd.f32 %v1989, %v2072
        %2079 = vrot.lane.b32.xlu0 %v2075, 96
        %v2080 = vpop.permute.xlu0 %2079
        %2081 = vrot.lane.b32.xlu0 %v2076, 96
        %v2082 = vpop.permute.xlu0 %2081
        %vm2085 = vcmask 1048320
        %2086 = vst.msk [vmem:[#allocation3] sm:$0xff] %vm2085, %v2080
        %2087 = vst.msk [vmem:[#allocation3 + $0x8] sm:$0xff] %vm2085, %v2082
        %v2088 = vld [vmem:[#allocation3] sm:$0xff]
        %v2089 = vld [vmem:[#allocation3 + $0x8] sm:$0xff]
        %v2090 = vld [vmem:[%s6] sm:$0x1]
        %v2092 = vlaneseq
        %v2093 = vshrl.u32 %v2092, 7
        %v2094 = vsub.s32 0, %v2093
        %v2095 = vrot.slane %v2090, %v2094
        %v2097 = vadd.f32 %v2088, %v2095
        %v2098 = vadd.f32 %v2089, %v2095
        %v2099 = vmax.f32 %v2097, 0.0
        %v2100 = vmax.f32 %v2098, 0.0
        %v2101 = vld [vmem:[%s7] sm:$0x1]
        %v2103 = vlaneseq
        %v2104 = vshrl.u32 %v2103, 7
        %v2105 = vsub.s32 0, %v2104
        %v2106 = vrot.slane %v2101, %v2105
        %v2108 = vmul.f32 %v2099, %v2106
        %v2109 = vmul.f32 %v2100, %v2106
        %v2110 = vld [vmem:[%s8] sm:$0x1]
        %v2112 = vlaneseq
        %v2113 = vshrl.u32 %v2112, 7
        %v2114 = vsub.s32 0, %v2113
        %v2115 = vrot.slane %v2110, %v2114
        %v2117 = vadd.f32 %v2108, %v2115
        %v2118 = vadd.f32 %v2109, %v2115
        %v2119 = vadd.f32 %v2117, %v2118
        %v2120 = vrot.slane %v2119, 4
        %v2121 = vadd.f32 %v2119, %v2120
        %v2122 = vrot.slane %v2121, 2
        %v2123 = vadd.f32 %v2121, %v2122
        %v2124 = vrot.slane %v2123, 1
        %v2125 = vadd.f32 %v2123, %v2124
        %v2126 = vrcp.pop 16.0
        %v2127 = vmul.f32 %v2125, %v2126
        %v2128 = vld [vmem:[%s9] sm:$0xff]
        %v2129 = vld [vmem:[%s9 + $0x8] sm:$0xff]
        %v2130 = vld [vmem:[%s9 + $0x10] sm:$0xff]
        %v2131 = vld [vmem:[%s9 + $0x18] sm:$0xff]
        %v2132 = vld [vmem:[%s9 + $0x20] sm:$0xff]
        %v2133 = vld [vmem:[%s9 + $0x28] sm:$0xff]
        %v2134 = vld [vmem:[%s9 + $0x30] sm:$0xff]
        %v2135 = vld [vmem:[%s9 + $0x38] sm:$0xff]
        %v2136 = vld [vmem:[%s9 + $0x40] sm:$0xff]
        %v2137 = vld [vmem:[%s9 + $0x48] sm:$0xff]
        %v2138 = vld [vmem:[%s9 + $0x50] sm:$0xff]
        %v2139 = vld [vmem:[%s9 + $0x58] sm:$0xff]
        %v2140 = vld [vmem:[%s9 + $0x60] sm:$0xff]
        %v2141 = vld [vmem:[%s9 + $0x68] sm:$0xff]
        %v2142 = vld [vmem:[%s9 + $0x70] sm:$0xff]
        %v2143 = vld [vmem:[%s9 + $0x78] sm:$0xff]
        %v2144 = vld [vmem:[%s10] sm:$0x1]
        %2145 = vmatprep.subr.mxu0 0.0
        %2146 = vmatpush1.msra.mxu0 %v2128
        %2147 = vmatprep.subr.mxu0 0.0
        %2148 = vmatpush1.msra.mxu0 %v2129
        %2149 = vmatprep.subr.mxu0 0.0
        %2150 = vmatpush1.msra.mxu0 %v2130
        %2151 = vmatprep.subr.mxu0 0.0
        %2152 = vmatpush1.msra.mxu0 %v2131
        %2153 = vmatprep.subr.mxu0 0.0
        %2154 = vmatpush1.msra.mxu0 %v2132
        %2155 = vmatprep.subr.mxu0 0.0
        %2156 = vmatpush1.msra.mxu0 %v2133
        %2157 = vmatprep.subr.mxu0 0.0
        %2158 = vmatpush1.msra.mxu0 %v2134
        %2159 = vmatprep.subr.mxu0 0.0
        %2160 = vmatpush1.msra.mxu0 %v2135
        %2161 = vmatprep.subr.mxu0 0.0
        %2162 = vmatpush1.msra.mxu0 %v2136
        %2163 = vmatprep.subr.mxu0 0.0
        %2164 = vmatpush1.msra.mxu0 %v2137
        %2165 = vmatprep.subr.mxu0 0.0
        %2166 = vmatpush1.msra.mxu0 %v2138
        %2167 = vmatprep.subr.mxu0 0.0
        %2168 = vmatpush1.msra.mxu0 %v2139
        %2169 = vmatprep.subr.mxu0 0.0
        %2170 = vmatpush1.msra.mxu0 %v2140
        %2171 = vmatprep.subr.mxu0 0.0
        %2172 = vmatpush1.msra.mxu0 %v2141
        %2173 = vmatprep.subr.mxu0 0.0
        %2174 = vmatpush1.msra.mxu0 %v2142
        %2175 = vmatprep.subr.mxu0 0.0
        %2176 = vmatpush1.msra.mxu0 %v2143
        %2177 = vmatprep.subr.mxu0 0.0
        %2178 = vmatpush1.msra.mxu0 0.0
        %2179 = vmatprep.subr.mxu0 0.0
        %2180 = vmatpush1.msra.mxu0 0.0
        %2181 = vmatprep.subr.mxu0 0.0
        %2182 = vmatpush1.msra.mxu0 0.0
        %2183 = vmatprep.subr.mxu0 0.0
        %2184 = vmatpush1.msra.mxu0 0.0
        %2185 = vmatprep.subr.mxu0 0.0
        %2186 = vmatpush1.msra.mxu0 0.0
        %2187 = vmatprep.subr.mxu0 0.0
        %2188 = vmatpush1.msra.mxu0 0.0
        %2189 = vmatprep.subr.mxu0 0.0
        %2190 = vmatpush1.msra.mxu0 0.0
        %2191 = vmatprep.subr.mxu0 0.0
        %2192 = vmatpush1.msra.mxu0 0.0
        %2193 = vmatprep.subr.mxu0 0.0
        %2194 = vmatpush1.msra.mxu0 0.0
        %2195 = vmatprep.subr.mxu0 0.0
        %2196 = vmatpush1.msra.mxu0 0.0
        %2197 = vmatprep.subr.mxu0 0.0
        %2198 = vmatpush1.msra.mxu0 0.0
        %2199 = vmatprep.subr.mxu0 0.0
        %2200 = vmatpush1.msra.mxu0 0.0
        %2201 = vmatprep.subr.mxu0 0.0
        %2202 = vmatpush1.msra.mxu0 0.0
        %2203 = vmatprep.subr.mxu0 0.0
        %2204 = vmatpush1.msra.mxu0 0.0
        %2205 = vmatprep.subr.mxu0 0.0
        %2206 = vmatpush1.msra.mxu0 0.0
        %2207 = vmatprep.subr.mxu0 0.0
        %2208 = vmatpush1.msra.mxu0 0.0
        %2209 = vmatprep.mubr.f32.mxu0 0.0
        %2210 = vmatmul.mubr.f32.gmra.mrb[0].mxu0 %v2127
        %v2211 = vpop.f32.mrb[0].mxu0
        %v2212 = vadd.f32 %v2144, %v2211
        %v2213 = vpop.f32.mrb[0].mxu0
        %2214 = vdwg.mxu0
        %v2215 = vmax.f32 %v2212, 0.0
        %v2216 = vld [vmem:[%s11] sm:$0xff]
        %v2217 = vld [vmem:[%s11 + $0x8] sm:$0xff]
        %v2218 = vld [vmem:[%s11 + $0x10] sm:$0xff]
        %v2219 = vld [vmem:[%s11 + $0x18] sm:$0xff]
        %v2220 = vld [vmem:[%s11 + $0x20] sm:$0xff]
        %v2221 = vld [vmem:[%s11 + $0x28] sm:$0xff]
        %v2222 = vld [vmem:[%s11 + $0x30] sm:$0xff]
        %v2223 = vld [vmem:[%s11 + $0x38] sm:$0xff]
        %v2224 = vld [vmem:[%s12] sm:$0x1]
        %vm2225 = vcmask 523264
        %v2227 = vsel %vm2225, %v2215, 0
        %2229 = vmatprep.subr.mxu0 0.0
        %2230 = vmatpush1.msra.mxu0 %v2216
        %2231 = vmatprep.subr.mxu0 0.0
        %2232 = vmatpush1.msra.mxu0 %v2217
        %2233 = vmatprep.subr.mxu0 0.0
        %2234 = vmatpush1.msra.mxu0 %v2218
        %2235 = vmatprep.subr.mxu0 0.0
        %2236 = vmatpush1.msra.mxu0 %v2219
        %2237 = vmatprep.subr.mxu0 0.0
        %2238 = vmatpush1.msra.mxu0 %v2220
        %2239 = vmatprep.subr.mxu0 0.0
        %2240 = vmatpush1.msra.mxu0 %v2221
        %2241 = vmatprep.subr.mxu0 0.0
        %2242 = vmatpush1.msra.mxu0 %v2222
        %2243 = vmatprep.subr.mxu0 0.0
        %2244 = vmatpush1.msra.mxu0 %v2223
        %2245 = vmatprep.subr.mxu0 0.0
        %2246 = vmatpush1.msra.mxu0 0.0
        %2247 = vmatprep.subr.mxu0 0.0
        %2248 = vmatpush1.msra.mxu0 0.0
        %2249 = vmatprep.subr.mxu0 0.0
        %2250 = vmatpush1.msra.mxu0 0.0
        %2251 = vmatprep.subr.mxu0 0.0
        %2252 = vmatpush1.msra.mxu0 0.0
        %2253 = vmatprep.subr.mxu0 0.0
        %2254 = vmatpush1.msra.mxu0 0.0
        %2255 = vmatprep.subr.mxu0 0.0
        %2256 = vmatpush1.msra.mxu0 0.0
        %2257 = vmatprep.subr.mxu0 0.0
        %2258 = vmatpush1.msra.mxu0 0.0
        %2259 = vmatprep.subr.mxu0 0.0
        %2260 = vmatpush1.msra.mxu0 0.0
        %2261 = vmatprep.subr.mxu0 0.0
        %2262 = vmatpush1.msra.mxu0 0.0
        %2263 = vmatprep.subr.mxu0 0.0
        %2264 = vmatpush1.msra.mxu0 0.0
        %2265 = vmatprep.subr.mxu0 0.0
        %2266 = vmatpush1.msra.mxu0 0.0
        %2267 = vmatprep.subr.mxu0 0.0
        %2268 = vmatpush1.msra.mxu0 0.0
        %2269 = vmatprep.subr.mxu0 0.0
        %2270 = vmatpush1.msra.mxu0 0.0
        %2271 = vmatprep.subr.mxu0 0.0
        %2272 = vmatpush1.msra.mxu0 0.0
        %2273 = vmatprep.subr.mxu0 0.0
        %2274 = vmatpush1.msra.mxu0 0.0
        %2275 = vmatprep.subr.mxu0 0.0
        %2276 = vmatpush1.msra.mxu0 0.0
        %2277 = vmatprep.subr.mxu0 0.0
        %2278 = vmatpush1.msra.mxu0 0.0
        %2279 = vmatprep.subr.mxu0 0.0
        %2280 = vmatpush1.msra.mxu0 0.0
        %2281 = vmatprep.subr.mxu0 0.0
        %2282 = vmatpush1.msra.mxu0 0.0
        %2283 = vmatprep.subr.mxu0 0.0
        %2284 = vmatpush1.msra.mxu0 0.0
        %2285 = vmatprep.subr.mxu0 0.0
        %2286 = vmatpush1.msra.mxu0 0.0
        %2287 = vmatprep.subr.mxu0 0.0
        %2288 = vmatpush1.msra.mxu0 0.0
        %2289 = vmatprep.subr.mxu0 0.0
        %2290 = vmatpush1.msra.mxu0 0.0
        %2291 = vmatprep.subr.mxu0 0.0
        %2292 = vmatpush1.msra.mxu0 0.0
        %2293 = vmatprep.mubr.f32.mxu0 0.0
        %2294 = vmatmul.mubr.f32.gmra.mrb[0].mxu0 %v2227
        %v2295 = vpop.f32.mrb[0].mxu0
        %v2296 = vadd.f32 %v2224, %v2295
        %v2297 = vpop.f32.mrb[0].mxu0
        %2298 = vdwg.mxu0
        %v2299 = vxor.u32 %v2296, 2147483648
        %v2300 = vmul.f32 %v2299, 1.442695
        %v2301 = vpow.pop %v2300
        %v2302 = vadd.f32 %v2301, 1.0
        %v2303 = vrcp.pop %v2302
        %v2304 = vmul.f32 1.0, %v2303
        %v2305 = vlaneseq
        %v2306 = vshrl.u32 %v2305, 7
        %v2307 = vsub.s32 0, %v2306
        %v2308 = vrot.slane %v2304, %v2307
        %v2309 = vmul.f32 %v2117, %v2308
        %v2310 = vmul.f32 %v2118, %v2308
        %2311 = vst [vmem:[#allocation4] sm:$0xff] 0.0
        %2312 = vst [vmem:[#allocation4 + $0x8] sm:$0xff] 0.0
        %2313 = vst [vmem:[#allocation4 + $0x10] sm:$0xff] 0.0
        %2314 = vst [vmem:[#allocation4 + $0x18] sm:$0x3] 0.0
        %2315 = vst [vmem:[#allocation4 + $0x5] sm:$0xff] %v2309
        %2316 = vst [vmem:[#allocation4 + $0xd] sm:$0xff] %v2310
        %v2317 = vld [vmem:[%s13] sm:$0xff]
        %v2318 = vld [vmem:[%s13 + $0x8] sm:$0xff]
        %v2319 = vld [vmem:[%s13 + $0x10] sm:$0xff]
        %v2320 = vld [vmem:[%s13 + $0x18] sm:$0xff]
        %v2321 = vld [vmem:[%s13 + $0x20] sm:$0xff]
        %v2322 = vld [vmem:[%s13 + $0x28] sm:$0xff]
        %v2323 = vld [vmem:[%s13 + $0x30] sm:$0xff]
        %v2324 = vld [vmem:[%s13 + $0x38] sm:$0xff]
        %v2325 = vld [vmem:[%s13 + $0x40] sm:$0xff]
        %v2326 = vld [vmem:[%s13 + $0x48] sm:$0xff]
        %v2327 = vld [vmem:[%s13 + $0x50] sm:$0xff]
        %v2328 = vld [vmem:[%s13 + $0x58] sm:$0xff]
        %v2329 = vld [vmem:[%s13 + $0x60] sm:$0xff]
        %v2330 = vld [vmem:[%s13 + $0x68] sm:$0xff]
        %v2331 = vld [vmem:[%s13 + $0x70] sm:$0xff]
        %v2332 = vld [vmem:[%s13 + $0x78] sm:$0xff]
        %v2333 = vld [vmem:[%s13 + $0x80] sm:$0xff]
        %v2334 = vld [vmem:[%s13 + $0x88] sm:$0xff]
        %v2335 = vld [vmem:[%s13 + $0x90] sm:$0xff]
        %v2336 = vld [vmem:[%s13 + $0x98] sm:$0xff]
        %v2337 = vld [vmem:[%s13 + $0xa0] sm:$0xff]
        %v2338 = vld [vmem:[%s13 + $0xa8] sm:$0xff]
        %v2339 = vld [vmem:[%s13 + $0xb0] sm:$0xff]
        %v2340 = vld [vmem:[%s13 + $0xb8] sm:$0xff]
        %v2341 = vld [vmem:[%s13 + $0xc0] sm:$0xff]
        %v2342 = vld [vmem:[%s13 + $0xc8] sm:$0xff]
        %v2343 = vld [vmem:[%s13 + $0xd0] sm:$0xff]
        %v2344 = vld [vmem:[%s13 + $0xd8] sm:$0xff]
        %v2345 = vld [vmem:[%s13 + $0xe0] sm:$0xff]
        %v2346 = vld [vmem:[%s13 + $0xe8] sm:$0xff]
        %v2347 = vld [vmem:[%s13 + $0xf0] sm:$0xff]
        %v2348 = vld [vmem:[%s13 + $0xf8] sm:$0xff]
        %v2349 = vld [vmem:[%s13 + $0x100] sm:$0xff]
        %v2350 = vld [vmem:[%s13 + $0x108] sm:$0xff]
        %v2351 = vld [vmem:[%s13 + $0x110] sm:$0xff]
        %v2352 = vld [vmem:[%s13 + $0x118] sm:$0xff]
        %v2353 = vld [vmem:[%s13 + $0x120] sm:$0xff]
        %v2354 = vld [vmem:[%s13 + $0x128] sm:$0xff]
        %v2355 = vld [vmem:[%s13 + $0x130] sm:$0xff]
        %v2356 = vld [vmem:[%s13 + $0x138] sm:$0xff]
        %v2357 = vld [vmem:[%s13 + $0x140] sm:$0xff]
        %v2358 = vld [vmem:[%s13 + $0x148] sm:$0xff]
        %v2359 = vld [vmem:[%s13 + $0x150] sm:$0xff]
        %v2360 = vld [vmem:[%s13 + $0x158] sm:$0xff]
        %v2361 = vld [vmem:[%s13 + $0x160] sm:$0xff]
        %v2362 = vld [vmem:[%s13 + $0x168] sm:$0xff]
        %v2363 = vld [vmem:[%s13 + $0x170] sm:$0xff]
        %v2364 = vld [vmem:[%s13 + $0x178] sm:$0xff]
        %v2365 = vld [vmem:[#allocation4 + $0x3] sm:$0xff]
        %v2366 = vld [vmem:[#allocation4 + $0xb] sm:$0xff]
        %v2367 = vld [vmem:[#allocation4 + $0x5] sm:$0xff]
        %v2368 = vld [vmem:[#allocation4 + $0xd] sm:$0xff]
        %2369 = vmatprep.subr.mxu0 0.0
        %2370 = vmatpush1.msra.mxu0 %v2333
        %2371 = vmatprep.subr.mxu0 0.0
        %2372 = vmatpush1.msra.mxu0 %v2334
        %2373 = vmatprep.subr.mxu0 0.0
        %2374 = vmatpush1.msra.mxu0 %v2335
        %2375 = vmatprep.subr.mxu0 0.0
        %2376 = vmatpush1.msra.mxu0 %v2336
        %2377 = vmatprep.subr.mxu0 0.0
        %2378 = vmatpush1.msra.mxu0 %v2337
        %2379 = vmatprep.subr.mxu0 0.0
        %2380 = vmatpush1.msra.mxu0 %v2338
        %2381 = vmatprep.subr.mxu0 0.0
        %2382 = vmatpush1.msra.mxu0 %v2339
        %2383 = vmatprep.subr.mxu0 0.0
        %2384 = vmatpush1.msra.mxu0 %v2340
        %2385 = vmatprep.subr.mxu0 0.0
        %2386 = vmatpush1.msra.mxu0 %v2341
        %2387 = vmatprep.subr.mxu0 0.0
        %2388 = vmatpush1.msra.mxu0 %v2342
        %2389 = vmatprep.subr.mxu0 0.0
        %2390 = vmatpush1.msra.mxu0 %v2343
        %2391 = vmatprep.subr.mxu0 0.0
        %2392 = vmatpush1.msra.mxu0 %v2344
        %2393 = vmatprep.subr.mxu0 0.0
        %2394 = vmatpush1.msra.mxu0 %v2345
        %2395 = vmatprep.subr.mxu0 0.0
        %2396 = vmatpush1.msra.mxu0 %v2346
        %2397 = vmatprep.subr.mxu0 0.0
        %2398 = vmatpush1.msra.mxu0 %v2347
        %2399 = vmatprep.subr.mxu0 0.0
        %2400 = vmatpush1.msra.mxu0 %v2348
        %2401 = vmatprep.subr.mxu0 0.0
        %2402 = vmatpush1.msra.mxu0 0.0
        %2403 = vmatprep.subr.mxu0 0.0
        %2404 = vmatpush1.msra.mxu0 0.0
        %2405 = vmatprep.subr.mxu0 0.0
        %2406 = vmatpush1.msra.mxu0 0.0
        %2407 = vmatprep.subr.mxu0 0.0
        %2408 = vmatpush1.msra.mxu0 0.0
        %2409 = vmatprep.subr.mxu0 0.0
        %2410 = vmatpush1.msra.mxu0 0.0
        %2411 = vmatprep.subr.mxu0 0.0
        %2412 = vmatpush1.msra.mxu0 0.0
        %2413 = vmatprep.subr.mxu0 0.0
        %2414 = vmatpush1.msra.mxu0 0.0
        %2415 = vmatprep.subr.mxu0 0.0
        %2416 = vmatpush1.msra.mxu0 0.0
        %2417 = vmatprep.subr.mxu0 0.0
        %2418 = vmatpush1.msra.mxu0 0.0
        %2419 = vmatprep.subr.mxu0 0.0
        %2420 = vmatpush1.msra.mxu0 0.0
        %2421 = vmatprep.subr.mxu0 0.0
        %2422 = vmatpush1.msra.mxu0 0.0
        %2423 = vmatprep.subr.mxu0 0.0
        %2424 = vmatpush1.msra.mxu0 0.0
        %2425 = vmatprep.subr.mxu0 0.0
        %2426 = vmatpush1.msra.mxu0 0.0
        %2427 = vmatprep.subr.mxu0 0.0
        %2428 = vmatpush1.msra.mxu0 0.0
        %2429 = vmatprep.subr.mxu0 0.0
        %2430 = vmatpush1.msra.mxu0 0.0
        %2431 = vmatprep.subr.mxu0 0.0
        %2432 = vmatpush1.msra.mxu0 0.0
        %2433 = vmatprep.mubr.f32.mxu0 0.0
        %2434 = vmatmul.mubr.f32.gmra.mrb[0].mxu0 %v2367
        %v2435 = vpop.f32.mrb[0].mxu0
        %v2436 = vadd.f32 0.0, %v2435
        %v2437 = vpop.f32.mrb[0].mxu0
        %2438 = vmatprep.mubr.f32.mxu0 0.0
        %2439 = vmatmul.mubr.f32.gmra.mrb[0].mxu0 %v2368
        %v2440 = vpop.f32.mrb[0].mxu0
        %v2441 = vadd.f32 0.0, %v2440
        %v2442 = vpop.f32.mrb[0].mxu0
        %2443 = vdwg.mxu0
        %2444 = vmatprep.subr.mxu0 0.0
        %2445 = vmatpush1.msra.mxu0 %v2317
        %2446 = vmatprep.subr.mxu0 0.0
        %2447 = vmatpush1.msra.mxu0 %v2318
        %2448 = vmatprep.subr.mxu0 0.0
        %2449 = vmatpush1.msra.mxu0 %v2319
        %2450 = vmatprep.subr.mxu0 0.0
        %2451 = vmatpush1.msra.mxu0 %v2320
        %2452 = vmatprep.subr.mxu0 0.0
        %2453 = vmatpush1.msra.mxu0 %v2321
        %2454 = vmatprep.subr.mxu0 0.0
        %2455 = vmatpush1.msra.mxu0 %v2322
        %2456 = vmatprep.subr.mxu0 0.0
        %2457 = vmatpush1.msra.mxu0 %v2323
        %2458 = vmatprep.subr.mxu0 0.0
        %2459 = vmatpush1.msra.mxu0 %v2324
        %2460 = vmatprep.subr.mxu0 0.0
        %2461 = vmatpush1.msra.mxu0 %v2325
        %2462 = vmatprep.subr.mxu0 0.0
        %2463 = vmatpush1.msra.mxu0 %v2326
        %2464 = vmatprep.subr.mxu0 0.0
        %2465 = vmatpush1.msra.mxu0 %v2327
        %2466 = vmatprep.subr.mxu0 0.0
        %2467 = vmatpush1.msra.mxu0 %v2328
        %2468 = vmatprep.subr.mxu0 0.0
        %2469 = vmatpush1.msra.mxu0 %v2329
        %2470 = vmatprep.subr.mxu0 0.0
        %2471 = vmatpush1.msra.mxu0 %v2330
        %2472 = vmatprep.subr.mxu0 0.0
        %2473 = vmatpush1.msra.mxu0 %v2331
        %2474 = vmatprep.subr.mxu0 0.0
        %2475 = vmatpush1.msra.mxu0 %v2332
        %2476 = vmatprep.subr.mxu0 0.0
        %2477 = vmatpush1.msra.mxu0 0.0
        %2478 = vmatprep.subr.mxu0 0.0
        %2479 = vmatpush1.msra.mxu0 0.0
        %2480 = vmatprep.subr.mxu0 0.0
        %2481 = vmatpush1.msra.mxu0 0.0
        %2482 = vmatprep.subr.mxu0 0.0
        %2483 = vmatpush1.msra.mxu0 0.0
        %2484 = vmatprep.subr.mxu0 0.0
        %2485 = vmatpush1.msra.mxu0 0.0
        %2486 = vmatprep.subr.mxu0 0.0
        %2487 = vmatpush1.msra.mxu0 0.0
        %2488 = vmatprep.subr.mxu0 0.0
        %2489 = vmatpush1.msra.mxu0 0.0
        %2490 = vmatprep.subr.mxu0 0.0
        %2491 = vmatpush1.msra.mxu0 0.0
        %2492 = vmatprep.subr.mxu0 0.0
        %2493 = vmatpush1.msra.mxu0 0.0
        %2494 = vmatprep.subr.mxu0 0.0
        %2495 = vmatpush1.msra.mxu0 0.0
        %2496 = vmatprep.subr.mxu0 0.0
        %2497 = vmatpush1.msra.mxu0 0.0
        %2498 = vmatprep.subr.mxu0 0.0
        %2499 = vmatpush1.msra.mxu0 0.0
        %2500 = vmatprep.subr.mxu0 0.0
        %2501 = vmatpush1.msra.mxu0 0.0
        %2502 = vmatprep.subr.mxu0 0.0
        %2503 = vmatpush1.msra.mxu0 0.0
        %2504 = vmatprep.subr.mxu0 0.0
        %2505 = vmatpush1.msra.mxu0 0.0
        %2506 = vmatprep.subr.mxu0 0.0
        %2507 = vmatpush1.msra.mxu0 0.0
        %2508 = vmatprep.mubr.f32.mxu0 0.0
        %2509 = vmatmul.mubr.f32.gmra.mrb[0].mxu0 %v2365
        %v2510 = vpop.f32.mrb[0].mxu0
        %v2511 = vadd.f32 %v2436, %v2510
        %v2512 = vpop.f32.mrb[0].mxu0
        %2513 = vmatprep.mubr.f32.mxu0 0.0
        %2514 = vmatmul.mubr.f32.gmra.mrb[0].mxu0 %v2366
        %v2515 = vpop.f32.mrb[0].mxu0
        %v2516 = vadd.f32 %v2441, %v2515
        %v2517 = vpop.f32.mrb[0].mxu0
        %2518 = vdwg.mxu0
        %v2519 = vld [vmem:[#allocation4 + $0x7] sm:$0xff]
        %v2520 = vld [vmem:[#allocation4 + $0xf] sm:$0xff]
        %2521 = vmatprep.subr.mxu0 0.0
        %2522 = vmatpush1.msra.mxu0 %v2349
        %2523 = vmatprep.subr.mxu0 0.0
        %2524 = vmatpush1.msra.mxu0 %v2350
        %2525 = vmatprep.subr.mxu0 0.0
        %2526 = vmatpush1.msra.mxu0 %v2351
        %2527 = vmatprep.subr.mxu0 0.0
        %2528 = vmatpush1.msra.mxu0 %v2352
        %2529 = vmatprep.subr.mxu0 0.0
        %2530 = vmatpush1.msra.mxu0 %v2353
        %2531 = vmatprep.subr.mxu0 0.0
        %2532 = vmatpush1.msra.mxu0 %v2354
        %2533 = vmatprep.subr.mxu0 0.0
        %2534 = vmatpush1.msra.mxu0 %v2355
        %2535 = vmatprep.subr.mxu0 0.0
        %2536 = vmatpush1.msra.mxu0 %v2356
        %2537 = vmatprep.subr.mxu0 0.0
        %2538 = vmatpush1.msra.mxu0 %v2357
        %2539 = vmatprep.subr.mxu0 0.0
        %2540 = vmatpush1.msra.mxu0 %v2358
        %2541 = vmatprep.subr.mxu0 0.0
        %2542 = vmatpush1.msra.mxu0 %v2359
        %2543 = vmatprep.subr.mxu0 0.0
        %2544 = vmatpush1.msra.mxu0 %v2360
        %2545 = vmatprep.subr.mxu0 0.0
        %2546 = vmatpush1.msra.mxu0 %v2361
        %2547 = vmatprep.subr.mxu0 0.0
        %2548 = vmatpush1.msra.mxu0 %v2362
        %2549 = vmatprep.subr.mxu0 0.0
        %2550 = vmatpush1.msra.mxu0 %v2363
        %2551 = vmatprep.subr.mxu0 0.0
        %2552 = vmatpush1.msra.mxu0 %v2364
        %2553 = vmatprep.subr.mxu0 0.0
        %2554 = vmatpush1.msra.mxu0 0.0
        %2555 = vmatprep.subr.mxu0 0.0
        %2556 = vmatpush1.msra.mxu0 0.0
        %2557 = vmatprep.subr.mxu0 0.0
        %2558 = vmatpush1.msra.mxu0 0.0
        %2559 = vmatprep.subr.mxu0 0.0
        %2560 = vmatpush1.msra.mxu0 0.0
        %2561 = vmatprep.subr.mxu0 0.0
        %2562 = vmatpush1.msra.mxu0 0.0
        %2563 = vmatprep.subr.mxu0 0.0
        %2564 = vmatpush1.msra.mxu0 0.0
        %2565 = vmatprep.subr.mxu0 0.0
        %2566 = vmatpush1.msra.mxu0 0.0
        %2567 = vmatprep.subr.mxu0 0.0
        %2568 = vmatpush1.msra.mxu0 0.0
        %2569 = vmatprep.subr.mxu0 0.0
        %2570 = vmatpush1.msra.mxu0 0.0
        %2571 = vmatprep.subr.mxu0 0.0
        %2572 = vmatpush1.msra.mxu0 0.0
        %2573 = vmatprep.subr.mxu0 0.0
        %2574 = vmatpush1.msra.mxu0 0.0
        %2575 = vmatprep.subr.mxu0 0.0
        %2576 = vmatpush1.msra.mxu0 0.0
        %2577 = vmatprep.subr.mxu0 0.0
        %2578 = vmatpush1.msra.mxu0 0.0
        %2579 = vmatprep.subr.mxu0 0.0
        %2580 = vmatpush1.msra.mxu0 0.0
        %2581 = vmatprep.subr.mxu0 0.0
        %2582 = vmatpush1.msra.mxu0 0.0
        %2583 = vmatprep.subr.mxu0 0.0
        %2584 = vmatpush1.msra.mxu0 0.0
        %2585 = vmatprep.mubr.f32.mxu0 0.0
        %2586 = vmatmul.mubr.f32.gmra.mrb[0].mxu0 %v2519
        %v2587 = vpop.f32.mrb[0].mxu0
        %v2588 = vadd.f32 0.0, %v2587
        %v2589 = vpop.f32.mrb[0].mxu0
        %2590 = vmatprep.mubr.f32.mxu0 0.0
        %2591 = vmatmul.mubr.f32.gmra.mrb[0].mxu0 %v2520
        %v2592 = vpop.f32.mrb[0].mxu0
        %v2593 = vadd.f32 0.0, %v2592
        %v2594 = vpop.f32.mrb[0].mxu0
        %2595 = vdwg.mxu0
        %v2596 = vadd.f32 %v2511, %v2588
        %v2597 = vadd.f32 %v2516, %v2593
        %2598 = vst.msk [vmem:[#allocation5] sm:$0xff] %vm2225, %v2596
        %2599 = vst.msk [vmem:[#allocation5 + $0x10] sm:$0xff] %vm2225, %v2597
        %s2600 = scalar_lea.vmem %s13, 384
        %v2601 = vld [vmem:[%s2600] sm:$0xff]
        %v2602 = vld [vmem:[%s2600 + $0x8] sm:$0xff]
        %v2603 = vld [vmem:[%s2600 + $0x10] sm:$0xff]
        %v2604 = vld [vmem:[%s2600 + $0x18] sm:$0xff]
        %v2605 = vld [vmem:[%s2600 + $0x20] sm:$0xff]
        %v2606 = vld [vmem:[%s2600 + $0x28] sm:$0xff]
        %v2607 = vld [vmem:[%s2600 + $0x30] sm:$0xff]
        %v2608 = vld [vmem:[%s2600 + $0x38] sm:$0xff]
        %v2609 = vld [vmem:[%s2600 + $0x40] sm:$0xff]
        %v2610 = vld [vmem:[%s2600 + $0x48] sm:$0xff]
        %v2611 = vld [vmem:[%s2600 + $0x50] sm:$0xff]
        %v2612 = vld [vmem:[%s2600 + $0x58] sm:$0xff]
        %v2613 = vld [vmem:[%s2600 + $0x60] sm:$0xff]
        %v2614 = vld [vmem:[%s2600 + $0x68] sm:$0xff]
        %v2615 = vld [vmem:[%s2600 + $0x70] sm:$0xff]
        %v2616 = vld [vmem:[%s2600 + $0x78] sm:$0xff]
        %v2617 = vld [vmem:[%s2600 + $0x80] sm:$0xff]
        %v2618 = vld [vmem:[%s2600 + $0x88] sm:$0xff]
        %v2619 = vld [vmem:[%s2600 + $0x90] sm:$0xff]
        %v2620 = vld [vmem:[%s2600 + $0x98] sm:$0xff]
        %v2621 = vld [vmem:[%s2600 + $0xa0] sm:$0xff]
        %v2622 = vld [vmem:[%s2600 + $0xa8] sm:$0xff]
        %v2623 = vld [vmem:[%s2600 + $0xb0] sm:$0xff]
        %v2624 = vld [vmem:[%s2600 + $0xb8] sm:$0xff]
        %v2625 = vld [vmem:[%s2600 + $0xc0] sm:$0xff]
        %v2626 = vld [vmem:[%s2600 + $0xc8] sm:$0xff]
        %v2627 = vld [vmem:[%s2600 + $0xd0] sm:$0xff]
        %v2628 = vld [vmem:[%s2600 + $0xd8] sm:$0xff]
        %v2629 = vld [vmem:[%s2600 + $0xe0] sm:$0xff]
        %v2630 = vld [vmem:[%s2600 + $0xe8] sm:$0xff]
        %v2631 = vld [vmem:[%s2600 + $0xf0] sm:$0xff]
        %v2632 = vld [vmem:[%s2600 + $0xf8] sm:$0xff]
        %v2633 = vld [vmem:[%s2600 + $0x100] sm:$0xff]
        %v2634 = vld [vmem:[%s2600 + $0x108] sm:$0xff]
        %v2635 = vld [vmem:[%s2600 + $0x110] sm:$0xff]
        %v2636 = vld [vmem:[%s2600 + $0x118] sm:$0xff]
        %v2637 = vld [vmem:[%s2600 + $0x120] sm:$0xff]
        %v2638 = vld [vmem:[%s2600 + $0x128] sm:$0xff]
        %v2639 = vld [vmem:[%s2600 + $0x130] sm:$0xff]
        %v2640 = vld [vmem:[%s2600 + $0x138] sm:$0xff]
        %v2641 = vld [vmem:[%s2600 + $0x140] sm:$0xff]
        %v2642 = vld [vmem:[%s2600 + $0x148] sm:$0xff]
        %v2643 = vld [vmem:[%s2600 + $0x150] sm:$0xff]
        %v2644 = vld [vmem:[%s2600 + $0x158] sm:$0xff]
        %v2645 = vld [vmem:[%s2600 + $0x160] sm:$0xff]
        %v2646 = vld [vmem:[%s2600 + $0x168] sm:$0xff]
        %v2647 = vld [vmem:[%s2600 + $0x170] sm:$0xff]
        %v2648 = vld [vmem:[%s2600 + $0x178] sm:$0xff]
        %v2649 = vld [vmem:[#allocation4 + $0x2] sm:$0xff]
        %v2650 = vld [vmem:[#allocation4 + $0xa] sm:$0xff]
        %v2651 = vld [vmem:[#allocation4 + $0x5] sm:$0xff]
        %v2652 = vld [vmem:[#allocation4 + $0xd] sm:$0xff]
        %2653 = vmatprep.subr.mxu0 0.0
        %2654 = vmatpush1.msra.mxu0 %v2617
        %2655 = vmatprep.subr.mxu0 0.0
        %2656 = vmatpush1.msra.mxu0 %v2618
        %2657 = vmatprep.subr.mxu0 0.0
        %2658 = vmatpush1.msra.mxu0 %v2619
        %2659 = vmatprep.subr.mxu0 0.0
        %2660 = vmatpush1.msra.mxu0 %v2620
        %2661 = vmatprep.subr.mxu0 0.0
        %2662 = vmatpush1.msra.mxu0 %v2621
        %2663 = vmatprep.subr.mxu0 0.0
        %2664 = vmatpush1.msra.mxu0 %v2622
        %2665 = vmatprep.subr.mxu0 0.0
        %2666 = vmatpush1.msra.mxu0 %v2623
        %2667 = vmatprep.subr.mxu0 0.0
        %2668 = vmatpush1.msra.mxu0 %v2624
        %2669 = vmatprep.subr.mxu0 0.0
        %2670 = vmatpush1.msra.mxu0 %v2625
        %2671 = vmatprep.subr.mxu0 0.0
        %2672 = vmatpush1.msra.mxu0 %v2626
        %2673 = vmatprep.subr.mxu0 0.0
        %2674 = vmatpush1.msra.mxu0 %v2627
        %2675 = vmatprep.subr.mxu0 0.0
        %2676 = vmatpush1.msra.mxu0 %v2628
        %2677 = vmatprep.subr.mxu0 0.0
        %2678 = vmatpush1.msra.mxu0 %v2629
        %2679 = vmatprep.subr.mxu0 0.0
        %2680 = vmatpush1.msra.mxu0 %v2630
        %2681 = vmatprep.subr.mxu0 0.0
        %2682 = vmatpush1.msra.mxu0 %v2631
        %2683 = vmatprep.subr.mxu0 0.0
        %2684 = vmatpush1.msra.mxu0 %v2632
        %2685 = vmatprep.subr.mxu0 0.0
        %2686 = vmatpush1.msra.mxu0 0.0
        %2687 = vmatprep.subr.mxu0 0.0
        %2688 = vmatpush1.msra.mxu0 0.0
        %2689 = vmatprep.subr.mxu0 0.0
        %2690 = vmatpush1.msra.mxu0 0.0
        %2691 = vmatprep.subr.mxu0 0.0
        %2692 = vmatpush1.msra.mxu0 0.0
        %2693 = vmatprep.subr.mxu0 0.0
        %2694 = vmatpush1.msra.mxu0 0.0
        %2695 = vmatprep.subr.mxu0 0.0
        %2696 = vmatpush1.msra.mxu0 0.0
        %2697 = vmatprep.subr.mxu0 0.0
        %2698 = vmatpush1.msra.mxu0 0.0
        %2699 = vmatprep.subr.mxu0 0.0
        %2700 = vmatpush1.msra.mxu0 0.0
        %2701 = vmatprep.subr.mxu0 0.0
        %2702 = vmatpush1.msra.mxu0 0.0
        %2703 = vmatprep.subr.mxu0 0.0
        %2704 = vmatpush1.msra.mxu0 0.0
        %2705 = vmatprep.subr.mxu0 0.0
        %2706 = vmatpush1.msra.mxu0 0.0
        %2707 = vmatprep.subr.mxu0 0.0
        %2708 = vmatpush1.msra.mxu0 0.0
        %2709 = vmatprep.subr.mxu0 0.0
        %2710 = vmatpush1.msra.mxu0 0.0
        %2711 = vmatprep.subr.mxu0 0.0
        %2712 = vmatpush1.msra.mxu0 0.0
        %2713 = vmatprep.subr.mxu0 0.0
        %2714 = vmatpush1.msra.mxu0 0.0
        %2715 = vmatprep.subr.mxu0 0.0
        %2716 = vmatpush1.msra.mxu0 0.0
        %2717 = vmatprep.mubr.f32.mxu0 0.0
        %2718 = vmatmul.mubr.f32.gmra.mrb[0].mxu0 %v2651
        %v2719 = vpop.f32.mrb[0].mxu0
        %v2720 = vadd.f32 0.0, %v2719
        %v2721 = vpop.f32.mrb[0].mxu0
        %2722 = vmatprep.mubr.f32.mxu0 0.0
        %2723 = vmatmul.mubr.f32.gmra.mrb[0].mxu0 %v2652
        %v2724 = vpop.f32.mrb[0].mxu0
        %v2725 = vadd.f32 0.0, %v2724
        %v2726 = vpop.f32.mrb[0].mxu0
        %2727 = vdwg.mxu0
        %2728 = vmatprep.subr.mxu0 0.0
        %2729 = vmatpush1.msra.mxu0 %v2601
        %2730 = vmatprep.subr.mxu0 0.0
        %2731 = vmatpush1.msra.mxu0 %v2602
        %2732 = vmatprep.subr.mxu0 0.0
        %2733 = vmatpush1.msra.mxu0 %v2603
        %2734 = vmatprep.subr.mxu0 0.0
        %2735 = vmatpush1.msra.mxu0 %v2604
        %2736 = vmatprep.subr.mxu0 0.0
        %2737 = vmatpush1.msra.mxu0 %v2605
        %2738 = vmatprep.subr.mxu0 0.0
        %2739 = vmatpush1.msra.mxu0 %v2606
        %2740 = vmatprep.subr.mxu0 0.0
        %2741 = vmatpush1.msra.mxu0 %v2607
        %2742 = vmatprep.subr.mxu0 0.0
        %2743 = vmatpush1.msra.mxu0 %v2608
        %2744 = vmatprep.subr.mxu0 0.0
        %2745 = vmatpush1.msra.mxu0 %v2609
        %2746 = vmatprep.subr.mxu0 0.0
        %2747 = vmatpush1.msra.mxu0 %v2610
        %2748 = vmatprep.subr.mxu0 0.0
        %2749 = vmatpush1.msra.mxu0 %v2611
        %2750 = vmatprep.subr.mxu0 0.0
        %2751 = vmatpush1.msra.mxu0 %v2612
        %2752 = vmatprep.subr.mxu0 0.0
        %2753 = vmatpush1.msra.mxu0 %v2613
        %2754 = vmatprep.subr.mxu0 0.0
        %2755 = vmatpush1.msra.mxu0 %v2614
        %2756 = vmatprep.subr.mxu0 0.0
        %2757 = vmatpush1.msra.mxu0 %v2615
        %2758 = vmatprep.subr.mxu0 0.0
        %2759 = vmatpush1.msra.mxu0 %v2616
        %2760 = vmatprep.subr.mxu0 0.0
        %2761 = vmatpush1.msra.mxu0 0.0
        %2762 = vmatprep.subr.mxu0 0.0
        %2763 = vmatpush1.msra.mxu0 0.0
        %2764 = vmatprep.subr.mxu0 0.0
        %2765 = vmatpush1.msra.mxu0 0.0
        %2766 = vmatprep.subr.mxu0 0.0
        %2767 = vmatpush1.msra.mxu0 0.0
        %2768 = vmatprep.subr.mxu0 0.0
        %2769 = vmatpush1.msra.mxu0 0.0
        %2770 = vmatprep.subr.mxu0 0.0
        %2771 = vmatpush1.msra.mxu0 0.0
        %2772 = vmatprep.subr.mxu0 0.0
        %2773 = vmatpush1.msra.mxu0 0.0
        %2774 = vmatprep.subr.mxu0 0.0
        %2775 = vmatpush1.msra.mxu0 0.0
        %2776 = vmatprep.subr.mxu0 0.0
        %2777 = vmatpush1.msra.mxu0 0.0
        %2778 = vmatprep.subr.mxu0 0.0
        %2779 = vmatpush1.msra.mxu0 0.0
        %2780 = vmatprep.subr.mxu0 0.0
        %2781 = vmatpush1.msra.mxu0 0.0
        %2782 = vmatprep.subr.mxu0 0.0
        %2783 = vmatpush1.msra.mxu0 0.0
        %2784 = vmatprep.subr.mxu0 0.0
        %2785 = vmatpush1.msra.mxu0 0.0
        %2786 = vmatprep.subr.mxu0 0.0
        %2787 = vmatpush1.msra.mxu0 0.0
        %2788 = vmatprep.subr.mxu0 0.0
        %2789 = vmatpush1.msra.mxu0 0.0
        %2790 = vmatprep.subr.mxu0 0.0
        %2791 = vmatpush1.msra.mxu0 0.0
        %2792 = vmatprep.mubr.f32.mxu0 0.0
        %2793 = vmatmul.mubr.f32.gmra.mrb[0].mxu0 %v2649
        %v2794 = vpop.f32.mrb[0].mxu0
        %v2795 = vadd.f32 %v2720, %v2794
        %v2796 = vpop.f32.mrb[0].mxu0
        %2797 = vmatprep.mubr.f32.mxu0 0.0
        %2798 = vmatmul.mubr.f32.gmra.mrb[0].mxu0 %v2650
        %v2799 = vpop.f32.mrb[0].mxu0
        %v2800 = vadd.f32 %v2725, %v2799
        %v2801 = vpop.f32.mrb[0].mxu0
        %2802 = vdwg.mxu0
        %v2803 = vld [vmem:[#allocation4 + $0x8] sm:$0xff]
        %v2804 = vld [vmem:[#allocation4 + $0x10] sm:$0xff]
        %2805 = vmatprep.subr.mxu0 0.0
        %2806 = vmatpush1.msra.mxu0 %v2633
        %2807 = vmatprep.subr.mxu0 0.0
        %2808 = vmatpush1.msra.mxu0 %v2634
        %2809 = vmatprep.subr.mxu0 0.0
        %2810 = vmatpush1.msra.mxu0 %v2635
        %2811 = vmatprep.subr.mxu0 0.0
        %2812 = vmatpush1.msra.mxu0 %v2636
        %2813 = vmatprep.subr.mxu0 0.0
        %2814 = vmatpush1.msra.mxu0 %v2637
        %2815 = vmatprep.subr.mxu0 0.0
        %2816 = vmatpush1.msra.mxu0 %v2638
        %2817 = vmatprep.subr.mxu0 0.0
        %2818 = vmatpush1.msra.mxu0 %v2639
        %2819 = vmatprep.subr.mxu0 0.0
        %2820 = vmatpush1.msra.mxu0 %v2640
        %2821 = vmatprep.subr.mxu0 0.0
        %2822 = vmatpush1.msra.mxu0 %v2641
        %2823 = vmatprep.subr.mxu0 0.0
        %2824 = vmatpush1.msra.mxu0 %v2642
        %2825 = vmatprep.subr.mxu0 0.0
        %2826 = vmatpush1.msra.mxu0 %v2643
        %2827 = vmatprep.subr.mxu0 0.0
        %2828 = vmatpush1.msra.mxu0 %v2644
        %2829 = vmatprep.subr.mxu0 0.0
        %2830 = vmatpush1.msra.mxu0 %v2645
        %2831 = vmatprep.subr.mxu0 0.0
        %2832 = vmatpush1.msra.mxu0 %v2646
        %2833 = vmatprep.subr.mxu0 0.0
        %2834 = vmatpush1.msra.mxu0 %v2647
        %2835 = vmatprep.subr.mxu0 0.0
        %2836 = vmatpush1.msra.mxu0 %v2648
        %2837 = vmatprep.subr.mxu0 0.0
        %2838 = vmatpush1.msra.mxu0 0.0
        %2839 = vmatprep.subr.mxu0 0.0
        %2840 = vmatpush1.msra.mxu0 0.0
        %2841 = vmatprep.subr.mxu0 0.0
        %2842 = vmatpush1.msra.mxu0 0.0
        %2843 = vmatprep.subr.mxu0 0.0
        %2844 = vmatpush1.msra.mxu0 0.0
        %2845 = vmatprep.subr.mxu0 0.0
        %2846 = vmatpush1.msra.mxu0 0.0
        %2847 = vmatprep.subr.mxu0 0.0
        %2848 = vmatpush1.msra.mxu0 0.0
        %2849 = vmatprep.subr.mxu0 0.0
        %2850 = vmatpush1.msra.mxu0 0.0
        %2851 = vmatprep.subr.mxu0 0.0
        %2852 = vmatpush1.msra.mxu0 0.0
        %2853 = vmatprep.subr.mxu0 0.0
        %2854 = vmatpush1.msra.mxu0 0.0
        %2855 = vmatprep.subr.mxu0 0.0
        %2856 = vmatpush1.msra.mxu0 0.0
        %2857 = vmatprep.subr.mxu0 0.0
        %2858 = vmatpush1.msra.mxu0 0.0
        %2859 = vmatprep.subr.mxu0 0.0
        %2860 = vmatpush1.msra.mxu0 0.0
        %2861 = vmatprep.subr.mxu0 0.0
        %2862 = vmatpush1.msra.mxu0 0.0
        %2863 = vmatprep.subr.mxu0 0.0
        %2864 = vmatpush1.msra.mxu0 0.0
        %2865 = vmatprep.subr.mxu0 0.0
        %2866 = vmatpush1.msra.mxu0 0.0
        %2867 = vmatprep.subr.mxu0 0.0
        %2868 = vmatpush1.msra.mxu0 0.0
        %2869 = vmatprep.mubr.f32.mxu0 0.0
        %2870 = vmatmul.mubr.f32.gmra.mrb[0].mxu0 %v2803
        %v2871 = vpop.f32.mrb[0].mxu0
        %v2872 = vadd.f32 0.0, %v2871
        %v2873 = vpop.f32.mrb[0].mxu0
        %2874 = vmatprep.mubr.f32.mxu0 0.0
        %2875 = vmatmul.mubr.f32.gmra.mrb[0].mxu0 %v2804
        %v2876 = vpop.f32.mrb[0].mxu0
        %v2877 = vadd.f32 0.0, %v2876
        %v2878 = vpop.f32.mrb[0].mxu0
        %2879 = vdwg.mxu0
        %v2880 = vadd.f32 %v2795, %v2872
        %v2881 = vadd.f32 %v2800, %v2877
        %2884 = vrot.lane.b32.xlu0 %v2880, 64
        %v2885 = vpop.permute.xlu0 %2884
        %2886 = vrot.lane.b32.xlu0 %v2881, 64
        %v2887 = vpop.permute.xlu0 %2886
        %vm2890 = vcmask 1048064
        %2891 = vst.msk [vmem:[#allocation5] sm:$0xff] %vm2890, %v2885
        %2892 = vst.msk [vmem:[#allocation5 + $0x10] sm:$0xff] %vm2890, %v2887
        %s2893 = scalar_lea.vmem %s13, 768
        %v2894 = vld [vmem:[%s2893] sm:$0xff]
        %v2895 = vld [vmem:[%s2893 + $0x8] sm:$0xff]
        %v2896 = vld [vmem:[%s2893 + $0x10] sm:$0xff]
        %v2897 = vld [vmem:[%s2893 + $0x18] sm:$0xff]
        %v2898 = vld [vmem:[%s2893 + $0x20] sm:$0xff]
        %v2899 = vld [vmem:[%s2893 + $0x28] sm:$0xff]
        %v2900 = vld [vmem:[%s2893 + $0x30] sm:$0xff]
        %v2901 = vld [vmem:[%s2893 + $0x38] sm:$0xff]
        %v2902 = vld [vmem:[%s2893 + $0x40] sm:$0xff]
        %v2903 = vld [vmem:[%s2893 + $0x48] sm:$0xff]
        %v2904 = vld [vmem:[%s2893 + $0x50] sm:$0xff]
        %v2905 = vld [vmem:[%s2893 + $0x58] sm:$0xff]
        %v2906 = vld [vmem:[%s2893 + $0x60] sm:$0xff]
        %v2907 = vld [vmem:[%s2893 + $0x68] sm:$0xff]
        %v2908 = vld [vmem:[%s2893 + $0x70] sm:$0xff]
        %v2909 = vld [vmem:[%s2893 + $0x78] sm:$0xff]
        %v2910 = vld [vmem:[%s2893 + $0x80] sm:$0xff]
        %v2911 = vld [vmem:[%s2893 + $0x88] sm:$0xff]
        %v2912 = vld [vmem:[%s2893 + $0x90] sm:$0xff]
        %v2913 = vld [vmem:[%s2893 + $0x98] sm:$0xff]
        %v2914 = vld [vmem:[%s2893 + $0xa0] sm:$0xff]
        %v2915 = vld [vmem:[%s2893 + $0xa8] sm:$0xff]
        %v2916 = vld [vmem:[%s2893 + $0xb0] sm:$0xff]
        %v2917 = vld [vmem:[%s2893 + $0xb8] sm:$0xff]
        %v2918 = vld [vmem:[%s2893 + $0xc0] sm:$0xff]
        %v2919 = vld [vmem:[%s2893 + $0xc8] sm:$0xff]
        %v2920 = vld [vmem:[%s2893 + $0xd0] sm:$0xff]
        %v2921 = vld [vmem:[%s2893 + $0xd8] sm:$0xff]
        %v2922 = vld [vmem:[%s2893 + $0xe0] sm:$0xff]
        %v2923 = vld [vmem:[%s2893 + $0xe8] sm:$0xff]
        %v2924 = vld [vmem:[%s2893 + $0xf0] sm:$0xff]
        %v2925 = vld [vmem:[%s2893 + $0xf8] sm:$0xff]
        %v2926 = vld [vmem:[%s2893 + $0x100] sm:$0xff]
        %v2927 = vld [vmem:[%s2893 + $0x108] sm:$0xff]
        %v2928 = vld [vmem:[%s2893 + $0x110] sm:$0xff]
        %v2929 = vld [vmem:[%s2893 + $0x118] sm:$0xff]
        %v2930 = vld [vmem:[%s2893 + $0x120] sm:$0xff]
        %v2931 = vld [vmem:[%s2893 + $0x128] sm:$0xff]
        %v2932 = vld [vmem:[%s2893 + $0x130] sm:$0xff]
        %v2933 = vld [vmem:[%s2893 + $0x138] sm:$0xff]
        %v2934 = vld [vmem:[%s2893 + $0x140] sm:$0xff]
        %v2935 = vld [vmem:[%s2893 + $0x148] sm:$0xff]
        %v2936 = vld [vmem:[%s2893 + $0x150] sm:$0xff]
        %v2937 = vld [vmem:[%s2893 + $0x158] sm:$0xff]
        %v2938 = vld [vmem:[%s2893 + $0x160] sm:$0xff]
        %v2939 = vld [vmem:[%s2893 + $0x168] sm:$0xff]
        %v2940 = vld [vmem:[%s2893 + $0x170] sm:$0xff]
        %v2941 = vld [vmem:[%s2893 + $0x178] sm:$0xff]
        %v2942 = vld [vmem:[#allocation4 + $0x1] sm:$0xff]
        %v2943 = vld [vmem:[#allocation4 + $0x9] sm:$0xff]
        %v2944 = vld [vmem:[#allocation4 + $0x5] sm:$0xff]
        %v2945 = vld [vmem:[#allocation4 + $0xd] sm:$0xff]
        %2946 = vmatprep.subr.mxu0 0.0
        %2947 = vmatpush1.msra.mxu0 %v2910
        %2948 = vmatprep.subr.mxu0 0.0
        %2949 = vmatpush1.msra.mxu0 %v2911
        %2950 = vmatprep.subr.mxu0 0.0
        %2951 = vmatpush1.msra.mxu0 %v2912
        %2952 = vmatprep.subr.mxu0 0.0
        %2953 = vmatpush1.msra.mxu0 %v2913
        %2954 = vmatprep.subr.mxu0 0.0
        %2955 = vmatpush1.msra.mxu0 %v2914
        %2956 = vmatprep.subr.mxu0 0.0
        %2957 = vmatpush1.msra.mxu0 %v2915
        %2958 = vmatprep.subr.mxu0 0.0
        %2959 = vmatpush1.msra.mxu0 %v2916
        %2960 = vmatprep.subr.mxu0 0.0
        %2961 = vmatpush1.msra.mxu0 %v2917
        %2962 = vmatprep.subr.mxu0 0.0
        %2963 = vmatpush1.msra.mxu0 %v2918
        %2964 = vmatprep.subr.mxu0 0.0
        %2965 = vmatpush1.msra.mxu0 %v2919
        %2966 = vmatprep.subr.mxu0 0.0
        %2967 = vmatpush1.msra.mxu0 %v2920
        %2968 = vmatprep.subr.mxu0 0.0
        %2969 = vmatpush1.msra.mxu0 %v2921
        %2970 = vmatprep.subr.mxu0 0.0
        %2971 = vmatpush1.msra.mxu0 %v2922
        %2972 = vmatprep.subr.mxu0 0.0
        %2973 = vmatpush1.msra.mxu0 %v2923
        %2974 = vmatprep.subr.mxu0 0.0
        %2975 = vmatpush1.msra.mxu0 %v2924
        %2976 = vmatprep.subr.mxu0 0.0
        %2977 = vmatpush1.msra.mxu0 %v2925
        %2978 = vmatprep.subr.mxu0 0.0
        %2979 = vmatpush1.msra.mxu0 0.0
        %2980 = vmatprep.subr.mxu0 0.0
        %2981 = vmatpush1.msra.mxu0 0.0
        %2982 = vmatprep.subr.mxu0 0.0
        %2983 = vmatpush1.msra.mxu0 0.0
        %2984 = vmatprep.subr.mxu0 0.0
        %2985 = vmatpush1.msra.mxu0 0.0
        %2986 = vmatprep.subr.mxu0 0.0
        %2987 = vmatpush1.msra.mxu0 0.0
        %2988 = vmatprep.subr.mxu0 0.0
        %2989 = vmatpush1.msra.mxu0 0.0
        %2990 = vmatprep.subr.mxu0 0.0
        %2991 = vmatpush1.msra.mxu0 0.0
        %2992 = vmatprep.subr.mxu0 0.0
        %2993 = vmatpush1.msra.mxu0 0.0
        %2994 = vmatprep.subr.mxu0 0.0
        %2995 = vmatpush1.msra.mxu0 0.0
        %2996 = vmatprep.subr.mxu0 0.0
        %2997 = vmatpush1.msra.mxu0 0.0
        %2998 = vmatprep.subr.mxu0 0.0
        %2999 = vmatpush1.msra.mxu0 0.0
        %3000 = vmatprep.subr.mxu0 0.0
        %3001 = vmatpush1.msra.mxu0 0.0
        %3002 = vmatprep.subr.mxu0 0.0
        %3003 = vmatpush1.msra.mxu0 0.0
        %3004 = vmatprep.subr.mxu0 0.0
        %3005 = vmatpush1.msra.mxu0 0.0
        %3006 = vmatprep.subr.mxu0 0.0
        %3007 = vmatpush1.msra.mxu0 0.0
        %3008 = vmatprep.subr.mxu0 0.0
        %3009 = vmatpush1.msra.mxu0 0.0
        %3010 = vmatprep.mubr.f32.mxu0 0.0
        %3011 = vmatmul.mubr.f32.gmra.mrb[0].mxu0 %v2944
        %v3012 = vpop.f32.mrb[0].mxu0
        %v3013 = vadd.f32 0.0, %v3012
        %v3014 = vpop.f32.mrb[0].mxu0
        %3015 = vmatprep.mubr.f32.mxu0 0.0
        %3016 = vmatmul.mubr.f32.gmra.mrb[0].mxu0 %v2945
        %v3017 = vpop.f32.mrb[0].mxu0
        %v3018 = vadd.f32 0.0, %v3017
        %v3019 = vpop.f32.mrb[0].mxu0
        %3020 = vdwg.mxu0
        %3021 = vmatprep.subr.mxu0 0.0
        %3022 = vmatpush1.msra.mxu0 %v2894
        %3023 = vmatprep.subr.mxu0 0.0
        %3024 = vmatpush1.msra.mxu0 %v2895
        %3025 = vmatprep.subr.mxu0 0.0
        %3026 = vmatpush1.msra.mxu0 %v2896
        %3027 = vmatprep.subr.mxu0 0.0
        %3028 = vmatpush1.msra.mxu0 %v2897
        %3029 = vmatprep.subr.mxu0 0.0
        %3030 = vmatpush1.msra.mxu0 %v2898
        %3031 = vmatprep.subr.mxu0 0.0
        %3032 = vmatpush1.msra.mxu0 %v2899
        %3033 = vmatprep.subr.mxu0 0.0
        %3034 = vmatpush1.msra.mxu0 %v2900
        %3035 = vmatprep.subr.mxu0 0.0
        %3036 = vmatpush1.msra.mxu0 %v2901
        %3037 = vmatprep.subr.mxu0 0.0
        %3038 = vmatpush1.msra.mxu0 %v2902
        %3039 = vmatprep.subr.mxu0 0.0
        %3040 = vmatpush1.msra.mxu0 %v2903
        %3041 = vmatprep.subr.mxu0 0.0
        %3042 = vmatpush1.msra.mxu0 %v2904
        %3043 = vmatprep.subr.mxu0 0.0
        %3044 = vmatpush1.msra.mxu0 %v2905
        %3045 = vmatprep.subr.mxu0 0.0
        %3046 = vmatpush1.msra.mxu0 %v2906
        %3047 = vmatprep.subr.mxu0 0.0
        %3048 = vmatpush1.msra.mxu0 %v2907
        %3049 = vmatprep.subr.mxu0 0.0
        %3050 = vmatpush1.msra.mxu0 %v2908
        %3051 = vmatprep.subr.mxu0 0.0
        %3052 = vmatpush1.msra.mxu0 %v2909
        %3053 = vmatprep.subr.mxu0 0.0
        %3054 = vmatpush1.msra.mxu0 0.0
        %3055 = vmatprep.subr.mxu0 0.0
        %3056 = vmatpush1.msra.mxu0 0.0
        %3057 = vmatprep.subr.mxu0 0.0
        %3058 = vmatpush1.msra.mxu0 0.0
        %3059 = vmatprep.subr.mxu0 0.0
        %3060 = vmatpush1.msra.mxu0 0.0
        %3061 = vmatprep.subr.mxu0 0.0
        %3062 = vmatpush1.msra.mxu0 0.0
        %3063 = vmatprep.subr.mxu0 0.0
        %3064 = vmatpush1.msra.mxu0 0.0
        %3065 = vmatprep.subr.mxu0 0.0
        %3066 = vmatpush1.msra.mxu0 0.0
        %3067 = vmatprep.subr.mxu0 0.0
        %3068 = vmatpush1.msra.mxu0 0.0
        %3069 = vmatprep.subr.mxu0 0.0
        %3070 = vmatpush1.msra.mxu0 0.0
        %3071 = vmatprep.subr.mxu0 0.0
        %3072 = vmatpush1.msra.mxu0 0.0
        %3073 = vmatprep.subr.mxu0 0.0
        %3074 = vmatpush1.msra.mxu0 0.0
        %3075 = vmatprep.subr.mxu0 0.0
        %3076 = vmatpush1.msra.mxu0 0.0
        %3077 = vmatprep.subr.mxu0 0.0
        %3078 = vmatpush1.msra.mxu0 0.0
        %3079 = vmatprep.subr.mxu0 0.0
        %3080 = vmatpush1.msra.mxu0 0.0
        %3081 = vmatprep.subr.mxu0 0.0
        %3082 = vmatpush1.msra.mxu0 0.0
        %3083 = vmatprep.subr.mxu0 0.0
        %3084 = vmatpush1.msra.mxu0 0.0
        %3085 = vmatprep.mubr.f32.mxu0 0.0
        %3086 = vmatmul.mubr.f32.gmra.mrb[0].mxu0 %v2942
        %v3087 = vpop.f32.mrb[0].mxu0
        %v3088 = vadd.f32 %v3013, %v3087
        %v3089 = vpop.f32.mrb[0].mxu0
        %3090 = vmatprep.mubr.f32.mxu0 0.0
        %3091 = vmatmul.mubr.f32.gmra.mrb[0].mxu0 %v2943
        %v3092 = vpop.f32.mrb[0].mxu0
        %v3093 = vadd.f32 %v3018, %v3092
        %v3094 = vpop.f32.mrb[0].mxu0
        %3095 = vdwg.mxu0
        %v3096 = vld [vmem:[#allocation4 + $0x9] sm:$0xff]
        %v3097 = vld [vmem:[#allocation4 + $0x11] sm:$0xff]
        %3098 = vmatprep.subr.mxu0 0.0
        %3099 = vmatpush1.msra.mxu0 %v2926
        %3100 = vmatprep.subr.mxu0 0.0
        %3101 = vmatpush1.msra.mxu0 %v2927
        %3102 = vmatprep.subr.mxu0 0.0
        %3103 = vmatpush1.msra.mxu0 %v2928
        %3104 = vmatprep.subr.mxu0 0.0
        %3105 = vmatpush1.msra.mxu0 %v2929
        %3106 = vmatprep.subr.mxu0 0.0
        %3107 = vmatpush1.msra.mxu0 %v2930
        %3108 = vmatprep.subr.mxu0 0.0
        %3109 = vmatpush1.msra.mxu0 %v2931
        %3110 = vmatprep.subr.mxu0 0.0
        %3111 = vmatpush1.msra.mxu0 %v2932
        %3112 = vmatprep.subr.mxu0 0.0
        %3113 = vmatpush1.msra.mxu0 %v2933
        %3114 = vmatprep.subr.mxu0 0.0
        %3115 = vmatpush1.msra.mxu0 %v2934
        %3116 = vmatprep.subr.mxu0 0.0
        %3117 = vmatpush1.msra.mxu0 %v2935
        %3118 = vmatprep.subr.mxu0 0.0
        %3119 = vmatpush1.msra.mxu0 %v2936
        %3120 = vmatprep.subr.mxu0 0.0
        %3121 = vmatpush1.msra.mxu0 %v2937
        %3122 = vmatprep.subr.mxu0 0.0
        %3123 = vmatpush1.msra.mxu0 %v2938
        %3124 = vmatprep.subr.mxu0 0.0
        %3125 = vmatpush1.msra.mxu0 %v2939
        %3126 = vmatprep.subr.mxu0 0.0
        %3127 = vmatpush1.msra.mxu0 %v2940
        %3128 = vmatprep.subr.mxu0 0.0
        %3129 = vmatpush1.msra.mxu0 %v2941
        %3130 = vmatprep.subr.mxu0 0.0
        %3131 = vmatpush1.msra.mxu0 0.0
        %3132 = vmatprep.subr.mxu0 0.0
        %3133 = vmatpush1.msra.mxu0 0.0
        %3134 = vmatprep.subr.mxu0 0.0
        %3135 = vmatpush1.msra.mxu0 0.0
        %3136 = vmatprep.subr.mxu0 0.0
        %3137 = vmatpush1.msra.mxu0 0.0
        %3138 = vmatprep.subr.mxu0 0.0
        %3139 = vmatpush1.msra.mxu0 0.0
        %3140 = vmatprep.subr.mxu0 0.0
        %3141 = vmatpush1.msra.mxu0 0.0
        %3142 = vmatprep.subr.mxu0 0.0
        %3143 = vmatpush1.msra.mxu0 0.0
        %3144 = vmatprep.subr.mxu0 0.0
        %3145 = vmatpush1.msra.mxu0 0.0
        %3146 = vmatprep.subr.mxu0 0.0
        %3147 = vmatpush1.msra.mxu0 0.0
        %3148 = vmatprep.subr.mxu0 0.0
        %3149 = vmatpush1.msra.mxu0 0.0
        %3150 = vmatprep.subr.mxu0 0.0
        %3151 = vmatpush1.msra.mxu0 0.0
        %3152 = vmatprep.subr.mxu0 0.0
        %3153 = vmatpush1.msra.mxu0 0.0
        %3154 = vmatprep.subr.mxu0 0.0
        %3155 = vmatpush1.msra.mxu0 0.0
        %3156 = vmatprep.subr.mxu0 0.0
        %3157 = vmatpush1.msra.mxu0 0.0
        %3158 = vmatprep.subr.mxu0 0.0
        %3159 = vmatpush1.msra.mxu0 0.0
        %3160 = vmatprep.subr.mxu0 0.0
        %3161 = vmatpush1.msra.mxu0 0.0
        %3162 = vmatprep.mubr.f32.mxu0 0.0
        %3163 = vmatmul.mubr.f32.gmra.mrb[0].mxu0 %v3096
        %v3164 = vpop.f32.mrb[0].mxu0
        %v3165 = vadd.f32 0.0, %v3164
        %v3166 = vpop.f32.mrb[0].mxu0
        %3167 = vmatprep.mubr.f32.mxu0 0.0
        %3168 = vmatmul.mubr.f32.gmra.mrb[0].mxu0 %v3097
        %v3169 = vpop.f32.mrb[0].mxu0
        %v3170 = vadd.f32 0.0, %v3169
        %v3171 = vpop.f32.mrb[0].mxu0
        %3172 = vdwg.mxu0
        %v3173 = vadd.f32 %v3088, %v3165
        %v3174 = vadd.f32 %v3093, %v3170
        %3175 = vst.msk [vmem:[#allocation5 + $0x8] sm:$0xff] %vm2225, %v3173
        %3176 = vst.msk [vmem:[#allocation5 + $0x18] sm:$0xff] %vm2225, %v3174
        %s3177 = scalar_lea.vmem %s13, 1152
        %v3178 = vld [vmem:[%s3177] sm:$0xff]
        %v3179 = vld [vmem:[%s3177 + $0x8] sm:$0xff]
        %v3180 = vld [vmem:[%s3177 + $0x10] sm:$0xff]
        %v3181 = vld [vmem:[%s3177 + $0x18] sm:$0xff]
        %v3182 = vld [vmem:[%s3177 + $0x20] sm:$0xff]
        %v3183 = vld [vmem:[%s3177 + $0x28] sm:$0xff]
        %v3184 = vld [vmem:[%s3177 + $0x30] sm:$0xff]
        %v3185 = vld [vmem:[%s3177 + $0x38] sm:$0xff]
        %v3186 = vld [vmem:[%s3177 + $0x40] sm:$0xff]
        %v3187 = vld [vmem:[%s3177 + $0x48] sm:$0xff]
        %v3188 = vld [vmem:[%s3177 + $0x50] sm:$0xff]
        %v3189 = vld [vmem:[%s3177 + $0x58] sm:$0xff]
        %v3190 = vld [vmem:[%s3177 + $0x60] sm:$0xff]
        %v3191 = vld [vmem:[%s3177 + $0x68] sm:$0xff]
        %v3192 = vld [vmem:[%s3177 + $0x70] sm:$0xff]
        %v3193 = vld [vmem:[%s3177 + $0x78] sm:$0xff]
        %v3194 = vld [vmem:[%s3177 + $0x80] sm:$0xff]
        %v3195 = vld [vmem:[%s3177 + $0x88] sm:$0xff]
        %v3196 = vld [vmem:[%s3177 + $0x90] sm:$0xff]
        %v3197 = vld [vmem:[%s3177 + $0x98] sm:$0xff]
        %v3198 = vld [vmem:[%s3177 + $0xa0] sm:$0xff]
        %v3199 = vld [vmem:[%s3177 + $0xa8] sm:$0xff]
        %v3200 = vld [vmem:[%s3177 + $0xb0] sm:$0xff]
        %v3201 = vld [vmem:[%s3177 + $0xb8] sm:$0xff]
        %v3202 = vld [vmem:[%s3177 + $0xc0] sm:$0xff]
        %v3203 = vld [vmem:[%s3177 + $0xc8] sm:$0xff]
        %v3204 = vld [vmem:[%s3177 + $0xd0] sm:$0xff]
        %v3205 = vld [vmem:[%s3177 + $0xd8] sm:$0xff]
        %v3206 = vld [vmem:[%s3177 + $0xe0] sm:$0xff]
        %v3207 = vld [vmem:[%s3177 + $0xe8] sm:$0xff]
        %v3208 = vld [vmem:[%s3177 + $0xf0] sm:$0xff]
        %v3209 = vld [vmem:[%s3177 + $0xf8] sm:$0xff]
        %v3210 = vld [vmem:[%s3177 + $0x100] sm:$0xff]
        %v3211 = vld [vmem:[%s3177 + $0x108] sm:$0xff]
        %v3212 = vld [vmem:[%s3177 + $0x110] sm:$0xff]
        %v3213 = vld [vmem:[%s3177 + $0x118] sm:$0xff]
        %v3214 = vld [vmem:[%s3177 + $0x120] sm:$0xff]
        %v3215 = vld [vmem:[%s3177 + $0x128] sm:$0xff]
        %v3216 = vld [vmem:[%s3177 + $0x130] sm:$0xff]
        %v3217 = vld [vmem:[%s3177 + $0x138] sm:$0xff]
        %v3218 = vld [vmem:[%s3177 + $0x140] sm:$0xff]
        %v3219 = vld [vmem:[%s3177 + $0x148] sm:$0xff]
        %v3220 = vld [vmem:[%s3177 + $0x150] sm:$0xff]
        %v3221 = vld [vmem:[%s3177 + $0x158] sm:$0xff]
        %v3222 = vld [vmem:[%s3177 + $0x160] sm:$0xff]
        %v3223 = vld [vmem:[%s3177 + $0x168] sm:$0xff]
        %v3224 = vld [vmem:[%s3177 + $0x170] sm:$0xff]
        %v3225 = vld [vmem:[%s3177 + $0x178] sm:$0xff]
        %v3226 = vld [vmem:[#allocation4] sm:$0xff]
        %v3227 = vld [vmem:[#allocation4 + $0x8] sm:$0xff]
        %v3228 = vld [vmem:[#allocation4 + $0x5] sm:$0xff]
        %v3229 = vld [vmem:[#allocation4 + $0xd] sm:$0xff]
        %3230 = vmatprep.subr.mxu0 0.0
        %3231 = vmatpush1.msra.mxu0 %v3194
        %3232 = vmatprep.subr.mxu0 0.0
        %3233 = vmatpush1.msra.mxu0 %v3195
        %3234 = vmatprep.subr.mxu0 0.0
        %3235 = vmatpush1.msra.mxu0 %v3196
        %3236 = vmatprep.subr.mxu0 0.0
        %3237 = vmatpush1.msra.mxu0 %v3197
        %3238 = vmatprep.subr.mxu0 0.0
        %3239 = vmatpush1.msra.mxu0 %v3198
        %3240 = vmatprep.subr.mxu0 0.0
        %3241 = vmatpush1.msra.mxu0 %v3199
        %3242 = vmatprep.subr.mxu0 0.0
        %3243 = vmatpush1.msra.mxu0 %v3200
        %3244 = vmatprep.subr.mxu0 0.0
        %3245 = vmatpush1.msra.mxu0 %v3201
        %3246 = vmatprep.subr.mxu0 0.0
        %3247 = vmatpush1.msra.mxu0 %v3202
        %3248 = vmatprep.subr.mxu0 0.0
        %3249 = vmatpush1.msra.mxu0 %v3203
        %3250 = vmatprep.subr.mxu0 0.0
        %3251 = vmatpush1.msra.mxu0 %v3204
        %3252 = vmatprep.subr.mxu0 0.0
        %3253 = vmatpush1.msra.mxu0 %v3205
        %3254 = vmatprep.subr.mxu0 0.0
        %3255 = vmatpush1.msra.mxu0 %v3206
        %3256 = vmatprep.subr.mxu0 0.0
        %3257 = vmatpush1.msra.mxu0 %v3207
        %3258 = vmatprep.subr.mxu0 0.0
        %3259 = vmatpush1.msra.mxu0 %v3208
        %3260 = vmatprep.subr.mxu0 0.0
        %3261 = vmatpush1.msra.mxu0 %v3209
        %3262 = vmatprep.subr.mxu0 0.0
        %3263 = vmatpush1.msra.mxu0 0.0
        %3264 = vmatprep.subr.mxu0 0.0
        %3265 = vmatpush1.msra.mxu0 0.0
        %3266 = vmatprep.subr.mxu0 0.0
        %3267 = vmatpush1.msra.mxu0 0.0
        %3268 = vmatprep.subr.mxu0 0.0
        %3269 = vmatpush1.msra.mxu0 0.0
        %3270 = vmatprep.subr.mxu0 0.0
        %3271 = vmatpush1.msra.mxu0 0.0
        %3272 = vmatprep.subr.mxu0 0.0
        %3273 = vmatpush1.msra.mxu0 0.0
        %3274 = vmatprep.subr.mxu0 0.0
        %3275 = vmatpush1.msra.mxu0 0.0
        %3276 = vmatprep.subr.mxu0 0.0
        %3277 = vmatpush1.msra.mxu0 0.0
        %3278 = vmatprep.subr.mxu0 0.0
        %3279 = vmatpush1.msra.mxu0 0.0
        %3280 = vmatprep.subr.mxu0 0.0
        %3281 = vmatpush1.msra.mxu0 0.0
        %3282 = vmatprep.subr.mxu0 0.0
        %3283 = vmatpush1.msra.mxu0 0.0
        %3284 = vmatprep.subr.mxu0 0.0
        %3285 = vmatpush1.msra.mxu0 0.0
        %3286 = vmatprep.subr.mxu0 0.0
        %3287 = vmatpush1.msra.mxu0 0.0
        %3288 = vmatprep.subr.mxu0 0.0
        %3289 = vmatpush1.msra.mxu0 0.0
        %3290 = vmatprep.subr.mxu0 0.0
        %3291 = vmatpush1.msra.mxu0 0.0
        %3292 = vmatprep.subr.mxu0 0.0
        %3293 = vmatpush1.msra.mxu0 0.0
        %3294 = vmatprep.mubr.f32.mxu0 0.0
        %3295 = vmatmul.mubr.f32.gmra.mrb[0].mxu0 %v3228
        %v3296 = vpop.f32.mrb[0].mxu0
        %v3297 = vadd.f32 0.0, %v3296
        %v3298 = vpop.f32.mrb[0].mxu0
        %3299 = vmatprep.mubr.f32.mxu0 0.0
        %3300 = vmatmul.mubr.f32.gmra.mrb[0].mxu0 %v3229
        %v3301 = vpop.f32.mrb[0].mxu0
        %v3302 = vadd.f32 0.0, %v3301
        %v3303 = vpop.f32.mrb[0].mxu0
        %3304 = vdwg.mxu0
        %3305 = vmatprep.subr.mxu0 0.0
        %3306 = vmatpush1.msra.mxu0 %v3178
        %3307 = vmatprep.subr.mxu0 0.0
        %3308 = vmatpush1.msra.mxu0 %v3179
        %3309 = vmatprep.subr.mxu0 0.0
        %3310 = vmatpush1.msra.mxu0 %v3180
        %3311 = vmatprep.subr.mxu0 0.0
        %3312 = vmatpush1.msra.mxu0 %v3181
        %3313 = vmatprep.subr.mxu0 0.0
        %3314 = vmatpush1.msra.mxu0 %v3182
        %3315 = vmatprep.subr.mxu0 0.0
        %3316 = vmatpush1.msra.mxu0 %v3183
        %3317 = vmatprep.subr.mxu0 0.0
        %3318 = vmatpush1.msra.mxu0 %v3184
        %3319 = vmatprep.subr.mxu0 0.0
        %3320 = vmatpush1.msra.mxu0 %v3185
        %3321 = vmatprep.subr.mxu0 0.0
        %3322 = vmatpush1.msra.mxu0 %v3186
        %3323 = vmatprep.subr.mxu0 0.0
        %3324 = vmatpush1.msra.mxu0 %v3187
        %3325 = vmatprep.subr.mxu0 0.0
        %3326 = vmatpush1.msra.mxu0 %v3188
        %3327 = vmatprep.subr.mxu0 0.0
        %3328 = vmatpush1.msra.mxu0 %v3189
        %3329 = vmatprep.subr.mxu0 0.0
        %3330 = vmatpush1.msra.mxu0 %v3190
        %3331 = vmatprep.subr.mxu0 0.0
        %3332 = vmatpush1.msra.mxu0 %v3191
        %3333 = vmatprep.subr.mxu0 0.0
        %3334 = vmatpush1.msra.mxu0 %v3192
        %3335 = vmatprep.subr.mxu0 0.0
        %3336 = vmatpush1.msra.mxu0 %v3193
        %3337 = vmatprep.subr.mxu0 0.0
        %3338 = vmatpush1.msra.mxu0 0.0
        %3339 = vmatprep.subr.mxu0 0.0
        %3340 = vmatpush1.msra.mxu0 0.0
        %3341 = vmatprep.subr.mxu0 0.0
        %3342 = vmatpush1.msra.mxu0 0.0
        %3343 = vmatprep.subr.mxu0 0.0
        %3344 = vmatpush1.msra.mxu0 0.0
        %3345 = vmatprep.subr.mxu0 0.0
        %3346 = vmatpush1.msra.mxu0 0.0
        %3347 = vmatprep.subr.mxu0 0.0
        %3348 = vmatpush1.msra.mxu0 0.0
        %3349 = vmatprep.subr.mxu0 0.0
        %3350 = vmatpush1.msra.mxu0 0.0
        %3351 = vmatprep.subr.mxu0 0.0
        %3352 = vmatpush1.msra.mxu0 0.0
        %3353 = vmatprep.subr.mxu0 0.0
        %3354 = vmatpush1.msra.mxu0 0.0
        %3355 = vmatprep.subr.mxu0 0.0
        %3356 = vmatpush1.msra.mxu0 0.0
        %3357 = vmatprep.subr.mxu0 0.0
        %3358 = vmatpush1.msra.mxu0 0.0
        %3359 = vmatprep.subr.mxu0 0.0
        %3360 = vmatpush1.msra.mxu0 0.0
        %3361 = vmatprep.subr.mxu0 0.0
        %3362 = vmatpush1.msra.mxu0 0.0
        %3363 = vmatprep.subr.mxu0 0.0
        %3364 = vmatpush1.msra.mxu0 0.0
        %3365 = vmatprep.subr.mxu0 0.0
        %3366 = vmatpush1.msra.mxu0 0.0
        %3367 = vmatprep.subr.mxu0 0.0
        %3368 = vmatpush1.msra.mxu0 0.0
        %3369 = vmatprep.mubr.f32.mxu0 0.0
        %3370 = vmatmul.mubr.f32.gmra.mrb[0].mxu0 %v3226
        %v3371 = vpop.f32.mrb[0].mxu0
        %v3372 = vadd.f32 %v3297, %v3371
        %v3373 = vpop.f32.mrb[0].mxu0
        %3374 = vmatprep.mubr.f32.mxu0 0.0
        %3375 = vmatmul.mubr.f32.gmra.mrb[0].mxu0 %v3227
        %v3376 = vpop.f32.mrb[0].mxu0
        %v3377 = vadd.f32 %v3302, %v3376
        %v3378 = vpop.f32.mrb[0].mxu0
        %3379 = vdwg.mxu0
        %v3380 = vld [vmem:[#allocation4 + $0xa] sm:$0xff]
        %v3381 = vld [vmem:[#allocation4 + $0x12] sm:$0xff]
        %3382 = vmatprep.subr.mxu0 0.0
        %3383 = vmatpush1.msra.mxu0 %v3210
        %3384 = vmatprep.subr.mxu0 0.0
        %3385 = vmatpush1.msra.mxu0 %v3211
        %3386 = vmatprep.subr.mxu0 0.0
        %3387 = vmatpush1.msra.mxu0 %v3212
        %3388 = vmatprep.subr.mxu0 0.0
        %3389 = vmatpush1.msra.mxu0 %v3213
        %3390 = vmatprep.subr.mxu0 0.0
        %3391 = vmatpush1.msra.mxu0 %v3214
        %3392 = vmatprep.subr.mxu0 0.0
        %3393 = vmatpush1.msra.mxu0 %v3215
        %3394 = vmatprep.subr.mxu0 0.0
        %3395 = vmatpush1.msra.mxu0 %v3216
        %3396 = vmatprep.subr.mxu0 0.0
        %3397 = vmatpush1.msra.mxu0 %v3217
        %3398 = vmatprep.subr.mxu0 0.0
        %3399 = vmatpush1.msra.mxu0 %v3218
        %3400 = vmatprep.subr.mxu0 0.0
        %3401 = vmatpush1.msra.mxu0 %v3219
        %3402 = vmatprep.subr.mxu0 0.0
        %3403 = vmatpush1.msra.mxu0 %v3220
        %3404 = vmatprep.subr.mxu0 0.0
        %3405 = vmatpush1.msra.mxu0 %v3221
        %3406 = vmatprep.subr.mxu0 0.0
        %3407 = vmatpush1.msra.mxu0 %v3222
        %3408 = vmatprep.subr.mxu0 0.0
        %3409 = vmatpush1.msra.mxu0 %v3223
        %3410 = vmatprep.subr.mxu0 0.0
        %3411 = vmatpush1.msra.mxu0 %v3224
        %3412 = vmatprep.subr.mxu0 0.0
        %3413 = vmatpush1.msra.mxu0 %v3225
        %3414 = vmatprep.subr.mxu0 0.0
        %3415 = vmatpush1.msra.mxu0 0.0
        %3416 = vmatprep.subr.mxu0 0.0
        %3417 = vmatpush1.msra.mxu0 0.0
        %3418 = vmatprep.subr.mxu0 0.0
        %3419 = vmatpush1.msra.mxu0 0.0
        %3420 = vmatprep.subr.mxu0 0.0
        %3421 = vmatpush1.msra.mxu0 0.0
        %3422 = vmatprep.subr.mxu0 0.0
        %3423 = vmatpush1.msra.mxu0 0.0
        %3424 = vmatprep.subr.mxu0 0.0
        %3425 = vmatpush1.msra.mxu0 0.0
        %3426 = vmatprep.subr.mxu0 0.0
        %3427 = vmatpush1.msra.mxu0 0.0
        %3428 = vmatprep.subr.mxu0 0.0
        %3429 = vmatpush1.msra.mxu0 0.0
        %3430 = vmatprep.subr.mxu0 0.0
        %3431 = vmatpush1.msra.mxu0 0.0
        %3432 = vmatprep.subr.mxu0 0.0
        %3433 = vmatpush1.msra.mxu0 0.0
        %3434 = vmatprep.subr.mxu0 0.0
        %3435 = vmatpush1.msra.mxu0 0.0
        %3436 = vmatprep.subr.mxu0 0.0
        %3437 = vmatpush1.msra.mxu0 0.0
        %3438 = vmatprep.subr.mxu0 0.0
        %3439 = vmatpush1.msra.mxu0 0.0
        %3440 = vmatprep.subr.mxu0 0.0
        %3441 = vmatpush1.msra.mxu0 0.0
        %3442 = vmatprep.subr.mxu0 0.0
        %3443 = vmatpush1.msra.mxu0 0.0
        %3444 = vmatprep.subr.mxu0 0.0
        %3445 = vmatpush1.msra.mxu0 0.0
        %3446 = vmatprep.mubr.f32.mxu0 0.0
        %3447 = vmatmul.mubr.f32.gmra.mrb[0].mxu0 %v3380
        %v3448 = vpop.f32.mrb[0].mxu0
        %v3449 = vadd.f32 0.0, %v3448
        %v3450 = vpop.f32.mrb[0].mxu0
        %3451 = vmatprep.mubr.f32.mxu0 0.0
        %3452 = vmatmul.mubr.f32.gmra.mrb[0].mxu0 %v3381
        %v3453 = vpop.f32.mrb[0].mxu0
        %v3454 = vadd.f32 0.0, %v3453
        %v3455 = vpop.f32.mrb[0].mxu0
        %3456 = vdwg.mxu0
        %v3457 = vadd.f32 %v3372, %v3449
        %v3458 = vadd.f32 %v3377, %v3454
        %3461 = vrot.lane.b32.xlu0 %v3457, 64
        %v3462 = vpop.permute.xlu0 %3461
        %3463 = vrot.lane.b32.xlu0 %v3458, 64
        %v3464 = vpop.permute.xlu0 %3463
        %3467 = vst.msk [vmem:[#allocation5 + $0x8] sm:$0xff] %vm2890, %v3462
        %3468 = vst.msk [vmem:[#allocation5 + $0x18] sm:$0xff] %vm2890, %v3464
        %v3469 = vld [vmem:[#allocation5] sm:$0xff]
        %v3470 = vld [vmem:[#allocation5 + $0x8] sm:$0xff]
        %v3471 = vld [vmem:[#allocation5 + $0x10] sm:$0xff]
        %v3472 = vld [vmem:[#allocation5 + $0x18] sm:$0xff]
        %v3473 = vld [vmem:[%s14] sm:$0x3]
        %v3475 = vlaneseq
        %v3476 = vshrl.u32 %v3475, 7
        %v3477 = vsub.s32 0, %v3476
        %v3478 = vrot.slane %v3473, %v3477
        %v3479 = vlaneseq
        %v3480 = vshrl.u32 %v3479, 7
        %v3481 = vsub.s32 1, %v3480
        %v3482 = vrot.slane %v3473, %v3481
        %v3485 = vadd.f32 %v3469, %v3478
        %v3486 = vadd.f32 %v3470, %v3482
        %v3487 = vadd.f32 %v3471, %v3478
        %v3488 = vadd.f32 %v3472, %v3482
        %v3489 = vmax.f32 %v3485, 0.0
        %v3490 = vmax.f32 %v3486, 0.0
        %v3491 = vmax.f32 %v3487, 0.0
        %v3492 = vmax.f32 %v3488, 0.0
        %v3493 = vld [vmem:[%s15] sm:$0x3]
        %v3495 = vlaneseq
        %v3496 = vshrl.u32 %v3495, 7
        %v3497 = vsub.s32 0, %v3496
        %v3498 = vrot.slane %v3493, %v3497
        %v3499 = vlaneseq
        %v3500 = vshrl.u32 %v3499, 7
        %v3501 = vsub.s32 1, %v3500
        %v3502 = vrot.slane %v3493, %v3501
        %v3505 = vmul.f32 %v3489, %v3498
        %v3506 = vmul.f32 %v3490, %v3502
        %v3507 = vmul.f32 %v3491, %v3498
        %v3508 = vmul.f32 %v3492, %v3502
        %v3509 = vld [vmem:[%s16] sm:$0x3]
        %v3511 = vlaneseq
        %v3512 = vshrl.u32 %v3511, 7
        %v3513 = vsub.s32 0, %v3512
        %v3514 = vrot.slane %v3509, %v3513
        %v3515 = vlaneseq
        %v3516 = vshrl.u32 %v3515, 7
        %v3517 = vsub.s32 1, %v3516
        %v3518 = vrot.slane %v3509, %v3517
        %v3521 = vadd.f32 %v3505, %v3514
        %v3522 = vadd.f32 %v3506, %v3518
        %v3523 = vadd.f32 %v3507, %v3514
        %v3524 = vadd.f32 %v3508, %v3518
        %v3525 = vadd.f32 %v3521, %v3523
        %v3526 = vrot.slane %v3525, 4
        %v3527 = vadd.f32 %v3525, %v3526
        %v3528 = vrot.slane %v3527, 2
        %v3529 = vadd.f32 %v3527, %v3528
        %v3530 = vrot.slane %v3529, 1
        %v3531 = vadd.f32 %v3529, %v3530
        %v3532 = vadd.f32 %v3522, %v3524
        %v3533 = vrot.slane %v3532, 4
        %v3534 = vadd.f32 %v3532, %v3533
        %v3535 = vrot.slane %v3534, 2
        %v3536 = vadd.f32 %v3534, %v3535
        %v3537 = vrot.slane %v3536, 1
        %v3538 = vadd.f32 %v3536, %v3537
        %v3539 = vmul.f32 %v3531, %v2126
        %v3540 = vmul.f32 %v3538, %v2126
        %v3541 = vld [vmem:[%s17] sm:$0xff]
        %v3542 = vld [vmem:[%s17 + $0x8] sm:$0xff]
        %v3543 = vld [vmem:[%s17 + $0x10] sm:$0xff]
        %v3544 = vld [vmem:[%s17 + $0x18] sm:$0xff]
        %v3545 = vld [vmem:[%s17 + $0x20] sm:$0xff]
        %v3546 = vld [vmem:[%s17 + $0x28] sm:$0xff]
        %v3547 = vld [vmem:[%s17 + $0x30] sm:$0xff]
        %v3548 = vld [vmem:[%s17 + $0x38] sm:$0xff]
        %v3549 = vld [vmem:[%s17 + $0x40] sm:$0xff]
        %v3550 = vld [vmem:[%s17 + $0x48] sm:$0xff]
        %v3551 = vld [vmem:[%s17 + $0x50] sm:$0xff]
        %v3552 = vld [vmem:[%s17 + $0x58] sm:$0xff]
        %v3553 = vld [vmem:[%s17 + $0x60] sm:$0xff]
        %v3554 = vld [vmem:[%s17 + $0x68] sm:$0xff]
        %v3555 = vld [vmem:[%s17 + $0x70] sm:$0xff]
        %v3556 = vld [vmem:[%s17 + $0x78] sm:$0xff]
        %v3557 = vld [vmem:[%s17 + $0x80] sm:$0xff]
        %v3558 = vld [vmem:[%s17 + $0x88] sm:$0xff]
        %v3559 = vld [vmem:[%s17 + $0x90] sm:$0xff]
        %v3560 = vld [vmem:[%s17 + $0x98] sm:$0xff]
        %v3561 = vld [vmem:[%s17 + $0xa0] sm:$0xff]
        %v3562 = vld [vmem:[%s17 + $0xa8] sm:$0xff]
        %v3563 = vld [vmem:[%s17 + $0xb0] sm:$0xff]
        %v3564 = vld [vmem:[%s17 + $0xb8] sm:$0xff]
        %v3565 = vld [vmem:[%s17 + $0xc0] sm:$0xff]
        %v3566 = vld [vmem:[%s17 + $0xc8] sm:$0xff]
        %v3567 = vld [vmem:[%s17 + $0xd0] sm:$0xff]
        %v3568 = vld [vmem:[%s17 + $0xd8] sm:$0xff]
        %v3569 = vld [vmem:[%s17 + $0xe0] sm:$0xff]
        %v3570 = vld [vmem:[%s17 + $0xe8] sm:$0xff]
        %v3571 = vld [vmem:[%s17 + $0xf0] sm:$0xff]
        %v3572 = vld [vmem:[%s17 + $0xf8] sm:$0xff]
        %v3573 = vld [vmem:[%s18] sm:$0x1]
        %3574 = vmatprep.subr.mxu0 0.0
        %3575 = vmatpush1.msra.mxu0 %v3541
        %3576 = vmatprep.subr.mxu0 0.0
        %3577 = vmatpush1.msra.mxu0 %v3542
        %3578 = vmatprep.subr.mxu0 0.0
        %3579 = vmatpush1.msra.mxu0 %v3543
        %3580 = vmatprep.subr.mxu0 0.0
        %3581 = vmatpush1.msra.mxu0 %v3544
        %3582 = vmatprep.subr.mxu0 0.0
        %3583 = vmatpush1.msra.mxu0 %v3545
        %3584 = vmatprep.subr.mxu0 0.0
        %3585 = vmatpush1.msra.mxu0 %v3546
        %3586 = vmatprep.subr.mxu0 0.0
        %3587 = vmatpush1.msra.mxu0 %v3547
        %3588 = vmatprep.subr.mxu0 0.0
        %3589 = vmatpush1.msra.mxu0 %v3548
        %3590 = vmatprep.subr.mxu0 0.0
        %3591 = vmatpush1.msra.mxu0 %v3549
        %3592 = vmatprep.subr.mxu0 0.0
        %3593 = vmatpush1.msra.mxu0 %v3550
        %3594 = vmatprep.subr.mxu0 0.0
        %3595 = vmatpush1.msra.mxu0 %v3551
        %3596 = vmatprep.subr.mxu0 0.0
        %3597 = vmatpush1.msra.mxu0 %v3552
        %3598 = vmatprep.subr.mxu0 0.0
        %3599 = vmatpush1.msra.mxu0 %v3553
        %3600 = vmatprep.subr.mxu0 0.0
        %3601 = vmatpush1.msra.mxu0 %v3554
        %3602 = vmatprep.subr.mxu0 0.0
        %3603 = vmatpush1.msra.mxu0 %v3555
        %3604 = vmatprep.subr.mxu0 0.0
        %3605 = vmatpush1.msra.mxu0 %v3556
        %3606 = vmatprep.subr.mxu0 0.0
        %3607 = vmatpush1.msra.mxu0 %v3557
        %3608 = vmatprep.subr.mxu0 0.0
        %3609 = vmatpush1.msra.mxu0 %v3558
        %3610 = vmatprep.subr.mxu0 0.0
        %3611 = vmatpush1.msra.mxu0 %v3559
        %3612 = vmatprep.subr.mxu0 0.0
        %3613 = vmatpush1.msra.mxu0 %v3560
        %3614 = vmatprep.subr.mxu0 0.0
        %3615 = vmatpush1.msra.mxu0 %v3561
        %3616 = vmatprep.subr.mxu0 0.0
        %3617 = vmatpush1.msra.mxu0 %v3562
        %3618 = vmatprep.subr.mxu0 0.0
        %3619 = vmatpush1.msra.mxu0 %v3563
        %3620 = vmatprep.subr.mxu0 0.0
        %3621 = vmatpush1.msra.mxu0 %v3564
        %3622 = vmatprep.subr.mxu0 0.0
        %3623 = vmatpush1.msra.mxu0 %v3565
        %3624 = vmatprep.subr.mxu0 0.0
        %3625 = vmatpush1.msra.mxu0 %v3566
        %3626 = vmatprep.subr.mxu0 0.0
        %3627 = vmatpush1.msra.mxu0 %v3567
        %3628 = vmatprep.subr.mxu0 0.0
        %3629 = vmatpush1.msra.mxu0 %v3568
        %3630 = vmatprep.subr.mxu0 0.0
        %3631 = vmatpush1.msra.mxu0 %v3569
        %3632 = vmatprep.subr.mxu0 0.0
        %3633 = vmatpush1.msra.mxu0 %v3570
        %3634 = vmatprep.subr.mxu0 0.0
        %3635 = vmatpush1.msra.mxu0 %v3571
        %3636 = vmatprep.subr.mxu0 0.0
        %3637 = vmatpush1.msra.mxu0 %v3572
        %3638 = vmatprep.mubr.f32.mxu0 %v3540
        %3639 = vmatmul.mubr.f32.gmra.mrb[0].mxu0 %v3539
        %v3640 = vpop.f32.mrb[0].mxu0
        %v3641 = vadd.f32 %v3573, %v3640
        %v3642 = vpop.f32.mrb[0].mxu0
        %3643 = vdwg.mxu0
        %v3644 = vmax.f32 %v3641, 0.0
        %v3645 = vld [vmem:[%s19] sm:$0xff]
        %v3646 = vld [vmem:[%s19 + $0x8] sm:$0xff]
        %v3647 = vld [vmem:[%s19 + $0x10] sm:$0xff]
        %v3648 = vld [vmem:[%s19 + $0x18] sm:$0xff]
        %v3649 = vld [vmem:[%s19 + $0x20] sm:$0xff]
        %v3650 = vld [vmem:[%s19 + $0x28] sm:$0xff]
        %v3651 = vld [vmem:[%s19 + $0x30] sm:$0xff]
        %v3652 = vld [vmem:[%s19 + $0x38] sm:$0xff]
        %v3653 = vld [vmem:[%s19 + $0x40] sm:$0xff]
        %v3654 = vld [vmem:[%s19 + $0x48] sm:$0xff]
        %v3655 = vld [vmem:[%s19 + $0x50] sm:$0xff]
        %v3656 = vld [vmem:[%s19 + $0x58] sm:$0xff]
        %v3657 = vld [vmem:[%s19 + $0x60] sm:$0xff]
        %v3658 = vld [vmem:[%s19 + $0x68] sm:$0xff]
        %v3659 = vld [vmem:[%s19 + $0x70] sm:$0xff]
        %v3660 = vld [vmem:[%s19 + $0x78] sm:$0xff]
        %v3661 = vld [vmem:[%s19 + $0x80] sm:$0xff]
        %v3662 = vld [vmem:[%s19 + $0x88] sm:$0xff]
        %v3663 = vld [vmem:[%s19 + $0x90] sm:$0xff]
        %v3664 = vld [vmem:[%s19 + $0x98] sm:$0xff]
        %v3665 = vld [vmem:[%s19 + $0xa0] sm:$0xff]
        %v3666 = vld [vmem:[%s19 + $0xa8] sm:$0xff]
        %v3667 = vld [vmem:[%s19 + $0xb0] sm:$0xff]
        %v3668 = vld [vmem:[%s19 + $0xb8] sm:$0xff]
        %v3669 = vld [vmem:[%s19 + $0xc0] sm:$0xff]
        %v3670 = vld [vmem:[%s19 + $0xc8] sm:$0xff]
        %v3671 = vld [vmem:[%s19 + $0xd0] sm:$0xff]
        %v3672 = vld [vmem:[%s19 + $0xd8] sm:$0xff]
        %v3673 = vld [vmem:[%s19 + $0xe0] sm:$0xff]
        %v3674 = vld [vmem:[%s19 + $0xe8] sm:$0xff]
        %v3675 = vld [vmem:[%s19 + $0xf0] sm:$0xff]
        %v3676 = vld [vmem:[%s19 + $0xf8] sm:$0xff]
        %v3677 = vld [vmem:[%s20] sm:$0x3]
        %v3679 = vlaneseq
        %v3680 = vshrl.u32 %v3679, 7
        %v3681 = vsub.s32 0, %v3680
        %v3682 = vrot.slane %v3677, %v3681
        %v3683 = vlaneseq
        %v3684 = vshrl.u32 %v3683, 7
        %v3685 = vsub.s32 1, %v3684
        %v3686 = vrot.slane %v3677, %v3685
        %3689 = vmatprep.subr.mxu0 %v3646
        %3690 = vmatpush1.msra.mxu0 %v3645
        %3691 = vmatprep.subr.mxu0 %v3648
        %3692 = vmatpush1.msra.mxu0 %v3647
        %3693 = vmatprep.subr.mxu0 %v3650
        %3694 = vmatpush1.msra.mxu0 %v3649
        %3695 = vmatprep.subr.mxu0 %v3652
        %3696 = vmatpush1.msra.mxu0 %v3651
        %3697 = vmatprep.subr.mxu0 %v3654
        %3698 = vmatpush1.msra.mxu0 %v3653
        %3699 = vmatprep.subr.mxu0 %v3656
        %3700 = vmatpush1.msra.mxu0 %v3655
        %3701 = vmatprep.subr.mxu0 %v3658
        %3702 = vmatpush1.msra.mxu0 %v3657
        %3703 = vmatprep.subr.mxu0 %v3660
        %3704 = vmatpush1.msra.mxu0 %v3659
        %3705 = vmatprep.subr.mxu0 %v3662
        %3706 = vmatpush1.msra.mxu0 %v3661
        %3707 = vmatprep.subr.mxu0 %v3664
        %3708 = vmatpush1.msra.mxu0 %v3663
        %3709 = vmatprep.subr.mxu0 %v3666
        %3710 = vmatpush1.msra.mxu0 %v3665
        %3711 = vmatprep.subr.mxu0 %v3668
        %3712 = vmatpush1.msra.mxu0 %v3667
        %3713 = vmatprep.subr.mxu0 %v3670
        %3714 = vmatpush1.msra.mxu0 %v3669
        %3715 = vmatprep.subr.mxu0 %v3672
        %3716 = vmatpush1.msra.mxu0 %v3671
        %3717 = vmatprep.subr.mxu0 %v3674
        %3718 = vmatpush1.msra.mxu0 %v3673
        %3719 = vmatprep.subr.mxu0 %v3676
        %3720 = vmatpush1.msra.mxu0 %v3675
        %3721 = vmatprep.subr.mxu0 0.0
        %3722 = vmatpush1.msra.mxu0 0.0
        %3723 = vmatprep.subr.mxu0 0.0
        %3724 = vmatpush1.msra.mxu0 0.0
        %3725 = vmatprep.subr.mxu0 0.0
        %3726 = vmatpush1.msra.mxu0 0.0
        %3727 = vmatprep.subr.mxu0 0.0
        %3728 = vmatpush1.msra.mxu0 0.0
        %3729 = vmatprep.subr.mxu0 0.0
        %3730 = vmatpush1.msra.mxu0 0.0
        %3731 = vmatprep.subr.mxu0 0.0
        %3732 = vmatpush1.msra.mxu0 0.0
        %3733 = vmatprep.subr.mxu0 0.0
        %3734 = vmatpush1.msra.mxu0 0.0
        %3735 = vmatprep.subr.mxu0 0.0
        %3736 = vmatpush1.msra.mxu0 0.0
        %3737 = vmatprep.subr.mxu0 0.0
        %3738 = vmatpush1.msra.mxu0 0.0
        %3739 = vmatprep.subr.mxu0 0.0
        %3740 = vmatpush1.msra.mxu0 0.0
        %3741 = vmatprep.subr.mxu0 0.0
        %3742 = vmatpush1.msra.mxu0 0.0
        %3743 = vmatprep.subr.mxu0 0.0
        %3744 = vmatpush1.msra.mxu0 0.0
        %3745 = vmatprep.subr.mxu0 0.0
        %3746 = vmatpush1.msra.mxu0 0.0
        %3747 = vmatprep.subr.mxu0 0.0
        %3748 = vmatpush1.msra.mxu0 0.0
        %3749 = vmatprep.subr.mxu0 0.0
        %3750 = vmatpush1.msra.mxu0 0.0
        %3751 = vmatprep.subr.mxu0 0.0
        %3752 = vmatpush1.msra.mxu0 0.0
        %3753 = vmatprep.mubr.f32.mxu0 0.0
        %3754 = vmatmul.mubr.f32.gmra.mrb[0].mxu0 %v3644
        %v3755 = vpop.f32.mrb[0].mxu0
        %v3756 = vadd.f32 %v3682, %v3755
        %v3757 = vpop.f32.mrb[0].mxu0
        %v3758 = vadd.f32 %v3686, %v3757
        %3759 = vdwg.mxu0
        %v3760 = vxor.u32 %v3756, 2147483648
        %v3761 = vxor.u32 %v3758, 2147483648
        %v3762 = vmul.f32 %v3760, 1.442695
        %v3763 = vpow.pop %v3762
        %v3764 = vmul.f32 %v3761, 1.442695
        %v3765 = vpow.pop %v3764
        %v3766 = vadd.f32 %v3763, 1.0
        %v3767 = vadd.f32 %v3765, 1.0
        %v3768 = vrcp.pop %v3766
        %v3769 = vmul.f32 1.0, %v3768
        %v3770 = vrcp.pop %v3767
        %v3771 = vmul.f32 1.0, %v3770
        %v3772 = vlaneseq
        %v3773 = vshrl.u32 %v3772, 7
        %v3774 = vsub.s32 0, %v3773
        %v3775 = vrot.slane %v3769, %v3774
        %v3776 = vlaneseq
        %v3777 = vshrl.u32 %v3776, 7
        %v3778 = vsub.s32 0, %v3777
        %v3779 = vrot.slane %v3771, %v3778
        %v3780 = vmul.f32 %v3521, %v3775
        %v3781 = vmul.f32 %v3522, %v3779
        %v3782 = vmul.f32 %v3523, %v3775
        %v3783 = vmul.f32 %v3524, %v3779
        %v3784 = vld [vmem:[%s22] sm:$0xf]
        %vm3785 = vcmask 1043456
        %v3786 = vsel %vm3785, %v3780, 0.0
        %v3787 = vrot.slane %v3786, 4
        %v3788 = vadd.f32 %v3786, %v3787
        %v3789 = vrot.slane %v3788, 2
        %v3790 = vadd.f32 %v3788, %v3789
        %v3791 = vrot.slane %v3790, 1
        %v3792 = vadd.f32 %v3790, %v3791
        %v3793 = vsel %vm3785, %v3781, 0.0
        %v3794 = vrot.slane %v3793, 4
        %v3795 = vadd.f32 %v3793, %v3794
        %v3796 = vrot.slane %v3795, 2
        %v3797 = vadd.f32 %v3795, %v3796
        %v3798 = vrot.slane %v3797, 1
        %v3799 = vadd.f32 %v3797, %v3798
        %v3800 = vrcp.pop 4.0
        %v3801 = vmul.f32 %v3792, %v3800
        %v3802 = vmul.f32 %v3799, %v3800
        %v3803 = vld [vmem:[%s21] sm:$0xff]
        %v3804 = vld [vmem:[%s21 + $0x8] sm:$0xff]
        %v3805 = vld [vmem:[%s21 + $0x10] sm:$0xff]
        %v3806 = vld [vmem:[%s21 + $0x18] sm:$0xff]
        %v3807 = vld [vmem:[%s21 + $0x20] sm:$0xff]
        %v3808 = vld [vmem:[%s21 + $0x28] sm:$0xff]
        %v3809 = vld [vmem:[%s21 + $0x30] sm:$0xff]
        %v3810 = vld [vmem:[%s21 + $0x38] sm:$0xff]
        %v3811 = vld [vmem:[%s21 + $0x40] sm:$0xff]
        %v3812 = vld [vmem:[%s21 + $0x48] sm:$0xff]
        %v3813 = vld [vmem:[%s21 + $0x50] sm:$0xff]
        %v3814 = vld [vmem:[%s21 + $0x58] sm:$0xff]
        %v3815 = vld [vmem:[%s21 + $0x60] sm:$0xff]
        %v3816 = vld [vmem:[%s21 + $0x68] sm:$0xff]
        %v3817 = vld [vmem:[%s21 + $0x70] sm:$0xff]
        %v3818 = vld [vmem:[%s21 + $0x78] sm:$0xff]
        %v3819 = vld [vmem:[%s21 + $0x80] sm:$0xff]
        %v3820 = vld [vmem:[%s21 + $0x88] sm:$0xff]
        %v3821 = vld [vmem:[%s21 + $0x90] sm:$0xff]
        %v3822 = vld [vmem:[%s21 + $0x98] sm:$0xff]
        %v3823 = vld [vmem:[%s21 + $0xa0] sm:$0xff]
        %v3824 = vld [vmem:[%s21 + $0xa8] sm:$0xff]
        %v3825 = vld [vmem:[%s21 + $0xb0] sm:$0xff]
        %v3826 = vld [vmem:[%s21 + $0xb8] sm:$0xff]
        %v3827 = vld [vmem:[%s21 + $0xc0] sm:$0xff]
        %v3828 = vld [vmem:[%s21 + $0xc8] sm:$0xff]
        %v3829 = vld [vmem:[%s21 + $0xd0] sm:$0xff]
        %v3830 = vld [vmem:[%s21 + $0xd8] sm:$0xff]
        %v3831 = vld [vmem:[%s21 + $0xe0] sm:$0xff]
        %v3832 = vld [vmem:[%s21 + $0xe8] sm:$0xff]
        %v3833 = vld [vmem:[%s21 + $0xf0] sm:$0xff]
        %v3834 = vld [vmem:[%s21 + $0xf8] sm:$0xff]
        %v3835 = vld [vmem:[%s21 + $0x100] sm:$0xff]
        %v3836 = vld [vmem:[%s21 + $0x108] sm:$0xff]
        %v3837 = vld [vmem:[%s21 + $0x110] sm:$0xff]
        %v3838 = vld [vmem:[%s21 + $0x118] sm:$0xff]
        %v3839 = vld [vmem:[%s21 + $0x120] sm:$0xff]
        %v3840 = vld [vmem:[%s21 + $0x128] sm:$0xff]
        %v3841 = vld [vmem:[%s21 + $0x130] sm:$0xff]
        %v3842 = vld [vmem:[%s21 + $0x138] sm:$0xff]
        %v3843 = vld [vmem:[%s21 + $0x140] sm:$0xff]
        %v3844 = vld [vmem:[%s21 + $0x148] sm:$0xff]
        %v3845 = vld [vmem:[%s21 + $0x150] sm:$0xff]
        %v3846 = vld [vmem:[%s21 + $0x158] sm:$0xff]
        %v3847 = vld [vmem:[%s21 + $0x160] sm:$0xff]
        %v3848 = vld [vmem:[%s21 + $0x168] sm:$0xff]
        %v3849 = vld [vmem:[%s21 + $0x170] sm:$0xff]
        %v3850 = vld [vmem:[%s21 + $0x178] sm:$0xff]
        %v3851 = vld [vmem:[%s21 + $0x180] sm:$0xff]
        %v3852 = vld [vmem:[%s21 + $0x188] sm:$0xff]
        %v3853 = vld [vmem:[%s21 + $0x190] sm:$0xff]
        %v3854 = vld [vmem:[%s21 + $0x198] sm:$0xff]
        %v3855 = vld [vmem:[%s21 + $0x1a0] sm:$0xff]
        %v3856 = vld [vmem:[%s21 + $0x1a8] sm:$0xff]
        %v3857 = vld [vmem:[%s21 + $0x1b0] sm:$0xff]
        %v3858 = vld [vmem:[%s21 + $0x1b8] sm:$0xff]
        %v3859 = vld [vmem:[%s21 + $0x1c0] sm:$0xff]
        %v3860 = vld [vmem:[%s21 + $0x1c8] sm:$0xff]
        %v3861 = vld [vmem:[%s21 + $0x1d0] sm:$0xff]
        %v3862 = vld [vmem:[%s21 + $0x1d8] sm:$0xff]
        %v3863 = vld [vmem:[%s21 + $0x1e0] sm:$0xff]
        %v3864 = vld [vmem:[%s21 + $0x1e8] sm:$0xff]
        %v3865 = vld [vmem:[%s21 + $0x1f0] sm:$0xff]
        %v3866 = vld [vmem:[%s21 + $0x1f8] sm:$0xff]
        %v3867 = vld [vmem:[%s21 + $0x200] sm:$0xff]
        %v3868 = vld [vmem:[%s21 + $0x208] sm:$0xff]
        %v3869 = vld [vmem:[%s21 + $0x210] sm:$0xff]
        %v3870 = vld [vmem:[%s21 + $0x218] sm:$0xff]
        %v3871 = vld [vmem:[%s21 + $0x220] sm:$0xff]
        %v3872 = vld [vmem:[%s21 + $0x228] sm:$0xff]
        %v3873 = vld [vmem:[%s21 + $0x230] sm:$0xff]
        %v3874 = vld [vmem:[%s21 + $0x238] sm:$0xff]
        %v3875 = vld [vmem:[%s21 + $0x240] sm:$0xff]
        %v3876 = vld [vmem:[%s21 + $0x248] sm:$0xff]
        %v3877 = vld [vmem:[%s21 + $0x250] sm:$0xff]
        %v3878 = vld [vmem:[%s21 + $0x258] sm:$0xff]
        %v3879 = vld [vmem:[%s21 + $0x260] sm:$0xff]
        %v3880 = vld [vmem:[%s21 + $0x268] sm:$0xff]
        %v3881 = vld [vmem:[%s21 + $0x270] sm:$0xff]
        %v3882 = vld [vmem:[%s21 + $0x278] sm:$0xff]
        %v3883 = vld [vmem:[%s21 + $0x280] sm:$0xff]
        %v3884 = vld [vmem:[%s21 + $0x288] sm:$0xff]
        %v3885 = vld [vmem:[%s21 + $0x290] sm:$0xff]
        %v3886 = vld [vmem:[%s21 + $0x298] sm:$0xff]
        %v3887 = vld [vmem:[%s21 + $0x2a0] sm:$0xff]
        %v3888 = vld [vmem:[%s21 + $0x2a8] sm:$0xff]
        %v3889 = vld [vmem:[%s21 + $0x2b0] sm:$0xff]
        %v3890 = vld [vmem:[%s21 + $0x2b8] sm:$0xff]
        %v3891 = vld [vmem:[%s21 + $0x2c0] sm:$0xff]
        %v3892 = vld [vmem:[%s21 + $0x2c8] sm:$0xff]
        %v3893 = vld [vmem:[%s21 + $0x2d0] sm:$0xff]
        %v3894 = vld [vmem:[%s21 + $0x2d8] sm:$0xff]
        %v3895 = vld [vmem:[%s21 + $0x2e0] sm:$0xff]
        %v3896 = vld [vmem:[%s21 + $0x2e8] sm:$0xff]
        %v3897 = vld [vmem:[%s21 + $0x2f0] sm:$0xff]
        %v3898 = vld [vmem:[%s21 + $0x2f8] sm:$0xff]
        %v3899 = vld [vmem:[%s21 + $0x300] sm:$0xff]
        %v3900 = vld [vmem:[%s21 + $0x308] sm:$0xff]
        %v3901 = vld [vmem:[%s21 + $0x310] sm:$0xff]
        %v3902 = vld [vmem:[%s21 + $0x318] sm:$0xff]
        %v3903 = vld [vmem:[%s21 + $0x320] sm:$0xff]
        %v3904 = vld [vmem:[%s21 + $0x328] sm:$0xff]
        %v3905 = vld [vmem:[%s21 + $0x330] sm:$0xff]
        %v3906 = vld [vmem:[%s21 + $0x338] sm:$0xff]
        %v3907 = vld [vmem:[%s21 + $0x340] sm:$0xff]
        %v3908 = vld [vmem:[%s21 + $0x348] sm:$0xff]
        %v3909 = vld [vmem:[%s21 + $0x350] sm:$0xff]
        %v3910 = vld [vmem:[%s21 + $0x358] sm:$0xff]
        %v3911 = vld [vmem:[%s21 + $0x360] sm:$0xff]
        %v3912 = vld [vmem:[%s21 + $0x368] sm:$0xff]
        %v3913 = vld [vmem:[%s21 + $0x370] sm:$0xff]
        %v3914 = vld [vmem:[%s21 + $0x378] sm:$0xff]
        %v3915 = vld [vmem:[%s21 + $0x380] sm:$0xff]
        %v3916 = vld [vmem:[%s21 + $0x388] sm:$0xff]
        %v3917 = vld [vmem:[%s21 + $0x390] sm:$0xff]
        %v3918 = vld [vmem:[%s21 + $0x398] sm:$0xff]
        %v3919 = vld [vmem:[%s21 + $0x3a0] sm:$0xff]
        %v3920 = vld [vmem:[%s21 + $0x3a8] sm:$0xff]
        %v3921 = vld [vmem:[%s21 + $0x3b0] sm:$0xff]
        %v3922 = vld [vmem:[%s21 + $0x3b8] sm:$0xff]
        %v3923 = vld [vmem:[%s21 + $0x3c0] sm:$0xff]
        %v3924 = vld [vmem:[%s21 + $0x3c8] sm:$0xff]
        %v3925 = vld [vmem:[%s21 + $0x3d0] sm:$0xff]
        %v3926 = vld [vmem:[%s21 + $0x3d8] sm:$0xff]
        %v3927 = vld [vmem:[%s21 + $0x3e0] sm:$0xff]
        %v3928 = vld [vmem:[%s21 + $0x3e8] sm:$0xff]
        %v3929 = vld [vmem:[%s21 + $0x3f0] sm:$0xff]
        %v3930 = vld [vmem:[%s21 + $0x3f8] sm:$0xff]
        %3931 = vmatprep.subr.mxu0 %v3804
        %3932 = vmatpush1.msra.mxu0 %v3803
        %3933 = vmatprep.subr.mxu0 %v3808
        %3934 = vmatpush1.msra.mxu0 %v3807
        %3935 = vmatprep.subr.mxu0 %v3812
        %3936 = vmatpush1.msra.mxu0 %v3811
        %3937 = vmatprep.subr.mxu0 %v3816
        %3938 = vmatpush1.msra.mxu0 %v3815
        %3939 = vmatprep.subr.mxu0 %v3820
        %3940 = vmatpush1.msra.mxu0 %v3819
        %3941 = vmatprep.subr.mxu0 %v3824
        %3942 = vmatpush1.msra.mxu0 %v3823
        %3943 = vmatprep.subr.mxu0 %v3828
        %3944 = vmatpush1.msra.mxu0 %v3827
        %3945 = vmatprep.subr.mxu0 %v3832
        %3946 = vmatpush1.msra.mxu0 %v3831
        %3947 = vmatprep.subr.mxu0 %v3836
        %3948 = vmatpush1.msra.mxu0 %v3835
        %3949 = vmatprep.subr.mxu0 %v3840
        %3950 = vmatpush1.msra.mxu0 %v3839
        %3951 = vmatprep.subr.mxu0 %v3844
        %3952 = vmatpush1.msra.mxu0 %v3843
        %3953 = vmatprep.subr.mxu0 %v3848
        %3954 = vmatpush1.msra.mxu0 %v3847
        %3955 = vmatprep.subr.mxu0 %v3852
        %3956 = vmatpush1.msra.mxu0 %v3851
        %3957 = vmatprep.subr.mxu0 %v3856
        %3958 = vmatpush1.msra.mxu0 %v3855
        %3959 = vmatprep.subr.mxu0 %v3860
        %3960 = vmatpush1.msra.mxu0 %v3859
        %3961 = vmatprep.subr.mxu0 %v3864
        %3962 = vmatpush1.msra.mxu0 %v3863
        %3963 = vmatprep.subr.mxu0 %v3868
        %3964 = vmatpush1.msra.mxu0 %v3867
        %3965 = vmatprep.subr.mxu0 %v3872
        %3966 = vmatpush1.msra.mxu0 %v3871
        %3967 = vmatprep.subr.mxu0 %v3876
        %3968 = vmatpush1.msra.mxu0 %v3875
        %3969 = vmatprep.subr.mxu0 %v3880
        %3970 = vmatpush1.msra.mxu0 %v3879
        %3971 = vmatprep.subr.mxu0 %v3884
        %3972 = vmatpush1.msra.mxu0 %v3883
        %3973 = vmatprep.subr.mxu0 %v3888
        %3974 = vmatpush1.msra.mxu0 %v3887
        %3975 = vmatprep.subr.mxu0 %v3892
        %3976 = vmatpush1.msra.mxu0 %v3891
        %3977 = vmatprep.subr.mxu0 %v3896
        %3978 = vmatpush1.msra.mxu0 %v3895
        %3979 = vmatprep.subr.mxu0 %v3900
        %3980 = vmatpush1.msra.mxu0 %v3899
        %3981 = vmatprep.subr.mxu0 %v3904
        %3982 = vmatpush1.msra.mxu0 %v3903
        %3983 = vmatprep.subr.mxu0 %v3908
        %3984 = vmatpush1.msra.mxu0 %v3907
        %3985 = vmatprep.subr.mxu0 %v3912
        %3986 = vmatpush1.msra.mxu0 %v3911
        %3987 = vmatprep.subr.mxu0 %v3916
        %3988 = vmatpush1.msra.mxu0 %v3915
        %3989 = vmatprep.subr.mxu0 %v3920
        %3990 = vmatpush1.msra.mxu0 %v3919
        %3991 = vmatprep.subr.mxu0 %v3924
        %3992 = vmatpush1.msra.mxu0 %v3923
        %3993 = vmatprep.subr.mxu0 %v3928
        %3994 = vmatpush1.msra.mxu0 %v3927
        %3995 = vmatprep.mubr.f32.mxu0 %v3802
        %3996 = vmatmul.mubr.f32.gmra.mrb[0].mxu0 %v3801
        %v3997 = vpop.f32.mrb[0].mxu0
        %v3998 = vadd.f32 0.0, %v3997
        %v3999 = vpop.f32.mrb[0].mxu0
        %v4000 = vadd.f32 0.0, %v3999
        %4001 = vdwg.mxu0
        %4002 = vmatprep.subr.mxu0 %v3806
        %4003 = vmatpush1.msra.mxu0 %v3805
        %4004 = vmatprep.subr.mxu0 %v3810
        %4005 = vmatpush1.msra.mxu0 %v3809
        %4006 = vmatprep.subr.mxu0 %v3814
        %4007 = vmatpush1.msra.mxu0 %v3813
        %4008 = vmatprep.subr.mxu0 %v3818
        %4009 = vmatpush1.msra.mxu0 %v3817
        %4010 = vmatprep.subr.mxu0 %v3822
        %4011 = vmatpush1.msra.mxu0 %v3821
        %4012 = vmatprep.subr.mxu0 %v3826
        %4013 = vmatpush1.msra.mxu0 %v3825
        %4014 = vmatprep.subr.mxu0 %v3830
        %4015 = vmatpush1.msra.mxu0 %v3829
        %4016 = vmatprep.subr.mxu0 %v3834
        %4017 = vmatpush1.msra.mxu0 %v3833
        %4018 = vmatprep.subr.mxu0 %v3838
        %4019 = vmatpush1.msra.mxu0 %v3837
        %4020 = vmatprep.subr.mxu0 %v3842
        %4021 = vmatpush1.msra.mxu0 %v3841
        %4022 = vmatprep.subr.mxu0 %v3846
        %4023 = vmatpush1.msra.mxu0 %v3845
        %4024 = vmatprep.subr.mxu0 %v3850
        %4025 = vmatpush1.msra.mxu0 %v3849
        %4026 = vmatprep.subr.mxu0 %v3854
        %4027 = vmatpush1.msra.mxu0 %v3853
        %4028 = vmatprep.subr.mxu0 %v3858
        %4029 = vmatpush1.msra.mxu0 %v3857
        %4030 = vmatprep.subr.mxu0 %v3862
        %4031 = vmatpush1.msra.mxu0 %v3861
        %4032 = vmatprep.subr.mxu0 %v3866
        %4033 = vmatpush1.msra.mxu0 %v3865
        %4034 = vmatprep.subr.mxu0 %v3870
        %4035 = vmatpush1.msra.mxu0 %v3869
        %4036 = vmatprep.subr.mxu0 %v3874
        %4037 = vmatpush1.msra.mxu0 %v3873
        %4038 = vmatprep.subr.mxu0 %v3878
        %4039 = vmatpush1.msra.mxu0 %v3877
        %4040 = vmatprep.subr.mxu0 %v3882
        %4041 = vmatpush1.msra.mxu0 %v3881
        %4042 = vmatprep.subr.mxu0 %v3886
        %4043 = vmatpush1.msra.mxu0 %v3885
        %4044 = vmatprep.subr.mxu0 %v3890
        %4045 = vmatpush1.msra.mxu0 %v3889
        %4046 = vmatprep.subr.mxu0 %v3894
        %4047 = vmatpush1.msra.mxu0 %v3893
        %4048 = vmatprep.subr.mxu0 %v3898
        %4049 = vmatpush1.msra.mxu0 %v3897
        %4050 = vmatprep.subr.mxu0 %v3902
        %4051 = vmatpush1.msra.mxu0 %v3901
        %4052 = vmatprep.subr.mxu0 %v3906
        %4053 = vmatpush1.msra.mxu0 %v3905
        %4054 = vmatprep.subr.mxu0 %v3910
        %4055 = vmatpush1.msra.mxu0 %v3909
        %4056 = vmatprep.subr.mxu0 %v3914
        %4057 = vmatpush1.msra.mxu0 %v3913
        %4058 = vmatprep.subr.mxu0 %v3918
        %4059 = vmatpush1.msra.mxu0 %v3917
        %4060 = vmatprep.subr.mxu0 %v3922
        %4061 = vmatpush1.msra.mxu0 %v3921
        %4062 = vmatprep.subr.mxu0 %v3926
        %4063 = vmatpush1.msra.mxu0 %v3925
        %4064 = vmatprep.subr.mxu0 %v3930
        %4065 = vmatpush1.msra.mxu0 %v3929
        %4066 = vmatprep.mubr.f32.mxu0 %v3802
        %4067 = vmatmul.mubr.f32.gmra.mrb[0].mxu0 %v3801
        %v4068 = vpop.f32.mrb[0].mxu0
        %v4069 = vadd.f32 0.0, %v4068
        %v4070 = vpop.f32.mrb[0].mxu0
        %v4071 = vadd.f32 0.0, %v4070
        %4072 = vdwg.mxu0
        %v4077 = vcombine.low %v3998, %v4000
        %v4078 = vcombine.low %v4069, %v4071
        %v4080 = vunpack.c.l.s4 1966171168
        %v4081 = vunpack.c.0.s8 %v4080
        %v4082 = vlaneseq
        %v4083 = vshrl.u32 %v4082, 7
        %v4084 = vsub.s32 %v4081, %v4083
        %v4085 = vrot.slane %v4077, %v4084
        %v4087 = vunpack.c.l.s4 1966171168
        %v4088 = vunpack.c.0.s8 %v4087
        %v4089 = vlaneseq
        %v4090 = vshrl.u32 %v4089, 7
        %v4091 = vsub.s32 %v4088, %v4090
        %v4092 = vrot.slane %v4078, %v4091
        %v4093 = vcombine.low %v4085, %v4092
        %v4095 = vunpack.c.l.s4 1966171168
        %v4096 = vunpack.c.0.s8 %v4095
        %v4097 = vlaneseq
        %v4098 = vshrl.u32 %v4097, 7
        %v4099 = vsub.s32 %v4096, %v4098
        %v4100 = vrot.slane %v4093, %v4099
        %v4102 = vadd.f32 %v3784, %v4100
        %v4105 = vrot.slane %v3780, 4
        %v4106 = vrot.slane %v3781, 4
        %v4109 = vsel %vm3785, %v4105, 0.0
        %v4110 = vrot.slane %v4109, 4
        %v4111 = vadd.f32 %v4109, %v4110
        %v4112 = vrot.slane %v4111, 2
        %v4113 = vadd.f32 %v4111, %v4112
        %v4114 = vrot.slane %v4113, 1
        %v4115 = vadd.f32 %v4113, %v4114
        %v4116 = vsel %vm3785, %v4106, 0.0
        %v4117 = vrot.slane %v4116, 4
        %v4118 = vadd.f32 %v4116, %v4117
        %v4119 = vrot.slane %v4118, 2
        %v4120 = vadd.f32 %v4118, %v4119
        %v4121 = vrot.slane %v4120, 1
        %v4122 = vadd.f32 %v4120, %v4121
        %v4123 = vmul.f32 %v4115, %v3800
        %v4124 = vmul.f32 %v4122, %v3800
        %v4125 = vld [vmem:[%s21 + $0x400] sm:$0xff]
        %v4126 = vld [vmem:[%s21 + $0x408] sm:$0xff]
        %v4127 = vld [vmem:[%s21 + $0x410] sm:$0xff]
        %v4128 = vld [vmem:[%s21 + $0x418] sm:$0xff]
        %v4129 = vld [vmem:[%s21 + $0x420] sm:$0xff]
        %v4130 = vld [vmem:[%s21 + $0x428] sm:$0xff]
        %v4131 = vld [vmem:[%s21 + $0x430] sm:$0xff]
        %v4132 = vld [vmem:[%s21 + $0x438] sm:$0xff]
        %v4133 = vld [vmem:[%s21 + $0x440] sm:$0xff]
        %v4134 = vld [vmem:[%s21 + $0x448] sm:$0xff]
        %v4135 = vld [vmem:[%s21 + $0x450] sm:$0xff]
        %v4136 = vld [vmem:[%s21 + $0x458] sm:$0xff]
        %v4137 = vld [vmem:[%s21 + $0x460] sm:$0xff]
        %v4138 = vld [vmem:[%s21 + $0x468] sm:$0xff]
        %v4139 = vld [vmem:[%s21 + $0x470] sm:$0xff]
        %v4140 = vld [vmem:[%s21 + $0x478] sm:$0xff]
        %v4141 = vld [vmem:[%s21 + $0x480] sm:$0xff]
        %v4142 = vld [vmem:[%s21 + $0x488] sm:$0xff]
        %v4143 = vld [vmem:[%s21 + $0x490] sm:$0xff]
        %v4144 = vld [vmem:[%s21 + $0x498] sm:$0xff]
        %v4145 = vld [vmem:[%s21 + $0x4a0] sm:$0xff]
        %v4146 = vld [vmem:[%s21 + $0x4a8] sm:$0xff]
        %v4147 = vld [vmem:[%s21 + $0x4b0] sm:$0xff]
        %v4148 = vld [vmem:[%s21 + $0x4b8] sm:$0xff]
        %v4149 = vld [vmem:[%s21 + $0x4c0] sm:$0xff]
        %v4150 = vld [vmem:[%s21 + $0x4c8] sm:$0xff]
        %v4151 = vld [vmem:[%s21 + $0x4d0] sm:$0xff]
        %v4152 = vld [vmem:[%s21 + $0x4d8] sm:$0xff]
        %v4153 = vld [vmem:[%s21 + $0x4e0] sm:$0xff]
        %v4154 = vld [vmem:[%s21 + $0x4e8] sm:$0xff]
        %v4155 = vld [vmem:[%s21 + $0x4f0] sm:$0xff]
        %v4156 = vld [vmem:[%s21 + $0x4f8] sm:$0xff]
        %v4157 = vld [vmem:[%s21 + $0x500] sm:$0xff]
        %v4158 = vld [vmem:[%s21 + $0x508] sm:$0xff]
        %v4159 = vld [vmem:[%s21 + $0x510] sm:$0xff]
        %v4160 = vld [vmem:[%s21 + $0x518] sm:$0xff]
        %v4161 = vld [vmem:[%s21 + $0x520] sm:$0xff]
        %v4162 = vld [vmem:[%s21 + $0x528] sm:$0xff]
        %v4163 = vld [vmem:[%s21 + $0x530] sm:$0xff]
        %v4164 = vld [vmem:[%s21 + $0x538] sm:$0xff]
        %v4165 = vld [vmem:[%s21 + $0x540] sm:$0xff]
        %v4166 = vld [vmem:[%s21 + $0x548] sm:$0xff]
        %v4167 = vld [vmem:[%s21 + $0x550] sm:$0xff]
        %v4168 = vld [vmem:[%s21 + $0x558] sm:$0xff]
        %v4169 = vld [vmem:[%s21 + $0x560] sm:$0xff]
        %v4170 = vld [vmem:[%s21 + $0x568] sm:$0xff]
        %v4171 = vld [vmem:[%s21 + $0x570] sm:$0xff]
        %v4172 = vld [vmem:[%s21 + $0x578] sm:$0xff]
        %v4173 = vld [vmem:[%s21 + $0x580] sm:$0xff]
        %v4174 = vld [vmem:[%s21 + $0x588] sm:$0xff]
        %v4175 = vld [vmem:[%s21 + $0x590] sm:$0xff]
        %v4176 = vld [vmem:[%s21 + $0x598] sm:$0xff]
        %v4177 = vld [vmem:[%s21 + $0x5a0] sm:$0xff]
        %v4178 = vld [vmem:[%s21 + $0x5a8] sm:$0xff]
        %v4179 = vld [vmem:[%s21 + $0x5b0] sm:$0xff]
        %v4180 = vld [vmem:[%s21 + $0x5b8] sm:$0xff]
        %v4181 = vld [vmem:[%s21 + $0x5c0] sm:$0xff]
        %v4182 = vld [vmem:[%s21 + $0x5c8] sm:$0xff]
        %v4183 = vld [vmem:[%s21 + $0x5d0] sm:$0xff]
        %v4184 = vld [vmem:[%s21 + $0x5d8] sm:$0xff]
        %v4185 = vld [vmem:[%s21 + $0x5e0] sm:$0xff]
        %v4186 = vld [vmem:[%s21 + $0x5e8] sm:$0xff]
        %v4187 = vld [vmem:[%s21 + $0x5f0] sm:$0xff]
        %v4188 = vld [vmem:[%s21 + $0x5f8] sm:$0xff]
        %v4189 = vld [vmem:[%s21 + $0x600] sm:$0xff]
        %v4190 = vld [vmem:[%s21 + $0x608] sm:$0xff]
        %v4191 = vld [vmem:[%s21 + $0x610] sm:$0xff]
        %v4192 = vld [vmem:[%s21 + $0x618] sm:$0xff]
        %v4193 = vld [vmem:[%s21 + $0x620] sm:$0xff]
        %v4194 = vld [vmem:[%s21 + $0x628] sm:$0xff]
        %v4195 = vld [vmem:[%s21 + $0x630] sm:$0xff]
        %v4196 = vld [vmem:[%s21 + $0x638] sm:$0xff]
        %v4197 = vld [vmem:[%s21 + $0x640] sm:$0xff]
        %v4198 = vld [vmem:[%s21 + $0x648] sm:$0xff]
        %v4199 = vld [vmem:[%s21 + $0x650] sm:$0xff]
        %v4200 = vld [vmem:[%s21 + $0x658] sm:$0xff]
        %v4201 = vld [vmem:[%s21 + $0x660] sm:$0xff]
        %v4202 = vld [vmem:[%s21 + $0x668] sm:$0xff]
        %v4203 = vld [vmem:[%s21 + $0x670] sm:$0xff]
        %v4204 = vld [vmem:[%s21 + $0x678] sm:$0xff]
        %v4205 = vld [vmem:[%s21 + $0x680] sm:$0xff]
        %v4206 = vld [vmem:[%s21 + $0x688] sm:$0xff]
        %v4207 = vld [vmem:[%s21 + $0x690] sm:$0xff]
        %v4208 = vld [vmem:[%s21 + $0x698] sm:$0xff]
        %v4209 = vld [vmem:[%s21 + $0x6a0] sm:$0xff]
        %v4210 = vld [vmem:[%s21 + $0x6a8] sm:$0xff]
        %v4211 = vld [vmem:[%s21 + $0x6b0] sm:$0xff]
        %v4212 = vld [vmem:[%s21 + $0x6b8] sm:$0xff]
        %v4213 = vld [vmem:[%s21 + $0x6c0] sm:$0xff]
        %v4214 = vld [vmem:[%s21 + $0x6c8] sm:$0xff]
        %v4215 = vld [vmem:[%s21 + $0x6d0] sm:$0xff]
        %v4216 = vld [vmem:[%s21 + $0x6d8] sm:$0xff]
        %v4217 = vld [vmem:[%s21 + $0x6e0] sm:$0xff]
        %v4218 = vld [vmem:[%s21 + $0x6e8] sm:$0xff]
        %v4219 = vld [vmem:[%s21 + $0x6f0] sm:$0xff]
        %v4220 = vld [vmem:[%s21 + $0x6f8] sm:$0xff]
        %v4221 = vld [vmem:[%s21 + $0x700] sm:$0xff]
        %v4222 = vld [vmem:[%s21 + $0x708] sm:$0xff]
        %v4223 = vld [vmem:[%s21 + $0x710] sm:$0xff]
        %v4224 = vld [vmem:[%s21 + $0x718] sm:$0xff]
        %v4225 = vld [vmem:[%s21 + $0x720] sm:$0xff]
        %v4226 = vld [vmem:[%s21 + $0x728] sm:$0xff]
        %v4227 = vld [vmem:[%s21 + $0x730] sm:$0xff]
        %v4228 = vld [vmem:[%s21 + $0x738] sm:$0xff]
        %v4229 = vld [vmem:[%s21 + $0x740] sm:$0xff]
        %v4230 = vld [vmem:[%s21 + $0x748] sm:$0xff]
        %v4231 = vld [vmem:[%s21 + $0x750] sm:$0xff]
        %v4232 = vld [vmem:[%s21 + $0x758] sm:$0xff]
        %v4233 = vld [vmem:[%s21 + $0x760] sm:$0xff]
        %v4234 = vld [vmem:[%s21 + $0x768] sm:$0xff]
        %v4235 = vld [vmem:[%s21 + $0x770] sm:$0xff]
        %v4236 = vld [vmem:[%s21 + $0x778] sm:$0xff]
        %v4237 = vld [vmem:[%s21 + $0x780] sm:$0xff]
        %v4238 = vld [vmem:[%s21 + $0x788] sm:$0xff]
        %v4239 = vld [vmem:[%s21 + $0x790] sm:$0xff]
        %v4240 = vld [vmem:[%s21 + $0x798] sm:$0xff]
        %v4241 = vld [vmem:[%s21 + $0x7a0] sm:$0xff]
        %v4242 = vld [vmem:[%s21 + $0x7a8] sm:$0xff]
        %v4243 = vld [vmem:[%s21 + $0x7b0] sm:$0xff]
        %v4244 = vld [vmem:[%s21 + $0x7b8] sm:$0xff]
        %v4245 = vld [vmem:[%s21 + $0x7c0] sm:$0xff]
        %v4246 = vld [vmem:[%s21 + $0x7c8] sm:$0xff]
        %v4247 = vld [vmem:[%s21 + $0x7d0] sm:$0xff]
        %v4248 = vld [vmem:[%s21 + $0x7d8] sm:$0xff]
        %v4249 = vld [vmem:[%s21 + $0x7e0] sm:$0xff]
        %v4250 = vld [vmem:[%s21 + $0x7e8] sm:$0xff]
        %v4251 = vld [vmem:[%s21 + $0x7f0] sm:$0xff]
        %v4252 = vld [vmem:[%s21 + $0x7f8] sm:$0xff]
        %4253 = vmatprep.subr.mxu0 %v4126
        %4254 = vmatpush1.msra.mxu0 %v4125
        %4255 = vmatprep.subr.mxu0 %v4130
        %4256 = vmatpush1.msra.mxu0 %v4129
        %4257 = vmatprep.subr.mxu0 %v4134
        %4258 = vmatpush1.msra.mxu0 %v4133
        %4259 = vmatprep.subr.mxu0 %v4138
        %4260 = vmatpush1.msra.mxu0 %v4137
        %4261 = vmatprep.subr.mxu0 %v4142
        %4262 = vmatpush1.msra.mxu0 %v4141
        %4263 = vmatprep.subr.mxu0 %v4146
        %4264 = vmatpush1.msra.mxu0 %v4145
        %4265 = vmatprep.subr.mxu0 %v4150
        %4266 = vmatpush1.msra.mxu0 %v4149
        %4267 = vmatprep.subr.mxu0 %v4154
        %4268 = vmatpush1.msra.mxu0 %v4153
        %4269 = vmatprep.subr.mxu0 %v4158
        %4270 = vmatpush1.msra.mxu0 %v4157
        %4271 = vmatprep.subr.mxu0 %v4162
        %4272 = vmatpush1.msra.mxu0 %v4161
        %4273 = vmatprep.subr.mxu0 %v4166
        %4274 = vmatpush1.msra.mxu0 %v4165
        %4275 = vmatprep.subr.mxu0 %v4170
        %4276 = vmatpush1.msra.mxu0 %v4169
        %4277 = vmatprep.subr.mxu0 %v4174
        %4278 = vmatpush1.msra.mxu0 %v4173
        %4279 = vmatprep.subr.mxu0 %v4178
        %4280 = vmatpush1.msra.mxu0 %v4177
        %4281 = vmatprep.subr.mxu0 %v4182
        %4282 = vmatpush1.msra.mxu0 %v4181
        %4283 = vmatprep.subr.mxu0 %v4186
        %4284 = vmatpush1.msra.mxu0 %v4185
        %4285 = vmatprep.subr.mxu0 %v4190
        %4286 = vmatpush1.msra.mxu0 %v4189
        %4287 = vmatprep.subr.mxu0 %v4194
        %4288 = vmatpush1.msra.mxu0 %v4193
        %4289 = vmatprep.subr.mxu0 %v4198
        %4290 = vmatpush1.msra.mxu0 %v4197
        %4291 = vmatprep.subr.mxu0 %v4202
        %4292 = vmatpush1.msra.mxu0 %v4201
        %4293 = vmatprep.subr.mxu0 %v4206
        %4294 = vmatpush1.msra.mxu0 %v4205
        %4295 = vmatprep.subr.mxu0 %v4210
        %4296 = vmatpush1.msra.mxu0 %v4209
        %4297 = vmatprep.subr.mxu0 %v4214
        %4298 = vmatpush1.msra.mxu0 %v4213
        %4299 = vmatprep.subr.mxu0 %v4218
        %4300 = vmatpush1.msra.mxu0 %v4217
        %4301 = vmatprep.subr.mxu0 %v4222
        %4302 = vmatpush1.msra.mxu0 %v4221
        %4303 = vmatprep.subr.mxu0 %v4226
        %4304 = vmatpush1.msra.mxu0 %v4225
        %4305 = vmatprep.subr.mxu0 %v4230
        %4306 = vmatpush1.msra.mxu0 %v4229
        %4307 = vmatprep.subr.mxu0 %v4234
        %4308 = vmatpush1.msra.mxu0 %v4233
        %4309 = vmatprep.subr.mxu0 %v4238
        %4310 = vmatpush1.msra.mxu0 %v4237
        %4311 = vmatprep.subr.mxu0 %v4242
        %4312 = vmatpush1.msra.mxu0 %v4241
        %4313 = vmatprep.subr.mxu0 %v4246
        %4314 = vmatpush1.msra.mxu0 %v4245
        %4315 = vmatprep.subr.mxu0 %v4250
        %4316 = vmatpush1.msra.mxu0 %v4249
        %4317 = vmatprep.mubr.f32.mxu0 %v4124
        %4318 = vmatmul.mubr.f32.gmra.mrb[0].mxu0 %v4123
        %v4319 = vpop.f32.mrb[0].mxu0
        %v4320 = vadd.f32 0.0, %v4319
        %v4321 = vpop.f32.mrb[0].mxu0
        %v4322 = vadd.f32 0.0, %v4321
        %4323 = vdwg.mxu0
        %4324 = vmatprep.subr.mxu0 %v4128
        %4325 = vmatpush1.msra.mxu0 %v4127
        %4326 = vmatprep.subr.mxu0 %v4132
        %4327 = vmatpush1.msra.mxu0 %v4131
        %4328 = vmatprep.subr.mxu0 %v4136
        %4329 = vmatpush1.msra.mxu0 %v4135
        %4330 = vmatprep.subr.mxu0 %v4140
        %4331 = vmatpush1.msra.mxu0 %v4139
        %4332 = vmatprep.subr.mxu0 %v4144
        %4333 = vmatpush1.msra.mxu0 %v4143
        %4334 = vmatprep.subr.mxu0 %v4148
        %4335 = vmatpush1.msra.mxu0 %v4147
        %4336 = vmatprep.subr.mxu0 %v4152
        %4337 = vmatpush1.msra.mxu0 %v4151
        %4338 = vmatprep.subr.mxu0 %v4156
        %4339 = vmatpush1.msra.mxu0 %v4155
        %4340 = vmatprep.subr.mxu0 %v4160
        %4341 = vmatpush1.msra.mxu0 %v4159
        %4342 = vmatprep.subr.mxu0 %v4164
        %4343 = vmatpush1.msra.mxu0 %v4163
        %4344 = vmatprep.subr.mxu0 %v4168
        %4345 = vmatpush1.msra.mxu0 %v4167
        %4346 = vmatprep.subr.mxu0 %v4172
        %4347 = vmatpush1.msra.mxu0 %v4171
        %4348 = vmatprep.subr.mxu0 %v4176
        %4349 = vmatpush1.msra.mxu0 %v4175
        %4350 = vmatprep.subr.mxu0 %v4180
        %4351 = vmatpush1.msra.mxu0 %v4179
        %4352 = vmatprep.subr.mxu0 %v4184
        %4353 = vmatpush1.msra.mxu0 %v4183
        %4354 = vmatprep.subr.mxu0 %v4188
        %4355 = vmatpush1.msra.mxu0 %v4187
        %4356 = vmatprep.subr.mxu0 %v4192
        %4357 = vmatpush1.msra.mxu0 %v4191
        %4358 = vmatprep.subr.mxu0 %v4196
        %4359 = vmatpush1.msra.mxu0 %v4195
        %4360 = vmatprep.subr.mxu0 %v4200
        %4361 = vmatpush1.msra.mxu0 %v4199
        %4362 = vmatprep.subr.mxu0 %v4204
        %4363 = vmatpush1.msra.mxu0 %v4203
        %4364 = vmatprep.subr.mxu0 %v4208
        %4365 = vmatpush1.msra.mxu0 %v4207
        %4366 = vmatprep.subr.mxu0 %v4212
        %4367 = vmatpush1.msra.mxu0 %v4211
        %4368 = vmatprep.subr.mxu0 %v4216
        %4369 = vmatpush1.msra.mxu0 %v4215
        %4370 = vmatprep.subr.mxu0 %v4220
        %4371 = vmatpush1.msra.mxu0 %v4219
        %4372 = vmatprep.subr.mxu0 %v4224
        %4373 = vmatpush1.msra.mxu0 %v4223
        %4374 = vmatprep.subr.mxu0 %v4228
        %4375 = vmatpush1.msra.mxu0 %v4227
        %4376 = vmatprep.subr.mxu0 %v4232
        %4377 = vmatpush1.msra.mxu0 %v4231
        %4378 = vmatprep.subr.mxu0 %v4236
        %4379 = vmatpush1.msra.mxu0 %v4235
        %4380 = vmatprep.subr.mxu0 %v4240
        %4381 = vmatpush1.msra.mxu0 %v4239
        %4382 = vmatprep.subr.mxu0 %v4244
        %4383 = vmatpush1.msra.mxu0 %v4243
        %4384 = vmatprep.subr.mxu0 %v4248
        %4385 = vmatpush1.msra.mxu0 %v4247
        %4386 = vmatprep.subr.mxu0 %v4252
        %4387 = vmatpush1.msra.mxu0 %v4251
        %4388 = vmatprep.mubr.f32.mxu0 %v4124
        %4389 = vmatmul.mubr.f32.gmra.mrb[0].mxu0 %v4123
        %v4390 = vpop.f32.mrb[0].mxu0
        %v4391 = vadd.f32 0.0, %v4390
        %v4392 = vpop.f32.mrb[0].mxu0
        %v4393 = vadd.f32 0.0, %v4392
        %4394 = vdwg.mxu0
        %v4399 = vcombine.low %v4320, %v4322
        %v4400 = vcombine.low %v4391, %v4393
        %v4402 = vunpack.c.l.s4 1966171168
        %v4403 = vunpack.c.0.s8 %v4402
        %v4404 = vlaneseq
        %v4405 = vshrl.u32 %v4404, 7
        %v4406 = vsub.s32 %v4403, %v4405
        %v4407 = vrot.slane %v4399, %v4406
        %v4409 = vunpack.c.l.s4 1966171168
        %v4410 = vunpack.c.0.s8 %v4409
        %v4411 = vlaneseq
        %v4412 = vshrl.u32 %v4411, 7
        %v4413 = vsub.s32 %v4410, %v4412
        %v4414 = vrot.slane %v4400, %v4413
        %v4415 = vcombine.low %v4407, %v4414
        %v4417 = vunpack.c.l.s4 1966171168
        %v4418 = vunpack.c.0.s8 %v4417
        %v4419 = vlaneseq
        %v4420 = vshrl.u32 %v4419, 7
        %v4421 = vsub.s32 %v4418, %v4420
        %v4422 = vrot.slane %v4415, %v4421
        %v4424 = vadd.f32 %v4102, %v4422
        %v4425 = vsel %vm3785, %v3782, 0.0
        %v4426 = vrot.slane %v4425, 4
        %v4427 = vadd.f32 %v4425, %v4426
        %v4428 = vrot.slane %v4427, 2
        %v4429 = vadd.f32 %v4427, %v4428
        %v4430 = vrot.slane %v4429, 1
        %v4431 = vadd.f32 %v4429, %v4430
        %v4432 = vsel %vm3785, %v3783, 0.0
        %v4433 = vrot.slane %v4432, 4
        %v4434 = vadd.f32 %v4432, %v4433
        %v4435 = vrot.slane %v4434, 2
        %v4436 = vadd.f32 %v4434, %v4435
        %v4437 = vrot.slane %v4436, 1
        %v4438 = vadd.f32 %v4436, %v4437
        %v4439 = vmul.f32 %v4431, %v3800
        %v4440 = vmul.f32 %v4438, %v3800
        %v4441 = vld [vmem:[%s21 + $0x800] sm:$0xff]
        %v4442 = vld [vmem:[%s21 + $0x808] sm:$0xff]
        %v4443 = vld [vmem:[%s21 + $0x810] sm:$0xff]
        %v4444 = vld [vmem:[%s21 + $0x818] sm:$0xff]
        %v4445 = vld [vmem:[%s21 + $0x820] sm:$0xff]
        %v4446 = vld [vmem:[%s21 + $0x828] sm:$0xff]
        %v4447 = vld [vmem:[%s21 + $0x830] sm:$0xff]
        %v4448 = vld [vmem:[%s21 + $0x838] sm:$0xff]
        %v4449 = vld [vmem:[%s21 + $0x840] sm:$0xff]
        %v4450 = vld [vmem:[%s21 + $0x848] sm:$0xff]
        %v4451 = vld [vmem:[%s21 + $0x850] sm:$0xff]
        %v4452 = vld [vmem:[%s21 + $0x858] sm:$0xff]
        %v4453 = vld [vmem:[%s21 + $0x860] sm:$0xff]
        %v4454 = vld [vmem:[%s21 + $0x868] sm:$0xff]
        %v4455 = vld [vmem:[%s21 + $0x870] sm:$0xff]
        %v4456 = vld [vmem:[%s21 + $0x878] sm:$0xff]
        %v4457 = vld [vmem:[%s21 + $0x880] sm:$0xff]
        %v4458 = vld [vmem:[%s21 + $0x888] sm:$0xff]
        %v4459 = vld [vmem:[%s21 + $0x890] sm:$0xff]
        %v4460 = vld [vmem:[%s21 + $0x898] sm:$0xff]
        %v4461 = vld [vmem:[%s21 + $0x8a0] sm:$0xff]
        %v4462 = vld [vmem:[%s21 + $0x8a8] sm:$0xff]
        %v4463 = vld [vmem:[%s21 + $0x8b0] sm:$0xff]
        %v4464 = vld [vmem:[%s21 + $0x8b8] sm:$0xff]
        %v4465 = vld [vmem:[%s21 + $0x8c0] sm:$0xff]
        %v4466 = vld [vmem:[%s21 + $0x8c8] sm:$0xff]
        %v4467 = vld [vmem:[%s21 + $0x8d0] sm:$0xff]
        %v4468 = vld [vmem:[%s21 + $0x8d8] sm:$0xff]
        %v4469 = vld [vmem:[%s21 + $0x8e0] sm:$0xff]
        %v4470 = vld [vmem:[%s21 + $0x8e8] sm:$0xff]
        %v4471 = vld [vmem:[%s21 + $0x8f0] sm:$0xff]
        %v4472 = vld [vmem:[%s21 + $0x8f8] sm:$0xff]
        %v4473 = vld [vmem:[%s21 + $0x900] sm:$0xff]
        %v4474 = vld [vmem:[%s21 + $0x908] sm:$0xff]
        %v4475 = vld [vmem:[%s21 + $0x910] sm:$0xff]
        %v4476 = vld [vmem:[%s21 + $0x918] sm:$0xff]
        %v4477 = vld [vmem:[%s21 + $0x920] sm:$0xff]
        %v4478 = vld [vmem:[%s21 + $0x928] sm:$0xff]
        %v4479 = vld [vmem:[%s21 + $0x930] sm:$0xff]
        %v4480 = vld [vmem:[%s21 + $0x938] sm:$0xff]
        %v4481 = vld [vmem:[%s21 + $0x940] sm:$0xff]
        %v4482 = vld [vmem:[%s21 + $0x948] sm:$0xff]
        %v4483 = vld [vmem:[%s21 + $0x950] sm:$0xff]
        %v4484 = vld [vmem:[%s21 + $0x958] sm:$0xff]
        %v4485 = vld [vmem:[%s21 + $0x960] sm:$0xff]
        %v4486 = vld [vmem:[%s21 + $0x968] sm:$0xff]
        %v4487 = vld [vmem:[%s21 + $0x970] sm:$0xff]
        %v4488 = vld [vmem:[%s21 + $0x978] sm:$0xff]
        %v4489 = vld [vmem:[%s21 + $0x980] sm:$0xff]
        %v4490 = vld [vmem:[%s21 + $0x988] sm:$0xff]
        %v4491 = vld [vmem:[%s21 + $0x990] sm:$0xff]
        %v4492 = vld [vmem:[%s21 + $0x998] sm:$0xff]
        %v4493 = vld [vmem:[%s21 + $0x9a0] sm:$0xff]
        %v4494 = vld [vmem:[%s21 + $0x9a8] sm:$0xff]
        %v4495 = vld [vmem:[%s21 + $0x9b0] sm:$0xff]
        %v4496 = vld [vmem:[%s21 + $0x9b8] sm:$0xff]
        %v4497 = vld [vmem:[%s21 + $0x9c0] sm:$0xff]
        %v4498 = vld [vmem:[%s21 + $0x9c8] sm:$0xff]
        %v4499 = vld [vmem:[%s21 + $0x9d0] sm:$0xff]
        %v4500 = vld [vmem:[%s21 + $0x9d8] sm:$0xff]
        %v4501 = vld [vmem:[%s21 + $0x9e0] sm:$0xff]
        %v4502 = vld [vmem:[%s21 + $0x9e8] sm:$0xff]
        %v4503 = vld [vmem:[%s21 + $0x9f0] sm:$0xff]
        %v4504 = vld [vmem:[%s21 + $0x9f8] sm:$0xff]
        %v4505 = vld [vmem:[%s21 + $0xa00] sm:$0xff]
        %v4506 = vld [vmem:[%s21 + $0xa08] sm:$0xff]
        %v4507 = vld [vmem:[%s21 + $0xa10] sm:$0xff]
        %v4508 = vld [vmem:[%s21 + $0xa18] sm:$0xff]
        %v4509 = vld [vmem:[%s21 + $0xa20] sm:$0xff]
        %v4510 = vld [vmem:[%s21 + $0xa28] sm:$0xff]
        %v4511 = vld [vmem:[%s21 + $0xa30] sm:$0xff]
        %v4512 = vld [vmem:[%s21 + $0xa38] sm:$0xff]
        %v4513 = vld [vmem:[%s21 + $0xa40] sm:$0xff]
        %v4514 = vld [vmem:[%s21 + $0xa48] sm:$0xff]
        %v4515 = vld [vmem:[%s21 + $0xa50] sm:$0xff]
        %v4516 = vld [vmem:[%s21 + $0xa58] sm:$0xff]
        %v4517 = vld [vmem:[%s21 + $0xa60] sm:$0xff]
        %v4518 = vld [vmem:[%s21 + $0xa68] sm:$0xff]
        %v4519 = vld [vmem:[%s21 + $0xa70] sm:$0xff]
        %v4520 = vld [vmem:[%s21 + $0xa78] sm:$0xff]
        %v4521 = vld [vmem:[%s21 + $0xa80] sm:$0xff]
        %v4522 = vld [vmem:[%s21 + $0xa88] sm:$0xff]
        %v4523 = vld [vmem:[%s21 + $0xa90] sm:$0xff]
        %v4524 = vld [vmem:[%s21 + $0xa98] sm:$0xff]
        %v4525 = vld [vmem:[%s21 + $0xaa0] sm:$0xff]
        %v4526 = vld [vmem:[%s21 + $0xaa8] sm:$0xff]
        %v4527 = vld [vmem:[%s21 + $0xab0] sm:$0xff]
        %v4528 = vld [vmem:[%s21 + $0xab8] sm:$0xff]
        %v4529 = vld [vmem:[%s21 + $0xac0] sm:$0xff]
        %v4530 = vld [vmem:[%s21 + $0xac8] sm:$0xff]
        %v4531 = vld [vmem:[%s21 + $0xad0] sm:$0xff]
        %v4532 = vld [vmem:[%s21 + $0xad8] sm:$0xff]
        %v4533 = vld [vmem:[%s21 + $0xae0] sm:$0xff]
        %v4534 = vld [vmem:[%s21 + $0xae8] sm:$0xff]
        %v4535 = vld [vmem:[%s21 + $0xaf0] sm:$0xff]
        %v4536 = vld [vmem:[%s21 + $0xaf8] sm:$0xff]
        %v4537 = vld [vmem:[%s21 + $0xb00] sm:$0xff]
        %v4538 = vld [vmem:[%s21 + $0xb08] sm:$0xff]
        %v4539 = vld [vmem:[%s21 + $0xb10] sm:$0xff]
        %v4540 = vld [vmem:[%s21 + $0xb18] sm:$0xff]
        %v4541 = vld [vmem:[%s21 + $0xb20] sm:$0xff]
        %v4542 = vld [vmem:[%s21 + $0xb28] sm:$0xff]
        %v4543 = vld [vmem:[%s21 + $0xb30] sm:$0xff]
        %v4544 = vld [vmem:[%s21 + $0xb38] sm:$0xff]
        %v4545 = vld [vmem:[%s21 + $0xb40] sm:$0xff]
        %v4546 = vld [vmem:[%s21 + $0xb48] sm:$0xff]
        %v4547 = vld [vmem:[%s21 + $0xb50] sm:$0xff]
        %v4548 = vld [vmem:[%s21 + $0xb58] sm:$0xff]
        %v4549 = vld [vmem:[%s21 + $0xb60] sm:$0xff]
        %v4550 = vld [vmem:[%s21 + $0xb68] sm:$0xff]
        %v4551 = vld [vmem:[%s21 + $0xb70] sm:$0xff]
        %v4552 = vld [vmem:[%s21 + $0xb78] sm:$0xff]
        %v4553 = vld [vmem:[%s21 + $0xb80] sm:$0xff]
        %v4554 = vld [vmem:[%s21 + $0xb88] sm:$0xff]
        %v4555 = vld [vmem:[%s21 + $0xb90] sm:$0xff]
        %v4556 = vld [vmem:[%s21 + $0xb98] sm:$0xff]
        %v4557 = vld [vmem:[%s21 + $0xba0] sm:$0xff]
        %v4558 = vld [vmem:[%s21 + $0xba8] sm:$0xff]
        %v4559 = vld [vmem:[%s21 + $0xbb0] sm:$0xff]
        %v4560 = vld [vmem:[%s21 + $0xbb8] sm:$0xff]
        %v4561 = vld [vmem:[%s21 + $0xbc0] sm:$0xff]
        %v4562 = vld [vmem:[%s21 + $0xbc8] sm:$0xff]
        %v4563 = vld [vmem:[%s21 + $0xbd0] sm:$0xff]
        %v4564 = vld [vmem:[%s21 + $0xbd8] sm:$0xff]
        %v4565 = vld [vmem:[%s21 + $0xbe0] sm:$0xff]
        %v4566 = vld [vmem:[%s21 + $0xbe8] sm:$0xff]
        %v4567 = vld [vmem:[%s21 + $0xbf0] sm:$0xff]
        %v4568 = vld [vmem:[%s21 + $0xbf8] sm:$0xff]
        %4569 = vmatprep.subr.mxu0 %v4442
        %4570 = vmatpush1.msra.mxu0 %v4441
        %4571 = vmatprep.subr.mxu0 %v4446
        %4572 = vmatpush1.msra.mxu0 %v4445
        %4573 = vmatprep.subr.mxu0 %v4450
        %4574 = vmatpush1.msra.mxu0 %v4449
        %4575 = vmatprep.subr.mxu0 %v4454
        %4576 = vmatpush1.msra.mxu0 %v4453
        %4577 = vmatprep.subr.mxu0 %v4458
        %4578 = vmatpush1.msra.mxu0 %v4457
        %4579 = vmatprep.subr.mxu0 %v4462
        %4580 = vmatpush1.msra.mxu0 %v4461
        %4581 = vmatprep.subr.mxu0 %v4466
        %4582 = vmatpush1.msra.mxu0 %v4465
        %4583 = vmatprep.subr.mxu0 %v4470
        %4584 = vmatpush1.msra.mxu0 %v4469
        %4585 = vmatprep.subr.mxu0 %v4474
        %4586 = vmatpush1.msra.mxu0 %v4473
        %4587 = vmatprep.subr.mxu0 %v4478
        %4588 = vmatpush1.msra.mxu0 %v4477
        %4589 = vmatprep.subr.mxu0 %v4482
        %4590 = vmatpush1.msra.mxu0 %v4481
        %4591 = vmatprep.subr.mxu0 %v4486
        %4592 = vmatpush1.msra.mxu0 %v4485
        %4593 = vmatprep.subr.mxu0 %v4490
        %4594 = vmatpush1.msra.mxu0 %v4489
        %4595 = vmatprep.subr.mxu0 %v4494
        %4596 = vmatpush1.msra.mxu0 %v4493
        %4597 = vmatprep.subr.mxu0 %v4498
        %4598 = vmatpush1.msra.mxu0 %v4497
        %4599 = vmatprep.subr.mxu0 %v4502
        %4600 = vmatpush1.msra.mxu0 %v4501
        %4601 = vmatprep.subr.mxu0 %v4506
        %4602 = vmatpush1.msra.mxu0 %v4505
        %4603 = vmatprep.subr.mxu0 %v4510
        %4604 = vmatpush1.msra.mxu0 %v4509
        %4605 = vmatprep.subr.mxu0 %v4514
        %4606 = vmatpush1.msra.mxu0 %v4513
        %4607 = vmatprep.subr.mxu0 %v4518
        %4608 = vmatpush1.msra.mxu0 %v4517
        %4609 = vmatprep.subr.mxu0 %v4522
        %4610 = vmatpush1.msra.mxu0 %v4521
        %4611 = vmatprep.subr.mxu0 %v4526
        %4612 = vmatpush1.msra.mxu0 %v4525
        %4613 = vmatprep.subr.mxu0 %v4530
        %4614 = vmatpush1.msra.mxu0 %v4529
        %4615 = vmatprep.subr.mxu0 %v4534
        %4616 = vmatpush1.msra.mxu0 %v4533
        %4617 = vmatprep.subr.mxu0 %v4538
        %4618 = vmatpush1.msra.mxu0 %v4537
        %4619 = vmatprep.subr.mxu0 %v4542
        %4620 = vmatpush1.msra.mxu0 %v4541
        %4621 = vmatprep.subr.mxu0 %v4546
        %4622 = vmatpush1.msra.mxu0 %v4545
        %4623 = vmatprep.subr.mxu0 %v4550
        %4624 = vmatpush1.msra.mxu0 %v4549
        %4625 = vmatprep.subr.mxu0 %v4554
        %4626 = vmatpush1.msra.mxu0 %v4553
        %4627 = vmatprep.subr.mxu0 %v4558
        %4628 = vmatpush1.msra.mxu0 %v4557
        %4629 = vmatprep.subr.mxu0 %v4562
        %4630 = vmatpush1.msra.mxu0 %v4561
        %4631 = vmatprep.subr.mxu0 %v4566
        %4632 = vmatpush1.msra.mxu0 %v4565
        %4633 = vmatprep.mubr.f32.mxu0 %v4440
        %4634 = vmatmul.mubr.f32.gmra.mrb[0].mxu0 %v4439
        %v4635 = vpop.f32.mrb[0].mxu0
        %v4636 = vadd.f32 0.0, %v4635
        %v4637 = vpop.f32.mrb[0].mxu0
        %v4638 = vadd.f32 0.0, %v4637
        %4639 = vdwg.mxu0
        %4640 = vmatprep.subr.mxu0 %v4444
        %4641 = vmatpush1.msra.mxu0 %v4443
        %4642 = vmatprep.subr.mxu0 %v4448
        %4643 = vmatpush1.msra.mxu0 %v4447
        %4644 = vmatprep.subr.mxu0 %v4452
        %4645 = vmatpush1.msra.mxu0 %v4451
        %4646 = vmatprep.subr.mxu0 %v4456
        %4647 = vmatpush1.msra.mxu0 %v4455
        %4648 = vmatprep.subr.mxu0 %v4460
        %4649 = vmatpush1.msra.mxu0 %v4459
        %4650 = vmatprep.subr.mxu0 %v4464
        %4651 = vmatpush1.msra.mxu0 %v4463
        %4652 = vmatprep.subr.mxu0 %v4468
        %4653 = vmatpush1.msra.mxu0 %v4467
        %4654 = vmatprep.subr.mxu0 %v4472
        %4655 = vmatpush1.msra.mxu0 %v4471
        %4656 = vmatprep.subr.mxu0 %v4476
        %4657 = vmatpush1.msra.mxu0 %v4475
        %4658 = vmatprep.subr.mxu0 %v4480
        %4659 = vmatpush1.msra.mxu0 %v4479
        %4660 = vmatprep.subr.mxu0 %v4484
        %4661 = vmatpush1.msra.mxu0 %v4483
        %4662 = vmatprep.subr.mxu0 %v4488
        %4663 = vmatpush1.msra.mxu0 %v4487
        %4664 = vmatprep.subr.mxu0 %v4492
        %4665 = vmatpush1.msra.mxu0 %v4491
        %4666 = vmatprep.subr.mxu0 %v4496
        %4667 = vmatpush1.msra.mxu0 %v4495
        %4668 = vmatprep.subr.mxu0 %v4500
        %4669 = vmatpush1.msra.mxu0 %v4499
        %4670 = vmatprep.subr.mxu0 %v4504
        %4671 = vmatpush1.msra.mxu0 %v4503
        %4672 = vmatprep.subr.mxu0 %v4508
        %4673 = vmatpush1.msra.mxu0 %v4507
        %4674 = vmatprep.subr.mxu0 %v4512
        %4675 = vmatpush1.msra.mxu0 %v4511
        %4676 = vmatprep.subr.mxu0 %v4516
        %4677 = vmatpush1.msra.mxu0 %v4515
        %4678 = vmatprep.subr.mxu0 %v4520
        %4679 = vmatpush1.msra.mxu0 %v4519
        %4680 = vmatprep.subr.mxu0 %v4524
        %4681 = vmatpush1.msra.mxu0 %v4523
        %4682 = vmatprep.subr.mxu0 %v4528
        %4683 = vmatpush1.msra.mxu0 %v4527
        %4684 = vmatprep.subr.mxu0 %v4532
        %4685 = vmatpush1.msra.mxu0 %v4531
        %4686 = vmatprep.subr.mxu0 %v4536
        %4687 = vmatpush1.msra.mxu0 %v4535
        %4688 = vmatprep.subr.mxu0 %v4540
        %4689 = vmatpush1.msra.mxu0 %v4539
        %4690 = vmatprep.subr.mxu0 %v4544
        %4691 = vmatpush1.msra.mxu0 %v4543
        %4692 = vmatprep.subr.mxu0 %v4548
        %4693 = vmatpush1.msra.mxu0 %v4547
        %4694 = vmatprep.subr.mxu0 %v4552
        %4695 = vmatpush1.msra.mxu0 %v4551
        %4696 = vmatprep.subr.mxu0 %v4556
        %4697 = vmatpush1.msra.mxu0 %v4555
        %4698 = vmatprep.subr.mxu0 %v4560
        %4699 = vmatpush1.msra.mxu0 %v4559
        %4700 = vmatprep.subr.mxu0 %v4564
        %4701 = vmatpush1.msra.mxu0 %v4563
        %4702 = vmatprep.subr.mxu0 %v4568
        %4703 = vmatpush1.msra.mxu0 %v4567
        %4704 = vmatprep.mubr.f32.mxu0 %v4440
        %4705 = vmatmul.mubr.f32.gmra.mrb[0].mxu0 %v4439
        %v4706 = vpop.f32.mrb[0].mxu0
        %v4707 = vadd.f32 0.0, %v4706
        %v4708 = vpop.f32.mrb[0].mxu0
        %v4709 = vadd.f32 0.0, %v4708
        %4710 = vdwg.mxu0
        %v4715 = vcombine.low %v4636, %v4638
        %v4716 = vcombine.low %v4707, %v4709
        %v4718 = vunpack.c.l.s4 1966171168
        %v4719 = vunpack.c.0.s8 %v4718
        %v4720 = vlaneseq
        %v4721 = vshrl.u32 %v4720, 7
        %v4722 = vsub.s32 %v4719, %v4721
        %v4723 = vrot.slane %v4715, %v4722
        %v4725 = vunpack.c.l.s4 1966171168
        %v4726 = vunpack.c.0.s8 %v4725
        %v4727 = vlaneseq
        %v4728 = vshrl.u32 %v4727, 7
        %v4729 = vsub.s32 %v4726, %v4728
        %v4730 = vrot.slane %v4716, %v4729
        %v4731 = vcombine.low %v4723, %v4730
        %v4733 = vunpack.c.l.s4 1966171168
        %v4734 = vunpack.c.0.s8 %v4733
        %v4735 = vlaneseq
        %v4736 = vshrl.u32 %v4735, 7
        %v4737 = vsub.s32 %v4734, %v4736
        %v4738 = vrot.slane %v4731, %v4737
        %v4740 = vadd.f32 %v4424, %v4738
        %v4743 = vrot.slane %v3782, 4
        %v4744 = vrot.slane %v3783, 4
        %v4747 = vsel %vm3785, %v4743, 0.0
        %v4748 = vrot.slane %v4747, 4
        %v4749 = vadd.f32 %v4747, %v4748
        %v4750 = vrot.slane %v4749, 2
        %v4751 = vadd.f32 %v4749, %v4750
        %v4752 = vrot.slane %v4751, 1
        %v4753 = vadd.f32 %v4751, %v4752
        %v4754 = vsel %vm3785, %v4744, 0.0
        %v4755 = vrot.slane %v4754, 4
        %v4756 = vadd.f32 %v4754, %v4755
        %v4757 = vrot.slane %v4756, 2
        %v4758 = vadd.f32 %v4756, %v4757
        %v4759 = vrot.slane %v4758, 1
        %v4760 = vadd.f32 %v4758, %v4759
        %v4761 = vmul.f32 %v4753, %v3800
        %v4762 = vmul.f32 %v4760, %v3800
        %v4763 = vld [vmem:[%s21 + $0xc00] sm:$0xff]
        %v4764 = vld [vmem:[%s21 + $0xc08] sm:$0xff]
        %v4765 = vld [vmem:[%s21 + $0xc10] sm:$0xff]
        %v4766 = vld [vmem:[%s21 + $0xc18] sm:$0xff]
        %v4767 = vld [vmem:[%s21 + $0xc20] sm:$0xff]
        %v4768 = vld [vmem:[%s21 + $0xc28] sm:$0xff]
        %v4769 = vld [vmem:[%s21 + $0xc30] sm:$0xff]
        %v4770 = vld [vmem:[%s21 + $0xc38] sm:$0xff]
        %v4771 = vld [vmem:[%s21 + $0xc40] sm:$0xff]
        %v4772 = vld [vmem:[%s21 + $0xc48] sm:$0xff]
        %v4773 = vld [vmem:[%s21 + $0xc50] sm:$0xff]
        %v4774 = vld [vmem:[%s21 + $0xc58] sm:$0xff]
        %v4775 = vld [vmem:[%s21 + $0xc60] sm:$0xff]
        %v4776 = vld [vmem:[%s21 + $0xc68] sm:$0xff]
        %v4777 = vld [vmem:[%s21 + $0xc70] sm:$0xff]
        %v4778 = vld [vmem:[%s21 + $0xc78] sm:$0xff]
        %v4779 = vld [vmem:[%s21 + $0xc80] sm:$0xff]
        %v4780 = vld [vmem:[%s21 + $0xc88] sm:$0xff]
        %v4781 = vld [vmem:[%s21 + $0xc90] sm:$0xff]
        %v4782 = vld [vmem:[%s21 + $0xc98] sm:$0xff]
        %v4783 = vld [vmem:[%s21 + $0xca0] sm:$0xff]
        %v4784 = vld [vmem:[%s21 + $0xca8] sm:$0xff]
        %v4785 = vld [vmem:[%s21 + $0xcb0] sm:$0xff]
        %v4786 = vld [vmem:[%s21 + $0xcb8] sm:$0xff]
        %v4787 = vld [vmem:[%s21 + $0xcc0] sm:$0xff]
        %v4788 = vld [vmem:[%s21 + $0xcc8] sm:$0xff]
        %v4789 = vld [vmem:[%s21 + $0xcd0] sm:$0xff]
        %v4790 = vld [vmem:[%s21 + $0xcd8] sm:$0xff]
        %v4791 = vld [vmem:[%s21 + $0xce0] sm:$0xff]
        %v4792 = vld [vmem:[%s21 + $0xce8] sm:$0xff]
        %v4793 = vld [vmem:[%s21 + $0xcf0] sm:$0xff]
        %v4794 = vld [vmem:[%s21 + $0xcf8] sm:$0xff]
        %v4795 = vld [vmem:[%s21 + $0xd00] sm:$0xff]
        %v4796 = vld [vmem:[%s21 + $0xd08] sm:$0xff]
        %v4797 = vld [vmem:[%s21 + $0xd10] sm:$0xff]
        %v4798 = vld [vmem:[%s21 + $0xd18] sm:$0xff]
        %v4799 = vld [vmem:[%s21 + $0xd20] sm:$0xff]
        %v4800 = vld [vmem:[%s21 + $0xd28] sm:$0xff]
        %v4801 = vld [vmem:[%s21 + $0xd30] sm:$0xff]
        %v4802 = vld [vmem:[%s21 + $0xd38] sm:$0xff]
        %v4803 = vld [vmem:[%s21 + $0xd40] sm:$0xff]
        %v4804 = vld [vmem:[%s21 + $0xd48] sm:$0xff]
        %v4805 = vld [vmem:[%s21 + $0xd50] sm:$0xff]
        %v4806 = vld [vmem:[%s21 + $0xd58] sm:$0xff]
        %v4807 = vld [vmem:[%s21 + $0xd60] sm:$0xff]
        %v4808 = vld [vmem:[%s21 + $0xd68] sm:$0xff]
        %v4809 = vld [vmem:[%s21 + $0xd70] sm:$0xff]
        %v4810 = vld [vmem:[%s21 + $0xd78] sm:$0xff]
        %v4811 = vld [vmem:[%s21 + $0xd80] sm:$0xff]
        %v4812 = vld [vmem:[%s21 + $0xd88] sm:$0xff]
        %v4813 = vld [vmem:[%s21 + $0xd90] sm:$0xff]
        %v4814 = vld [vmem:[%s21 + $0xd98] sm:$0xff]
        %v4815 = vld [vmem:[%s21 + $0xda0] sm:$0xff]
        %v4816 = vld [vmem:[%s21 + $0xda8] sm:$0xff]
        %v4817 = vld [vmem:[%s21 + $0xdb0] sm:$0xff]
        %v4818 = vld [vmem:[%s21 + $0xdb8] sm:$0xff]
        %v4819 = vld [vmem:[%s21 + $0xdc0] sm:$0xff]
        %v4820 = vld [vmem:[%s21 + $0xdc8] sm:$0xff]
        %v4821 = vld [vmem:[%s21 + $0xdd0] sm:$0xff]
        %v4822 = vld [vmem:[%s21 + $0xdd8] sm:$0xff]
        %v4823 = vld [vmem:[%s21 + $0xde0] sm:$0xff]
        %v4824 = vld [vmem:[%s21 + $0xde8] sm:$0xff]
        %v4825 = vld [vmem:[%s21 + $0xdf0] sm:$0xff]
        %v4826 = vld [vmem:[%s21 + $0xdf8] sm:$0xff]
        %v4827 = vld [vmem:[%s21 + $0xe00] sm:$0xff]
        %v4828 = vld [vmem:[%s21 + $0xe08] sm:$0xff]
        %v4829 = vld [vmem:[%s21 + $0xe10] sm:$0xff]
        %v4830 = vld [vmem:[%s21 + $0xe18] sm:$0xff]
        %v4831 = vld [vmem:[%s21 + $0xe20] sm:$0xff]
        %v4832 = vld [vmem:[%s21 + $0xe28] sm:$0xff]
        %v4833 = vld [vmem:[%s21 + $0xe30] sm:$0xff]
        %v4834 = vld [vmem:[%s21 + $0xe38] sm:$0xff]
        %v4835 = vld [vmem:[%s21 + $0xe40] sm:$0xff]
        %v4836 = vld [vmem:[%s21 + $0xe48] sm:$0xff]
        %v4837 = vld [vmem:[%s21 + $0xe50] sm:$0xff]
        %v4838 = vld [vmem:[%s21 + $0xe58] sm:$0xff]
        %v4839 = vld [vmem:[%s21 + $0xe60] sm:$0xff]
        %v4840 = vld [vmem:[%s21 + $0xe68] sm:$0xff]
        %v4841 = vld [vmem:[%s21 + $0xe70] sm:$0xff]
        %v4842 = vld [vmem:[%s21 + $0xe78] sm:$0xff]
        %v4843 = vld [vmem:[%s21 + $0xe80] sm:$0xff]
        %v4844 = vld [vmem:[%s21 + $0xe88] sm:$0xff]
        %v4845 = vld [vmem:[%s21 + $0xe90] sm:$0xff]
        %v4846 = vld [vmem:[%s21 + $0xe98] sm:$0xff]
        %v4847 = vld [vmem:[%s21 + $0xea0] sm:$0xff]
        %v4848 = vld [vmem:[%s21 + $0xea8] sm:$0xff]
        %v4849 = vld [vmem:[%s21 + $0xeb0] sm:$0xff]
        %v4850 = vld [vmem:[%s21 + $0xeb8] sm:$0xff]
        %v4851 = vld [vmem:[%s21 + $0xec0] sm:$0xff]
        %v4852 = vld [vmem:[%s21 + $0xec8] sm:$0xff]
        %v4853 = vld [vmem:[%s21 + $0xed0] sm:$0xff]
        %v4854 = vld [vmem:[%s21 + $0xed8] sm:$0xff]
        %v4855 = vld [vmem:[%s21 + $0xee0] sm:$0xff]
        %v4856 = vld [vmem:[%s21 + $0xee8] sm:$0xff]
        %v4857 = vld [vmem:[%s21 + $0xef0] sm:$0xff]
        %v4858 = vld [vmem:[%s21 + $0xef8] sm:$0xff]
        %v4859 = vld [vmem:[%s21 + $0xf00] sm:$0xff]
        %v4860 = vld [vmem:[%s21 + $0xf08] sm:$0xff]
        %v4861 = vld [vmem:[%s21 + $0xf10] sm:$0xff]
        %v4862 = vld [vmem:[%s21 + $0xf18] sm:$0xff]
        %v4863 = vld [vmem:[%s21 + $0xf20] sm:$0xff]
        %v4864 = vld [vmem:[%s21 + $0xf28] sm:$0xff]
        %v4865 = vld [vmem:[%s21 + $0xf30] sm:$0xff]
        %v4866 = vld [vmem:[%s21 + $0xf38] sm:$0xff]
        %v4867 = vld [vmem:[%s21 + $0xf40] sm:$0xff]
        %v4868 = vld [vmem:[%s21 + $0xf48] sm:$0xff]
        %v4869 = vld [vmem:[%s21 + $0xf50] sm:$0xff]
        %v4870 = vld [vmem:[%s21 + $0xf58] sm:$0xff]
        %v4871 = vld [vmem:[%s21 + $0xf60] sm:$0xff]
        %v4872 = vld [vmem:[%s21 + $0xf68] sm:$0xff]
        %v4873 = vld [vmem:[%s21 + $0xf70] sm:$0xff]
        %v4874 = vld [vmem:[%s21 + $0xf78] sm:$0xff]
        %v4875 = vld [vmem:[%s21 + $0xf80] sm:$0xff]
        %v4876 = vld [vmem:[%s21 + $0xf88] sm:$0xff]
        %v4877 = vld [vmem:[%s21 + $0xf90] sm:$0xff]
        %v4878 = vld [vmem:[%s21 + $0xf98] sm:$0xff]
        %v4879 = vld [vmem:[%s21 + $0xfa0] sm:$0xff]
        %v4880 = vld [vmem:[%s21 + $0xfa8] sm:$0xff]
        %v4881 = vld [vmem:[%s21 + $0xfb0] sm:$0xff]
        %v4882 = vld [vmem:[%s21 + $0xfb8] sm:$0xff]
        %v4883 = vld [vmem:[%s21 + $0xfc0] sm:$0xff]
        %v4884 = vld [vmem:[%s21 + $0xfc8] sm:$0xff]
        %v4885 = vld [vmem:[%s21 + $0xfd0] sm:$0xff]
        %v4886 = vld [vmem:[%s21 + $0xfd8] sm:$0xff]
        %v4887 = vld [vmem:[%s21 + $0xfe0] sm:$0xff]
        %v4888 = vld [vmem:[%s21 + $0xfe8] sm:$0xff]
        %v4889 = vld [vmem:[%s21 + $0xff0] sm:$0xff]
        %v4890 = vld [vmem:[%s21 + $0xff8] sm:$0xff]
        %4891 = vmatprep.subr.mxu0 %v4764
        %4892 = vmatpush1.msra.mxu0 %v4763
        %4893 = vmatprep.subr.mxu0 %v4768
        %4894 = vmatpush1.msra.mxu0 %v4767
        %4895 = vmatprep.subr.mxu0 %v4772
        %4896 = vmatpush1.msra.mxu0 %v4771
        %4897 = vmatprep.subr.mxu0 %v4776
        %4898 = vmatpush1.msra.mxu0 %v4775
        %4899 = vmatprep.subr.mxu0 %v4780
        %4900 = vmatpush1.msra.mxu0 %v4779
        %4901 = vmatprep.subr.mxu0 %v4784
        %4902 = vmatpush1.msra.mxu0 %v4783
        %4903 = vmatprep.subr.mxu0 %v4788
        %4904 = vmatpush1.msra.mxu0 %v4787
        %4905 = vmatprep.subr.mxu0 %v4792
        %4906 = vmatpush1.msra.mxu0 %v4791
        %4907 = vmatprep.subr.mxu0 %v4796
        %4908 = vmatpush1.msra.mxu0 %v4795
        %4909 = vmatprep.subr.mxu0 %v4800
        %4910 = vmatpush1.msra.mxu0 %v4799
        %4911 = vmatprep.subr.mxu0 %v4804
        %4912 = vmatpush1.msra.mxu0 %v4803
        %4913 = vmatprep.subr.mxu0 %v4808
        %4914 = vmatpush1.msra.mxu0 %v4807
        %4915 = vmatprep.subr.mxu0 %v4812
        %4916 = vmatpush1.msra.mxu0 %v4811
        %4917 = vmatprep.subr.mxu0 %v4816
        %4918 = vmatpush1.msra.mxu0 %v4815
        %4919 = vmatprep.subr.mxu0 %v4820
        %4920 = vmatpush1.msra.mxu0 %v4819
        %4921 = vmatprep.subr.mxu0 %v4824
        %4922 = vmatpush1.msra.mxu0 %v4823
        %4923 = vmatprep.subr.mxu0 %v4828
        %4924 = vmatpush1.msra.mxu0 %v4827
        %4925 = vmatprep.subr.mxu0 %v4832
        %4926 = vmatpush1.msra.mxu0 %v4831
        %4927 = vmatprep.subr.mxu0 %v4836
        %4928 = vmatpush1.msra.mxu0 %v4835
        %4929 = vmatprep.subr.mxu0 %v4840
        %4930 = vmatpush1.msra.mxu0 %v4839
        %4931 = vmatprep.subr.mxu0 %v4844
        %4932 = vmatpush1.msra.mxu0 %v4843
        %4933 = vmatprep.subr.mxu0 %v4848
        %4934 = vmatpush1.msra.mxu0 %v4847
        %4935 = vmatprep.subr.mxu0 %v4852
        %4936 = vmatpush1.msra.mxu0 %v4851
        %4937 = vmatprep.subr.mxu0 %v4856
        %4938 = vmatpush1.msra.mxu0 %v4855
        %4939 = vmatprep.subr.mxu0 %v4860
        %4940 = vmatpush1.msra.mxu0 %v4859
        %4941 = vmatprep.subr.mxu0 %v4864
        %4942 = vmatpush1.msra.mxu0 %v4863
        %4943 = vmatprep.subr.mxu0 %v4868
        %4944 = vmatpush1.msra.mxu0 %v4867
        %4945 = vmatprep.subr.mxu0 %v4872
        %4946 = vmatpush1.msra.mxu0 %v4871
        %4947 = vmatprep.subr.mxu0 %v4876
        %4948 = vmatpush1.msra.mxu0 %v4875
        %4949 = vmatprep.subr.mxu0 %v4880
        %4950 = vmatpush1.msra.mxu0 %v4879
        %4951 = vmatprep.subr.mxu0 %v4884
        %4952 = vmatpush1.msra.mxu0 %v4883
        %4953 = vmatprep.subr.mxu0 %v4888
        %4954 = vmatpush1.msra.mxu0 %v4887
        %4955 = vmatprep.mubr.f32.mxu0 %v4762
        %4956 = vmatmul.mubr.f32.gmra.mrb[0].mxu0 %v4761
        %v4957 = vpop.f32.mrb[0].mxu0
        %v4958 = vadd.f32 0.0, %v4957
        %v4959 = vpop.f32.mrb[0].mxu0
        %v4960 = vadd.f32 0.0, %v4959
        %4961 = vdwg.mxu0
        %4962 = vmatprep.subr.mxu0 %v4766
        %4963 = vmatpush1.msra.mxu0 %v4765
        %4964 = vmatprep.subr.mxu0 %v4770
        %4965 = vmatpush1.msra.mxu0 %v4769
        %4966 = vmatprep.subr.mxu0 %v4774
        %4967 = vmatpush1.msra.mxu0 %v4773
        %4968 = vmatprep.subr.mxu0 %v4778
        %4969 = vmatpush1.msra.mxu0 %v4777
        %4970 = vmatprep.subr.mxu0 %v4782
        %4971 = vmatpush1.msra.mxu0 %v4781
        %4972 = vmatprep.subr.mxu0 %v4786
        %4973 = vmatpush1.msra.mxu0 %v4785
        %4974 = vmatprep.subr.mxu0 %v4790
        %4975 = vmatpush1.msra.mxu0 %v4789
        %4976 = vmatprep.subr.mxu0 %v4794
        %4977 = vmatpush1.msra.mxu0 %v4793
        %4978 = vmatprep.subr.mxu0 %v4798
        %4979 = vmatpush1.msra.mxu0 %v4797
        %4980 = vmatprep.subr.mxu0 %v4802
        %4981 = vmatpush1.msra.mxu0 %v4801
        %4982 = vmatprep.subr.mxu0 %v4806
        %4983 = vmatpush1.msra.mxu0 %v4805
        %4984 = vmatprep.subr.mxu0 %v4810
        %4985 = vmatpush1.msra.mxu0 %v4809
        %4986 = vmatprep.subr.mxu0 %v4814
        %4987 = vmatpush1.msra.mxu0 %v4813
        %4988 = vmatprep.subr.mxu0 %v4818
        %4989 = vmatpush1.msra.mxu0 %v4817
        %4990 = vmatprep.subr.mxu0 %v4822
        %4991 = vmatpush1.msra.mxu0 %v4821
        %4992 = vmatprep.subr.mxu0 %v4826
        %4993 = vmatpush1.msra.mxu0 %v4825
        %4994 = vmatprep.subr.mxu0 %v4830
        %4995 = vmatpush1.msra.mxu0 %v4829
        %4996 = vmatprep.subr.mxu0 %v4834
        %4997 = vmatpush1.msra.mxu0 %v4833
        %4998 = vmatprep.subr.mxu0 %v4838
        %4999 = vmatpush1.msra.mxu0 %v4837
        %5000 = vmatprep.subr.mxu0 %v4842
        %5001 = vmatpush1.msra.mxu0 %v4841
        %5002 = vmatprep.subr.mxu0 %v4846
        %5003 = vmatpush1.msra.mxu0 %v4845
        %5004 = vmatprep.subr.mxu0 %v4850
        %5005 = vmatpush1.msra.mxu0 %v4849
        %5006 = vmatprep.subr.mxu0 %v4854
        %5007 = vmatpush1.msra.mxu0 %v4853
        %5008 = vmatprep.subr.mxu0 %v4858
        %5009 = vmatpush1.msra.mxu0 %v4857
        %5010 = vmatprep.subr.mxu0 %v4862
        %5011 = vmatpush1.msra.mxu0 %v4861
        %5012 = vmatprep.subr.mxu0 %v4866
        %5013 = vmatpush1.msra.mxu0 %v4865
        %5014 = vmatprep.subr.mxu0 %v4870
        %5015 = vmatpush1.msra.mxu0 %v4869
        %5016 = vmatprep.subr.mxu0 %v4874
        %5017 = vmatpush1.msra.mxu0 %v4873
        %5018 = vmatprep.subr.mxu0 %v4878
        %5019 = vmatpush1.msra.mxu0 %v4877
        %5020 = vmatprep.subr.mxu0 %v4882
        %5021 = vmatpush1.msra.mxu0 %v4881
        %5022 = vmatprep.subr.mxu0 %v4886
        %5023 = vmatpush1.msra.mxu0 %v4885
        %5024 = vmatprep.subr.mxu0 %v4890
        %5025 = vmatpush1.msra.mxu0 %v4889
        %5026 = vmatprep.mubr.f32.mxu0 %v4762
        %5027 = vmatmul.mubr.f32.gmra.mrb[0].mxu0 %v4761
        %v5028 = vpop.f32.mrb[0].mxu0
        %v5029 = vadd.f32 0.0, %v5028
        %v5030 = vpop.f32.mrb[0].mxu0
        %v5031 = vadd.f32 0.0, %v5030
        %5032 = vdwg.mxu0
        %v5037 = vcombine.low %v4958, %v4960
        %v5038 = vcombine.low %v5029, %v5031
        %v5040 = vunpack.c.l.s4 1966171168
        %v5041 = vunpack.c.0.s8 %v5040
        %v5042 = vlaneseq
        %v5043 = vshrl.u32 %v5042, 7
        %v5044 = vsub.s32 %v5041, %v5043
        %v5045 = vrot.slane %v5037, %v5044
        %v5047 = vunpack.c.l.s4 1966171168
        %v5048 = vunpack.c.0.s8 %v5047
        %v5049 = vlaneseq
        %v5050 = vshrl.u32 %v5049, 7
        %v5051 = vsub.s32 %v5048, %v5050
        %v5052 = vrot.slane %v5038, %v5051
        %v5053 = vcombine.low %v5045, %v5052
        %v5055 = vunpack.c.l.s4 1966171168
        %v5056 = vunpack.c.0.s8 %v5055
        %v5057 = vlaneseq
        %v5058 = vshrl.u32 %v5057, 7
        %v5059 = vsub.s32 %v5056, %v5058
        %v5060 = vrot.slane %v5053, %v5059
        %v5062 = vadd.f32 %v4740, %v5060
        %v5063 = vmax.f32 %v5062, 0.0
        %v5064 = vld [vmem:[%s23] sm:$0xff]
        %v5065 = vld [vmem:[%s23 + $0x8] sm:$0xff]
        %v5066 = vld [vmem:[%s23 + $0x10] sm:$0xff]
        %v5067 = vld [vmem:[%s23 + $0x18] sm:$0xff]
        %v5068 = vld [vmem:[%s23 + $0x20] sm:$0xff]
        %v5069 = vld [vmem:[%s23 + $0x28] sm:$0xff]
        %v5070 = vld [vmem:[%s23 + $0x30] sm:$0xff]
        %v5071 = vld [vmem:[%s23 + $0x38] sm:$0xff]
        %v5072 = vld [vmem:[%s23 + $0x40] sm:$0xff]
        %v5073 = vld [vmem:[%s23 + $0x48] sm:$0xff]
        %v5074 = vld [vmem:[%s23 + $0x50] sm:$0xff]
        %v5075 = vld [vmem:[%s23 + $0x58] sm:$0xff]
        %v5076 = vld [vmem:[%s23 + $0x60] sm:$0xff]
        %v5077 = vld [vmem:[%s23 + $0x68] sm:$0xff]
        %v5078 = vld [vmem:[%s23 + $0x70] sm:$0xff]
        %v5079 = vld [vmem:[%s23 + $0x78] sm:$0xff]
        %v5080 = vld [vmem:[%s23 + $0x80] sm:$0xff]
        %v5081 = vld [vmem:[%s23 + $0x88] sm:$0xff]
        %v5082 = vld [vmem:[%s23 + $0x90] sm:$0xff]
        %v5083 = vld [vmem:[%s23 + $0x98] sm:$0xff]
        %v5084 = vld [vmem:[%s23 + $0xa0] sm:$0xff]
        %v5085 = vld [vmem:[%s23 + $0xa8] sm:$0xff]
        %v5086 = vld [vmem:[%s23 + $0xb0] sm:$0xff]
        %v5087 = vld [vmem:[%s23 + $0xb8] sm:$0xff]
        %v5088 = vld [vmem:[%s23 + $0xc0] sm:$0xff]
        %v5089 = vld [vmem:[%s23 + $0xc8] sm:$0xff]
        %v5090 = vld [vmem:[%s23 + $0xd0] sm:$0xff]
        %v5091 = vld [vmem:[%s23 + $0xd8] sm:$0xff]
        %v5092 = vld [vmem:[%s23 + $0xe0] sm:$0xff]
        %v5093 = vld [vmem:[%s23 + $0xe8] sm:$0xff]
        %v5094 = vld [vmem:[%s23 + $0xf0] sm:$0xff]
        %v5095 = vld [vmem:[%s23 + $0xf8] sm:$0xff]
        %v5096 = vld [vmem:[%s23 + $0x100] sm:$0xff]
        %v5097 = vld [vmem:[%s23 + $0x108] sm:$0xff]
        %v5098 = vld [vmem:[%s23 + $0x110] sm:$0xff]
        %v5099 = vld [vmem:[%s23 + $0x118] sm:$0xff]
        %v5100 = vld [vmem:[%s23 + $0x120] sm:$0xff]
        %v5101 = vld [vmem:[%s23 + $0x128] sm:$0xff]
        %v5102 = vld [vmem:[%s23 + $0x130] sm:$0xff]
        %v5103 = vld [vmem:[%s23 + $0x138] sm:$0xff]
        %v5104 = vld [vmem:[%s23 + $0x140] sm:$0xff]
        %v5105 = vld [vmem:[%s23 + $0x148] sm:$0xff]
        %v5106 = vld [vmem:[%s23 + $0x150] sm:$0xff]
        %v5107 = vld [vmem:[%s23 + $0x158] sm:$0xff]
        %v5108 = vld [vmem:[%s23 + $0x160] sm:$0xff]
        %v5109 = vld [vmem:[%s23 + $0x168] sm:$0xff]
        %v5110 = vld [vmem:[%s23 + $0x170] sm:$0xff]
        %v5111 = vld [vmem:[%s23 + $0x178] sm:$0xff]
        %v5112 = vld [vmem:[%s23 + $0x180] sm:$0xff]
        %v5113 = vld [vmem:[%s23 + $0x188] sm:$0xff]
        %v5114 = vld [vmem:[%s23 + $0x190] sm:$0xff]
        %v5115 = vld [vmem:[%s23 + $0x198] sm:$0xff]
        %v5116 = vld [vmem:[%s23 + $0x1a0] sm:$0xff]
        %v5117 = vld [vmem:[%s23 + $0x1a8] sm:$0xff]
        %v5118 = vld [vmem:[%s23 + $0x1b0] sm:$0xff]
        %v5119 = vld [vmem:[%s23 + $0x1b8] sm:$0xff]
        %v5120 = vld [vmem:[%s23 + $0x1c0] sm:$0xff]
        %v5121 = vld [vmem:[%s23 + $0x1c8] sm:$0xff]
        %v5122 = vld [vmem:[%s23 + $0x1d0] sm:$0xff]
        %v5123 = vld [vmem:[%s23 + $0x1d8] sm:$0xff]
        %v5124 = vld [vmem:[%s23 + $0x1e0] sm:$0xff]
        %v5125 = vld [vmem:[%s23 + $0x1e8] sm:$0xff]
        %v5126 = vld [vmem:[%s23 + $0x1f0] sm:$0xff]
        %v5127 = vld [vmem:[%s23 + $0x1f8] sm:$0xff]
        %v5128 = vld [vmem:[%s23 + $0x200] sm:$0xff]
        %v5129 = vld [vmem:[%s23 + $0x208] sm:$0xff]
        %v5130 = vld [vmem:[%s23 + $0x210] sm:$0xff]
        %v5131 = vld [vmem:[%s23 + $0x218] sm:$0xff]
        %v5132 = vld [vmem:[%s23 + $0x220] sm:$0xff]
        %v5133 = vld [vmem:[%s23 + $0x228] sm:$0xff]
        %v5134 = vld [vmem:[%s23 + $0x230] sm:$0xff]
        %v5135 = vld [vmem:[%s23 + $0x238] sm:$0xff]
        %v5136 = vld [vmem:[%s23 + $0x240] sm:$0xff]
        %v5137 = vld [vmem:[%s23 + $0x248] sm:$0xff]
        %v5138 = vld [vmem:[%s23 + $0x250] sm:$0xff]
        %v5139 = vld [vmem:[%s23 + $0x258] sm:$0xff]
        %v5140 = vld [vmem:[%s23 + $0x260] sm:$0xff]
        %v5141 = vld [vmem:[%s23 + $0x268] sm:$0xff]
        %v5142 = vld [vmem:[%s23 + $0x270] sm:$0xff]
        %v5143 = vld [vmem:[%s23 + $0x278] sm:$0xff]
        %v5144 = vld [vmem:[%s23 + $0x280] sm:$0xff]
        %v5145 = vld [vmem:[%s23 + $0x288] sm:$0xff]
        %v5146 = vld [vmem:[%s23 + $0x290] sm:$0xff]
        %v5147 = vld [vmem:[%s23 + $0x298] sm:$0xff]
        %v5148 = vld [vmem:[%s23 + $0x2a0] sm:$0xff]
        %v5149 = vld [vmem:[%s23 + $0x2a8] sm:$0xff]
        %v5150 = vld [vmem:[%s23 + $0x2b0] sm:$0xff]
        %v5151 = vld [vmem:[%s23 + $0x2b8] sm:$0xff]
        %v5152 = vld [vmem:[%s23 + $0x2c0] sm:$0xff]
        %v5153 = vld [vmem:[%s23 + $0x2c8] sm:$0xff]
        %v5154 = vld [vmem:[%s23 + $0x2d0] sm:$0xff]
        %v5155 = vld [vmem:[%s23 + $0x2d8] sm:$0xff]
        %v5156 = vld [vmem:[%s23 + $0x2e0] sm:$0xff]
        %v5157 = vld [vmem:[%s23 + $0x2e8] sm:$0xff]
        %v5158 = vld [vmem:[%s23 + $0x2f0] sm:$0xff]
        %v5159 = vld [vmem:[%s23 + $0x2f8] sm:$0xff]
        %v5160 = vld [vmem:[%s23 + $0x300] sm:$0xff]
        %v5161 = vld [vmem:[%s23 + $0x308] sm:$0xff]
        %v5162 = vld [vmem:[%s23 + $0x310] sm:$0xff]
        %v5163 = vld [vmem:[%s23 + $0x318] sm:$0xff]
        %v5164 = vld [vmem:[%s23 + $0x320] sm:$0xff]
        %v5165 = vld [vmem:[%s23 + $0x328] sm:$0xff]
        %v5166 = vld [vmem:[%s23 + $0x330] sm:$0xff]
        %v5167 = vld [vmem:[%s23 + $0x338] sm:$0xff]
        %v5168 = vld [vmem:[%s23 + $0x340] sm:$0xff]
        %v5169 = vld [vmem:[%s23 + $0x348] sm:$0xff]
        %v5170 = vld [vmem:[%s23 + $0x350] sm:$0xff]
        %v5171 = vld [vmem:[%s23 + $0x358] sm:$0xff]
        %v5172 = vld [vmem:[%s23 + $0x360] sm:$0xff]
        %v5173 = vld [vmem:[%s23 + $0x368] sm:$0xff]
        %v5174 = vld [vmem:[%s23 + $0x370] sm:$0xff]
        %v5175 = vld [vmem:[%s23 + $0x378] sm:$0xff]
        %v5176 = vld [vmem:[%s23 + $0x380] sm:$0xff]
        %v5177 = vld [vmem:[%s23 + $0x388] sm:$0xff]
        %v5178 = vld [vmem:[%s23 + $0x390] sm:$0xff]
        %v5179 = vld [vmem:[%s23 + $0x398] sm:$0xff]
        %v5180 = vld [vmem:[%s23 + $0x3a0] sm:$0xff]
        %v5181 = vld [vmem:[%s23 + $0x3a8] sm:$0xff]
        %v5182 = vld [vmem:[%s23 + $0x3b0] sm:$0xff]
        %v5183 = vld [vmem:[%s23 + $0x3b8] sm:$0xff]
        %v5184 = vld [vmem:[%s23 + $0x3c0] sm:$0xff]
        %v5185 = vld [vmem:[%s23 + $0x3c8] sm:$0xff]
        %v5186 = vld [vmem:[%s23 + $0x3d0] sm:$0xff]
        %v5187 = vld [vmem:[%s23 + $0x3d8] sm:$0xff]
        %v5188 = vld [vmem:[%s23 + $0x3e0] sm:$0xff]
        %v5189 = vld [vmem:[%s23 + $0x3e8] sm:$0xff]
        %v5190 = vld [vmem:[%s23 + $0x3f0] sm:$0xff]
        %v5191 = vld [vmem:[%s23 + $0x3f8] sm:$0xff]
        %v5192 = vld [vmem:[%s23 + $0x400] sm:$0xff]
        %v5193 = vld [vmem:[%s23 + $0x408] sm:$0xff]
        %v5194 = vld [vmem:[%s23 + $0x410] sm:$0xff]
        %v5195 = vld [vmem:[%s23 + $0x418] sm:$0xff]
        %v5196 = vld [vmem:[%s23 + $0x420] sm:$0xff]
        %v5197 = vld [vmem:[%s23 + $0x428] sm:$0xff]
        %v5198 = vld [vmem:[%s23 + $0x430] sm:$0xff]
        %v5199 = vld [vmem:[%s23 + $0x438] sm:$0xff]
        %v5200 = vld [vmem:[%s23 + $0x440] sm:$0xff]
        %v5201 = vld [vmem:[%s23 + $0x448] sm:$0xff]
        %v5202 = vld [vmem:[%s23 + $0x450] sm:$0xff]
        %v5203 = vld [vmem:[%s23 + $0x458] sm:$0xff]
        %v5204 = vld [vmem:[%s23 + $0x460] sm:$0xff]
        %v5205 = vld [vmem:[%s23 + $0x468] sm:$0xff]
        %v5206 = vld [vmem:[%s23 + $0x470] sm:$0xff]
        %v5207 = vld [vmem:[%s23 + $0x478] sm:$0xff]
        %v5208 = vld [vmem:[%s23 + $0x480] sm:$0xff]
        %v5209 = vld [vmem:[%s23 + $0x488] sm:$0xff]
        %v5210 = vld [vmem:[%s23 + $0x490] sm:$0xff]
        %v5211 = vld [vmem:[%s23 + $0x498] sm:$0xff]
        %v5212 = vld [vmem:[%s23 + $0x4a0] sm:$0xff]
        %v5213 = vld [vmem:[%s23 + $0x4a8] sm:$0xff]
        %v5214 = vld [vmem:[%s23 + $0x4b0] sm:$0xff]
        %v5215 = vld [vmem:[%s23 + $0x4b8] sm:$0xff]
        %v5216 = vld [vmem:[%s23 + $0x4c0] sm:$0xff]
        %v5217 = vld [vmem:[%s23 + $0x4c8] sm:$0xff]
        %v5218 = vld [vmem:[%s23 + $0x4d0] sm:$0xff]
        %v5219 = vld [vmem:[%s23 + $0x4d8] sm:$0xff]
        %v5220 = vld [vmem:[%s23 + $0x4e0] sm:$0xff]
        %v5221 = vld [vmem:[%s23 + $0x4e8] sm:$0xff]
        %v5222 = vld [vmem:[%s23 + $0x4f0] sm:$0xff]
        %v5223 = vld [vmem:[%s23 + $0x4f8] sm:$0xff]
        %v5224 = vld [vmem:[%s23 + $0x500] sm:$0xff]
        %v5225 = vld [vmem:[%s23 + $0x508] sm:$0xff]
        %v5226 = vld [vmem:[%s23 + $0x510] sm:$0xff]
        %v5227 = vld [vmem:[%s23 + $0x518] sm:$0xff]
        %v5228 = vld [vmem:[%s23 + $0x520] sm:$0xff]
        %v5229 = vld [vmem:[%s23 + $0x528] sm:$0xff]
        %v5230 = vld [vmem:[%s23 + $0x530] sm:$0xff]
        %v5231 = vld [vmem:[%s23 + $0x538] sm:$0xff]
        %v5232 = vld [vmem:[%s23 + $0x540] sm:$0xff]
        %v5233 = vld [vmem:[%s23 + $0x548] sm:$0xff]
        %v5234 = vld [vmem:[%s23 + $0x550] sm:$0xff]
        %v5235 = vld [vmem:[%s23 + $0x558] sm:$0xff]
        %v5236 = vld [vmem:[%s23 + $0x560] sm:$0xff]
        %v5237 = vld [vmem:[%s23 + $0x568] sm:$0xff]
        %v5238 = vld [vmem:[%s23 + $0x570] sm:$0xff]
        %v5239 = vld [vmem:[%s23 + $0x578] sm:$0xff]
        %v5240 = vld [vmem:[%s23 + $0x580] sm:$0xff]
        %v5241 = vld [vmem:[%s23 + $0x588] sm:$0xff]
        %v5242 = vld [vmem:[%s23 + $0x590] sm:$0xff]
        %v5243 = vld [vmem:[%s23 + $0x598] sm:$0xff]
        %v5244 = vld [vmem:[%s23 + $0x5a0] sm:$0xff]
        %v5245 = vld [vmem:[%s23 + $0x5a8] sm:$0xff]
        %v5246 = vld [vmem:[%s23 + $0x5b0] sm:$0xff]
        %v5247 = vld [vmem:[%s23 + $0x5b8] sm:$0xff]
        %v5248 = vld [vmem:[%s23 + $0x5c0] sm:$0xff]
        %v5249 = vld [vmem:[%s23 + $0x5c8] sm:$0xff]
        %v5250 = vld [vmem:[%s23 + $0x5d0] sm:$0xff]
        %v5251 = vld [vmem:[%s23 + $0x5d8] sm:$0xff]
        %v5252 = vld [vmem:[%s23 + $0x5e0] sm:$0xff]
        %v5253 = vld [vmem:[%s23 + $0x5e8] sm:$0xff]
        %v5254 = vld [vmem:[%s23 + $0x5f0] sm:$0xff]
        %v5255 = vld [vmem:[%s23 + $0x5f8] sm:$0xff]
        %v5256 = vld [vmem:[%s23 + $0x600] sm:$0xff]
        %v5257 = vld [vmem:[%s23 + $0x608] sm:$0xff]
        %v5258 = vld [vmem:[%s23 + $0x610] sm:$0xff]
        %v5259 = vld [vmem:[%s23 + $0x618] sm:$0xff]
        %v5260 = vld [vmem:[%s23 + $0x620] sm:$0xff]
        %v5261 = vld [vmem:[%s23 + $0x628] sm:$0xff]
        %v5262 = vld [vmem:[%s23 + $0x630] sm:$0xff]
        %v5263 = vld [vmem:[%s23 + $0x638] sm:$0xff]
        %v5264 = vld [vmem:[%s23 + $0x640] sm:$0xff]
        %v5265 = vld [vmem:[%s23 + $0x648] sm:$0xff]
        %v5266 = vld [vmem:[%s23 + $0x650] sm:$0xff]
        %v5267 = vld [vmem:[%s23 + $0x658] sm:$0xff]
        %v5268 = vld [vmem:[%s23 + $0x660] sm:$0xff]
        %v5269 = vld [vmem:[%s23 + $0x668] sm:$0xff]
        %v5270 = vld [vmem:[%s23 + $0x670] sm:$0xff]
        %v5271 = vld [vmem:[%s23 + $0x678] sm:$0xff]
        %v5272 = vld [vmem:[%s23 + $0x680] sm:$0xff]
        %v5273 = vld [vmem:[%s23 + $0x688] sm:$0xff]
        %v5274 = vld [vmem:[%s23 + $0x690] sm:$0xff]
        %v5275 = vld [vmem:[%s23 + $0x698] sm:$0xff]
        %v5276 = vld [vmem:[%s23 + $0x6a0] sm:$0xff]
        %v5277 = vld [vmem:[%s23 + $0x6a8] sm:$0xff]
        %v5278 = vld [vmem:[%s23 + $0x6b0] sm:$0xff]
        %v5279 = vld [vmem:[%s23 + $0x6b8] sm:$0xff]
        %v5280 = vld [vmem:[%s23 + $0x6c0] sm:$0xff]
        %v5281 = vld [vmem:[%s23 + $0x6c8] sm:$0xff]
        %v5282 = vld [vmem:[%s23 + $0x6d0] sm:$0xff]
        %v5283 = vld [vmem:[%s23 + $0x6d8] sm:$0xff]
        %v5284 = vld [vmem:[%s23 + $0x6e0] sm:$0xff]
        %v5285 = vld [vmem:[%s23 + $0x6e8] sm:$0xff]
        %v5286 = vld [vmem:[%s23 + $0x6f0] sm:$0xff]
        %v5287 = vld [vmem:[%s23 + $0x6f8] sm:$0xff]
        %v5288 = vld [vmem:[%s23 + $0x700] sm:$0xff]
        %v5289 = vld [vmem:[%s23 + $0x708] sm:$0xff]
        %v5290 = vld [vmem:[%s23 + $0x710] sm:$0xff]
        %v5291 = vld [vmem:[%s23 + $0x718] sm:$0xff]
        %v5292 = vld [vmem:[%s23 + $0x720] sm:$0xff]
        %v5293 = vld [vmem:[%s23 + $0x728] sm:$0xff]
        %v5294 = vld [vmem:[%s23 + $0x730] sm:$0xff]
        %v5295 = vld [vmem:[%s23 + $0x738] sm:$0xff]
        %v5296 = vld [vmem:[%s23 + $0x740] sm:$0xff]
        %v5297 = vld [vmem:[%s23 + $0x748] sm:$0xff]
        %v5298 = vld [vmem:[%s23 + $0x750] sm:$0xff]
        %v5299 = vld [vmem:[%s23 + $0x758] sm:$0xff]
        %v5300 = vld [vmem:[%s23 + $0x760] sm:$0xff]
        %v5301 = vld [vmem:[%s23 + $0x768] sm:$0xff]
        %v5302 = vld [vmem:[%s23 + $0x770] sm:$0xff]
        %v5303 = vld [vmem:[%s23 + $0x778] sm:$0xff]
        %v5304 = vld [vmem:[%s23 + $0x780] sm:$0xff]
        %v5305 = vld [vmem:[%s23 + $0x788] sm:$0xff]
        %v5306 = vld [vmem:[%s23 + $0x790] sm:$0xff]
        %v5307 = vld [vmem:[%s23 + $0x798] sm:$0xff]
        %v5308 = vld [vmem:[%s23 + $0x7a0] sm:$0xff]
        %v5309 = vld [vmem:[%s23 + $0x7a8] sm:$0xff]
        %v5310 = vld [vmem:[%s23 + $0x7b0] sm:$0xff]
        %v5311 = vld [vmem:[%s23 + $0x7b8] sm:$0xff]
        %v5312 = vld [vmem:[%s23 + $0x7c0] sm:$0xff]
        %v5313 = vld [vmem:[%s23 + $0x7c8] sm:$0xff]
        %v5314 = vld [vmem:[%s23 + $0x7d0] sm:$0xff]
        %v5315 = vld [vmem:[%s23 + $0x7d8] sm:$0xff]
        %v5316 = vld [vmem:[%s23 + $0x7e0] sm:$0xff]
        %v5317 = vld [vmem:[%s23 + $0x7e8] sm:$0xff]
        %v5318 = vld [vmem:[%s23 + $0x7f0] sm:$0xff]
        %v5319 = vld [vmem:[%s23 + $0x7f8] sm:$0xff]
        %v5320 = vld [vmem:[%s24] sm:$0xf]
        %v5322 = vlaneseq
        %v5323 = vshrl.u32 %v5322, 7
        %v5324 = vsub.s32 0, %v5323
        %v5325 = vrot.slane %v5063, %v5324
        %v5326 = vlaneseq
        %v5327 = vshrl.u32 %v5326, 7
        %v5328 = vsub.s32 1, %v5327
        %v5329 = vrot.slane %v5063, %v5328
        %v5330 = vlaneseq
        %v5331 = vshrl.u32 %v5330, 7
        %v5332 = vsub.s32 2, %v5331
        %v5333 = vrot.slane %v5063, %v5332
        %v5334 = vlaneseq
        %v5335 = vshrl.u32 %v5334, 7
        %v5336 = vsub.s32 3, %v5335
        %v5337 = vrot.slane %v5063, %v5336
        %v5343 = vlaneseq
        %v5344 = vshrl.u32 %v5343, 7
        %v5345 = vsub.s32 0, %v5344
        %v5346 = vrot.slane %v5320, %v5345
        %v5347 = vlaneseq
        %v5348 = vshrl.u32 %v5347, 7
        %v5349 = vsub.s32 1, %v5348
        %v5350 = vrot.slane %v5320, %v5349
        %v5351 = vlaneseq
        %v5352 = vshrl.u32 %v5351, 7
        %v5353 = vsub.s32 2, %v5352
        %v5354 = vrot.slane %v5320, %v5353
        %v5355 = vlaneseq
        %v5356 = vshrl.u32 %v5355, 7
        %v5357 = vsub.s32 3, %v5356
        %v5358 = vrot.slane %v5320, %v5357
        %5363 = vmatprep.subr.mxu0 %v5065
        %5364 = vmatpush1.msra.mxu0 %v5064
        %5365 = vmatprep.subr.mxu0 %v5069
        %5366 = vmatpush1.msra.mxu0 %v5068
        %5367 = vmatprep.subr.mxu0 %v5073
        %5368 = vmatpush1.msra.mxu0 %v5072
        %5369 = vmatprep.subr.mxu0 %v5077
        %5370 = vmatpush1.msra.mxu0 %v5076
        %5371 = vmatprep.subr.mxu0 %v5081
        %5372 = vmatpush1.msra.mxu0 %v5080
        %5373 = vmatprep.subr.mxu0 %v5085
        %5374 = vmatpush1.msra.mxu0 %v5084
        %5375 = vmatprep.subr.mxu0 %v5089
        %5376 = vmatpush1.msra.mxu0 %v5088
        %5377 = vmatprep.subr.mxu0 %v5093
        %5378 = vmatpush1.msra.mxu0 %v5092
        %5379 = vmatprep.subr.mxu0 %v5097
        %5380 = vmatpush1.msra.mxu0 %v5096
        %5381 = vmatprep.subr.mxu0 %v5101
        %5382 = vmatpush1.msra.mxu0 %v5100
        %5383 = vmatprep.subr.mxu0 %v5105
        %5384 = vmatpush1.msra.mxu0 %v5104
        %5385 = vmatprep.subr.mxu0 %v5109
        %5386 = vmatpush1.msra.mxu0 %v5108
        %5387 = vmatprep.subr.mxu0 %v5113
        %5388 = vmatpush1.msra.mxu0 %v5112
        %5389 = vmatprep.subr.mxu0 %v5117
        %5390 = vmatpush1.msra.mxu0 %v5116
        %5391 = vmatprep.subr.mxu0 %v5121
        %5392 = vmatpush1.msra.mxu0 %v5120
        %5393 = vmatprep.subr.mxu0 %v5125
        %5394 = vmatpush1.msra.mxu0 %v5124
        %5395 = vmatprep.subr.mxu0 %v5129
        %5396 = vmatpush1.msra.mxu0 %v5128
        %5397 = vmatprep.subr.mxu0 %v5133
        %5398 = vmatpush1.msra.mxu0 %v5132
        %5399 = vmatprep.subr.mxu0 %v5137
        %5400 = vmatpush1.msra.mxu0 %v5136
        %5401 = vmatprep.subr.mxu0 %v5141
        %5402 = vmatpush1.msra.mxu0 %v5140
        %5403 = vmatprep.subr.mxu0 %v5145
        %5404 = vmatpush1.msra.mxu0 %v5144
        %5405 = vmatprep.subr.mxu0 %v5149
        %5406 = vmatpush1.msra.mxu0 %v5148
        %5407 = vmatprep.subr.mxu0 %v5153
        %5408 = vmatpush1.msra.mxu0 %v5152
        %5409 = vmatprep.subr.mxu0 %v5157
        %5410 = vmatpush1.msra.mxu0 %v5156
        %5411 = vmatprep.subr.mxu0 %v5161
        %5412 = vmatpush1.msra.mxu0 %v5160
        %5413 = vmatprep.subr.mxu0 %v5165
        %5414 = vmatpush1.msra.mxu0 %v5164
        %5415 = vmatprep.subr.mxu0 %v5169
        %5416 = vmatpush1.msra.mxu0 %v5168
        %5417 = vmatprep.subr.mxu0 %v5173
        %5418 = vmatpush1.msra.mxu0 %v5172
        %5419 = vmatprep.subr.mxu0 %v5177
        %5420 = vmatpush1.msra.mxu0 %v5176
        %5421 = vmatprep.subr.mxu0 %v5181
        %5422 = vmatpush1.msra.mxu0 %v5180
        %5423 = vmatprep.subr.mxu0 %v5185
        %5424 = vmatpush1.msra.mxu0 %v5184
        %5425 = vmatprep.subr.mxu0 %v5189
        %5426 = vmatpush1.msra.mxu0 %v5188
        %5427 = vmatprep.mubr.f32.mxu0 %v5329
        %5428 = vmatmul.mubr.f32.gmra.mrb[0].mxu0 %v5325
        %v5429 = vpop.f32.mrb[0].mxu0
        %v5430 = vadd.f32 %v5346, %v5429
        %v5431 = vpop.f32.mrb[0].mxu0
        %v5432 = vadd.f32 %v5350, %v5431
        %5433 = vdwg.mxu0
        %5434 = vmatprep.subr.mxu0 %v5193
        %5435 = vmatpush1.msra.mxu0 %v5192
        %5436 = vmatprep.subr.mxu0 %v5197
        %5437 = vmatpush1.msra.mxu0 %v5196
        %5438 = vmatprep.subr.mxu0 %v5201
        %5439 = vmatpush1.msra.mxu0 %v5200
        %5440 = vmatprep.subr.mxu0 %v5205
        %5441 = vmatpush1.msra.mxu0 %v5204
        %5442 = vmatprep.subr.mxu0 %v5209
        %5443 = vmatpush1.msra.mxu0 %v5208
        %5444 = vmatprep.subr.mxu0 %v5213
        %5445 = vmatpush1.msra.mxu0 %v5212
        %5446 = vmatprep.subr.mxu0 %v5217
        %5447 = vmatpush1.msra.mxu0 %v5216
        %5448 = vmatprep.subr.mxu0 %v5221
        %5449 = vmatpush1.msra.mxu0 %v5220
        %5450 = vmatprep.subr.mxu0 %v5225
        %5451 = vmatpush1.msra.mxu0 %v5224
        %5452 = vmatprep.subr.mxu0 %v5229
        %5453 = vmatpush1.msra.mxu0 %v5228
        %5454 = vmatprep.subr.mxu0 %v5233
        %5455 = vmatpush1.msra.mxu0 %v5232
        %5456 = vmatprep.subr.mxu0 %v5237
        %5457 = vmatpush1.msra.mxu0 %v5236
        %5458 = vmatprep.subr.mxu0 %v5241
        %5459 = vmatpush1.msra.mxu0 %v5240
        %5460 = vmatprep.subr.mxu0 %v5245
        %5461 = vmatpush1.msra.mxu0 %v5244
        %5462 = vmatprep.subr.mxu0 %v5249
        %5463 = vmatpush1.msra.mxu0 %v5248
        %5464 = vmatprep.subr.mxu0 %v5253
        %5465 = vmatpush1.msra.mxu0 %v5252
        %5466 = vmatprep.subr.mxu0 %v5257
        %5467 = vmatpush1.msra.mxu0 %v5256
        %5468 = vmatprep.subr.mxu0 %v5261
        %5469 = vmatpush1.msra.mxu0 %v5260
        %5470 = vmatprep.subr.mxu0 %v5265
        %5471 = vmatpush1.msra.mxu0 %v5264
        %5472 = vmatprep.subr.mxu0 %v5269
        %5473 = vmatpush1.msra.mxu0 %v5268
        %5474 = vmatprep.subr.mxu0 %v5273
        %5475 = vmatpush1.msra.mxu0 %v5272
        %5476 = vmatprep.subr.mxu0 %v5277
        %5477 = vmatpush1.msra.mxu0 %v5276
        %5478 = vmatprep.subr.mxu0 %v5281
        %5479 = vmatpush1.msra.mxu0 %v5280
        %5480 = vmatprep.subr.mxu0 %v5285
        %5481 = vmatpush1.msra.mxu0 %v5284
        %5482 = vmatprep.subr.mxu0 %v5289
        %5483 = vmatpush1.msra.mxu0 %v5288
        %5484 = vmatprep.subr.mxu0 %v5293
        %5485 = vmatpush1.msra.mxu0 %v5292
        %5486 = vmatprep.subr.mxu0 %v5297
        %5487 = vmatpush1.msra.mxu0 %v5296
        %5488 = vmatprep.subr.mxu0 %v5301
        %5489 = vmatpush1.msra.mxu0 %v5300
        %5490 = vmatprep.subr.mxu0 %v5305
        %5491 = vmatpush1.msra.mxu0 %v5304
        %5492 = vmatprep.subr.mxu0 %v5309
        %5493 = vmatpush1.msra.mxu0 %v5308
        %5494 = vmatprep.subr.mxu0 %v5313
        %5495 = vmatpush1.msra.mxu0 %v5312
        %5496 = vmatprep.subr.mxu0 %v5317
        %5497 = vmatpush1.msra.mxu0 %v5316
        %5498 = vmatprep.mubr.f32.mxu0 %v5337
        %5499 = vmatmul.mubr.f32.gmra.mrb[0].mxu0 %v5333
        %v5500 = vpop.f32.mrb[0].mxu0
        %v5501 = vadd.f32 %v5430, %v5500
        %v5502 = vpop.f32.mrb[0].mxu0
        %v5503 = vadd.f32 %v5432, %v5502
        %5504 = vdwg.mxu0
        %5505 = vmatprep.subr.mxu0 %v5067
        %5506 = vmatpush1.msra.mxu0 %v5066
        %5507 = vmatprep.subr.mxu0 %v5071
        %5508 = vmatpush1.msra.mxu0 %v5070
        %5509 = vmatprep.subr.mxu0 %v5075
        %5510 = vmatpush1.msra.mxu0 %v5074
        %5511 = vmatprep.subr.mxu0 %v5079
        %5512 = vmatpush1.msra.mxu0 %v5078
        %5513 = vmatprep.subr.mxu0 %v5083
        %5514 = vmatpush1.msra.mxu0 %v5082
        %5515 = vmatprep.subr.mxu0 %v5087
        %5516 = vmatpush1.msra.mxu0 %v5086
        %5517 = vmatprep.subr.mxu0 %v5091
        %5518 = vmatpush1.msra.mxu0 %v5090
        %5519 = vmatprep.subr.mxu0 %v5095
        %5520 = vmatpush1.msra.mxu0 %v5094
        %5521 = vmatprep.subr.mxu0 %v5099
        %5522 = vmatpush1.msra.mxu0 %v5098
        %5523 = vmatprep.subr.mxu0 %v5103
        %5524 = vmatpush1.msra.mxu0 %v5102
        %5525 = vmatprep.subr.mxu0 %v5107
        %5526 = vmatpush1.msra.mxu0 %v5106
        %5527 = vmatprep.subr.mxu0 %v5111
        %5528 = vmatpush1.msra.mxu0 %v5110
        %5529 = vmatprep.subr.mxu0 %v5115
        %5530 = vmatpush1.msra.mxu0 %v5114
        %5531 = vmatprep.subr.mxu0 %v5119
        %5532 = vmatpush1.msra.mxu0 %v5118
        %5533 = vmatprep.subr.mxu0 %v5123
        %5534 = vmatpush1.msra.mxu0 %v5122
        %5535 = vmatprep.subr.mxu0 %v5127
        %5536 = vmatpush1.msra.mxu0 %v5126
        %5537 = vmatprep.subr.mxu0 %v5131
        %5538 = vmatpush1.msra.mxu0 %v5130
        %5539 = vmatprep.subr.mxu0 %v5135
        %5540 = vmatpush1.msra.mxu0 %v5134
        %5541 = vmatprep.subr.mxu0 %v5139
        %5542 = vmatpush1.msra.mxu0 %v5138
        %5543 = vmatprep.subr.mxu0 %v5143
        %5544 = vmatpush1.msra.mxu0 %v5142
        %5545 = vmatprep.subr.mxu0 %v5147
        %5546 = vmatpush1.msra.mxu0 %v5146
        %5547 = vmatprep.subr.mxu0 %v5151
        %5548 = vmatpush1.msra.mxu0 %v5150
        %5549 = vmatprep.subr.mxu0 %v5155
        %5550 = vmatpush1.msra.mxu0 %v5154
        %5551 = vmatprep.subr.mxu0 %v5159
        %5552 = vmatpush1.msra.mxu0 %v5158
        %5553 = vmatprep.subr.mxu0 %v5163
        %5554 = vmatpush1.msra.mxu0 %v5162
        %5555 = vmatprep.subr.mxu0 %v5167
        %5556 = vmatpush1.msra.mxu0 %v5166
        %5557 = vmatprep.subr.mxu0 %v5171
        %5558 = vmatpush1.msra.mxu0 %v5170
        %5559 = vmatprep.subr.mxu0 %v5175
        %5560 = vmatpush1.msra.mxu0 %v5174
        %5561 = vmatprep.subr.mxu0 %v5179
        %5562 = vmatpush1.msra.mxu0 %v5178
        %5563 = vmatprep.subr.mxu0 %v5183
        %5564 = vmatpush1.msra.mxu0 %v5182
        %5565 = vmatprep.subr.mxu0 %v5187
        %5566 = vmatpush1.msra.mxu0 %v5186
        %5567 = vmatprep.subr.mxu0 %v5191
        %5568 = vmatpush1.msra.mxu0 %v5190
        %5569 = vmatprep.mubr.f32.mxu0 %v5329
        %5570 = vmatmul.mubr.f32.gmra.mrb[0].mxu0 %v5325
        %v5571 = vpop.f32.mrb[0].mxu0
        %v5572 = vadd.f32 %v5354, %v5571
        %v5573 = vpop.f32.mrb[0].mxu0
        %v5574 = vadd.f32 %v5358, %v5573
        %5575 = vdwg.mxu0
        %5576 = vmatprep.subr.mxu0 %v5195
        %5577 = vmatpush1.msra.mxu0 %v5194
        %5578 = vmatprep.subr.mxu0 %v5199
        %5579 = vmatpush1.msra.mxu0 %v5198
        %5580 = vmatprep.subr.mxu0 %v5203
        %5581 = vmatpush1.msra.mxu0 %v5202
        %5582 = vmatprep.subr.mxu0 %v5207
        %5583 = vmatpush1.msra.mxu0 %v5206
        %5584 = vmatprep.subr.mxu0 %v5211
        %5585 = vmatpush1.msra.mxu0 %v5210
        %5586 = vmatprep.subr.mxu0 %v5215
        %5587 = vmatpush1.msra.mxu0 %v5214
        %5588 = vmatprep.subr.mxu0 %v5219
        %5589 = vmatpush1.msra.mxu0 %v5218
        %5590 = vmatprep.subr.mxu0 %v5223
        %5591 = vmatpush1.msra.mxu0 %v5222
        %5592 = vmatprep.subr.mxu0 %v5227
        %5593 = vmatpush1.msra.mxu0 %v5226
        %5594 = vmatprep.subr.mxu0 %v5231
        %5595 = vmatpush1.msra.mxu0 %v5230
        %5596 = vmatprep.subr.mxu0 %v5235
        %5597 = vmatpush1.msra.mxu0 %v5234
        %5598 = vmatprep.subr.mxu0 %v5239
        %5599 = vmatpush1.msra.mxu0 %v5238
        %5600 = vmatprep.subr.mxu0 %v5243
        %5601 = vmatpush1.msra.mxu0 %v5242
        %5602 = vmatprep.subr.mxu0 %v5247
        %5603 = vmatpush1.msra.mxu0 %v5246
        %5604 = vmatprep.subr.mxu0 %v5251
        %5605 = vmatpush1.msra.mxu0 %v5250
        %5606 = vmatprep.subr.mxu0 %v5255
        %5607 = vmatpush1.msra.mxu0 %v5254
        %5608 = vmatprep.subr.mxu0 %v5259
        %5609 = vmatpush1.msra.mxu0 %v5258
        %5610 = vmatprep.subr.mxu0 %v5263
        %5611 = vmatpush1.msra.mxu0 %v5262
        %5612 = vmatprep.subr.mxu0 %v5267
        %5613 = vmatpush1.msra.mxu0 %v5266
        %5614 = vmatprep.subr.mxu0 %v5271
        %5615 = vmatpush1.msra.mxu0 %v5270
        %5616 = vmatprep.subr.mxu0 %v5275
        %5617 = vmatpush1.msra.mxu0 %v5274
        %5618 = vmatprep.subr.mxu0 %v5279
        %5619 = vmatpush1.msra.mxu0 %v5278
        %5620 = vmatprep.subr.mxu0 %v5283
        %5621 = vmatpush1.msra.mxu0 %v5282
        %5622 = vmatprep.subr.mxu0 %v5287
        %5623 = vmatpush1.msra.mxu0 %v5286
        %5624 = vmatprep.subr.mxu0 %v5291
        %5625 = vmatpush1.msra.mxu0 %v5290
        %5626 = vmatprep.subr.mxu0 %v5295
        %5627 = vmatpush1.msra.mxu0 %v5294
        %5628 = vmatprep.subr.mxu0 %v5299
        %5629 = vmatpush1.msra.mxu0 %v5298
        %5630 = vmatprep.subr.mxu0 %v5303
        %5631 = vmatpush1.msra.mxu0 %v5302
        %5632 = vmatprep.subr.mxu0 %v5307
        %5633 = vmatpush1.msra.mxu0 %v5306
        %5634 = vmatprep.subr.mxu0 %v5311
        %5635 = vmatpush1.msra.mxu0 %v5310
        %5636 = vmatprep.subr.mxu0 %v5315
        %5637 = vmatpush1.msra.mxu0 %v5314
        %5638 = vmatprep.subr.mxu0 %v5319
        %5639 = vmatpush1.msra.mxu0 %v5318
        %5640 = vmatprep.mubr.f32.mxu0 %v5337
        %5641 = vmatmul.mubr.f32.gmra.mrb[0].mxu0 %v5333
        %v5642 = vpop.f32.mrb[0].mxu0
        %v5643 = vadd.f32 %v5572, %v5642
        %v5644 = vpop.f32.mrb[0].mxu0
        %v5645 = vadd.f32 %v5574, %v5644
        %5646 = vdwg.mxu0
        %v5647 = vmax.f32 %v5501, 0.0
        %v5648 = vmax.f32 %v5503, 0.0
        %v5649 = vmax.f32 %v5643, 0.0
        %v5650 = vmax.f32 %v5645, 0.0
        %v5651 = vld [vmem:[%s25] sm:$0xff]
        %v5652 = vld [vmem:[%s25 + $0x8] sm:$0xff]
        %v5653 = vld [vmem:[%s25 + $0x10] sm:$0xff]
        %v5654 = vld [vmem:[%s25 + $0x18] sm:$0xff]
        %v5655 = vld [vmem:[%s25 + $0x20] sm:$0xff]
        %v5656 = vld [vmem:[%s25 + $0x28] sm:$0xff]
        %v5657 = vld [vmem:[%s25 + $0x30] sm:$0xff]
        %v5658 = vld [vmem:[%s25 + $0x38] sm:$0xff]
        %v5659 = vld [vmem:[%s25 + $0x40] sm:$0xff]
        %v5660 = vld [vmem:[%s25 + $0x48] sm:$0xff]
        %v5661 = vld [vmem:[%s25 + $0x50] sm:$0xff]
        %v5662 = vld [vmem:[%s25 + $0x58] sm:$0xff]
        %v5663 = vld [vmem:[%s25 + $0x60] sm:$0xff]
        %v5664 = vld [vmem:[%s25 + $0x68] sm:$0xff]
        %v5665 = vld [vmem:[%s25 + $0x70] sm:$0xff]
        %v5666 = vld [vmem:[%s25 + $0x78] sm:$0xff]
        %v5667 = vld [vmem:[%s25 + $0x80] sm:$0xff]
        %v5668 = vld [vmem:[%s25 + $0x88] sm:$0xff]
        %v5669 = vld [vmem:[%s25 + $0x90] sm:$0xff]
        %v5670 = vld [vmem:[%s25 + $0x98] sm:$0xff]
        %v5671 = vld [vmem:[%s25 + $0xa0] sm:$0xff]
        %v5672 = vld [vmem:[%s25 + $0xa8] sm:$0xff]
        %v5673 = vld [vmem:[%s25 + $0xb0] sm:$0xff]
        %v5674 = vld [vmem:[%s25 + $0xb8] sm:$0xff]
        %v5675 = vld [vmem:[%s25 + $0xc0] sm:$0xff]
        %v5676 = vld [vmem:[%s25 + $0xc8] sm:$0xff]
        %v5677 = vld [vmem:[%s25 + $0xd0] sm:$0xff]
        %v5678 = vld [vmem:[%s25 + $0xd8] sm:$0xff]
        %v5679 = vld [vmem:[%s25 + $0xe0] sm:$0xff]
        %v5680 = vld [vmem:[%s25 + $0xe8] sm:$0xff]
        %v5681 = vld [vmem:[%s25 + $0xf0] sm:$0xff]
        %v5682 = vld [vmem:[%s25 + $0xf8] sm:$0xff]
        %v5683 = vld [vmem:[%s25 + $0x100] sm:$0xff]
        %v5684 = vld [vmem:[%s25 + $0x108] sm:$0xff]
        %v5685 = vld [vmem:[%s25 + $0x110] sm:$0xff]
        %v5686 = vld [vmem:[%s25 + $0x118] sm:$0xff]
        %v5687 = vld [vmem:[%s25 + $0x120] sm:$0xff]
        %v5688 = vld [vmem:[%s25 + $0x128] sm:$0xff]
        %v5689 = vld [vmem:[%s25 + $0x130] sm:$0xff]
        %v5690 = vld [vmem:[%s25 + $0x138] sm:$0xff]
        %v5691 = vld [vmem:[%s25 + $0x140] sm:$0xff]
        %v5692 = vld [vmem:[%s25 + $0x148] sm:$0xff]
        %v5693 = vld [vmem:[%s25 + $0x150] sm:$0xff]
        %v5694 = vld [vmem:[%s25 + $0x158] sm:$0xff]
        %v5695 = vld [vmem:[%s25 + $0x160] sm:$0xff]
        %v5696 = vld [vmem:[%s25 + $0x168] sm:$0xff]
        %v5697 = vld [vmem:[%s25 + $0x170] sm:$0xff]
        %v5698 = vld [vmem:[%s25 + $0x178] sm:$0xff]
        %v5699 = vld [vmem:[%s25 + $0x180] sm:$0xff]
        %v5700 = vld [vmem:[%s25 + $0x188] sm:$0xff]
        %v5701 = vld [vmem:[%s25 + $0x190] sm:$0xff]
        %v5702 = vld [vmem:[%s25 + $0x198] sm:$0xff]
        %v5703 = vld [vmem:[%s25 + $0x1a0] sm:$0xff]
        %v5704 = vld [vmem:[%s25 + $0x1a8] sm:$0xff]
        %v5705 = vld [vmem:[%s25 + $0x1b0] sm:$0xff]
        %v5706 = vld [vmem:[%s25 + $0x1b8] sm:$0xff]
        %v5707 = vld [vmem:[%s25 + $0x1c0] sm:$0xff]
        %v5708 = vld [vmem:[%s25 + $0x1c8] sm:$0xff]
        %v5709 = vld [vmem:[%s25 + $0x1d0] sm:$0xff]
        %v5710 = vld [vmem:[%s25 + $0x1d8] sm:$0xff]
        %v5711 = vld [vmem:[%s25 + $0x1e0] sm:$0xff]
        %v5712 = vld [vmem:[%s25 + $0x1e8] sm:$0xff]
        %v5713 = vld [vmem:[%s25 + $0x1f0] sm:$0xff]
        %v5714 = vld [vmem:[%s25 + $0x1f8] sm:$0xff]
        %v5715 = vld [vmem:[%s26] sm:$0x1]
        %5716 = vmatprep.subr.mxu0 0.0
        %5717 = vmatpush1.msra.mxu0 %v5651
        %5718 = vmatprep.subr.mxu0 0.0
        %5719 = vmatpush1.msra.mxu0 %v5652
        %5720 = vmatprep.subr.mxu0 0.0
        %5721 = vmatpush1.msra.mxu0 %v5653
        %5722 = vmatprep.subr.mxu0 0.0
        %5723 = vmatpush1.msra.mxu0 %v5654
        %5724 = vmatprep.subr.mxu0 0.0
        %5725 = vmatpush1.msra.mxu0 %v5655
        %5726 = vmatprep.subr.mxu0 0.0
        %5727 = vmatpush1.msra.mxu0 %v5656
        %5728 = vmatprep.subr.mxu0 0.0
        %5729 = vmatpush1.msra.mxu0 %v5657
        %5730 = vmatprep.subr.mxu0 0.0
        %5731 = vmatpush1.msra.mxu0 %v5658
        %5732 = vmatprep.subr.mxu0 0.0
        %5733 = vmatpush1.msra.mxu0 %v5659
        %5734 = vmatprep.subr.mxu0 0.0
        %5735 = vmatpush1.msra.mxu0 %v5660
        %5736 = vmatprep.subr.mxu0 0.0
        %5737 = vmatpush1.msra.mxu0 %v5661
        %5738 = vmatprep.subr.mxu0 0.0
        %5739 = vmatpush1.msra.mxu0 %v5662
        %5740 = vmatprep.subr.mxu0 0.0
        %5741 = vmatpush1.msra.mxu0 %v5663
        %5742 = vmatprep.subr.mxu0 0.0
        %5743 = vmatpush1.msra.mxu0 %v5664
        %5744 = vmatprep.subr.mxu0 0.0
        %5745 = vmatpush1.msra.mxu0 %v5665
        %5746 = vmatprep.subr.mxu0 0.0
        %5747 = vmatpush1.msra.mxu0 %v5666
        %5748 = vmatprep.subr.mxu0 0.0
        %5749 = vmatpush1.msra.mxu0 %v5667
        %5750 = vmatprep.subr.mxu0 0.0
        %5751 = vmatpush1.msra.mxu0 %v5668
        %5752 = vmatprep.subr.mxu0 0.0
        %5753 = vmatpush1.msra.mxu0 %v5669
        %5754 = vmatprep.subr.mxu0 0.0
        %5755 = vmatpush1.msra.mxu0 %v5670
        %5756 = vmatprep.subr.mxu0 0.0
        %5757 = vmatpush1.msra.mxu0 %v5671
        %5758 = vmatprep.subr.mxu0 0.0
        %5759 = vmatpush1.msra.mxu0 %v5672
        %5760 = vmatprep.subr.mxu0 0.0
        %5761 = vmatpush1.msra.mxu0 %v5673
        %5762 = vmatprep.subr.mxu0 0.0
        %5763 = vmatpush1.msra.mxu0 %v5674
        %5764 = vmatprep.subr.mxu0 0.0
        %5765 = vmatpush1.msra.mxu0 %v5675
        %5766 = vmatprep.subr.mxu0 0.0
        %5767 = vmatpush1.msra.mxu0 %v5676
        %5768 = vmatprep.subr.mxu0 0.0
        %5769 = vmatpush1.msra.mxu0 %v5677
        %5770 = vmatprep.subr.mxu0 0.0
        %5771 = vmatpush1.msra.mxu0 %v5678
        %5772 = vmatprep.subr.mxu0 0.0
        %5773 = vmatpush1.msra.mxu0 %v5679
        %5774 = vmatprep.subr.mxu0 0.0
        %5775 = vmatpush1.msra.mxu0 %v5680
        %5776 = vmatprep.subr.mxu0 0.0
        %5777 = vmatpush1.msra.mxu0 %v5681
        %5778 = vmatprep.subr.mxu0 0.0
        %5779 = vmatpush1.msra.mxu0 %v5682
        %5780 = vmatprep.mubr.f32.mxu0 %v5648
        %5781 = vmatmul.mubr.f32.gmra.mrb[0].mxu0 %v5647
        %v5782 = vpop.f32.mrb[0].mxu0
        %v5783 = vadd.f32 %v5715, %v5782
        %v5784 = vpop.f32.mrb[0].mxu0
        %5785 = vdwg.mxu0
        %5786 = vmatprep.subr.mxu0 0.0
        %5787 = vmatpush1.msra.mxu0 %v5683
        %5788 = vmatprep.subr.mxu0 0.0
        %5789 = vmatpush1.msra.mxu0 %v5684
        %5790 = vmatprep.subr.mxu0 0.0
        %5791 = vmatpush1.msra.mxu0 %v5685
        %5792 = vmatprep.subr.mxu0 0.0
        %5793 = vmatpush1.msra.mxu0 %v5686
        %5794 = vmatprep.subr.mxu0 0.0
        %5795 = vmatpush1.msra.mxu0 %v5687
        %5796 = vmatprep.subr.mxu0 0.0
        %5797 = vmatpush1.msra.mxu0 %v5688
        %5798 = vmatprep.subr.mxu0 0.0
        %5799 = vmatpush1.msra.mxu0 %v5689
        %5800 = vmatprep.subr.mxu0 0.0
        %5801 = vmatpush1.msra.mxu0 %v5690
        %5802 = vmatprep.subr.mxu0 0.0
        %5803 = vmatpush1.msra.mxu0 %v5691
        %5804 = vmatprep.subr.mxu0 0.0
        %5805 = vmatpush1.msra.mxu0 %v5692
        %5806 = vmatprep.subr.mxu0 0.0
        %5807 = vmatpush1.msra.mxu0 %v5693
        %5808 = vmatprep.subr.mxu0 0.0
        %5809 = vmatpush1.msra.mxu0 %v5694
        %5810 = vmatprep.subr.mxu0 0.0
        %5811 = vmatpush1.msra.mxu0 %v5695
        %5812 = vmatprep.subr.mxu0 0.0
        %5813 = vmatpush1.msra.mxu0 %v5696
        %5814 = vmatprep.subr.mxu0 0.0
        %5815 = vmatpush1.msra.mxu0 %v5697
        %5816 = vmatprep.subr.mxu0 0.0
        %5817 = vmatpush1.msra.mxu0 %v5698
        %5818 = vmatprep.subr.mxu0 0.0
        %5819 = vmatpush1.msra.mxu0 %v5699
        %5820 = vmatprep.subr.mxu0 0.0
        %5821 = vmatpush1.msra.mxu0 %v5700
        %5822 = vmatprep.subr.mxu0 0.0
        %5823 = vmatpush1.msra.mxu0 %v5701
        %5824 = vmatprep.subr.mxu0 0.0
        %5825 = vmatpush1.msra.mxu0 %v5702
        %5826 = vmatprep.subr.mxu0 0.0
        %5827 = vmatpush1.msra.mxu0 %v5703
        %5828 = vmatprep.subr.mxu0 0.0
        %5829 = vmatpush1.msra.mxu0 %v5704
        %5830 = vmatprep.subr.mxu0 0.0
        %5831 = vmatpush1.msra.mxu0 %v5705
        %5832 = vmatprep.subr.mxu0 0.0
        %5833 = vmatpush1.msra.mxu0 %v5706
        %5834 = vmatprep.subr.mxu0 0.0
        %5835 = vmatpush1.msra.mxu0 %v5707
        %5836 = vmatprep.subr.mxu0 0.0
        %5837 = vmatpush1.msra.mxu0 %v5708
        %5838 = vmatprep.subr.mxu0 0.0
        %5839 = vmatpush1.msra.mxu0 %v5709
        %5840 = vmatprep.subr.mxu0 0.0
        %5841 = vmatpush1.msra.mxu0 %v5710
        %5842 = vmatprep.subr.mxu0 0.0
        %5843 = vmatpush1.msra.mxu0 %v5711
        %5844 = vmatprep.subr.mxu0 0.0
        %5845 = vmatpush1.msra.mxu0 %v5712
        %5846 = vmatprep.subr.mxu0 0.0
        %5847 = vmatpush1.msra.mxu0 %v5713
        %5848 = vmatprep.subr.mxu0 0.0
        %5849 = vmatpush1.msra.mxu0 %v5714
        %5850 = vmatprep.mubr.f32.mxu0 %v5650
        %5851 = vmatmul.mubr.f32.gmra.mrb[0].mxu0 %v5649
        %v5852 = vpop.f32.mrb[0].mxu0
        %v5853 = vadd.f32 %v5783, %v5852
        %v5854 = vpop.f32.mrb[0].mxu0
        %5855 = vdwg.mxu0
        %vm5856 = vcmask 73728
        %5857 = vst.msk [vmem:[%s810] sm:$0x1] %vm5856, %v5853
        %s5858 = sand.u32 %s621, 1
        %s5859 = scalar_lea.sflag [#allocation7], %s5858
        %s5860 = sand.u32 %s621, 1
        %s5861 = scalar_lea.vmem [#allocation6], %s5860
        // Predicated region
        $region129: #{multi_scale_cnn_forward.1} parent=127 // pred_check
          %p5862 = pneg %p631
        $region130: #{multi_scale_cnn_forward.1} parent=127 // pred_check_branch
          %5864 = sbr.rel (%p5862) target = $region132
        $region131: #{multi_scale_cnn_forward.1} parent=127 // pred_region
          %s5866 = ssub.s32 16, 16
          %5867 = vsyncadd %s5859, %s5866
          %s5868 = smul.addr %s41, 16
          %s5869 = scalar_lea.hbm %s27, %s5868
          %s5871 = sshll.u32 %s5861, 4
          %s5872 = int_to_ptr.vmem [resolvable:$true] %s5871
          %5874 = dma.vmem_to_hbm [thread:$0]  %s5872, 16, %s5869, %s5859
        $region132: #{multi_scale_cnn_forward.1} parent=127 // pred_fallthru
          _
      $region128: #{multi_scale_cnn_forward.1} parent=5 // pred_fallthru
        _
      %p5875 = scmp.le.s32.totalorder 2, %s36
      // Predicated region
      $region133: #{multi_scale_cnn_forward.1} parent=5 // pred_check
        %p5876 = pneg %p5875
      $region134: #{multi_scale_cnn_forward.1} parent=5 // pred_check_branch
        %5878 = sbr.rel (%p5876) target = $region136
      $region135: #{multi_scale_cnn_forward.1} parent=5 // pred_region
        %s5879 = ssub.s32 %s36, 2
        // Predicated region
        $region137: #{multi_scale_cnn_forward.1} parent=135 // pred_check
          %p5880 = pneg %p637
        $region138: #{multi_scale_cnn_forward.1} parent=135 // pred_check_branch
          %5882 = sbr.rel (%p5880) target = $region140
        $region139: #{multi_scale_cnn_forward.1} parent=135 // pred_region
          %s5883 = sand.u32 %s622, 1
          %s5884 = scalar_lea.sflag [#allocation7], %s5883
          %s5885 = sand.u32 %s622, 1
          %s5886 = scalar_lea.vmem [#allocation6], %s5885
          %5887 = dma.done %s5884, 16
        $region140: #{multi_scale_cnn_forward.1} parent=135 // pred_fallthru
          _
      $region136: #{multi_scale_cnn_forward.1} parent=5 // pred_fallthru
        _
    $region6: #{multi_scale_cnn_forward.1} parent=1 // loop_footer
      %s40 = sadd.s32 1, %s36
    $region7: #{multi_scale_cnn_forward.1} parent=1 // loop_footer_branch
      %35 = sbr.rel target = $region3
    $region8: #{multi_scale_cnn_forward.1} parent=1 // loop_exit
      _
    %5888 = vsyncpa [#allocation7], 1
    %s5889 = scalar_lea.sflag [#allocation7], 1
    %5890 = vsyncpa %s5889, 1

</llo_original>
